<compile_context>
chip_gen: v6e
topology: v6e:2x2x1
jax: 0.10.0
libtpu: 0.0.40
codegen_flags: <defaults>
</compile_context>

<pallas_src>
import math
import functools
import numpy as np
import jax
import jax.numpy as jnp
from jax import lax
from jax.experimental import pallas as pl
from jax.experimental.pallas import tpu as pltpu

# Flip to True on v6e/v7x to run the projection / wavelet matmuls with bf16 operands
# (f32 accumulation on the MXU).  Default False keeps the reference float32 numerics.
USE_BF16_MATMUL = False


# ----------------------------------------------------------------------------
# Legendre multiwavelet filters (numpy; mirrors get_filter('legendre', k))
# ----------------------------------------------------------------------------
def _legendre_mono(n):
    c = np.zeros(n + 1)
    c[n] = 1.0
    return np.polynomial.legendre.leg2poly(c)  # ascending monomial coeffs


def _compose(p_asc, q_asc):
    # p(q(x)) via Horner, ascending monomial coeffs
    P = np.polynomial.polynomial
    res = np.array([p_asc[-1]], dtype=np.float64)
    for cc in p_asc[-2::-1]:
        res = P.polyadd(P.polymul(res, q_asc), np.array([cc], dtype=np.float64))
    return res


def _shifted_legendre(n, a, b):
    comp = _compose(_legendre_mono(n), np.array([b, a], dtype=np.float64))
    out = np.zeros(n + 1)
    out[: len(comp)] = comp
    return out


def _eval_poly(coeffs_asc, x):
    return np.polynomial.polynomial.polyval(x, coeffs_asc)


def _eval_legendre(n, x):
    c = np.zeros(n + 1)
    c[n] = 1.0
    return np.polynomial.legendre.legval(x, c)


def _legendre_der(k, x):
    out = 0.0
    for i in np.arange(k - 1, -1, -2):
        out = out + (2 * i + 1) * _eval_legendre(int(i), x)
    return out


def _get_phi_psi_legendre(k):
    phi_coeff = np.zeros((k, k))
    phi_2x_coeff = np.zeros((k, k))
    for ki in range(k):
        phi_coeff[ki, : ki + 1] = np.sqrt(2 * ki + 1) * _shifted_legendre(ki, 2.0, -1.0)
        phi_2x_coeff[ki, : ki + 1] = (
            np.sqrt(2) * np.sqrt(2 * ki + 1) * _shifted_legendre(ki, 4.0, -1.0)
        )
    psi1_coeff = np.zeros((k, k))
    psi2_coeff = np.zeros((k, k))
    for ki in range(k):
        psi1_coeff[ki, :] = phi_2x_coeff[ki, :]
        for i in range(k):
            a = phi_2x_coeff[ki, : ki + 1]
            b = phi_coeff[i, : i + 1]
            prod_ = np.convolve(a, b)
            prod_[np.abs(prod_) < 1e-8] = 0
            proj_ = (prod_ * 1 / (np.arange(len(prod_)) + 1)
                     * np.power(0.5, 1 + np.arange(len(prod_)))).sum()
            psi1_coeff[ki, :] -= proj_ * phi_coeff[i, :]
            psi2_coeff[ki, :] -= proj_ * phi_coeff[i, :]
        for j in range(ki):
            a = phi_2x_coeff[ki, : ki + 1]
            b = psi1_coeff[j, :]
            prod_ = np.convolve(a, b)
            prod_[np.abs(prod_) < 1e-8] = 0
            proj_ = (prod_ * 1 / (np.arange(len(prod_)) + 1)
                     * np.power(0.5, 1 + np.arange(len(prod_)))).sum()
            psi1_coeff[ki, :] -= proj_ * psi1_coeff[j, :]
            psi2_coeff[ki, :] -= proj_ * psi2_coeff[j, :]
        a = psi1_coeff[ki, :]
        prod_ = np.convolve(a, a)
        prod_[np.abs(prod_) < 1e-8] = 0
        norm1 = (prod_ * 1 / (np.arange(len(prod_)) + 1)
                 * np.power(0.5, 1 + np.arange(len(prod_)))).sum()
        a = psi2_coeff[ki, :]
        prod_ = np.convolve(a, a)
        prod_[np.abs(prod_) < 1e-8] = 0
        norm2 = (prod_ * 1 / (np.arange(len(prod_)) + 1)
                 * (1 - np.power(0.5, 1 + np.arange(len(prod_))))).sum()
        norm_ = np.sqrt(norm1 + norm2)
        psi1_coeff[ki, :] /= norm_
        psi2_coeff[ki, :] /= norm_
        psi1_coeff[np.abs(psi1_coeff) < 1e-8] = 0
        psi2_coeff[np.abs(psi2_coeff) < 1e-8] = 0
    return phi_coeff, psi1_coeff, psi2_coeff


def get_filter_legendre(k):
    phi_c, psi1_c, psi2_c = _get_phi_psi_legendre(k)

    def phi(i, x):
        return _eval_poly(phi_c[i], x)

    def psi(i, x):
        mask = (x <= 0.5) * 1.0
        return _eval_poly(psi1_c[i], x) * mask + _eval_poly(psi2_c[i], x) * (1 - mask)

    x_m = np.real(
        np.polynomial.Polynomial(_shifted_legendre(k, 2.0, -1.0)).roots()
    ).astype(np.float64)
    wm = 1 / k / _legendre_der(k, 2 * x_m - 1) / _eval_legendre(k - 1, 2 * x_m - 1)
    H0 = np.zeros((k, k)); H1 = np.zeros((k, k))
    G0 = np.zeros((k, k)); G1 = np.zeros((k, k))
    for ki in range(k):
        for kpi in range(k):
            H0[ki, kpi] = 1 / np.sqrt(2) * (wm * phi(ki, x_m / 2) * phi(kpi, x_m)).sum()
            G0[ki, kpi] = 1 / np.sqrt(2) * (wm * psi(ki, x_m / 2) * phi(kpi, x_m)).sum()
            H1[ki, kpi] = 1 / np.sqrt(2) * (wm * phi(ki, (x_m + 1) / 2) * phi(kpi, x_m)).sum()
            G1[ki, kpi] = 1 / np.sqrt(2) * (wm * psi(ki, (x_m + 1) / 2) * phi(kpi, x_m)).sum()
    PHI0 = np.eye(k)
    PHI1 = np.eye(k)
    for M_ in (H0, H1, G0, G1):
        M_[np.abs(M_) < 1e-8] = 0
    return H0, H1, G0, G1, PHI0, PHI1


# ----------------------------------------------------------------------------
# Pallas matmul kernels (projections + fused wavelet analysis / synthesis)
# ----------------------------------------------------------------------------
def _matmul_bias_kernel(x_ref, w_ref, b_ref, o_ref):
    x = x_ref[...]
    w = w_ref[...]
    if USE_BF16_MATMUL:
        x = x.astype(jnp.bfloat16)
        w = w.astype(jnp.bfloat16)
    acc = jnp.dot(x, w, preferred_element_type=jnp.float32)
    o_ref[...] = (acc + b_ref[...]).astype(o_ref.dtype)


def _matmul_kernel(x_ref, w_ref, o_ref):
    x = x_ref[...]
    w = w_ref[...]
    if USE_BF16_MATMUL:
        x = x.astype(jnp.bfloat16)
        w = w.astype(jnp.bfloat16)
    o_ref[...] = jnp.dot(x, w, preferred_element_type=jnp.float32).astype(o_ref.dtype)


def _pick_row_tile(M, K, N, itemsize=4, budget=20 * 1024 * 1024):
    """Largest row tile (<=512) dividing M whose double-buffered in/out blocks plus
    the resident weight stay within a VMEM budget that is safe on v5e/v6e/v7x."""
    for t in (512, 256, 128, 64, 32, 16, 8):
        if M % t == 0 and 2 * itemsize * (t * K + K * N + t * N) <= budget:
            return t
    return M  # small / odd M: single full-extent block (legal: equals array dim)


_MM_COMPILER_PARAMS = pltpu.CompilerParams(
    dimension_semantics=("parallel",),          # row tiles are independent (v7x 2 TC)
    vmem_limit_bytes=32 * 1024 * 1024,          # explicit; raises v5e's 16 MiB default
)


def pallas_matmul2d(x2d, w, b=None):
    """(M, K) @ (K, N) (+ b), tiled over rows with a Pallas kernel."""
    M, K = x2d.shape
    N = w.shape[1]
    tm = _pick_row_tile(M, K, N)
    grid = (M // tm,)
    x_spec = pl.BlockSpec((tm, K), lambda i: (i, 0))
    w_spec = pl.BlockSpec((K, N), lambda i: (0, 0))
    o_spec = pl.BlockSpec((tm, N), lambda i: (i, 0))
    out_shape = jax.ShapeDtypeStruct((M, N), x2d.dtype)
    if b is None:
        return pl.pallas_call(
            _matmul_kernel,
            out_shape=out_shape,
            grid=grid,
            in_specs=[x_spec, w_spec],
            out_specs=o_spec,
            compiler_params=_MM_COMPILER_PARAMS,
        )(x2d, w)
    b2 = b.reshape(1, N)  # (1, N) block is legal: it equals the full bias array dims
    b_spec = pl.BlockSpec((1, N), lambda i: (0, 0))
    return pl.pallas_call(
        _matmul_bias_kernel,
        out_shape=out_shape,
        grid=grid,
        in_specs=[x_spec, w_spec, b_spec],
        out_specs=o_spec,
        compiler_params=_MM_COMPILER_PARAMS,
    )(x2d, w, b2)


# ----------------------------------------------------------------------------
# Pallas Fourier cross-attention core (complex QK^T -> complex tanh -> attn * K)
# ----------------------------------------------------------------------------
def _pad8(m):
    return max(8, ((m + 7) // 8) * 8)


def _pad_lane(m):
    p = _pad8(m)
    # Lane-dense stores once the modes axis is large enough that padding to a
    # multiple of 128 costs at most ~2x transcendental work.
    if p >= 64:
        p = ((p + 127) // 128) * 128
    return p


def _make_fourier_core_kernel(scale):
    scale = float(scale)

    def kernel(qr_ref, qi_ref, kr_ref, ki_ref, or_ref, oi_ref):
        f32 = jnp.float32
        qr, qi = qr_ref[...], qi_ref[...]      # (G, E, MqP)
        kr, ki = kr_ref[...], ki_ref[...]      # (G, E, MkP)

        def qk(a, b):      # (G,E,X),(G,E,Y) -> (G,X,Y) : per-head a^T b (no conjugation)
            return jnp.einsum('gex,gey->gxy', a, b, preferred_element_type=f32)

        def attn_v(a, t):  # (G,E,Y),(G,X,Y) -> (G,E,X) : per-head a t^T
            return jnp.einsum('gey,gxy->gex', a, t, preferred_element_type=f32)

        # complex xqk = q^T k (matches torch.einsum on complex, no conj)
        sr = qk(qr, kr) - qk(qi, ki)
        si = qk(qr, ki) + qk(qi, kr)

        # complex tanh:  tanh(a+ib) = (sinh 2a + i sin 2b) / (cosh 2a + cos 2b)
        # numerically stable form using tanh / sech (f32 elementwise).
        a2 = 2.0 * sr
        b2 = 2.0 * si
        tanh_a2 = jnp.tanh(a2)
        em = jnp.exp(-jnp.abs(a2))
        sech_a2 = 2.0 * em / (1.0 + em * em)
        den = 1.0 + jnp.cos(b2) * sech_a2
        tr = tanh_a2 / den
        ti = jnp.sin(b2) * sech_a2 / den

        # complex xqkv[e,x] = sum_y xqk[x,y] * k[e,y], scaled by 1/(in_ch*out_ch)
        orr = attn_v(kr, tr) - attn_v(ki, ti)
        oii = attn_v(kr, ti) + attn_v(ki, tr)
        or_ref[...] = (orr * scale).astype(or_ref.dtype)
        oi_ref[...] = (oii * scale).astype(oi_ref.dtype)

    return kernel


def fourier_core_pallas(qr, qi, kr, ki, scale, heads_per_step=8):
    """Inputs: (BH, E, Mq) and (BH, E, Mk) real/imag.  Output: (BH, E, Mq) real/imag,
    already scaled by `scale`.  Processes G batch-heads per grid step."""
    BH, E, Mq = qr.shape
    Mk = kr.shape[-1]
    MqP = _pad_lane(Mq)
    MkP = _pad8(Mk)
    G = min(heads_per_step, BH)
    BHp = ((BH + G - 1) // G) * G

    def pad3(x, P):
        return jnp.pad(x, ((0, BHp - x.shape[0]), (0, 0), (0, P - x.shape[-1])))

    qr_p, qi_p = pad3(qr, MqP), pad3(qi, MqP)
    kr_p, ki_p = pad3(kr, MkP), pad3(ki, MkP)
    spec_q = pl.BlockSpec((G, E, MqP), lambda b: (b, 0, 0))
    spec_k = pl.BlockSpec((G, E, MkP), lambda b: (b, 0, 0))
    orr, oii = pl.pallas_call(
        _make_fourier_core_kernel(scale),
        out_shape=[
            jax.ShapeDtypeStruct((BHp, E, MqP), jnp.float32),
            jax.ShapeDtypeStruct((BHp, E, MqP), jnp.float32),
        ],
        grid=(BHp // G,),
        in_specs=[spec_q, spec_q, spec_k, spec_k],
        out_specs=[spec_q, spec_q],
        compiler_params=pltpu.CompilerParams(
            dimension_semantics=("parallel",),
            vmem_limit_bytes=32 * 1024 * 1024,
        ),
    )(qr_p, qi_p, kr_p, ki_p)
    return orr[:BH, :, :Mq], oii[:BH, :, :Mq]


def fourier_cross_attention(q, k, v, modes, in_ch, out_ch):
    """Mirrors FourierCrossAttentionW.forward (activation='tanh').
    Note: v contributes only its length (the reference reuses xk_ft in both einsums)."""
    B, Lq, E, H = q.shape
    Lkv = v.shape[1]
    Mq = min(Lq // 2, modes)
    Mkv = min(Lkv // 2, modes)
    if Mq <= 0 or Mkv <= 0:
        return jnp.zeros_like(q)  # out_ft stays all-zero -> irfft gives zeros
    xq = jnp.transpose(q, (0, 3, 2, 1))  # (B, H, E, Lq)
    xk = jnp.transpose(k, (0, 3, 2, 1))
    # TODO(synk): rfft/irfft have no Pallas equivalent; they stay on the XLA TPU FFT.
    xq_ft = jnp.fft.rfft(xq, axis=-1)[..., :Mq]
    xk_ft = jnp.fft.rfft(xk, axis=-1)[..., :Mkv]
    qr = jnp.real(xq_ft).astype(jnp.float32).reshape(B * H, E, Mq)
    qi = jnp.imag(xq_ft).astype(jnp.float32).reshape(B * H, E, Mq)
    kr = jnp.real(xk_ft).astype(jnp.float32).reshape(B * H, E, Mkv)
    ki = jnp.imag(xk_ft).astype(jnp.float32).reshape(B * H, E, Mkv)
    scale = 1.0 / float(in_ch) / float(out_ch)  # folded into the Pallas kernel epilogue
    orr, oii = fourier_core_pallas(qr, qi, kr, ki, scale)
    out_c = (orr + 1j * oii).astype(jnp.complex64).reshape(B, H, E, Mq)
    out_ft = jnp.zeros((B, H, E, Lq // 2 + 1), jnp.complex64).at[..., :Mq].set(out_c)
    out = jnp.fft.irfft(out_ft, n=Lq, axis=-1)
    return jnp.transpose(out, (0, 3, 2, 1)).astype(q.dtype)


# ----------------------------------------------------------------------------
# Fused, lane-dense wavelet analysis / synthesis
# ----------------------------------------------------------------------------
def _fused_decompose_weight(ec_d, ec_s, c, k):
    """Block-diagonal-over-channel weight implementing
       cat([x_even, x_odd], -1) @ [ec_d | ec_s]
    directly on (rows, 2*c*k) slabs (input row order = (parity, channel, k), output
    column order = (channel, [d | s])).  Fuses ec_d/ec_s into one matmul and absorbs
    the even/odd deinterleave; output lane width = c*2k (lane dense)."""
    w_ds = np.concatenate([np.asarray(ec_d), np.asarray(ec_s)], axis=1)  # (2k, 2k)
    w_ds3 = w_ds.reshape(2, k, 2 * k)
    big = np.einsum('io,pkj->pikoj', np.eye(c), w_ds3)                   # (2,c,k,c,2k)
    return jnp.asarray(big.reshape(2 * c * k, c * 2 * k), jnp.float32)


def _fused_reconstruct_weight(rc_e, rc_o, c, k):
    """Block-diagonal-over-channel weight implementing x @ rc_e and x @ rc_o in one
    matmul, with the even/odd re-interleave folded into the output column ordering
    (parity, channel, k) so a plain reshape produces the interleaved sequence."""
    w_eo = np.stack([np.asarray(rc_e), np.asarray(rc_o)], axis=0)        # (2, 2k, k)
    big = np.einsum('io,pjm->ijpom', np.eye(c), w_eo)                    # (c,2k,2,c,k)
    return jnp.asarray(big.reshape(c * 2 * k, 2 * c * k), jnp.float32)


def wavelet_decompose(x, dec_w, c, kk):
    """x: (B, n, c, k) -> (d, s) each (B, n/2, c, k) via one fused Pallas matmul."""
    B, n = x.shape[0], x.shape[1]
    rows = x.reshape(B * (n // 2), 2 * c * kk)   # row layout = (even/odd, channel, k)
    out = pallas_matmul2d(rows, dec_w)
    out = out.reshape(B, n // 2, c, 2 * kk)
    return out[..., :kk], out[..., kk:]          # d, s


def wavelet_reconstruct(x, rec_w, c, kk):
    """x: (B, n, c, 2k) -> (B, 2n, c, k); even/odd interleave is in the weight layout."""
    B, n = x.shape[0], x.shape[1]
    rows = x.reshape(B * n, c * 2 * kk)
    out = pallas_matmul2d(rows, rec_w)           # columns ordered (parity, channel, k)
    return out.reshape(B, 2 * n, c, kk)


# ----------------------------------------------------------------------------
# Forward pass (mirrors MultiWaveletCross.forward + FourierCrossAttentionW.forward)
# ----------------------------------------------------------------------------
def multi_wavelet_cross_forward(params, q, k, v, *, c, kk, L, modes, in_ch, out_ch):
    B, N, H, E = q.shape
    _, S, _, _ = k.shape
    ich = H * E

    qp = pallas_matmul2d(q.reshape(B * N, ich), params["Lq_w"], params["Lq_b"]).reshape(B, N, c, kk)
    kp = pallas_matmul2d(k.reshape(B * S, ich), params["Lk_w"], params["Lk_b"]).reshape(B, S, c, kk)
    vp = pallas_matmul2d(v.reshape(B * S, ich), params["Lv_w"], params["Lv_b"]).reshape(B, S, c, kk)

    if N > S:
        zeros = jnp.zeros_like(qp[:, : N - S]).astype(jnp.float32)
        vp = jnp.concatenate([vp, zeros], axis=1)
        kp = jnp.concatenate([kp, zeros], axis=1)
    else:
        vp = vp[:, :N]
        kp = kp[:, :N]

    ns = int(math.floor(np.log2(N)))
    nl = int(2 ** math.ceil(np.log2(N)))
    qp = jnp.concatenate([qp, qp[:, 0: nl - N]], axis=1)
    kp = jnp.concatenate([kp, kp[:, 0: nl - N]], axis=1)
    vp = jnp.concatenate([vp, vp[:, 0: nl - N]], axis=1)

    dec_w = params["dec_w"]
    rec_w = params["rec_w"]

    # Decompose q, k, v together (they share shapes): one fused Pallas matmul per
    # level instead of six (ec_d & ec_s for each of q/k/v).
    x3 = jnp.concatenate([qp, kp, vp], axis=0)            # (3B, nl, c, k)
    levels = []
    for _ in range(ns - L):
        d3, x3 = wavelet_decompose(x3, dec_w, c, kk)
        levels.append((d3, x3))

    Ud, Us = [], []
    for i in range(ns - L):
        d3, s3 = levels[i]
        dq, dk_, dv = d3[:B], d3[B:2 * B], d3[2 * B:]
        sq, sk, sv = s3[:B], s3[B:2 * B], s3[2 * B:]
        # attn1(d_q,d_k,d_v) == attn3(d_q,d_k,d_v): the attention is parameter-free
        # and receives identical inputs, so only two distinct problems remain per
        # level; run them in ONE batched attention call (one rfft/irfft/pallas_call).
        q_att = jnp.concatenate([dq, sq], axis=0)
        k_att = jnp.concatenate([dk_, sk], axis=0)
        v_att = jnp.concatenate([dv, sv], axis=0)
        out = fourier_cross_attention(q_att, k_att, v_att, modes, in_ch, out_ch)
        out_d, out_s = out[:B], out[B:]
        Ud.append(out_d + out_s)   # attn1 + attn2
        Us.append(out_d)           # attn3

    xq_c, xk_c, xv_c = x3[:B], x3[B:2 * B], x3[2 * B:]
    xv_out = fourier_cross_attention(xq_c, xk_c, xv_c, modes, in_ch, out_ch)  # attn4

    for i in range(ns - 1 - L, -1, -1):
        xv_out = xv_out + Us[i]
        xv_out = jnp.concatenate([xv_out, Ud[i]], axis=-1)   # (B, n, c, 2k)
        xv_out = wavelet_reconstruct(xv_out, rec_w, c, kk)   # (B, 2n, c, k)

    out = pallas_matmul2d(
        xv_out[:, :N].reshape(B * N, c * kk), params["out_w"], params["out_b"]
    ).reshape(B, N, ich)
    return out, None


# ----------------------------------------------------------------------------
# Deterministic parameter initialization
# ----------------------------------------------------------------------------
def init_params(key, ich, c, kk):
    H0, H1, G0, G1, PHI0, PHI1 = get_filter_legendre(kk)
    H0r = H0 @ PHI0; G0r = G0 @ PHI0
    H1r = H1 @ PHI1; G1r = G1 @ PHI1
    for M_ in (H0r, H1r, G0r, G1r):
        M_[np.abs(M_) < 1e-8] = 0
    ec_s = np.concatenate((H0.T, H1.T), axis=0)   # (2k, k)
    ec_d = np.concatenate((G0.T, G1.T), axis=0)
    rc_e = np.concatenate((H0r, G0r), axis=0)
    rc_o = np.concatenate((H1r, G1r), axis=0)

    def linear(key, fan_in, fan_out):
        kw, kb = jax.random.split(key)
        bound = 1.0 / np.sqrt(fan_in)
        W = jax.random.uniform(kw, (fan_in, fan_out), jnp.float32, -bound, bound)
        b = jax.random.uniform(kb, (fan_out,), jnp.float32, -bound, bound)
        return W, b

    k1, k2, k3, k4 = jax.random.split(key, 4)
    Lq_w, Lq_b = linear(k1, ich, c * kk)
    Lk_w, Lk_b = linear(k2, ich, c * kk)
    Lv_w, Lv_b = linear(k3, ich, c * kk)
    out_w, out_b = linear(k4, c * kk, ich)
    # (T0 = nn.Linear(k, k) exists in __init__ but is unused in forward; omitted.)
    return dict(
        Lq_w=Lq_w, Lq_b=Lq_b, Lk_w=Lk_w, Lk_b=Lk_b, Lv_w=Lv_w, Lv_b=Lv_b,
        out_w=out_w, out_b=out_b,
        dec_w=_fused_decompose_weight(ec_d, ec_s, c, kk),
        rec_w=_fused_reconstruct_weight(rc_e, rc_o, c, kk),
    )


if __name__ == "__main__":
    # small config consistent with the module
    B, N, H, E = 2, 16, 4, 8          # ich = H*E = 32
    S = 16
    c, kk, L, modes = 4, 4, 0, 4
    ich = H * E
    in_channels = out_channels = ich  # used only for the 1/(in*out) scaling in attention

    root = jax.random.PRNGKey(0)
    kparam, kq, kkey, kv = jax.random.split(root, 4)
    params = init_params(kparam, ich, c, kk)
    q = jax.random.normal(kq, (B, N, H, E), jnp.float32)
    k_in = jax.random.normal(kkey, (B, S, H, E), jnp.float32)
    v_in = jax.random.normal(kv, (B, S, H, E), jnp.float32)

    fwd = jax.jit(functools.partial(
        multi_wavelet_cross_forward,
        c=c, kk=kk, L=L, modes=modes, in_ch=in_channels, out_ch=out_channels))
    out, _ = fwd(params, q, k_in, v_in)
    out = jax.block_until_ready(out)
    assert out.shape == (B, N, ich), out.shape
    assert bool(jnp.all(jnp.isfinite(out)))
    print("KERNEL_OK")
</pallas_src>

<mosaic_0001>
module attributes {stable_mosaic.version = 11 : i64} {
  func.func @_matmul_kernel(%arg0: i32, %arg1: memref<2x32xf32, #tpu.memory_space<vmem>>, %arg2: memref<32x32xf32, #tpu.memory_space<vmem>>, %arg3: memref<2x32xf32, #tpu.memory_space<vmem>>) attributes {dimension_semantics = [#tpu.dimension_semantics<parallel>], iteration_bounds = array<i64: 1>, scalar_prefetch = 0 : i64, scratch_operands = 0 : i64, tpu.core_type = #tpu.core_type<tc>, window_params = [{transform_indices = @transform_0, window_bounds = array<i64: 2, 32>}, {pipeline_mode = #tpu.pipeline_mode<synchronous>, transform_indices = @transform_1, window_bounds = array<i64: 32, 32>}, {transform_indices = @transform_2, window_bounds = array<i64: 2, 32>}]} {
    %c0 = arith.constant 0 : index
    %c0_0 = arith.constant 0 : index
    %0 = vector.load %arg1[%c0, %c0_0] : memref<2x32xf32, #tpu.memory_space<vmem>>, vector<2x32xf32>
    %c0_1 = arith.constant 0 : index
    %c0_2 = arith.constant 0 : index
    %1 = vector.load %arg2[%c0_1, %c0_2] : memref<32x32xf32, #tpu.memory_space<vmem>>, vector<32x32xf32>
    %cst = arith.constant dense<0.000000e+00> : vector<2x32xf32>
    %2 = tpu.matmul %0, %1, %cst {dimension_numbers = #tpu.dot_dimension_numbers<[1], [0], [0], [1], [0, 0, 1, 1], [], []>} : vector<2x32xf32>, vector<32x32xf32>, vector<2x32xf32> -> vector<2x32xf32>
    %c0_3 = arith.constant 0 : index
    %c0_4 = arith.constant 0 : index
    %3 = vector.load %arg3[%c0_3, %c0_4] : memref<2x32xf32, #tpu.memory_space<vmem>>, vector<2x32xf32>
    tpu.vector_store %arg3[%c0_3, %c0_4], %2 {strides = array<i32>} : memref<2x32xf32, #tpu.memory_space<vmem>>, vector<2x32xf32>,
    return
  }
  func.func @transform_0(%arg0: i32) -> (i32, i32) {
    %c0_i32 = arith.constant 0 : i32
    %c0_i32_0 = arith.constant 0 : i32
    return %arg0, %c0_i32 : i32, i32
  }
  func.func @transform_1(%arg0: i32) -> (i32, i32) {
    %c0_i32 = arith.constant 0 : i32
    %c0_i32_0 = arith.constant 0 : i32
    %c0_i32_1 = arith.constant 0 : i32
    return %c0_i32, %c0_i32_0 : i32, i32
  }
  func.func @transform_2(%arg0: i32) -> (i32, i32) {
    %c0_i32 = arith.constant 0 : i32
    %c0_i32_0 = arith.constant 0 : i32
    return %arg0, %c0_i32 : i32, i32
  }
}

module attributes {stable_mosaic.version = 11 : i64} {
  func.func @_matmul_bias_kernel(%arg0: i32, %arg1: memref<32x32xf32, #tpu.memory_space<vmem>>, %arg2: memref<32x16xf32, #tpu.memory_space<vmem>>, %arg3: memref<1x16xf32, #tpu.memory_space<vmem>>, %arg4: memref<32x16xf32, #tpu.memory_space<vmem>>) attributes {dimension_semantics = [#tpu.dimension_semantics<parallel>], iteration_bounds = array<i64: 1>, scalar_prefetch = 0 : i64, scratch_operands = 0 : i64, tpu.core_type = #tpu.core_type<tc>, window_params = [{transform_indices = @transform_0, window_bounds = array<i64: 32, 32>}, {pipeline_mode = #tpu.pipeline_mode<synchronous>, transform_indices = @transform_1, window_bounds = array<i64: 32, 16>}, {pipeline_mode = #tpu.pipeline_mode<synchronous>, transform_indices = @transform_2, window_bounds = array<i64: 1, 16>}, {transform_indices = @transform_3, window_bounds = array<i64: 32, 16>}]} {
    %c0 = arith.constant 0 : index
    %c0_0 = arith.constant 0 : index
    %0 = vector.load %arg1[%c0, %c0_0] : memref<32x32xf32, #tpu.memory_space<vmem>>, vector<32x32xf32>
    %c0_1 = arith.constant 0 : index
    %c0_2 = arith.constant 0 : index
    %1 = vector.load %arg2[%c0_1, %c0_2] : memref<32x16xf32, #tpu.memory_space<vmem>>, vector<32x16xf32>
    %cst = arith.constant dense<0.000000e+00> : vector<32x16xf32>
    %2 = tpu.matmul %0, %1, %cst {dimension_numbers = #tpu.dot_dimension_numbers<[1], [0], [0], [1], [0, 0, 1, 1], [], []>} : vector<32x32xf32>, vector<32x16xf32>, vector<32x16xf32> -> vector<32x16xf32>
    %c0_3 = arith.constant 0 : index
    %c0_4 = arith.constant 0 : index
    %3 = vector.load %arg3[%c0_3, %c0_4] : memref<1x16xf32, #tpu.memory_space<vmem>>, vector<1x16xf32>
    %4 = vector.broadcast %3 : vector<1x16xf32> to vector<32x16xf32>
    %5 = arith.addf %2, %4 : vector<32x16xf32>
    %c0_5 = arith.constant 0 : index
    %c0_6 = arith.constant 0 : index
    %6 = vector.load %arg4[%c0_5, %c0_6] : memref<32x16xf32, #tpu.memory_space<vmem>>, vector<32x16xf32>
    tpu.vector_store %arg4[%c0_5, %c0_6], %5 {strides = array<i32>} : memref<32x16xf32, #tpu.memory_space<vmem>>, vector<32x16xf32>,
    return
  }
  func.func @transform_0(%arg0: i32) -> (i32, i32) {
    %c0_i32 = arith.constant 0 : i32
    %c0_i32_0 = arith.constant 0 : i32
    return %arg0, %c0_i32 : i32, i32
  }
  func.func @transform_1(%arg0: i32) -> (i32, i32) {
    %c0_i32 = arith.constant 0 : i32
    %c0_i32_0 = arith.constant 0 : i32
    %c0_i32_1 = arith.constant 0 : i32
    return %c0_i32, %c0_i32_0 : i32, i32
  }
  func.func @transform_2(%arg0: i32) -> (i32, i32) {
    %c0_i32 = arith.constant 0 : i32
    %c0_i32_0 = arith.constant 0 : i32
    %c0_i32_1 = arith.constant 0 : i32
    return %c0_i32, %c0_i32_0 : i32, i32
  }
  func.func @transform_3(%arg0: i32) -> (i32, i32) {
    %c0_i32 = arith.constant 0 : i32
    %c0_i32_0 = arith.constant 0 : i32
    return %arg0, %c0_i32 : i32, i32
  }
}

module attributes {stable_mosaic.version = 11 : i64} {
  func.func @_matmul_kernel(%arg0: i32, %arg1: memref<16x32xf32, #tpu.memory_space<vmem>>, %arg2: memref<32x32xf32, #tpu.memory_space<vmem>>, %arg3: memref<16x32xf32, #tpu.memory_space<vmem>>) attributes {dimension_semantics = [#tpu.dimension_semantics<parallel>], iteration_bounds = array<i64: 3>, scalar_prefetch = 0 : i64, scratch_operands = 0 : i64, tpu.core_type = #tpu.core_type<tc>, window_params = [{transform_indices = @transform_0, window_bounds = array<i64: 16, 32>}, {pipeline_mode = #tpu.pipeline_mode<synchronous>, transform_indices = @transform_1, window_bounds = array<i64: 32, 32>}, {transform_indices = @transform_2, window_bounds = array<i64: 16, 32>}]} {
    %c0 = arith.constant 0 : index
    %c0_0 = arith.constant 0 : index
    %0 = vector.load %arg1[%c0, %c0_0] : memref<16x32xf32, #tpu.memory_space<vmem>>, vector<16x32xf32>
    %c0_1 = arith.constant 0 : index
    %c0_2 = arith.constant 0 : index
    %1 = vector.load %arg2[%c0_1, %c0_2] : memref<32x32xf32, #tpu.memory_space<vmem>>, vector<32x32xf32>
    %cst = arith.constant dense<0.000000e+00> : vector<16x32xf32>
    %2 = tpu.matmul %0, %1, %cst {dimension_numbers = #tpu.dot_dimension_numbers<[1], [0], [0], [1], [0, 0, 1, 1], [], []>} : vector<16x32xf32>, vector<32x32xf32>, vector<16x32xf32> -> vector<16x32xf32>
    %c0_3 = arith.constant 0 : index
    %c0_4 = arith.constant 0 : index
    %3 = vector.load %arg3[%c0_3, %c0_4] : memref<16x32xf32, #tpu.memory_space<vmem>>, vector<16x32xf32>
    tpu.vector_store %arg3[%c0_3, %c0_4], %2 {strides = array<i32>} : memref<16x32xf32, #tpu.memory_space<vmem>>, vector<16x32xf32>,
    return
  }
  func.func @transform_0(%arg0: i32) -> (i32, i32) {
    %c0_i32 = arith.constant 0 : i32
    %c0_i32_0 = arith.constant 0 : i32
    return %arg0, %c0_i32 : i32, i32
  }
  func.func @transform_1(%arg0: i32) -> (i32, i32) {
    %c0_i32 = arith.constant 0 : i32
    %c0_i32_0 = arith.constant 0 : i32
    %c0_i32_1 = arith.constant 0 : i32
    return %c0_i32, %c0_i32_0 : i32, i32
  }
  func.func @transform_2(%arg0: i32) -> (i32, i32) {
    %c0_i32 = arith.constant 0 : i32
    %c0_i32_0 = arith.constant 0 : i32
    return %arg0, %c0_i32 : i32, i32
  }
}

module attributes {stable_mosaic.version = 11 : i64} {
  func.func @_matmul_kernel(%arg0: i32, %arg1: memref<8x32xf32, #tpu.memory_space<vmem>>, %arg2: memref<32x32xf32, #tpu.memory_space<vmem>>, %arg3: memref<8x32xf32, #tpu.memory_space<vmem>>) attributes {dimension_semantics = [#tpu.dimension_semantics<parallel>], iteration_bounds = array<i64: 3>, scalar_prefetch = 0 : i64, scratch_operands = 0 : i64, tpu.core_type = #tpu.core_type<tc>, window_params = [{transform_indices = @transform_0, window_bounds = array<i64: 8, 32>}, {pipeline_mode = #tpu.pipeline_mode<synchronous>, transform_indices = @transform_1, window_bounds = array<i64: 32, 32>}, {transform_indices = @transform_2, window_bounds = array<i64: 8, 32>}]} {
    %c0 = arith.constant 0 : index
    %c0_0 = arith.constant 0 : index
    %0 = vector.load %arg1[%c0, %c0_0] : memref<8x32xf32, #tpu.memory_space<vmem>>, vector<8x32xf32>
    %c0_1 = arith.constant 0 : index
    %c0_2 = arith.constant 0 : index
    %1 = vector.load %arg2[%c0_1, %c0_2] : memref<32x32xf32, #tpu.memory_space<vmem>>, vector<32x32xf32>
    %cst = arith.constant dense<0.000000e+00> : vector<8x32xf32>
    %2 = tpu.matmul %0, %1, %cst {dimension_numbers = #tpu.dot_dimension_numbers<[1], [0], [0], [1], [0, 0, 1, 1], [], []>} : vector<8x32xf32>, vector<32x32xf32>, vector<8x32xf32> -> vector<8x32xf32>
    %c0_3 = arith.constant 0 : index
    %c0_4 = arith.constant 0 : index
    %3 = vector.load %arg3[%c0_3, %c0_4] : memref<8x32xf32, #tpu.memory_space<vmem>>, vector<8x32xf32>
    tpu.vector_store %arg3[%c0_3, %c0_4], %2 {strides = array<i32>} : memref<8x32xf32, #tpu.memory_space<vmem>>, vector<8x32xf32>,
    return
  }
  func.func @transform_0(%arg0: i32) -> (i32, i32) {
    %c0_i32 = arith.constant 0 : i32
    %c0_i32_0 = arith.constant 0 : i32
    return %arg0, %c0_i32 : i32, i32
  }
  func.func @transform_1(%arg0: i32) -> (i32, i32) {
    %c0_i32 = arith.constant 0 : i32
    %c0_i32_0 = arith.constant 0 : i32
    %c0_i32_1 = arith.constant 0 : i32
    return %c0_i32, %c0_i32_0 : i32, i32
  }
  func.func @transform_2(%arg0: i32) -> (i32, i32) {
    %c0_i32 = arith.constant 0 : i32
    %c0_i32_0 = arith.constant 0 : i32
    return %arg0, %c0_i32 : i32, i32
  }
}

module attributes {stable_mosaic.version = 11 : i64} {
  func.func @_matmul_kernel(%arg0: i32, %arg1: memref<12x32xf32, #tpu.memory_space<vmem>>, %arg2: memref<32x32xf32, #tpu.memory_space<vmem>>, %arg3: memref<12x32xf32, #tpu.memory_space<vmem>>) attributes {dimension_semantics = [#tpu.dimension_semantics<parallel>], iteration_bounds = array<i64: 1>, scalar_prefetch = 0 : i64, scratch_operands = 0 : i64, tpu.core_type = #tpu.core_type<tc>, window_params = [{transform_indices = @transform_0, window_bounds = array<i64: 12, 32>}, {pipeline_mode = #tpu.pipeline_mode<synchronous>, transform_indices = @transform_1, window_bounds = array<i64: 32, 32>}, {transform_indices = @transform_2, window_bounds = array<i64: 12, 32>}]} {
    %c0 = arith.constant 0 : index
    %c0_0 = arith.constant 0 : index
    %0 = vector.load %arg1[%c0, %c0_0] : memref<12x32xf32, #tpu.memory_space<vmem>>, vector<12x32xf32>
    %c0_1 = arith.constant 0 : index
    %c0_2 = arith.constant 0 : index
    %1 = vector.load %arg2[%c0_1, %c0_2] : memref<32x32xf32, #tpu.memory_space<vmem>>, vector<32x32xf32>
    %cst = arith.constant dense<0.000000e+00> : vector<12x32xf32>
    %2 = tpu.matmul %0, %1, %cst {dimension_numbers = #tpu.dot_dimension_numbers<[1], [0], [0], [1], [0, 0, 1, 1], [], []>} : vector<12x32xf32>, vector<32x32xf32>, vector<12x32xf32> -> vector<12x32xf32>
    %c0_3 = arith.constant 0 : index
    %c0_4 = arith.constant 0 : index
    %3 = vector.load %arg3[%c0_3, %c0_4] : memref<12x32xf32, #tpu.memory_space<vmem>>, vector<12x32xf32>
    tpu.vector_store %arg3[%c0_3, %c0_4], %2 {strides = array<i32>} : memref<12x32xf32, #tpu.memory_space<vmem>>, vector<12x32xf32>,
    return
  }
  func.func @transform_0(%arg0: i32) -> (i32, i32) {
    %c0_i32 = arith.constant 0 : i32
    %c0_i32_0 = arith.constant 0 : i32
    return %arg0, %c0_i32 : i32, i32
  }
  func.func @transform_1(%arg0: i32) -> (i32, i32) {
    %c0_i32 = arith.constant 0 : i32
    %c0_i32_0 = arith.constant 0 : i32
    %c0_i32_1 = arith.constant 0 : i32
    return %c0_i32, %c0_i32_0 : i32, i32
  }
  func.func @transform_2(%arg0: i32) -> (i32, i32) {
    %c0_i32 = arith.constant 0 : i32
    %c0_i32_0 = arith.constant 0 : i32
    return %arg0, %c0_i32 : i32, i32
  }
}

module attributes {stable_mosaic.version = 11 : i64} {
  func.func @kernel(%arg0: i32, %arg1: memref<8x4x8xf32, #tpu.memory_space<vmem>>, %arg2: memref<8x4x8xf32, #tpu.memory_space<vmem>>, %arg3: memref<8x4x8xf32, #tpu.memory_space<vmem>>, %arg4: memref<8x4x8xf32, #tpu.memory_space<vmem>>, %arg5: memref<8x4x8xf32, #tpu.memory_space<vmem>>, %arg6: memref<8x4x8xf32, #tpu.memory_space<vmem>>) attributes {dimension_semantics = [#tpu.dimension_semantics<parallel>], iteration_bounds = array<i64: 2>, scalar_prefetch = 0 : i64, scratch_operands = 0 : i64, tpu.core_type = #tpu.core_type<tc>, window_params = [{transform_indices = @transform_0, window_bounds = array<i64: 8, 4, 8>}, {transform_indices = @transform_1, window_bounds = array<i64: 8, 4, 8>}, {transform_indices = @transform_2, window_bounds = array<i64: 8, 4, 8>}, {transform_indices = @transform_3, window_bounds = array<i64: 8, 4, 8>}, {transform_indices = @transform_4, window_bounds = array<i64: 8, 4, 8>}, {transform_indices = @transform_5, window_bounds = array<i64: 8, 4, 8>}]} {
    %c0 = arith.constant 0 : index
    %c0_0 = arith.constant 0 : index
    %c0_1 = arith.constant 0 : index
    %0 = vector.load %arg1[%c0, %c0_0, %c0_1] : memref<8x4x8xf32, #tpu.memory_space<vmem>>, vector<8x4x8xf32>
    %c0_2 = arith.constant 0 : index
    %c0_3 = arith.constant 0 : index
    %c0_4 = arith.constant 0 : index
    %1 = vector.load %arg2[%c0_2, %c0_3, %c0_4] : memref<8x4x8xf32, #tpu.memory_space<vmem>>, vector<8x4x8xf32>
    %c0_5 = arith.constant 0 : index
    %c0_6 = arith.constant 0 : index
    %c0_7 = arith.constant 0 : index
    %2 = vector.load %arg3[%c0_5, %c0_6, %c0_7] : memref<8x4x8xf32, #tpu.memory_space<vmem>>, vector<8x4x8xf32>
    %c0_8 = arith.constant 0 : index
    %c0_9 = arith.constant 0 : index
    %c0_10 = arith.constant 0 : index
    %3 = vector.load %arg4[%c0_8, %c0_9, %c0_10] : memref<8x4x8xf32, #tpu.memory_space<vmem>>, vector<8x4x8xf32>
    "tpu.trace_start"() <{level = 10 : i32, message = "gex,gey->gxy"}> : () -> ()
    %cst = arith.constant dense<0.000000e+00> : vector<8x8x8xf32>
    %4 = tpu.matmul %0, %2, %cst {dimension_numbers = #tpu.dot_dimension_numbers<[1], [1], [2], [2], [0, 0, 0, 2, 1, 2], [0], [0]>} : vector<8x4x8xf32>, vector<8x4x8xf32>, vector<8x8x8xf32> -> vector<8x8x8xf32>
    %cst_11 = arith.constant dense<0.000000e+00> : vector<8x8x8xf32>
    %5 = tpu.matmul %1, %3, %cst_11 {dimension_numbers = #tpu.dot_dimension_numbers<[1], [1], [2], [2], [0, 0, 0, 2, 1, 2], [0], [0]>} : vector<8x4x8xf32>, vector<8x4x8xf32>, vector<8x8x8xf32> -> vector<8x8x8xf32>
    "tpu.trace_stop"() : () -> ()
    %6 = arith.subf %4, %5 : vector<8x8x8xf32>
    "tpu.trace_start"() <{level = 10 : i32, message = "gex,gey->gxy"}> : () -> ()
    %cst_12 = arith.constant dense<0.000000e+00> : vector<8x8x8xf32>
    %7 = tpu.matmul %0, %3, %cst_12 {dimension_numbers = #tpu.dot_dimension_numbers<[1], [1], [2], [2], [0, 0, 0, 2, 1, 2], [0], [0]>} : vector<8x4x8xf32>, vector<8x4x8xf32>, vector<8x8x8xf32> -> vector<8x8x8xf32>
    %cst_13 = arith.constant dense<0.000000e+00> : vector<8x8x8xf32>
    %8 = tpu.matmul %1, %2, %cst_13 {dimension_numbers = #tpu.dot_dimension_numbers<[1], [1], [2], [2], [0, 0, 0, 2, 1, 2], [0], [0]>} : vector<8x4x8xf32>, vector<8x4x8xf32>, vector<8x8x8xf32> -> vector<8x8x8xf32>
    "tpu.trace_stop"() : () -> ()
    %9 = arith.addf %7, %8 : vector<8x8x8xf32>
    %cst_14 = arith.constant 2.000000e+00 : f32
    %10 = vector.broadcast %cst_14 : f32 to vector<8x8x8xf32>
    %11 = arith.mulf %10, %6 : vector<8x8x8xf32>
    %cst_15 = arith.constant 2.000000e+00 : f32
    %12 = vector.broadcast %cst_15 : f32 to vector<8x8x8xf32>
    %13 = arith.mulf %12, %9 : vector<8x8x8xf32>
    %14 = math.tanh %11 : vector<8x8x8xf32>
    %15 = math.absf %11 : vector<8x8x8xf32>
    %cst_16 = arith.constant 0.000000e+00 : f32
    %16 = vector.broadcast %cst_16 : f32 to vector<8x8x8xf32>
    %17 = arith.subf %16, %15 : vector<8x8x8xf32>
    %18 = math.exp %17 : vector<8x8x8xf32>
    %cst_17 = arith.constant 2.000000e+00 : f32
    %19 = vector.broadcast %cst_17 : f32 to vector<8x8x8xf32>
    %20 = arith.mulf %19, %18 : vector<8x8x8xf32>
    %21 = arith.mulf %18, %18 : vector<8x8x8xf32>
    %cst_18 = arith.constant 1.000000e+00 : f32
    %22 = vector.broadcast %cst_18 : f32 to vector<8x8x8xf32>
    %23 = arith.addf %22, %21 : vector<8x8x8xf32>
    %24 = arith.divf %20, %23 : vector<8x8x8xf32>
    %25 = math.cos %13 : vector<8x8x8xf32>
    %26 = arith.mulf %25, %24 : vector<8x8x8xf32>
    %cst_19 = arith.constant 1.000000e+00 : f32
    %27 = vector.broadcast %cst_19 : f32 to vector<8x8x8xf32>
    %28 = arith.addf %27, %26 : vector<8x8x8xf32>
    %29 = arith.divf %14, %28 : vector<8x8x8xf32>
    %30 = math.sin %13 : vector<8x8x8xf32>
    %31 = arith.mulf %30, %24 : vector<8x8x8xf32>
    %32 = arith.divf %31, %28 : vector<8x8x8xf32>
    "tpu.trace_start"() <{level = 10 : i32, message = "gey,gxy->gex"}> : () -> ()
    %cst_20 = arith.constant dense<0.000000e+00> : vector<8x4x8xf32>
    %33 = tpu.matmul %2, %29, %cst_20 {dimension_numbers = #tpu.dot_dimension_numbers<[2], [2], [1], [1], [0, 0, 0, 1, 1, 1], [0], [0]>} : vector<8x4x8xf32>, vector<8x8x8xf32>, vector<8x4x8xf32> -> vector<8x4x8xf32>
    %cst_21 = arith.constant dense<0.000000e+00> : vector<8x4x8xf32>
    %34 = tpu.matmul %3, %32, %cst_21 {dimension_numbers = #tpu.dot_dimension_numbers<[2], [2], [1], [1], [0, 0, 0, 1, 1, 1], [0], [0]>} : vector<8x4x8xf32>, vector<8x8x8xf32>, vector<8x4x8xf32> -> vector<8x4x8xf32>
    "tpu.trace_stop"() : () -> ()
    %35 = arith.subf %33, %34 : vector<8x4x8xf32>
    "tpu.trace_start"() <{level = 10 : i32, message = "gey,gxy->gex"}> : () -> ()
    %cst_22 = arith.constant dense<0.000000e+00> : vector<8x4x8xf32>
    %36 = tpu.matmul %2, %32, %cst_22 {dimension_numbers = #tpu.dot_dimension_numbers<[2], [2], [1], [1], [0, 0, 0, 1, 1, 1], [0], [0]>} : vector<8x4x8xf32>, vector<8x8x8xf32>, vector<8x4x8xf32> -> vector<8x4x8xf32>
    %cst_23 = arith.constant dense<0.000000e+00> : vector<8x4x8xf32>
    %37 = tpu.matmul %3, %29, %cst_23 {dimension_numbers = #tpu.dot_dimension_numbers<[2], [2], [1], [1], [0, 0, 0, 1, 1, 1], [0], [0]>} : vector<8x4x8xf32>, vector<8x8x8xf32>, vector<8x4x8xf32> -> vector<8x4x8xf32>
    "tpu.trace_stop"() : () -> ()
    %38 = arith.addf %36, %37 : vector<8x4x8xf32>
    %cst_24 = arith.constant 9.765625E-4 : f32
    %39 = vector.broadcast %cst_24 : f32 to vector<8x4x8xf32>
    %40 = arith.mulf %35, %39 : vector<8x4x8xf32>
    %c0_25 = arith.constant 0 : index
    %c0_26 = arith.constant 0 : index
    %c0_27 = arith.constant 0 : index
    %41 = vector.load %arg5[%c0_25, %c0_26, %c0_27] : memref<8x4x8xf32, #tpu.memory_space<vmem>>, vector<8x4x8xf32>
    tpu.vector_store %arg5[%c0_25, %c0_26, %c0_27], %40 {strides = array<i32>} : memref<8x4x8xf32, #tpu.memory_space<vmem>>, vector<8x4x8xf32>,
    %cst_28 = arith.constant 9.765625E-4 : f32
    %42 = vector.broadcast %cst_28 : f32 to vector<8x4x8xf32>
    %43 = arith.mulf %38, %42 : vector<8x4x8xf32>
    %c0_29 = arith.constant 0 : index
    %c0_30 = arith.constant 0 : index
    %c0_31 = arith.constant 0 : index
    %44 = vector.load %arg6[%c0_29, %c0_30, %c0_31] : memref<8x4x8xf32, #tpu.memory_space<vmem>>, vector<8x4x8xf32>
    tpu.vector_store %arg6[%c0_29, %c0_30, %c0_31], %43 {strides = array<i32>} : memref<8x4x8xf32, #tpu.memory_space<vmem>>, vector<8x4x8xf32>,
    return
  }
  func.func @transform_0(%arg0: i32) -> (i32, i32, i32) {
    %c0_i32 = arith.constant 0 : i32
    %c0_i32_0 = arith.constant 0 : i32
    %c0_i32_1 = arith.constant 0 : i32
    return %arg0, %c0_i32, %c0_i32_0 : i32, i32, i32
  }
  func.func @transform_1(%arg0: i32) -> (i32, i32, i32) {
    %c0_i32 = arith.constant 0 : i32
    %c0_i32_0 = arith.constant 0 : i32
    %c0_i32_1 = arith.constant 0 : i32
    return %arg0, %c0_i32, %c0_i32_0 : i32, i32, i32
  }
  func.func @transform_2(%arg0: i32) -> (i32, i32, i32) {
    %c0_i32 = arith.constant 0 : i32
    %c0_i32_0 = arith.constant 0 : i32
    %c0_i32_1 = arith.constant 0 : i32
    return %arg0, %c0_i32, %c0_i32_0 : i32, i32, i32
  }
  func.func @transform_3(%arg0: i32) -> (i32, i32, i32) {
    %c0_i32 = arith.constant 0 : i32
    %c0_i32_0 = arith.constant 0 : i32
    %c0_i32_1 = arith.constant 0 : i32
    return %arg0, %c0_i32, %c0_i32_0 : i32, i32, i32
  }
  func.func @transform_4(%arg0: i32) -> (i32, i32, i32) {
    %c0_i32 = arith.constant 0 : i32
    %c0_i32_0 = arith.constant 0 : i32
    %c0_i32_1 = arith.constant 0 : i32
    return %arg0, %c0_i32, %c0_i32_0 : i32, i32, i32
  }
  func.func @transform_5(%arg0: i32) -> (i32, i32, i32) {
    %c0_i32 = arith.constant 0 : i32
    %c0_i32_0 = arith.constant 0 : i32
    %c0_i32_1 = arith.constant 0 : i32
    return %arg0, %c0_i32, %c0_i32_0 : i32, i32, i32
  }
}

module attributes {stable_mosaic.version = 11 : i64} {
  func.func @_matmul_kernel(%arg0: i32, %arg1: memref<4x32xf32, #tpu.memory_space<vmem>>, %arg2: memref<32x32xf32, #tpu.memory_space<vmem>>, %arg3: memref<4x32xf32, #tpu.memory_space<vmem>>) attributes {dimension_semantics = [#tpu.dimension_semantics<parallel>], iteration_bounds = array<i64: 1>, scalar_prefetch = 0 : i64, scratch_operands = 0 : i64, tpu.core_type = #tpu.core_type<tc>, window_params = [{transform_indices = @transform_0, window_bounds = array<i64: 4, 32>}, {pipeline_mode = #tpu.pipeline_mode<synchronous>, transform_indices = @transform_1, window_bounds = array<i64: 32, 32>}, {transform_indices = @transform_2, window_bounds = array<i64: 4, 32>}]} {
    %c0 = arith.constant 0 : index
    %c0_0 = arith.constant 0 : index
    %0 = vector.load %arg1[%c0, %c0_0] : memref<4x32xf32, #tpu.memory_space<vmem>>, vector<4x32xf32>
    %c0_1 = arith.constant 0 : index
    %c0_2 = arith.constant 0 : index
    %1 = vector.load %arg2[%c0_1, %c0_2] : memref<32x32xf32, #tpu.memory_space<vmem>>, vector<32x32xf32>
    %cst = arith.constant dense<0.000000e+00> : vector<4x32xf32>
    %2 = tpu.matmul %0, %1, %cst {dimension_numbers = #tpu.dot_dimension_numbers<[1], [0], [0], [1], [0, 0, 1, 1], [], []>} : vector<4x32xf32>, vector<32x32xf32>, vector<4x32xf32> -> vector<4x32xf32>
    %c0_3 = arith.constant 0 : index
    %c0_4 = arith.constant 0 : index
    %3 = vector.load %arg3[%c0_3, %c0_4] : memref<4x32xf32, #tpu.memory_space<vmem>>, vector<4x32xf32>
    tpu.vector_store %arg3[%c0_3, %c0_4], %2 {strides = array<i32>} : memref<4x32xf32, #tpu.memory_space<vmem>>, vector<4x32xf32>,
    return
  }
  func.func @transform_0(%arg0: i32) -> (i32, i32) {
    %c0_i32 = arith.constant 0 : i32
    %c0_i32_0 = arith.constant 0 : i32
    return %arg0, %c0_i32 : i32, i32
  }
  func.func @transform_1(%arg0: i32) -> (i32, i32) {
    %c0_i32 = arith.constant 0 : i32
    %c0_i32_0 = arith.constant 0 : i32
    %c0_i32_1 = arith.constant 0 : i32
    return %c0_i32, %c0_i32_0 : i32, i32
  }
  func.func @transform_2(%arg0: i32) -> (i32, i32) {
    %c0_i32 = arith.constant 0 : i32
    %c0_i32_0 = arith.constant 0 : i32
    return %arg0, %c0_i32 : i32, i32
  }
}

module attributes {stable_mosaic.version = 11 : i64} {
  func.func @_matmul_kernel(%arg0: i32, %arg1: memref<8x32xf32, #tpu.memory_space<vmem>>, %arg2: memref<32x32xf32, #tpu.memory_space<vmem>>, %arg3: memref<8x32xf32, #tpu.memory_space<vmem>>) attributes {dimension_semantics = [#tpu.dimension_semantics<parallel>], iteration_bounds = array<i64: 1>, scalar_prefetch = 0 : i64, scratch_operands = 0 : i64, tpu.core_type = #tpu.core_type<tc>, window_params = [{transform_indices = @transform_0, window_bounds = array<i64: 8, 32>}, {pipeline_mode = #tpu.pipeline_mode<synchronous>, transform_indices = @transform_1, window_bounds = array<i64: 32, 32>}, {transform_indices = @transform_2, window_bounds = array<i64: 8, 32>}]} {
    %c0 = arith.constant 0 : index
    %c0_0 = arith.constant 0 : index
    %0 = vector.load %arg1[%c0, %c0_0] : memref<8x32xf32, #tpu.memory_space<vmem>>, vector<8x32xf32>
    %c0_1 = arith.constant 0 : index
    %c0_2 = arith.constant 0 : index
    %1 = vector.load %arg2[%c0_1, %c0_2] : memref<32x32xf32, #tpu.memory_space<vmem>>, vector<32x32xf32>
    %cst = arith.constant dense<0.000000e+00> : vector<8x32xf32>
    %2 = tpu.matmul %0, %1, %cst {dimension_numbers = #tpu.dot_dimension_numbers<[1], [0], [0], [1], [0, 0, 1, 1], [], []>} : vector<8x32xf32>, vector<32x32xf32>, vector<8x32xf32> -> vector<8x32xf32>
    %c0_3 = arith.constant 0 : index
    %c0_4 = arith.constant 0 : index
    %3 = vector.load %arg3[%c0_3, %c0_4] : memref<8x32xf32, #tpu.memory_space<vmem>>, vector<8x32xf32>
    tpu.vector_store %arg3[%c0_3, %c0_4], %2 {strides = array<i32>} : memref<8x32xf32, #tpu.memory_space<vmem>>, vector<8x32xf32>,
    return
  }
  func.func @transform_0(%arg0: i32) -> (i32, i32) {
    %c0_i32 = arith.constant 0 : i32
    %c0_i32_0 = arith.constant 0 : i32
    return %arg0, %c0_i32 : i32, i32
  }
  func.func @transform_1(%arg0: i32) -> (i32, i32) {
    %c0_i32 = arith.constant 0 : i32
    %c0_i32_0 = arith.constant 0 : i32
    %c0_i32_1 = arith.constant 0 : i32
    return %c0_i32, %c0_i32_0 : i32, i32
  }
  func.func @transform_2(%arg0: i32) -> (i32, i32) {
    %c0_i32 = arith.constant 0 : i32
    %c0_i32_0 = arith.constant 0 : i32
    return %arg0, %c0_i32 : i32, i32
  }
}

module attributes {stable_mosaic.version = 11 : i64} {
  func.func @_matmul_kernel(%arg0: i32, %arg1: memref<16x32xf32, #tpu.memory_space<vmem>>, %arg2: memref<32x32xf32, #tpu.memory_space<vmem>>, %arg3: memref<16x32xf32, #tpu.memory_space<vmem>>) attributes {dimension_semantics = [#tpu.dimension_semantics<parallel>], iteration_bounds = array<i64: 1>, scalar_prefetch = 0 : i64, scratch_operands = 0 : i64, tpu.core_type = #tpu.core_type<tc>, window_params = [{transform_indices = @transform_0, window_bounds = array<i64: 16, 32>}, {pipeline_mode = #tpu.pipeline_mode<synchronous>, transform_indices = @transform_1, window_bounds = array<i64: 32, 32>}, {transform_indices = @transform_2, window_bounds = array<i64: 16, 32>}]} {
    %c0 = arith.constant 0 : index
    %c0_0 = arith.constant 0 : index
    %0 = vector.load %arg1[%c0, %c0_0] : memref<16x32xf32, #tpu.memory_space<vmem>>, vector<16x32xf32>
    %c0_1 = arith.constant 0 : index
    %c0_2 = arith.constant 0 : index
    %1 = vector.load %arg2[%c0_1, %c0_2] : memref<32x32xf32, #tpu.memory_space<vmem>>, vector<32x32xf32>
    %cst = arith.constant dense<0.000000e+00> : vector<16x32xf32>
    %2 = tpu.matmul %0, %1, %cst {dimension_numbers = #tpu.dot_dimension_numbers<[1], [0], [0], [1], [0, 0, 1, 1], [], []>} : vector<16x32xf32>, vector<32x32xf32>, vector<16x32xf32> -> vector<16x32xf32>
    %c0_3 = arith.constant 0 : index
    %c0_4 = arith.constant 0 : index
    %3 = vector.load %arg3[%c0_3, %c0_4] : memref<16x32xf32, #tpu.memory_space<vmem>>, vector<16x32xf32>
    tpu.vector_store %arg3[%c0_3, %c0_4], %2 {strides = array<i32>} : memref<16x32xf32, #tpu.memory_space<vmem>>, vector<16x32xf32>,
    return
  }
  func.func @transform_0(%arg0: i32) -> (i32, i32) {
    %c0_i32 = arith.constant 0 : i32
    %c0_i32_0 = arith.constant 0 : i32
    return %arg0, %c0_i32 : i32, i32
  }
  func.func @transform_1(%arg0: i32) -> (i32, i32) {
    %c0_i32 = arith.constant 0 : i32
    %c0_i32_0 = arith.constant 0 : i32
    %c0_i32_1 = arith.constant 0 : i32
    return %c0_i32, %c0_i32_0 : i32, i32
  }
  func.func @transform_2(%arg0: i32) -> (i32, i32) {
    %c0_i32 = arith.constant 0 : i32
    %c0_i32_0 = arith.constant 0 : i32
    return %arg0, %c0_i32 : i32, i32
  }
}

module attributes {stable_mosaic.version = 11 : i64} {
  func.func @_matmul_bias_kernel(%arg0: i32, %arg1: memref<32x16xf32, #tpu.memory_space<vmem>>, %arg2: memref<16x32xf32, #tpu.memory_space<vmem>>, %arg3: memref<1x32xf32, #tpu.memory_space<vmem>>, %arg4: memref<32x32xf32, #tpu.memory_space<vmem>>) attributes {dimension_semantics = [#tpu.dimension_semantics<parallel>], iteration_bounds = array<i64: 1>, scalar_prefetch = 0 : i64, scratch_operands = 0 : i64, tpu.core_type = #tpu.core_type<tc>, window_params = [{transform_indices = @transform_0, window_bounds = array<i64: 32, 16>}, {pipeline_mode = #tpu.pipeline_mode<synchronous>, transform_indices = @transform_1, window_bounds = array<i64: 16, 32>}, {pipeline_mode = #tpu.pipeline_mode<synchronous>, transform_indices = @transform_2, window_bounds = array<i64: 1, 32>}, {transform_indices = @transform_3, window_bounds = array<i64: 32, 32>}]} {
    %c0 = arith.constant 0 : index
    %c0_0 = arith.constant 0 : index
    %0 = vector.load %arg1[%c0, %c0_0] : memref<32x16xf32, #tpu.memory_space<vmem>>, vector<32x16xf32>
    %c0_1 = arith.constant 0 : index
    %c0_2 = arith.constant 0 : index
    %1 = vector.load %arg2[%c0_1, %c0_2] : memref<16x32xf32, #tpu.memory_space<vmem>>, vector<16x32xf32>
    %cst = arith.constant dense<0.000000e+00> : vector<32x32xf32>
    %2 = tpu.matmul %0, %1, %cst {dimension_numbers = #tpu.dot_dimension_numbers<[1], [0], [0], [1], [0, 0, 1, 1], [], []>} : vector<32x16xf32>, vector<16x32xf32>, vector<32x32xf32> -> vector<32x32xf32>
    %c0_3 = arith.constant 0 : index
    %c0_4 = arith.constant 0 : index
    %3 = vector.load %arg3[%c0_3, %c0_4] : memref<1x32xf32, #tpu.memory_space<vmem>>, vector<1x32xf32>
    %4 = vector.broadcast %3 : vector<1x32xf32> to vector<32x32xf32>
    %5 = arith.addf %2, %4 : vector<32x32xf32>
    %c0_5 = arith.constant 0 : index
    %c0_6 = arith.constant 0 : index
    %6 = vector.load %arg4[%c0_5, %c0_6] : memref<32x32xf32, #tpu.memory_space<vmem>>, vector<32x32xf32>
    tpu.vector_store %arg4[%c0_5, %c0_6], %5 {strides = array<i32>} : memref<32x32xf32, #tpu.memory_space<vmem>>, vector<32x32xf32>,
    return
  }
  func.func @transform_0(%arg0: i32) -> (i32, i32) {
    %c0_i32 = arith.constant 0 : i32
    %c0_i32_0 = arith.constant 0 : i32
    return %arg0, %c0_i32 : i32, i32
  }
  func.func @transform_1(%arg0: i32) -> (i32, i32) {
    %c0_i32 = arith.constant 0 : i32
    %c0_i32_0 = arith.constant 0 : i32
    %c0_i32_1 = arith.constant 0 : i32
    return %c0_i32, %c0_i32_0 : i32, i32
  }
  func.func @transform_2(%arg0: i32) -> (i32, i32) {
    %c0_i32 = arith.constant 0 : i32
    %c0_i32_0 = arith.constant 0 : i32
    %c0_i32_1 = arith.constant 0 : i32
    return %c0_i32, %c0_i32_0 : i32, i32
  }
  func.func @transform_3(%arg0: i32) -> (i32, i32) {
    %c0_i32 = arith.constant 0 : i32
    %c0_i32_0 = arith.constant 0 : i32
    return %arg0, %c0_i32 : i32, i32
  }
}

</mosaic_0001>

<llo_original>
// kernel: multi_wavelet_cross_forward.14
$region0: #{multi_wavelet_cross_forward.14}
  #allocation0 [shape = 'u32[]', space=smem, size = 0x4, offset = 0x4, fixed_abs, tag = 'smem constant byte address 0x4 - core index']
  #allocation1 [shape = 'u32[144,128]{1,0:T(1,128)}', space=vmem, size = 0x12000, scoped, tag = 'internal scratch']
  %s0 = inlined_call_operand.vmem [shape: f32[2,32], index: 0, kind: input, shape index: {}]
  %s1 = inlined_call_operand.hbm [shape: f32[32,32], index: 1, kind: input, shape index: {}]
  %s2 = inlined_call_operand.vmem [shape: f32[2,32], index: 2, kind: output, shape index: {}]
  %s3 = sld [smem:[#allocation0]]
  $region22: #{multi_wavelet_cross_forward.14} parent=0
    _
  %s5 = ssub.s32 1, %s3
  %s6 = scalar_select 0, %s5, %s3
  $region1: #{multi_wavelet_cross_forward.14} parent=0
    #allocation2 [shape = 'u8[16384]{0}', space=vmem, size = 0x4000, scoped, tag = 'input window, operand 1, single buffered']
    #allocation3 [shape = 's32[1]{0}', space=sflag, size = 0x4, scoped, tag = 'scoped memory for multi_wavelet_cross_forward.14']
    %7 = vsyncpa [#allocation3], 0
    // Predicated region
    $region2: #{multi_wavelet_cross_forward.14} parent=1 // pred_check
      _
    $region3: #{multi_wavelet_cross_forward.14} parent=1 // pred_check_branch
      %9 = sbr.rel (0) target = $region5
    $region4: #{multi_wavelet_cross_forward.14} parent=1 // pred_region
      _
    $region5: #{multi_wavelet_cross_forward.14} parent=1 // pred_fallthru
      _
    // Predicated region
    $region6: #{multi_wavelet_cross_forward.14} parent=1 // pred_check
      _
    $region7: #{multi_wavelet_cross_forward.14} parent=1 // pred_check_branch
      %11 = sbr.rel (0) target = $region9
    $region8: #{multi_wavelet_cross_forward.14} parent=1 // pred_region
      %s13 = ssub.s32 512, 512
      %14 = vsyncadd [#allocation3], %s13
      %s15 = sshll.u32 [#allocation2], 4
      %s16 = int_to_ptr.vmem [resolvable:$true] %s15
      %21 = dma.hbm_to_vmem [thread:$0]  %s1, 512, %s16, [#allocation3], 128, 128, 8
    $region9: #{multi_wavelet_cross_forward.14} parent=1 // pred_fallthru
      _
    // Predicated region
    $region10: #{multi_wavelet_cross_forward.14} parent=1 // pred_check
      _
    $region11: #{multi_wavelet_cross_forward.14} parent=1 // pred_check_branch
      %23 = sbr.rel (0) target = $region13
    $region12: #{multi_wavelet_cross_forward.14} parent=1 // pred_region
      %24 = dma.done [#allocation3], 512
    $region13: #{multi_wavelet_cross_forward.14} parent=1 // pred_fallthru
      _
    %v25 = vld [vmem:[%s0] sm:$0x3]
    %v26 = vld [vmem:[#allocation2] sm:$0xff]
    %v27 = vld [vmem:[#allocation2 + $0x8] sm:$0xff]
    %v28 = vld [vmem:[#allocation2 + $0x10] sm:$0xff]
    %v29 = vld [vmem:[#allocation2 + $0x18] sm:$0xff]
    %vm30 = vcmask 261120
    %v32 = vsel %vm30, %v25, 0
    %34 = vmatprep.subr.mxu0 0.0
    %35 = vmatpush1.msra.mxu0 0.0
    %36 = vmatprep.subr.mxu0 0.0
    %37 = vmatpush1.msra.mxu0 0.0
    %38 = vmatprep.subr.mxu0 0.0
    %39 = vmatpush1.msra.mxu0 0.0
    %40 = vmatprep.subr.mxu0 0.0
    %41 = vmatpush1.msra.mxu0 0.0
    %42 = vmatprep.subr.mxu0 0.0
    %43 = vmatpush1.msra.mxu0 0.0
    %44 = vmatprep.subr.mxu0 0.0
    %45 = vmatpush1.msra.mxu0 0.0
    %46 = vmatprep.subr.mxu0 0.0
    %47 = vmatpush1.msra.mxu0 0.0
    %48 = vmatprep.subr.mxu0 0.0
    %49 = vmatpush1.msra.mxu0 0.0
    %50 = vmatprep.subr.mxu0 0.0
    %51 = vmatpush1.msra.mxu0 0.0
    %52 = vmatprep.subr.mxu0 0.0
    %53 = vmatpush1.msra.mxu0 0.0
    %54 = vmatprep.subr.mxu0 0.0
    %55 = vmatpush1.msra.mxu0 0.0
    %56 = vmatprep.subr.mxu0 0.0
    %57 = vmatpush1.msra.mxu0 0.0
    %58 = vmatprep.subr.mxu0 0.0
    %59 = vmatpush1.msra.mxu0 %v29
    %60 = vmatprep.subr.mxu0 0.0
    %61 = vmatpush1.msra.mxu0 %v28
    %62 = vmatprep.subr.mxu0 0.0
    %63 = vmatpush1.msra.mxu0 %v27
    %64 = vmatprep.subr.mxu0 0.0
    %65 = vmatpush1.msra.mxu0 %v26
    %66 = vmatprep.subr.mxu0 0.0
    %67 = vmatpush2.msra.mxu0 0.0
    %68 = vmatprep.subr.mxu0 0.0
    %69 = vmatpush2.msra.mxu0 0.0
    %70 = vmatprep.subr.mxu0 0.0
    %71 = vmatpush2.msra.mxu0 0.0
    %72 = vmatprep.subr.mxu0 0.0
    %73 = vmatpush2.msra.mxu0 0.0
    %74 = vmatprep.subr.mxu0 0.0
    %75 = vmatpush2.msra.mxu0 0.0
    %76 = vmatprep.subr.mxu0 0.0
    %77 = vmatpush2.msra.mxu0 0.0
    %78 = vmatprep.subr.mxu0 0.0
    %79 = vmatpush2.msra.mxu0 0.0
    %80 = vmatprep.subr.mxu0 0.0
    %81 = vmatpush2.msra.mxu0 0.0
    %82 = vmatprep.subr.mxu0 0.0
    %83 = vmatpush2.msra.mxu0 0.0
    %84 = vmatprep.subr.mxu0 0.0
    %85 = vmatpush2.msra.mxu0 0.0
    %86 = vmatprep.subr.mxu0 0.0
    %87 = vmatpush2.msra.mxu0 0.0
    %88 = vmatprep.subr.mxu0 0.0
    %89 = vmatpush2.msra.mxu0 0.0
    %90 = vmatprep.subr.mxu0 0.0
    %91 = vmatpush2.msra.mxu0 0.0
    %92 = vmatprep.subr.mxu0 0.0
    %93 = vmatpush2.msra.mxu0 0.0
    %94 = vmatprep.subr.mxu0 0.0
    %95 = vmatpush2.msra.mxu0 0.0
    %96 = vmatprep.subr.mxu0 0.0
    %97 = vmatpush2.msra.mxu0 0.0
    %98 = vmatprep.mubr.f32.mxu0 0.0
    %99 = vmatmul.mubr.f32.gmra.mxu0 %v32
    %v100 = vpop.f32.mrf.mxu0
    %v101 = vadd.f32 0.0, %v100
    %v102 = vpop.f32.mrf.mxu0
    %103 = vdwg.mxu0
    %vm104 = vcmask 254976
    %105 = vst.msk [vmem:[%s2] sm:$0x3] %vm104, %v101
    // Predicated region
    $region14: #{multi_wavelet_cross_forward.14} parent=1 // pred_check
      _
    $region15: #{multi_wavelet_cross_forward.14} parent=1 // pred_check_branch
      %107 = sbr.rel (0) target = $region17
    $region16: #{multi_wavelet_cross_forward.14} parent=1 // pred_region
      _
    $region17: #{multi_wavelet_cross_forward.14} parent=1 // pred_fallthru
      _
    // Predicated region
    $region18: #{multi_wavelet_cross_forward.14} parent=1 // pred_check
      _
    $region19: #{multi_wavelet_cross_forward.14} parent=1 // pred_check_branch
      %109 = sbr.rel (0) target = $region21
    $region20: #{multi_wavelet_cross_forward.14} parent=1 // pred_region
      _
    $region21: #{multi_wavelet_cross_forward.14} parent=1 // pred_fallthru
      _
    %110 = vsyncpa [#allocation3], 1

// kernel: multi_wavelet_cross_forward.17
$region0: #{multi_wavelet_cross_forward.17}
  #allocation0 [shape = 'u32[]', space=smem, size = 0x4, offset = 0x4, fixed_abs, tag = 'smem constant byte address 0x4 - core index']
  #allocation1 [shape = 'u32[144,128]{1,0:T(1,128)}', space=vmem, size = 0x12000, scoped, tag = 'internal scratch']
  %s0 = inlined_call_operand.vmem [shape: f32[32,32], index: 0, kind: input, shape index: {}]
  %s1 = inlined_call_operand.vmem [shape: f32[32,16], index: 1, kind: input, shape index: {}]
  %s2 = inlined_call_operand.vmem [shape: f32[1,16], index: 2, kind: input, shape index: {}]
  %s3 = inlined_call_operand.vmem [shape: f32[32,16], index: 3, kind: output, shape index: {}]
  %s4 = sld [smem:[#allocation0]]
  $region22: #{multi_wavelet_cross_forward.17} parent=0
    _
  %s6 = ssub.s32 1, %s4
  %s7 = scalar_select 0, %s6, %s4
  // Predicated region
  $region2: #{multi_wavelet_cross_forward.17} parent=0 // pred_check
    _
  $region3: #{multi_wavelet_cross_forward.17} parent=0 // pred_check_branch
    %9 = sbr.rel (0) target = $region5
  $region4: #{multi_wavelet_cross_forward.17} parent=0 // pred_region
    _
  $region5: #{multi_wavelet_cross_forward.17} parent=0 // pred_fallthru
    _
  // Predicated region
  $region6: #{multi_wavelet_cross_forward.17} parent=0 // pred_check
    _
  $region7: #{multi_wavelet_cross_forward.17} parent=0 // pred_check_branch
    %11 = sbr.rel (0) target = $region9
  $region8: #{multi_wavelet_cross_forward.17} parent=0 // pred_region
    _
  $region9: #{multi_wavelet_cross_forward.17} parent=0 // pred_fallthru
    _
  // Predicated region
  $region10: #{multi_wavelet_cross_forward.17} parent=0 // pred_check
    _
  $region11: #{multi_wavelet_cross_forward.17} parent=0 // pred_check_branch
    %13 = sbr.rel (0) target = $region13
  $region12: #{multi_wavelet_cross_forward.17} parent=0 // pred_region
    _
  $region13: #{multi_wavelet_cross_forward.17} parent=0 // pred_fallthru
    _
  %v14 = vld [vmem:[%s0] sm:$0xff]
  %v15 = vld [vmem:[%s0 + $0x8] sm:$0xff]
  %v16 = vld [vmem:[%s0 + $0x10] sm:$0xff]
  %v17 = vld [vmem:[%s0 + $0x18] sm:$0xff]
  %v18 = vld [vmem:[%s1] sm:$0xff]
  %v19 = vld [vmem:[%s1 + $0x8] sm:$0xff]
  %v20 = vld [vmem:[%s1 + $0x10] sm:$0xff]
  %v21 = vld [vmem:[%s1 + $0x18] sm:$0xff]
  %v22 = vld [vmem:[%s2] sm:$0x1]
  %v24 = vlaneseq
  %v25 = vshrl.u32 %v24, 7
  %v26 = vsub.s32 0, %v25
  %v27 = vrot.slane %v22, %v26
  %vm29 = vcmask 261120
  %v31 = vsel %vm29, %v14, 0
  %v34 = vsel %vm29, %v15, 0
  %v37 = vsel %vm29, %v16, 0
  %v40 = vsel %vm29, %v17, 0
  %42 = vmatprep.subr.mxu0 0.0
  %43 = vmatpush1.msra.mxu0 0.0
  %44 = vmatprep.subr.mxu0 0.0
  %45 = vmatpush1.msra.mxu0 0.0
  %46 = vmatprep.subr.mxu0 0.0
  %47 = vmatpush1.msra.mxu0 0.0
  %48 = vmatprep.subr.mxu0 0.0
  %49 = vmatpush1.msra.mxu0 0.0
  %50 = vmatprep.subr.mxu0 0.0
  %51 = vmatpush1.msra.mxu0 0.0
  %52 = vmatprep.subr.mxu0 0.0
  %53 = vmatpush1.msra.mxu0 0.0
  %54 = vmatprep.subr.mxu0 0.0
  %55 = vmatpush1.msra.mxu0 0.0
  %56 = vmatprep.subr.mxu0 0.0
  %57 = vmatpush1.msra.mxu0 0.0
  %58 = vmatprep.subr.mxu0 0.0
  %59 = vmatpush1.msra.mxu0 0.0
  %60 = vmatprep.subr.mxu0 0.0
  %61 = vmatpush1.msra.mxu0 0.0
  %62 = vmatprep.subr.mxu0 0.0
  %63 = vmatpush1.msra.mxu0 0.0
  %64 = vmatprep.subr.mxu0 0.0
  %65 = vmatpush1.msra.mxu0 0.0
  %66 = vmatprep.subr.mxu0 0.0
  %67 = vmatpush1.msra.mxu0 %v21
  %68 = vmatprep.subr.mxu0 0.0
  %69 = vmatpush1.msra.mxu0 %v20
  %70 = vmatprep.subr.mxu0 0.0
  %71 = vmatpush1.msra.mxu0 %v19
  %72 = vmatprep.subr.mxu0 0.0
  %73 = vmatpush1.msra.mxu0 %v18
  %74 = vmatprep.subr.mxu0 0.0
  %75 = vmatpush2.msra.mxu0 0.0
  %76 = vmatprep.subr.mxu0 0.0
  %77 = vmatpush2.msra.mxu0 0.0
  %78 = vmatprep.subr.mxu0 0.0
  %79 = vmatpush2.msra.mxu0 0.0
  %80 = vmatprep.subr.mxu0 0.0
  %81 = vmatpush2.msra.mxu0 0.0
  %82 = vmatprep.subr.mxu0 0.0
  %83 = vmatpush2.msra.mxu0 0.0
  %84 = vmatprep.subr.mxu0 0.0
  %85 = vmatpush2.msra.mxu0 0.0
  %86 = vmatprep.subr.mxu0 0.0
  %87 = vmatpush2.msra.mxu0 0.0
  %88 = vmatprep.subr.mxu0 0.0
  %89 = vmatpush2.msra.mxu0 0.0
  %90 = vmatprep.subr.mxu0 0.0
  %91 = vmatpush2.msra.mxu0 0.0
  %92 = vmatprep.subr.mxu0 0.0
  %93 = vmatpush2.msra.mxu0 0.0
  %94 = vmatprep.subr.mxu0 0.0
  %95 = vmatpush2.msra.mxu0 0.0
  %96 = vmatprep.subr.mxu0 0.0
  %97 = vmatpush2.msra.mxu0 0.0
  %98 = vmatprep.subr.mxu0 0.0
  %99 = vmatpush2.msra.mxu0 0.0
  %100 = vmatprep.subr.mxu0 0.0
  %101 = vmatpush2.msra.mxu0 0.0
  %102 = vmatprep.subr.mxu0 0.0
  %103 = vmatpush2.msra.mxu0 0.0
  %104 = vmatprep.subr.mxu0 0.0
  %105 = vmatpush2.msra.mxu0 0.0
  %106 = vmatprep.mubr.f32.mxu0 0.0
  %107 = vmatmul.mubr.f32.gmra.mxu0 %v31
  %v108 = vpop.f32.mrf.mxu0
  %v109 = vadd.f32 %v27, %v108
  %v110 = vpop.f32.mrf.mxu0
  %111 = vmatprep.mubr.f32.mxu0 0.0
  %112 = vmatmul.mubr.f32.gmra.mxu0 %v34
  %v113 = vpop.f32.mrf.mxu0
  %v114 = vadd.f32 %v27, %v113
  %v115 = vpop.f32.mrf.mxu0
  %116 = vmatprep.mubr.f32.mxu0 0.0
  %117 = vmatmul.mubr.f32.gmra.mxu0 %v37
  %v118 = vpop.f32.mrf.mxu0
  %v119 = vadd.f32 %v27, %v118
  %v120 = vpop.f32.mrf.mxu0
  %121 = vmatprep.mubr.f32.mxu0 0.0
  %122 = vmatmul.mubr.f32.gmra.mxu0 %v40
  %v123 = vpop.f32.mrf.mxu0
  %v124 = vadd.f32 %v27, %v123
  %v125 = vpop.f32.mrf.mxu0
  %126 = vdwg.mxu0
  %vm127 = vcmask 130048
  %128 = vst.msk [vmem:[%s3] sm:$0xff] %vm127, %v109
  %129 = vst.msk [vmem:[%s3 + $0x8] sm:$0xff] %vm127, %v114
  %130 = vst.msk [vmem:[%s3 + $0x10] sm:$0xff] %vm127, %v119
  %131 = vst.msk [vmem:[%s3 + $0x18] sm:$0xff] %vm127, %v124
  // Predicated region
  $region14: #{multi_wavelet_cross_forward.17} parent=0 // pred_check
    _
  $region15: #{multi_wavelet_cross_forward.17} parent=0 // pred_check_branch
    %133 = sbr.rel (0) target = $region17
  $region16: #{multi_wavelet_cross_forward.17} parent=0 // pred_region
    _
  $region17: #{multi_wavelet_cross_forward.17} parent=0 // pred_fallthru
    _
  // Predicated region
  $region18: #{multi_wavelet_cross_forward.17} parent=0 // pred_check
    _
  $region19: #{multi_wavelet_cross_forward.17} parent=0 // pred_check_branch
    %135 = sbr.rel (0) target = $region21
  $region20: #{multi_wavelet_cross_forward.17} parent=0 // pred_region
    _
  $region21: #{multi_wavelet_cross_forward.17} parent=0 // pred_fallthru
    _

// kernel: multi_wavelet_cross_forward.18
$region0: #{multi_wavelet_cross_forward.18}
  #allocation0 [shape = 'u32[]', space=smem, size = 0x4, offset = 0x4, fixed_abs, tag = 'smem constant byte address 0x4 - core index']
  #allocation1 [shape = 'u32[144,128]{1,0:T(1,128)}', space=vmem, size = 0x12000, scoped, tag = 'internal scratch']
  %s0 = inlined_call_operand.vmem [shape: f32[48,32], index: 0, kind: input, shape index: {}]
  %s1 = inlined_call_operand.vmem [shape: f32[32,32], index: 1, kind: input, shape index: {}]
  %s2 = inlined_call_operand.vmem [shape: f32[48,32], index: 2, kind: output, shape index: {}]
  %s3 = sld [smem:[#allocation0]]
  $region41: #{multi_wavelet_cross_forward.18} parent=0
    _
  %s5 = ssub.s32 1, %s3
  %s6 = scalar_select 0, %s5, %s3
  loop: start=0, step=1, limit=5
  $region2: #{multi_wavelet_cross_forward.18} parent=0 // loop_pre_header
    _
  $region3: #{multi_wavelet_cross_forward.18} parent=0 // loop_header
    %s8 = sphi 0, %s12
    %p9 = scmp.ge.s32.totalorder %s8, 5
    %s18 = sphi 0, %s20
    %s21 = sphi 0, %s18
    %s22 = sphi 0, %s21
    %s38 = sphi 0, %s22
    %s42 = sphi 0, %s42
    %s44 = sphi 0, %s42
    %s45 = sphi 0, %s44
    %s59 = sphi 0, %s45
    %s65 = sphi 0, %s67
    %s68 = sphi 0, %s65
    %s69 = sphi 0, %s68
    %s85 = sphi 0, %s69
  $region4: #{multi_wavelet_cross_forward.18} parent=0 // loop_header_branch
    %11 = sbr.rel (%p9) target = $region8
  $region5: #{multi_wavelet_cross_forward.18} parent=0 // loop_body
    %s13 = ssub.s32 %s8, 1
    %s14 = ssub.s32 %s8, 2
    %s15 = sadd.s32 %s8, 1
    %s16 = ssub.s32 %s8, %s15
    %p17 = scmp.eq.s32.totalorder %s16, 0
    %s19 = sadd.s32 %s18, 1
    %s20 = scalar_select %p17, %s18, %s19
    %p23 = pneg %p17
    %p24 = scmp.eq.s32.totalorder %s8, 2
    %p25 = por %p23, %p24
    %p26 = scmp.ne.s32.totalorder %s18, %s21
    %p27 = scmp.eq.s32.totalorder %s8, 0
    %p28 = por %p26, %p27
    %p29 = scmp.ne.s32.totalorder %s18, %s21
    %p30 = scmp.eq.s32.totalorder %s13, 2
    %p31 = por %p29, %p30
    %p32 = scmp.ne.s32.totalorder %s21, %s22
    %p33 = scmp.eq.s32.totalorder %s13, 0
    %p34 = por %p32, %p33
    %p35 = scmp.ne.s32.totalorder %s21, %s22
    %p36 = scmp.eq.s32.totalorder %s14, 2
    %p37 = por %p35, %p36
    %p39 = scmp.ne.s32.totalorder %s22, %s38
    %p40 = scmp.eq.s32.totalorder %s14, 0
    %p41 = por %p39, %p40
    %s43 = sadd.s32 %s42, 1
    %p46 = scmp.eq.s32.totalorder %s8, 2
    %p47 = scmp.ne.s32.totalorder %s42, %s44
    %p48 = scmp.eq.s32.totalorder %s8, 0
    %p49 = por %p47, %p48
    %p50 = scmp.ne.s32.totalorder %s42, %s44
    %p51 = scmp.eq.s32.totalorder %s13, 2
    %p52 = por %p50, %p51
    %p53 = scmp.ne.s32.totalorder %s44, %s45
    %p54 = scmp.eq.s32.totalorder %s13, 0
    %p55 = por %p53, %p54
    %p56 = scmp.ne.s32.totalorder %s44, %s45
    %p57 = scmp.eq.s32.totalorder %s14, 2
    %p58 = por %p56, %p57
    %p60 = scmp.ne.s32.totalorder %s45, %s59
    %p61 = scmp.eq.s32.totalorder %s14, 0
    %p62 = por %p60, %p61
    %s63 = ssub.s32 %s8, %s15
    %p64 = scmp.eq.s32.totalorder %s63, 0
    %s66 = sadd.s32 %s65, 1
    %s67 = scalar_select %p64, %s65, %s66
    %p70 = pneg %p64
    %p71 = scmp.eq.s32.totalorder %s8, 2
    %p72 = por %p70, %p71
    %p73 = scmp.ne.s32.totalorder %s65, %s68
    %p74 = scmp.eq.s32.totalorder %s8, 0
    %p75 = por %p73, %p74
    %p76 = scmp.ne.s32.totalorder %s65, %s68
    %p77 = scmp.eq.s32.totalorder %s13, 2
    %p78 = por %p76, %p77
    %p79 = scmp.ne.s32.totalorder %s68, %s69
    %p80 = scmp.eq.s32.totalorder %s13, 0
    %p81 = por %p79, %p80
    %p82 = scmp.ne.s32.totalorder %s68, %s69
    %p83 = scmp.eq.s32.totalorder %s14, 2
    %p84 = por %p82, %p83
    %p86 = scmp.ne.s32.totalorder %s69, %s85
    %p87 = scmp.eq.s32.totalorder %s14, 0
    %p88 = por %p86, %p87
    %p89 = scmp.le.s32.totalorder 1, %s8
    %p90 = scmp.lt.s32.totalorder %s8, 4
    %p91 = pnand %p89, %p90
    %p92 = pneg %p91
    // Predicated region
    $region9: #{multi_wavelet_cross_forward.18} parent=5 // pred_check
      _
    $region10: #{multi_wavelet_cross_forward.18} parent=5 // pred_check_branch
      %94 = sbr.rel (%p91) target = $region12
    $region11: #{multi_wavelet_cross_forward.18} parent=5 // pred_region
      %s95 = ssub.s32 %s8, 1
      // Predicated region
      $region13: #{multi_wavelet_cross_forward.18} parent=11 // pred_check
        %p96 = pneg %p55
      $region14: #{multi_wavelet_cross_forward.18} parent=11 // pred_check_branch
        %98 = sbr.rel (%p96) target = $region16
      $region15: #{multi_wavelet_cross_forward.18} parent=11 // pred_region
        _
      $region16: #{multi_wavelet_cross_forward.18} parent=11 // pred_fallthru
        _
    $region12: #{multi_wavelet_cross_forward.18} parent=5 // pred_fallthru
      _
    %p99 = scmp.lt.s32.totalorder %s8, 3
    // Predicated region
    $region17: #{multi_wavelet_cross_forward.18} parent=5 // pred_check
      %p100 = pneg %p99
    $region18: #{multi_wavelet_cross_forward.18} parent=5 // pred_check_branch
      %102 = sbr.rel (%p100) target = $region20
    $region19: #{multi_wavelet_cross_forward.18} parent=5 // pred_region
      // Predicated region
      $region21: #{multi_wavelet_cross_forward.18} parent=19 // pred_check
        %p103 = pneg %p28
      $region22: #{multi_wavelet_cross_forward.18} parent=19 // pred_check_branch
        %105 = sbr.rel (%p103) target = $region24
      $region23: #{multi_wavelet_cross_forward.18} parent=19 // pred_region
        %s106 = smul.u32 2, %s8
        %p107 = scmp.lt.s32.totalorder %s106, 5
        %s108 = scalar_select %p107, %s106, 5
        %s109 = smul.addr %s108, 8
        %s110 = scalar_lea.vmem %s0, %s109
        %s111 = smul.u32 2, %s8
      $region24: #{multi_wavelet_cross_forward.18} parent=19 // pred_fallthru
        _
    $region20: #{multi_wavelet_cross_forward.18} parent=5 // pred_fallthru
      _
    %p112 = scmp.le.s32.totalorder 1, %s8
    %p113 = scmp.lt.s32.totalorder %s8, 4
    %p114 = pnand %p112, %p113
    %p115 = pneg %p114
    // Predicated region
    $region25: #{multi_wavelet_cross_forward.18} parent=5 // pred_check
      _
    $region26: #{multi_wavelet_cross_forward.18} parent=5 // pred_check_branch
      %117 = sbr.rel (%p114) target = $region28
    $region27: #{multi_wavelet_cross_forward.18} parent=5 // pred_region
      %s118 = ssub.s32 %s8, 1
      %s119 = smul.u32 2, %s13
      %p120 = scmp.lt.s32.totalorder %s119, 5
      %s121 = scalar_select %p120, %s119, 5
      %s122 = smul.addr %s121, 8
      %s123 = scalar_lea.vmem %s0, %s122
      %p124 = pneg %p34
      %p125 = pneg %p31
      %p126 = pneg %p55
      %p127 = pneg %p52
      %p128 = pneg %p81
      %p129 = pneg %p78
      %s130 = smul.u32 2, %s13
      %p131 = scmp.lt.s32.totalorder %s130, 5
      %s132 = scalar_select %p131, %s130, 5
      %s133 = smul.addr %s132, 8
      %s134 = scalar_lea.vmem %s2, %s133
      %s135 = smul.u32 2, %s13
      %p136 = scmp.lt.s32.totalorder %s135, 5
      %s137 = scalar_select %p136, %s135, 5
      %s138 = smul.addr %s137, 8
      %s139 = scalar_lea.vmem %s0, %s138
      %s140 = smul.u32 2, %s13
      %s141 = smul.u32 2, %s13
      %p142 = scmp.lt.s32.totalorder %s141, 5
      %s143 = scalar_select %p142, %s141, 5
      %s144 = smul.addr %s143, 8
      %s145 = scalar_lea.vmem %s2, %s144
      %s146 = smul.u32 2, %s13
      %v147 = vld [vmem:[%s139] sm:$0xff]
      %v148 = vld [vmem:[%s139 + $0x8] sm:$0xff]
      %v149 = vld [vmem:[%s1] sm:$0xff]
      %v150 = vld [vmem:[%s1 + $0x8] sm:$0xff]
      %v151 = vld [vmem:[%s1 + $0x10] sm:$0xff]
      %v152 = vld [vmem:[%s1 + $0x18] sm:$0xff]
      %vm153 = vcmask 261120
      %v155 = vsel %vm153, %v147, 0
      %v158 = vsel %vm153, %v148, 0
      %160 = vmatprep.subr.mxu0 0.0
      %161 = vmatpush1.msra.mxu0 0.0
      %162 = vmatprep.subr.mxu0 0.0
      %163 = vmatpush1.msra.mxu0 0.0
      %164 = vmatprep.subr.mxu0 0.0
      %165 = vmatpush1.msra.mxu0 0.0
      %166 = vmatprep.subr.mxu0 0.0
      %167 = vmatpush1.msra.mxu0 0.0
      %168 = vmatprep.subr.mxu0 0.0
      %169 = vmatpush1.msra.mxu0 0.0
      %170 = vmatprep.subr.mxu0 0.0
      %171 = vmatpush1.msra.mxu0 0.0
      %172 = vmatprep.subr.mxu0 0.0
      %173 = vmatpush1.msra.mxu0 0.0
      %174 = vmatprep.subr.mxu0 0.0
      %175 = vmatpush1.msra.mxu0 0.0
      %176 = vmatprep.subr.mxu0 0.0
      %177 = vmatpush1.msra.mxu0 0.0
      %178 = vmatprep.subr.mxu0 0.0
      %179 = vmatpush1.msra.mxu0 0.0
      %180 = vmatprep.subr.mxu0 0.0
      %181 = vmatpush1.msra.mxu0 0.0
      %182 = vmatprep.subr.mxu0 0.0
      %183 = vmatpush1.msra.mxu0 0.0
      %184 = vmatprep.subr.mxu0 0.0
      %185 = vmatpush1.msra.mxu0 %v152
      %186 = vmatprep.subr.mxu0 0.0
      %187 = vmatpush1.msra.mxu0 %v151
      %188 = vmatprep.subr.mxu0 0.0
      %189 = vmatpush1.msra.mxu0 %v150
      %190 = vmatprep.subr.mxu0 0.0
      %191 = vmatpush1.msra.mxu0 %v149
      %192 = vmatprep.subr.mxu0 0.0
      %193 = vmatpush2.msra.mxu0 0.0
      %194 = vmatprep.subr.mxu0 0.0
      %195 = vmatpush2.msra.mxu0 0.0
      %196 = vmatprep.subr.mxu0 0.0
      %197 = vmatpush2.msra.mxu0 0.0
      %198 = vmatprep.subr.mxu0 0.0
      %199 = vmatpush2.msra.mxu0 0.0
      %200 = vmatprep.subr.mxu0 0.0
      %201 = vmatpush2.msra.mxu0 0.0
      %202 = vmatprep.subr.mxu0 0.0
      %203 = vmatpush2.msra.mxu0 0.0
      %204 = vmatprep.subr.mxu0 0.0
      %205 = vmatpush2.msra.mxu0 0.0
      %206 = vmatprep.subr.mxu0 0.0
      %207 = vmatpush2.msra.mxu0 0.0
      %208 = vmatprep.subr.mxu0 0.0
      %209 = vmatpush2.msra.mxu0 0.0
      %210 = vmatprep.subr.mxu0 0.0
      %211 = vmatpush2.msra.mxu0 0.0
      %212 = vmatprep.subr.mxu0 0.0
      %213 = vmatpush2.msra.mxu0 0.0
      %214 = vmatprep.subr.mxu0 0.0
      %215 = vmatpush2.msra.mxu0 0.0
      %216 = vmatprep.subr.mxu0 0.0
      %217 = vmatpush2.msra.mxu0 0.0
      %218 = vmatprep.subr.mxu0 0.0
      %219 = vmatpush2.msra.mxu0 0.0
      %220 = vmatprep.subr.mxu0 0.0
      %221 = vmatpush2.msra.mxu0 0.0
      %222 = vmatprep.subr.mxu0 0.0
      %223 = vmatpush2.msra.mxu0 0.0
      %224 = vmatprep.mubr.f32.mxu0 0.0
      %225 = vmatmul.mubr.f32.gmra.mxu0 %v155
      %v226 = vpop.f32.mrf.mxu0
      %v227 = vadd.f32 0.0, %v226
      %v228 = vpop.f32.mrf.mxu0
      %229 = vmatprep.mubr.f32.mxu0 0.0
      %230 = vmatmul.mubr.f32.gmra.mxu0 %v158
      %v231 = vpop.f32.mrf.mxu0
      %v232 = vadd.f32 0.0, %v231
      %v233 = vpop.f32.mrf.mxu0
      %234 = vdwg.mxu0
      %235 = vst.msk [vmem:[%s145] sm:$0xff] %vm153, %v227
      %236 = vst.msk [vmem:[%s145 + $0x8] sm:$0xff] %vm153, %v232
      %s237 = smul.u32 2, %s13
      %p238 = scmp.lt.s32.totalorder %s237, 5
      %s239 = scalar_select %p238, %s237, 5
      %s240 = smul.addr %s239, 8
      %s241 = scalar_lea.vmem %s2, %s240
      // Predicated region
      $region29: #{multi_wavelet_cross_forward.18} parent=27 // pred_check
        %p242 = pneg %p78
      $region30: #{multi_wavelet_cross_forward.18} parent=27 // pred_check_branch
        %244 = sbr.rel (%p242) target = $region32
      $region31: #{multi_wavelet_cross_forward.18} parent=27 // pred_region
        %s245 = smul.u32 2, %s13
      $region32: #{multi_wavelet_cross_forward.18} parent=27 // pred_fallthru
        _
    $region28: #{multi_wavelet_cross_forward.18} parent=5 // pred_fallthru
      _
    %p246 = scmp.le.s32.totalorder 2, %s8
    // Predicated region
    $region33: #{multi_wavelet_cross_forward.18} parent=5 // pred_check
      %p247 = pneg %p246
    $region34: #{multi_wavelet_cross_forward.18} parent=5 // pred_check_branch
      %249 = sbr.rel (%p247) target = $region36
    $region35: #{multi_wavelet_cross_forward.18} parent=5 // pred_region
      %s250 = ssub.s32 %s8, 2
      // Predicated region
      $region37: #{multi_wavelet_cross_forward.18} parent=35 // pred_check
        %p251 = pneg %p84
      $region38: #{multi_wavelet_cross_forward.18} parent=35 // pred_check_branch
        %253 = sbr.rel (%p251) target = $region40
      $region39: #{multi_wavelet_cross_forward.18} parent=35 // pred_region
        %s254 = smul.u32 2, %s14
        %p255 = scmp.lt.s32.totalorder %s254, 5
        %s256 = scalar_select %p255, %s254, 5
        %s257 = smul.addr %s256, 8
        %s258 = scalar_lea.vmem %s2, %s257
      $region40: #{multi_wavelet_cross_forward.18} parent=35 // pred_fallthru
        _
    $region36: #{multi_wavelet_cross_forward.18} parent=5 // pred_fallthru
      _
  $region6: #{multi_wavelet_cross_forward.18} parent=0 // loop_footer
    %s12 = sadd.s32 1, %s8
  $region7: #{multi_wavelet_cross_forward.18} parent=0 // loop_footer_branch
    %7 = sbr.rel target = $region3
  $region8: #{multi_wavelet_cross_forward.18} parent=0 // loop_exit
    _

// kernel: multi_wavelet_cross_forward.19
$region0: #{multi_wavelet_cross_forward.19}
  #allocation0 [shape = 'u32[]', space=smem, size = 0x4, offset = 0x4, fixed_abs, tag = 'smem constant byte address 0x4 - core index']
  #allocation1 [shape = 'u32[144,128]{1,0:T(1,128)}', space=vmem, size = 0x12000, scoped, tag = 'internal scratch']
  %s0 = inlined_call_operand.vmem [shape: f32[24,32], index: 0, kind: input, shape index: {}]
  %s1 = inlined_call_operand.vmem [shape: f32[32,32], index: 1, kind: input, shape index: {}]
  %s2 = inlined_call_operand.vmem [shape: f32[24,32], index: 2, kind: output, shape index: {}]
  %s3 = sld [smem:[#allocation0]]
  $region41: #{multi_wavelet_cross_forward.19} parent=0
    _
  %s5 = ssub.s32 1, %s3
  %s6 = scalar_select 0, %s5, %s3
  loop: start=0, step=1, limit=5
  $region2: #{multi_wavelet_cross_forward.19} parent=0 // loop_pre_header
    _
  $region3: #{multi_wavelet_cross_forward.19} parent=0 // loop_header
    %s8 = sphi 0, %s12
    %p9 = scmp.ge.s32.totalorder %s8, 5
    %s18 = sphi 0, %s20
    %s21 = sphi 0, %s18
    %s22 = sphi 0, %s21
    %s38 = sphi 0, %s22
    %s42 = sphi 0, %s42
    %s44 = sphi 0, %s42
    %s45 = sphi 0, %s44
    %s59 = sphi 0, %s45
    %s65 = sphi 0, %s67
    %s68 = sphi 0, %s65
    %s69 = sphi 0, %s68
    %s85 = sphi 0, %s69
  $region4: #{multi_wavelet_cross_forward.19} parent=0 // loop_header_branch
    %11 = sbr.rel (%p9) target = $region8
  $region5: #{multi_wavelet_cross_forward.19} parent=0 // loop_body
    %s13 = ssub.s32 %s8, 1
    %s14 = ssub.s32 %s8, 2
    %s15 = sadd.s32 %s8, 1
    %s16 = ssub.s32 %s8, %s15
    %p17 = scmp.eq.s32.totalorder %s16, 0
    %s19 = sadd.s32 %s18, 1
    %s20 = scalar_select %p17, %s18, %s19
    %p23 = pneg %p17
    %p24 = scmp.eq.s32.totalorder %s8, 2
    %p25 = por %p23, %p24
    %p26 = scmp.ne.s32.totalorder %s18, %s21
    %p27 = scmp.eq.s32.totalorder %s8, 0
    %p28 = por %p26, %p27
    %p29 = scmp.ne.s32.totalorder %s18, %s21
    %p30 = scmp.eq.s32.totalorder %s13, 2
    %p31 = por %p29, %p30
    %p32 = scmp.ne.s32.totalorder %s21, %s22
    %p33 = scmp.eq.s32.totalorder %s13, 0
    %p34 = por %p32, %p33
    %p35 = scmp.ne.s32.totalorder %s21, %s22
    %p36 = scmp.eq.s32.totalorder %s14, 2
    %p37 = por %p35, %p36
    %p39 = scmp.ne.s32.totalorder %s22, %s38
    %p40 = scmp.eq.s32.totalorder %s14, 0
    %p41 = por %p39, %p40
    %s43 = sadd.s32 %s42, 1
    %p46 = scmp.eq.s32.totalorder %s8, 2
    %p47 = scmp.ne.s32.totalorder %s42, %s44
    %p48 = scmp.eq.s32.totalorder %s8, 0
    %p49 = por %p47, %p48
    %p50 = scmp.ne.s32.totalorder %s42, %s44
    %p51 = scmp.eq.s32.totalorder %s13, 2
    %p52 = por %p50, %p51
    %p53 = scmp.ne.s32.totalorder %s44, %s45
    %p54 = scmp.eq.s32.totalorder %s13, 0
    %p55 = por %p53, %p54
    %p56 = scmp.ne.s32.totalorder %s44, %s45
    %p57 = scmp.eq.s32.totalorder %s14, 2
    %p58 = por %p56, %p57
    %p60 = scmp.ne.s32.totalorder %s45, %s59
    %p61 = scmp.eq.s32.totalorder %s14, 0
    %p62 = por %p60, %p61
    %s63 = ssub.s32 %s8, %s15
    %p64 = scmp.eq.s32.totalorder %s63, 0
    %s66 = sadd.s32 %s65, 1
    %s67 = scalar_select %p64, %s65, %s66
    %p70 = pneg %p64
    %p71 = scmp.eq.s32.totalorder %s8, 2
    %p72 = por %p70, %p71
    %p73 = scmp.ne.s32.totalorder %s65, %s68
    %p74 = scmp.eq.s32.totalorder %s8, 0
    %p75 = por %p73, %p74
    %p76 = scmp.ne.s32.totalorder %s65, %s68
    %p77 = scmp.eq.s32.totalorder %s13, 2
    %p78 = por %p76, %p77
    %p79 = scmp.ne.s32.totalorder %s68, %s69
    %p80 = scmp.eq.s32.totalorder %s13, 0
    %p81 = por %p79, %p80
    %p82 = scmp.ne.s32.totalorder %s68, %s69
    %p83 = scmp.eq.s32.totalorder %s14, 2
    %p84 = por %p82, %p83
    %p86 = scmp.ne.s32.totalorder %s69, %s85
    %p87 = scmp.eq.s32.totalorder %s14, 0
    %p88 = por %p86, %p87
    %p89 = scmp.le.s32.totalorder 1, %s8
    %p90 = scmp.lt.s32.totalorder %s8, 4
    %p91 = pnand %p89, %p90
    %p92 = pneg %p91
    // Predicated region
    $region9: #{multi_wavelet_cross_forward.19} parent=5 // pred_check
      _
    $region10: #{multi_wavelet_cross_forward.19} parent=5 // pred_check_branch
      %94 = sbr.rel (%p91) target = $region12
    $region11: #{multi_wavelet_cross_forward.19} parent=5 // pred_region
      %s95 = ssub.s32 %s8, 1
      // Predicated region
      $region13: #{multi_wavelet_cross_forward.19} parent=11 // pred_check
        %p96 = pneg %p55
      $region14: #{multi_wavelet_cross_forward.19} parent=11 // pred_check_branch
        %98 = sbr.rel (%p96) target = $region16
      $region15: #{multi_wavelet_cross_forward.19} parent=11 // pred_region
        _
      $region16: #{multi_wavelet_cross_forward.19} parent=11 // pred_fallthru
        _
    $region12: #{multi_wavelet_cross_forward.19} parent=5 // pred_fallthru
      _
    %p99 = scmp.lt.s32.totalorder %s8, 3
    // Predicated region
    $region17: #{multi_wavelet_cross_forward.19} parent=5 // pred_check
      %p100 = pneg %p99
    $region18: #{multi_wavelet_cross_forward.19} parent=5 // pred_check_branch
      %102 = sbr.rel (%p100) target = $region20
    $region19: #{multi_wavelet_cross_forward.19} parent=5 // pred_region
      // Predicated region
      $region21: #{multi_wavelet_cross_forward.19} parent=19 // pred_check
        %p103 = pneg %p28
      $region22: #{multi_wavelet_cross_forward.19} parent=19 // pred_check_branch
        %105 = sbr.rel (%p103) target = $region24
      $region23: #{multi_wavelet_cross_forward.19} parent=19 // pred_region
        %p106 = scmp.lt.s32.totalorder %s8, 2
        %s107 = scalar_select %p106, %s8, 2
        %s108 = smul.addr %s107, 8
        %s109 = scalar_lea.vmem %s0, %s108
      $region24: #{multi_wavelet_cross_forward.19} parent=19 // pred_fallthru
        _
    $region20: #{multi_wavelet_cross_forward.19} parent=5 // pred_fallthru
      _
    %p110 = scmp.le.s32.totalorder 1, %s8
    %p111 = scmp.lt.s32.totalorder %s8, 4
    %p112 = pnand %p110, %p111
    %p113 = pneg %p112
    // Predicated region
    $region25: #{multi_wavelet_cross_forward.19} parent=5 // pred_check
      _
    $region26: #{multi_wavelet_cross_forward.19} parent=5 // pred_check_branch
      %115 = sbr.rel (%p112) target = $region28
    $region27: #{multi_wavelet_cross_forward.19} parent=5 // pred_region
      %s116 = ssub.s32 %s8, 1
      %p117 = scmp.lt.s32.totalorder %s13, 2
      %s118 = scalar_select %p117, %s13, 2
      %s119 = smul.addr %s118, 8
      %s120 = scalar_lea.vmem %s0, %s119
      %p121 = pneg %p34
      %p122 = pneg %p31
      %p123 = pneg %p55
      %p124 = pneg %p52
      %p125 = pneg %p81
      %p126 = pneg %p78
      %p127 = scmp.lt.s32.totalorder %s13, 2
      %s128 = scalar_select %p127, %s13, 2
      %s129 = smul.addr %s128, 8
      %s130 = scalar_lea.vmem %s2, %s129
      %p131 = scmp.lt.s32.totalorder %s13, 2
      %s132 = scalar_select %p131, %s13, 2
      %s133 = smul.addr %s132, 8
      %s134 = scalar_lea.vmem %s0, %s133
      %p135 = scmp.lt.s32.totalorder %s13, 2
      %s136 = scalar_select %p135, %s13, 2
      %s137 = smul.addr %s136, 8
      %s138 = scalar_lea.vmem %s2, %s137
      %v139 = vld [vmem:[%s134] sm:$0xff]
      %v140 = vld [vmem:[%s1] sm:$0xff]
      %v141 = vld [vmem:[%s1 + $0x8] sm:$0xff]
      %v142 = vld [vmem:[%s1 + $0x10] sm:$0xff]
      %v143 = vld [vmem:[%s1 + $0x18] sm:$0xff]
      %vm144 = vcmask 261120
      %v146 = vsel %vm144, %v139, 0
      %148 = vmatprep.subr.mxu0 0.0
      %149 = vmatpush1.msra.mxu0 0.0
      %150 = vmatprep.subr.mxu0 0.0
      %151 = vmatpush1.msra.mxu0 0.0
      %152 = vmatprep.subr.mxu0 0.0
      %153 = vmatpush1.msra.mxu0 0.0
      %154 = vmatprep.subr.mxu0 0.0
      %155 = vmatpush1.msra.mxu0 0.0
      %156 = vmatprep.subr.mxu0 0.0
      %157 = vmatpush1.msra.mxu0 0.0
      %158 = vmatprep.subr.mxu0 0.0
      %159 = vmatpush1.msra.mxu0 0.0
      %160 = vmatprep.subr.mxu0 0.0
      %161 = vmatpush1.msra.mxu0 0.0
      %162 = vmatprep.subr.mxu0 0.0
      %163 = vmatpush1.msra.mxu0 0.0
      %164 = vmatprep.subr.mxu0 0.0
      %165 = vmatpush1.msra.mxu0 0.0
      %166 = vmatprep.subr.mxu0 0.0
      %167 = vmatpush1.msra.mxu0 0.0
      %168 = vmatprep.subr.mxu0 0.0
      %169 = vmatpush1.msra.mxu0 0.0
      %170 = vmatprep.subr.mxu0 0.0
      %171 = vmatpush1.msra.mxu0 0.0
      %172 = vmatprep.subr.mxu0 0.0
      %173 = vmatpush1.msra.mxu0 %v143
      %174 = vmatprep.subr.mxu0 0.0
      %175 = vmatpush1.msra.mxu0 %v142
      %176 = vmatprep.subr.mxu0 0.0
      %177 = vmatpush1.msra.mxu0 %v141
      %178 = vmatprep.subr.mxu0 0.0
      %179 = vmatpush1.msra.mxu0 %v140
      %180 = vmatprep.subr.mxu0 0.0
      %181 = vmatpush2.msra.mxu0 0.0
      %182 = vmatprep.subr.mxu0 0.0
      %183 = vmatpush2.msra.mxu0 0.0
      %184 = vmatprep.subr.mxu0 0.0
      %185 = vmatpush2.msra.mxu0 0.0
      %186 = vmatprep.subr.mxu0 0.0
      %187 = vmatpush2.msra.mxu0 0.0
      %188 = vmatprep.subr.mxu0 0.0
      %189 = vmatpush2.msra.mxu0 0.0
      %190 = vmatprep.subr.mxu0 0.0
      %191 = vmatpush2.msra.mxu0 0.0
      %192 = vmatprep.subr.mxu0 0.0
      %193 = vmatpush2.msra.mxu0 0.0
      %194 = vmatprep.subr.mxu0 0.0
      %195 = vmatpush2.msra.mxu0 0.0
      %196 = vmatprep.subr.mxu0 0.0
      %197 = vmatpush2.msra.mxu0 0.0
      %198 = vmatprep.subr.mxu0 0.0
      %199 = vmatpush2.msra.mxu0 0.0
      %200 = vmatprep.subr.mxu0 0.0
      %201 = vmatpush2.msra.mxu0 0.0
      %202 = vmatprep.subr.mxu0 0.0
      %203 = vmatpush2.msra.mxu0 0.0
      %204 = vmatprep.subr.mxu0 0.0
      %205 = vmatpush2.msra.mxu0 0.0
      %206 = vmatprep.subr.mxu0 0.0
      %207 = vmatpush2.msra.mxu0 0.0
      %208 = vmatprep.subr.mxu0 0.0
      %209 = vmatpush2.msra.mxu0 0.0
      %210 = vmatprep.subr.mxu0 0.0
      %211 = vmatpush2.msra.mxu0 0.0
      %212 = vmatprep.mubr.f32.mxu0 0.0
      %213 = vmatmul.mubr.f32.gmra.mxu0 %v146
      %v214 = vpop.f32.mrf.mxu0
      %v215 = vadd.f32 0.0, %v214
      %v216 = vpop.f32.mrf.mxu0
      %217 = vdwg.mxu0
      %218 = vst.msk [vmem:[%s138] sm:$0xff] %vm144, %v215
      %p219 = scmp.lt.s32.totalorder %s13, 2
      %s220 = scalar_select %p219, %s13, 2
      %s221 = smul.addr %s220, 8
      %s222 = scalar_lea.vmem %s2, %s221
      // Predicated region
      $region29: #{multi_wavelet_cross_forward.19} parent=27 // pred_check
        %p223 = pneg %p78
      $region30: #{multi_wavelet_cross_forward.19} parent=27 // pred_check_branch
        %225 = sbr.rel (%p223) target = $region32
      $region31: #{multi_wavelet_cross_forward.19} parent=27 // pred_region
        _
      $region32: #{multi_wavelet_cross_forward.19} parent=27 // pred_fallthru
        _
    $region28: #{multi_wavelet_cross_forward.19} parent=5 // pred_fallthru
      _
    %p226 = scmp.le.s32.totalorder 2, %s8
    // Predicated region
    $region33: #{multi_wavelet_cross_forward.19} parent=5 // pred_check
      %p227 = pneg %p226
    $region34: #{multi_wavelet_cross_forward.19} parent=5 // pred_check_branch
      %229 = sbr.rel (%p227) target = $region36
    $region35: #{multi_wavelet_cross_forward.19} parent=5 // pred_region
      %s230 = ssub.s32 %s8, 2
      // Predicated region
      $region37: #{multi_wavelet_cross_forward.19} parent=35 // pred_check
        %p231 = pneg %p84
      $region38: #{multi_wavelet_cross_forward.19} parent=35 // pred_check_branch
        %233 = sbr.rel (%p231) target = $region40
      $region39: #{multi_wavelet_cross_forward.19} parent=35 // pred_region
        %p234 = scmp.lt.s32.totalorder %s14, 2
        %s235 = scalar_select %p234, %s14, 2
        %s236 = smul.addr %s235, 8
        %s237 = scalar_lea.vmem %s2, %s236
      $region40: #{multi_wavelet_cross_forward.19} parent=35 // pred_fallthru
        _
    $region36: #{multi_wavelet_cross_forward.19} parent=5 // pred_fallthru
      _
  $region6: #{multi_wavelet_cross_forward.19} parent=0 // loop_footer
    %s12 = sadd.s32 1, %s8
  $region7: #{multi_wavelet_cross_forward.19} parent=0 // loop_footer_branch
    %7 = sbr.rel target = $region3
  $region8: #{multi_wavelet_cross_forward.19} parent=0 // loop_exit
    _

// kernel: multi_wavelet_cross_forward.20
$region0: #{multi_wavelet_cross_forward.20}
  #allocation0 [shape = 'u32[]', space=smem, size = 0x4, offset = 0x4, fixed_abs, tag = 'smem constant byte address 0x4 - core index']
  #allocation1 [shape = 'u32[144,128]{1,0:T(1,128)}', space=vmem, size = 0x12000, scoped, tag = 'internal scratch']
  %s0 = inlined_call_operand.vmem [shape: f32[12,32], index: 0, kind: input, shape index: {}]
  %s1 = inlined_call_operand.vmem [shape: f32[32,32], index: 1, kind: input, shape index: {}]
  %s2 = inlined_call_operand.vmem [shape: f32[12,32], index: 2, kind: output, shape index: {}]
  %s3 = sld [smem:[#allocation0]]
  $region18: #{multi_wavelet_cross_forward.20} parent=0
    _
  %s5 = ssub.s32 1, %s3
  %s6 = scalar_select 0, %s5, %s3
  // Predicated region
  $region2: #{multi_wavelet_cross_forward.20} parent=0 // pred_check
    _
  $region3: #{multi_wavelet_cross_forward.20} parent=0 // pred_check_branch
    %8 = sbr.rel (0) target = $region5
  $region4: #{multi_wavelet_cross_forward.20} parent=0 // pred_region
    _
  $region5: #{multi_wavelet_cross_forward.20} parent=0 // pred_fallthru
    _
  // Predicated region
  $region6: #{multi_wavelet_cross_forward.20} parent=0 // pred_check
    _
  $region7: #{multi_wavelet_cross_forward.20} parent=0 // pred_check_branch
    %10 = sbr.rel (0) target = $region9
  $region8: #{multi_wavelet_cross_forward.20} parent=0 // pred_region
    _
  $region9: #{multi_wavelet_cross_forward.20} parent=0 // pred_fallthru
    _
  %v11 = vld [vmem:[%s0] sm:$0xff]
  %v12 = vld [vmem:[%s0 + $0x8] sm:$0xf]
  %v13 = vld [vmem:[%s1] sm:$0xff]
  %v14 = vld [vmem:[%s1 + $0x8] sm:$0xff]
  %v15 = vld [vmem:[%s1 + $0x10] sm:$0xff]
  %v16 = vld [vmem:[%s1 + $0x18] sm:$0xff]
  %vm17 = vcmask 261120
  %v19 = vsel %vm17, %v11, 0
  %v22 = vsel %vm17, %v12, 0
  %24 = vmatprep.subr.mxu0 0.0
  %25 = vmatpush1.msra.mxu0 0.0
  %26 = vmatprep.subr.mxu0 0.0
  %27 = vmatpush1.msra.mxu0 0.0
  %28 = vmatprep.subr.mxu0 0.0
  %29 = vmatpush1.msra.mxu0 0.0
  %30 = vmatprep.subr.mxu0 0.0
  %31 = vmatpush1.msra.mxu0 0.0
  %32 = vmatprep.subr.mxu0 0.0
  %33 = vmatpush1.msra.mxu0 0.0
  %34 = vmatprep.subr.mxu0 0.0
  %35 = vmatpush1.msra.mxu0 0.0
  %36 = vmatprep.subr.mxu0 0.0
  %37 = vmatpush1.msra.mxu0 0.0
  %38 = vmatprep.subr.mxu0 0.0
  %39 = vmatpush1.msra.mxu0 0.0
  %40 = vmatprep.subr.mxu0 0.0
  %41 = vmatpush1.msra.mxu0 0.0
  %42 = vmatprep.subr.mxu0 0.0
  %43 = vmatpush1.msra.mxu0 0.0
  %44 = vmatprep.subr.mxu0 0.0
  %45 = vmatpush1.msra.mxu0 0.0
  %46 = vmatprep.subr.mxu0 0.0
  %47 = vmatpush1.msra.mxu0 0.0
  %48 = vmatprep.subr.mxu0 0.0
  %49 = vmatpush1.msra.mxu0 %v16
  %50 = vmatprep.subr.mxu0 0.0
  %51 = vmatpush1.msra.mxu0 %v15
  %52 = vmatprep.subr.mxu0 0.0
  %53 = vmatpush1.msra.mxu0 %v14
  %54 = vmatprep.subr.mxu0 0.0
  %55 = vmatpush1.msra.mxu0 %v13
  %56 = vmatprep.subr.mxu0 0.0
  %57 = vmatpush2.msra.mxu0 0.0
  %58 = vmatprep.subr.mxu0 0.0
  %59 = vmatpush2.msra.mxu0 0.0
  %60 = vmatprep.subr.mxu0 0.0
  %61 = vmatpush2.msra.mxu0 0.0
  %62 = vmatprep.subr.mxu0 0.0
  %63 = vmatpush2.msra.mxu0 0.0
  %64 = vmatprep.subr.mxu0 0.0
  %65 = vmatpush2.msra.mxu0 0.0
  %66 = vmatprep.subr.mxu0 0.0
  %67 = vmatpush2.msra.mxu0 0.0
  %68 = vmatprep.subr.mxu0 0.0
  %69 = vmatpush2.msra.mxu0 0.0
  %70 = vmatprep.subr.mxu0 0.0
  %71 = vmatpush2.msra.mxu0 0.0
  %72 = vmatprep.subr.mxu0 0.0
  %73 = vmatpush2.msra.mxu0 0.0
  %74 = vmatprep.subr.mxu0 0.0
  %75 = vmatpush2.msra.mxu0 0.0
  %76 = vmatprep.subr.mxu0 0.0
  %77 = vmatpush2.msra.mxu0 0.0
  %78 = vmatprep.subr.mxu0 0.0
  %79 = vmatpush2.msra.mxu0 0.0
  %80 = vmatprep.subr.mxu0 0.0
  %81 = vmatpush2.msra.mxu0 0.0
  %82 = vmatprep.subr.mxu0 0.0
  %83 = vmatpush2.msra.mxu0 0.0
  %84 = vmatprep.subr.mxu0 0.0
  %85 = vmatpush2.msra.mxu0 0.0
  %86 = vmatprep.subr.mxu0 0.0
  %87 = vmatpush2.msra.mxu0 0.0
  %88 = vmatprep.mubr.f32.mxu0 0.0
  %89 = vmatmul.mubr.f32.gmra.mxu0 %v19
  %v90 = vpop.f32.mrf.mxu0
  %v91 = vadd.f32 0.0, %v90
  %v92 = vpop.f32.mrf.mxu0
  %93 = vmatprep.mubr.f32.mxu0 0.0
  %94 = vmatmul.mubr.f32.gmra.mxu0 %v22
  %v95 = vpop.f32.mrf.mxu0
  %v96 = vadd.f32 0.0, %v95
  %v97 = vpop.f32.mrf.mxu0
  %98 = vdwg.mxu0
  %99 = vst.msk [vmem:[%s2] sm:$0xff] %vm17, %v91
  %vm100 = vcmask 257024
  %101 = vst.msk [vmem:[%s2 + $0x8] sm:$0xf] %vm100, %v96
  // Predicated region
  $region10: #{multi_wavelet_cross_forward.20} parent=0 // pred_check
    _
  $region11: #{multi_wavelet_cross_forward.20} parent=0 // pred_check_branch
    %103 = sbr.rel (0) target = $region13
  $region12: #{multi_wavelet_cross_forward.20} parent=0 // pred_region
    _
  $region13: #{multi_wavelet_cross_forward.20} parent=0 // pred_fallthru
    _
  // Predicated region
  $region14: #{multi_wavelet_cross_forward.20} parent=0 // pred_check
    _
  $region15: #{multi_wavelet_cross_forward.20} parent=0 // pred_check_branch
    %105 = sbr.rel (0) target = $region17
  $region16: #{multi_wavelet_cross_forward.20} parent=0 // pred_region
    _
  $region17: #{multi_wavelet_cross_forward.20} parent=0 // pred_fallthru
    _

// kernel: multi_wavelet_cross_forward.22
$region0: #{multi_wavelet_cross_forward.22}
  #allocation0 [shape = 'u32[]', space=smem, size = 0x4, offset = 0x4, fixed_abs, tag = 'smem constant byte address 0x4 - core index']
  #allocation1 [shape = 'u32[144,128]{1,0:T(1,128)}', space=vmem, size = 0x12000, scoped, tag = 'internal scratch']
  %s0 = inlined_call_operand.vmem [shape: f32[4,32], index: 0, kind: input, shape index: {}]
  %s1 = inlined_call_operand.vmem [shape: f32[32,32], index: 1, kind: input, shape index: {}]
  %s2 = inlined_call_operand.vmem [shape: f32[4,32], index: 2, kind: output, shape index: {}]
  %s3 = sld [smem:[#allocation0]]
  $region18: #{multi_wavelet_cross_forward.22} parent=0
    _
  %s5 = ssub.s32 1, %s3
  %s6 = scalar_select 0, %s5, %s3
  // Predicated region
  $region2: #{multi_wavelet_cross_forward.22} parent=0 // pred_check
    _
  $region3: #{multi_wavelet_cross_forward.22} parent=0 // pred_check_branch
    %8 = sbr.rel (0) target = $region5
  $region4: #{multi_wavelet_cross_forward.22} parent=0 // pred_region
    _
  $region5: #{multi_wavelet_cross_forward.22} parent=0 // pred_fallthru
    _
  // Predicated region
  $region6: #{multi_wavelet_cross_forward.22} parent=0 // pred_check
    _
  $region7: #{multi_wavelet_cross_forward.22} parent=0 // pred_check_branch
    %10 = sbr.rel (0) target = $region9
  $region8: #{multi_wavelet_cross_forward.22} parent=0 // pred_region
    _
  $region9: #{multi_wavelet_cross_forward.22} parent=0 // pred_fallthru
    _
  %v11 = vld [vmem:[%s0] sm:$0xf]
  %v12 = vld [vmem:[%s1] sm:$0xff]
  %v13 = vld [vmem:[%s1 + $0x8] sm:$0xff]
  %v14 = vld [vmem:[%s1 + $0x10] sm:$0xff]
  %v15 = vld [vmem:[%s1 + $0x18] sm:$0xff]
  %vm16 = vcmask 261120
  %v18 = vsel %vm16, %v11, 0
  %20 = vmatprep.subr.mxu0 0.0
  %21 = vmatpush1.msra.mxu0 0.0
  %22 = vmatprep.subr.mxu0 0.0
  %23 = vmatpush1.msra.mxu0 0.0
  %24 = vmatprep.subr.mxu0 0.0
  %25 = vmatpush1.msra.mxu0 0.0
  %26 = vmatprep.subr.mxu0 0.0
  %27 = vmatpush1.msra.mxu0 0.0
  %28 = vmatprep.subr.mxu0 0.0
  %29 = vmatpush1.msra.mxu0 0.0
  %30 = vmatprep.subr.mxu0 0.0
  %31 = vmatpush1.msra.mxu0 0.0
  %32 = vmatprep.subr.mxu0 0.0
  %33 = vmatpush1.msra.mxu0 0.0
  %34 = vmatprep.subr.mxu0 0.0
  %35 = vmatpush1.msra.mxu0 0.0
  %36 = vmatprep.subr.mxu0 0.0
  %37 = vmatpush1.msra.mxu0 0.0
  %38 = vmatprep.subr.mxu0 0.0
  %39 = vmatpush1.msra.mxu0 0.0
  %40 = vmatprep.subr.mxu0 0.0
  %41 = vmatpush1.msra.mxu0 0.0
  %42 = vmatprep.subr.mxu0 0.0
  %43 = vmatpush1.msra.mxu0 0.0
  %44 = vmatprep.subr.mxu0 0.0
  %45 = vmatpush1.msra.mxu0 %v15
  %46 = vmatprep.subr.mxu0 0.0
  %47 = vmatpush1.msra.mxu0 %v14
  %48 = vmatprep.subr.mxu0 0.0
  %49 = vmatpush1.msra.mxu0 %v13
  %50 = vmatprep.subr.mxu0 0.0
  %51 = vmatpush1.msra.mxu0 %v12
  %52 = vmatprep.subr.mxu0 0.0
  %53 = vmatpush2.msra.mxu0 0.0
  %54 = vmatprep.subr.mxu0 0.0
  %55 = vmatpush2.msra.mxu0 0.0
  %56 = vmatprep.subr.mxu0 0.0
  %57 = vmatpush2.msra.mxu0 0.0
  %58 = vmatprep.subr.mxu0 0.0
  %59 = vmatpush2.msra.mxu0 0.0
  %60 = vmatprep.subr.mxu0 0.0
  %61 = vmatpush2.msra.mxu0 0.0
  %62 = vmatprep.subr.mxu0 0.0
  %63 = vmatpush2.msra.mxu0 0.0
  %64 = vmatprep.subr.mxu0 0.0
  %65 = vmatpush2.msra.mxu0 0.0
  %66 = vmatprep.subr.mxu0 0.0
  %67 = vmatpush2.msra.mxu0 0.0
  %68 = vmatprep.subr.mxu0 0.0
  %69 = vmatpush2.msra.mxu0 0.0
  %70 = vmatprep.subr.mxu0 0.0
  %71 = vmatpush2.msra.mxu0 0.0
  %72 = vmatprep.subr.mxu0 0.0
  %73 = vmatpush2.msra.mxu0 0.0
  %74 = vmatprep.subr.mxu0 0.0
  %75 = vmatpush2.msra.mxu0 0.0
  %76 = vmatprep.subr.mxu0 0.0
  %77 = vmatpush2.msra.mxu0 0.0
  %78 = vmatprep.subr.mxu0 0.0
  %79 = vmatpush2.msra.mxu0 0.0
  %80 = vmatprep.subr.mxu0 0.0
  %81 = vmatpush2.msra.mxu0 0.0
  %82 = vmatprep.subr.mxu0 0.0
  %83 = vmatpush2.msra.mxu0 0.0
  %84 = vmatprep.mubr.f32.mxu0 0.0
  %85 = vmatmul.mubr.f32.gmra.mxu0 %v18
  %v86 = vpop.f32.mrf.mxu0
  %v87 = vadd.f32 0.0, %v86
  %v88 = vpop.f32.mrf.mxu0
  %89 = vdwg.mxu0
  %vm90 = vcmask 257024
  %91 = vst.msk [vmem:[%s2] sm:$0xf] %vm90, %v87
  // Predicated region
  $region10: #{multi_wavelet_cross_forward.22} parent=0 // pred_check
    _
  $region11: #{multi_wavelet_cross_forward.22} parent=0 // pred_check_branch
    %93 = sbr.rel (0) target = $region13
  $region12: #{multi_wavelet_cross_forward.22} parent=0 // pred_region
    _
  $region13: #{multi_wavelet_cross_forward.22} parent=0 // pred_fallthru
    _
  // Predicated region
  $region14: #{multi_wavelet_cross_forward.22} parent=0 // pred_check
    _
  $region15: #{multi_wavelet_cross_forward.22} parent=0 // pred_check_branch
    %95 = sbr.rel (0) target = $region17
  $region16: #{multi_wavelet_cross_forward.22} parent=0 // pred_region
    _
  $region17: #{multi_wavelet_cross_forward.22} parent=0 // pred_fallthru
    _

// kernel: reverse.3
$region0: #{reverse.3}
  %s0 = inlined_call_operand.vmem [shape: f32[4,4,4,3], index: 0, kind: input, shape index: {}]
  %s1 = inlined_call_operand.vmem [shape: f32[4,4,4,3], index: 1, kind: output, shape index: {}]
  %v2 = vlaneseq
  %v3 = vsub.s32 2, %v2
  %4 = vset.pattern.permute.xlu0 %v3
  $region1: #{reverse.3} parent=0
    #allocation0 [shape = 'u8[65536]{0}', space=vmem, size = 0x10000, scoped, tag = 'operand span for operand 0']
    #allocation1 [shape = 'u8[32768]{0}', space=vmem, size = 0x8000, scoped, tag = 'packed  for operand 0']
    #allocation2 [shape = 'u8[65536]{0}', space=vmem, size = 0x10000, scoped, tag = 'operand span for operand 1']
    #allocation3 [shape = 'u8[32768]{0}', space=vmem, size = 0x8000, scoped, tag = 'packed  for operand 1']
    // Predicated region
    $region2: #{reverse.3} parent=1 // pred_check
      _
    $region3: #{reverse.3} parent=1 // pred_check_branch
      %6 = sbr.rel (0) target = $region5
    $region4: #{reverse.3} parent=1 // pred_region
      // Predicated region
      $region6: #{reverse.3} parent=4 // pred_check
        _
      $region7: #{reverse.3} parent=4 // pred_check_branch
        %8 = sbr.rel target = $region9
      $region8: #{reverse.3} parent=4 // pred_region
        // Predicated region
        $region21: #{reverse.3} parent=8 // pred_check
          _
        $region22: #{reverse.3} parent=8 // pred_check_branch
          %54 = sbr.rel (0) target = $region24
        $region23: #{reverse.3} parent=8 // pred_region
          loop: start=0, step=1, limit=1
          $region25: #{reverse.3} parent=23 // loop_pre_header
            _
          $region26: #{reverse.3} parent=23 // loop_header
            %s56 = sphi 0, %s60
            %p57 = scmp.ge.s32.totalorder %s56, 1
            %s61 = sphi %s0, %s0
            %s62 = sphi [#allocation1], [#allocation1]
          $region27: #{reverse.3} parent=23 // loop_header_branch
            %59 = sbr.rel (%p57) target = $region31
          $region28: #{reverse.3} parent=23 // loop_body
            _
          $region29: #{reverse.3} parent=23 // loop_footer
            %s60 = sadd.s32 1, %s56
          $region30: #{reverse.3} parent=23 // loop_footer_branch
            %55 = sbr.rel target = $region26
          $region31: #{reverse.3} parent=23 // loop_exit
            _
          %s64 = ssub.s32 16, 1
          loop: start=0, step=1, limit=1
          $region32: #{reverse.3} parent=23 // loop_pre_header
            _
          $region33: #{reverse.3} parent=23 // loop_header
            %s66 = sphi 0, %s70
            %p67 = scmp.ge.s32.totalorder %s66, 1
            %s71 = sphi %s0, %s0
            %s72 = sphi [#allocation1], [#allocation1]
          $region34: #{reverse.3} parent=23 // loop_header_branch
            %69 = sbr.rel (%p67) target = $region38
          $region35: #{reverse.3} parent=23 // loop_body
            %v73 = vld [vmem:[%s71] sm:%s64]
            %74 = vst [vmem:[%s72] sm:%s64] %v73
            %v75 = vld [vmem:[%s71 + $0x4] sm:%s64]
            %76 = vst [vmem:[%s72 + $0x4] sm:%s64] %v75
            %v77 = vld [vmem:[%s71 + $0x8] sm:%s64]
            %78 = vst [vmem:[%s72 + $0x8] sm:%s64] %v77
            %v79 = vld [vmem:[%s71 + $0xc] sm:%s64]
            %80 = vst [vmem:[%s72 + $0xc] sm:%s64] %v79
            %v81 = vld [vmem:[%s71 + $0x10] sm:%s64]
            %82 = vst [vmem:[%s72 + $0x10] sm:%s64] %v81
            %v83 = vld [vmem:[%s71 + $0x14] sm:%s64]
            %84 = vst [vmem:[%s72 + $0x14] sm:%s64] %v83
            %v85 = vld [vmem:[%s71 + $0x18] sm:%s64]
            %86 = vst [vmem:[%s72 + $0x18] sm:%s64] %v85
            %v87 = vld [vmem:[%s71 + $0x1c] sm:%s64]
            %88 = vst [vmem:[%s72 + $0x1c] sm:%s64] %v87
            %v89 = vld [vmem:[%s71 + $0x20] sm:%s64]
            %90 = vst [vmem:[%s72 + $0x20] sm:%s64] %v89
            %v91 = vld [vmem:[%s71 + $0x24] sm:%s64]
            %92 = vst [vmem:[%s72 + $0x24] sm:%s64] %v91
            %v93 = vld [vmem:[%s71 + $0x28] sm:%s64]
            %94 = vst [vmem:[%s72 + $0x28] sm:%s64] %v93
            %v95 = vld [vmem:[%s71 + $0x2c] sm:%s64]
            %96 = vst [vmem:[%s72 + $0x2c] sm:%s64] %v95
            %v97 = vld [vmem:[%s71 + $0x30] sm:%s64]
            %98 = vst [vmem:[%s72 + $0x30] sm:%s64] %v97
            %v99 = vld [vmem:[%s71 + $0x34] sm:%s64]
            %100 = vst [vmem:[%s72 + $0x34] sm:%s64] %v99
            %v101 = vld [vmem:[%s71 + $0x38] sm:%s64]
            %102 = vst [vmem:[%s72 + $0x38] sm:%s64] %v101
            %v103 = vld [vmem:[%s71 + $0x3c] sm:%s64]
            %104 = vst [vmem:[%s72 + $0x3c] sm:%s64] %v103
          $region36: #{reverse.3} parent=23 // loop_footer
            %s70 = sadd.s32 1, %s66
          $region37: #{reverse.3} parent=23 // loop_footer_branch
            %65 = sbr.rel target = $region33
          $region38: #{reverse.3} parent=23 // loop_exit
            _
        $region24: #{reverse.3} parent=8 // pred_fallthru
          _
      $region9: #{reverse.3} parent=4 // pred_fallthru
        _
      // Predicated region
      $region10: #{reverse.3} parent=4 // pred_check
        _
      $region11: #{reverse.3} parent=4 // pred_check_branch
        %10 = sbr.rel (0) target = $region13
      $region12: #{reverse.3} parent=4 // pred_region
        %s12 = ssub.s32 16, 1
        loop: start=0, step=1, limit=1
        $region14: #{reverse.3} parent=12 // loop_pre_header
          _
        $region15: #{reverse.3} parent=12 // loop_header
          %s14 = sphi 0, %s18
          %p15 = scmp.ge.s32.totalorder %s14, 1
          %s19 = sphi %s0, %s0
          %s20 = sphi [#allocation1], [#allocation1]
        $region16: #{reverse.3} parent=12 // loop_header_branch
          %17 = sbr.rel (%p15) target = $region20
        $region17: #{reverse.3} parent=12 // loop_body
          %v21 = vld [vmem:[%s19] sm:%s12]
          %22 = vst [vmem:[%s20] sm:%s12] %v21
          %v23 = vld [vmem:[%s19 + $0x4] sm:%s12]
          %24 = vst [vmem:[%s20 + $0x4] sm:%s12] %v23
          %v25 = vld [vmem:[%s19 + $0x8] sm:%s12]
          %26 = vst [vmem:[%s20 + $0x8] sm:%s12] %v25
          %v27 = vld [vmem:[%s19 + $0xc] sm:%s12]
          %28 = vst [vmem:[%s20 + $0xc] sm:%s12] %v27
          %v29 = vld [vmem:[%s19 + $0x10] sm:%s12]
          %30 = vst [vmem:[%s20 + $0x10] sm:%s12] %v29
          %v31 = vld [vmem:[%s19 + $0x14] sm:%s12]
          %32 = vst [vmem:[%s20 + $0x14] sm:%s12] %v31
          %v33 = vld [vmem:[%s19 + $0x18] sm:%s12]
          %34 = vst [vmem:[%s20 + $0x18] sm:%s12] %v33
          %v35 = vld [vmem:[%s19 + $0x1c] sm:%s12]
          %36 = vst [vmem:[%s20 + $0x1c] sm:%s12] %v35
          %v37 = vld [vmem:[%s19 + $0x20] sm:%s12]
          %38 = vst [vmem:[%s20 + $0x20] sm:%s12] %v37
          %v39 = vld [vmem:[%s19 + $0x24] sm:%s12]
          %40 = vst [vmem:[%s20 + $0x24] sm:%s12] %v39
          %v41 = vld [vmem:[%s19 + $0x28] sm:%s12]
          %42 = vst [vmem:[%s20 + $0x28] sm:%s12] %v41
          %v43 = vld [vmem:[%s19 + $0x2c] sm:%s12]
          %44 = vst [vmem:[%s20 + $0x2c] sm:%s12] %v43
          %v45 = vld [vmem:[%s19 + $0x30] sm:%s12]
          %46 = vst [vmem:[%s20 + $0x30] sm:%s12] %v45
          %v47 = vld [vmem:[%s19 + $0x34] sm:%s12]
          %48 = vst [vmem:[%s20 + $0x34] sm:%s12] %v47
          %v49 = vld [vmem:[%s19 + $0x38] sm:%s12]
          %50 = vst [vmem:[%s20 + $0x38] sm:%s12] %v49
          %v51 = vld [vmem:[%s19 + $0x3c] sm:%s12]
          %52 = vst [vmem:[%s20 + $0x3c] sm:%s12] %v51
        $region18: #{reverse.3} parent=12 // loop_footer
          %s18 = sadd.s32 1, %s14
        $region19: #{reverse.3} parent=12 // loop_footer_branch
          %13 = sbr.rel target = $region15
        $region20: #{reverse.3} parent=12 // loop_exit
          _
      $region13: #{reverse.3} parent=4 // pred_fallthru
        _
    $region5: #{reverse.3} parent=1 // pred_fallthru
      _
    %105 = vnop
    %s107 = sshll.u32 1, 4
    %s108 = ssub.s32 %s107, 1
    %s109 = smul.addr 4, 15
    %s110 = scalar_lea.vmem [#allocation1], %s109
    %v111 = vld [vmem:[%s110] sm:%s108]
    %s112 = scalar_lea.vmem [#allocation0], 120
    %113 = vst [vmem:[%s112] sm:%s108] %v111
    %s114 = smul.addr 4, 14
    %s115 = scalar_lea.vmem [#allocation1], %s114
    %v116 = vld [vmem:[%s115] sm:%s108]
    %s117 = scalar_lea.vmem [#allocation0], 112
    %118 = vst [vmem:[%s117] sm:%s108] %v116
    %s119 = smul.addr 4, 13
    %s120 = scalar_lea.vmem [#allocation1], %s119
    %v121 = vld [vmem:[%s120] sm:%s108]
    %s122 = scalar_lea.vmem [#allocation0], 104
    %123 = vst [vmem:[%s122] sm:%s108] %v121
    %s124 = smul.addr 4, 12
    %s125 = scalar_lea.vmem [#allocation1], %s124
    %v126 = vld [vmem:[%s125] sm:%s108]
    %s127 = scalar_lea.vmem [#allocation0], 96
    %128 = vst [vmem:[%s127] sm:%s108] %v126
    %s129 = smul.addr 4, 11
    %s130 = scalar_lea.vmem [#allocation1], %s129
    %v131 = vld [vmem:[%s130] sm:%s108]
    %s132 = scalar_lea.vmem [#allocation0], 88
    %133 = vst [vmem:[%s132] sm:%s108] %v131
    %s134 = smul.addr 4, 10
    %s135 = scalar_lea.vmem [#allocation1], %s134
    %v136 = vld [vmem:[%s135] sm:%s108]
    %s137 = scalar_lea.vmem [#allocation0], 80
    %138 = vst [vmem:[%s137] sm:%s108] %v136
    %s139 = smul.addr 4, 9
    %s140 = scalar_lea.vmem [#allocation1], %s139
    %v141 = vld [vmem:[%s140] sm:%s108]
    %s142 = scalar_lea.vmem [#allocation0], 72
    %143 = vst [vmem:[%s142] sm:%s108] %v141
    %s144 = smul.addr 4, 8
    %s145 = scalar_lea.vmem [#allocation1], %s144
    %v146 = vld [vmem:[%s145] sm:%s108]
    %s147 = scalar_lea.vmem [#allocation0], 64
    %148 = vst [vmem:[%s147] sm:%s108] %v146
    %s149 = smul.addr 4, 7
    %s150 = scalar_lea.vmem [#allocation1], %s149
    %v151 = vld [vmem:[%s150] sm:%s108]
    %s152 = scalar_lea.vmem [#allocation0], 56
    %153 = vst [vmem:[%s152] sm:%s108] %v151
    %s154 = smul.addr 4, 6
    %s155 = scalar_lea.vmem [#allocation1], %s154
    %v156 = vld [vmem:[%s155] sm:%s108]
    %s157 = scalar_lea.vmem [#allocation0], 48
    %158 = vst [vmem:[%s157] sm:%s108] %v156
    %s159 = smul.addr 4, 5
    %s160 = scalar_lea.vmem [#allocation1], %s159
    %v161 = vld [vmem:[%s160] sm:%s108]
    %s162 = scalar_lea.vmem [#allocation0], 40
    %163 = vst [vmem:[%s162] sm:%s108] %v161
    %s164 = smul.addr 4, 4
    %s165 = scalar_lea.vmem [#allocation1], %s164
    %v166 = vld [vmem:[%s165] sm:%s108]
    %s167 = scalar_lea.vmem [#allocation0], 32
    %168 = vst [vmem:[%s167] sm:%s108] %v166
    %s169 = smul.addr 4, 3
    %s170 = scalar_lea.vmem [#allocation1], %s169
    %v171 = vld [vmem:[%s170] sm:%s108]
    %s172 = scalar_lea.vmem [#allocation0], 24
    %173 = vst [vmem:[%s172] sm:%s108] %v171
    %s174 = smul.addr 4, 2
    %s175 = scalar_lea.vmem [#allocation1], %s174
    %v176 = vld [vmem:[%s175] sm:%s108]
    %s177 = scalar_lea.vmem [#allocation0], 16
    %178 = vst [vmem:[%s177] sm:%s108] %v176
    %s179 = scalar_lea.vmem [#allocation1], 4
    %v180 = vld [vmem:[%s179] sm:%s108]
    %s181 = scalar_lea.vmem [#allocation0], 8
    %182 = vst [vmem:[%s181] sm:%s108] %v180
    %v183 = vld [vmem:[#allocation1] sm:%s108]
    %184 = vst [vmem:[#allocation0] sm:%s108] %v183
    %v185 = vld [vmem:[#allocation0] sm:$0xff]
    %186 = vperm.xlu0 %4, %v185
    %v187 = vpop.permute.xlu0 %186
    %188 = vst [vmem:[#allocation2] sm:$0xff] %v187
    %s189 = scalar_lea.vmem [#allocation2], 8
    %s190 = scalar_lea.vmem [#allocation0], 8
    %v191 = vld [vmem:[%s190] sm:$0xff]
    %192 = vperm.xlu0 %4, %v191
    %v193 = vpop.permute.xlu0 %192
    %194 = vst [vmem:[%s189] sm:$0xff] %v193
    %s195 = scalar_lea.vmem [#allocation2], 16
    %s196 = scalar_lea.vmem [#allocation0], 16
    %v197 = vld [vmem:[%s196] sm:$0xff]
    %198 = vperm.xlu0 %4, %v197
    %v199 = vpop.permute.xlu0 %198
    %200 = vst [vmem:[%s195] sm:$0xff] %v199
    %s201 = scalar_lea.vmem [#allocation2], 24
    %s202 = scalar_lea.vmem [#allocation0], 24
    %v203 = vld [vmem:[%s202] sm:$0xff]
    %204 = vperm.xlu0 %4, %v203
    %v205 = vpop.permute.xlu0 %204
    %206 = vst [vmem:[%s201] sm:$0xff] %v205
    %s207 = scalar_lea.vmem [#allocation2], 32
    %s208 = scalar_lea.vmem [#allocation0], 32
    %v209 = vld [vmem:[%s208] sm:$0xff]
    %210 = vperm.xlu0 %4, %v209
    %v211 = vpop.permute.xlu0 %210
    %212 = vst [vmem:[%s207] sm:$0xff] %v211
    %s213 = scalar_lea.vmem [#allocation2], 40
    %s214 = scalar_lea.vmem [#allocation0], 40
    %v215 = vld [vmem:[%s214] sm:$0xff]
    %216 = vperm.xlu0 %4, %v215
    %v217 = vpop.permute.xlu0 %216
    %218 = vst [vmem:[%s213] sm:$0xff] %v217
    %s219 = scalar_lea.vmem [#allocation2], 48
    %s220 = scalar_lea.vmem [#allocation0], 48
    %v221 = vld [vmem:[%s220] sm:$0xff]
    %222 = vperm.xlu0 %4, %v221
    %v223 = vpop.permute.xlu0 %222
    %224 = vst [vmem:[%s219] sm:$0xff] %v223
    %s225 = scalar_lea.vmem [#allocation2], 56
    %s226 = scalar_lea.vmem [#allocation0], 56
    %v227 = vld [vmem:[%s226] sm:$0xff]
    %228 = vperm.xlu0 %4, %v227
    %v229 = vpop.permute.xlu0 %228
    %230 = vst [vmem:[%s225] sm:$0xff] %v229
    %s231 = scalar_lea.vmem [#allocation2], 64
    %s232 = scalar_lea.vmem [#allocation0], 64
    %v233 = vld [vmem:[%s232] sm:$0xff]
    %234 = vperm.xlu0 %4, %v233
    %v235 = vpop.permute.xlu0 %234
    %236 = vst [vmem:[%s231] sm:$0xff] %v235
    %s237 = scalar_lea.vmem [#allocation2], 72
    %s238 = scalar_lea.vmem [#allocation0], 72
    %v239 = vld [vmem:[%s238] sm:$0xff]
    %240 = vperm.xlu0 %4, %v239
    %v241 = vpop.permute.xlu0 %240
    %242 = vst [vmem:[%s237] sm:$0xff] %v241
    %s243 = scalar_lea.vmem [#allocation2], 80
    %s244 = scalar_lea.vmem [#allocation0], 80
    %v245 = vld [vmem:[%s244] sm:$0xff]
    %246 = vperm.xlu0 %4, %v245
    %v247 = vpop.permute.xlu0 %246
    %248 = vst [vmem:[%s243] sm:$0xff] %v247
    %s249 = scalar_lea.vmem [#allocation2], 88
    %s250 = scalar_lea.vmem [#allocation0], 88
    %v251 = vld [vmem:[%s250] sm:$0xff]
    %252 = vperm.xlu0 %4, %v251
    %v253 = vpop.permute.xlu0 %252
    %254 = vst [vmem:[%s249] sm:$0xff] %v253
    %s255 = scalar_lea.vmem [#allocation2], 96
    %s256 = scalar_lea.vmem [#allocation0], 96
    %v257 = vld [vmem:[%s256] sm:$0xff]
    %258 = vperm.xlu0 %4, %v257
    %v259 = vpop.permute.xlu0 %258
    %260 = vst [vmem:[%s255] sm:$0xff] %v259
    %s261 = scalar_lea.vmem [#allocation2], 104
    %s262 = scalar_lea.vmem [#allocation0], 104
    %v263 = vld [vmem:[%s262] sm:$0xff]
    %264 = vperm.xlu0 %4, %v263
    %v265 = vpop.permute.xlu0 %264
    %266 = vst [vmem:[%s261] sm:$0xff] %v265
    %s267 = scalar_lea.vmem [#allocation2], 112
    %s268 = scalar_lea.vmem [#allocation0], 112
    %v269 = vld [vmem:[%s268] sm:$0xff]
    %270 = vperm.xlu0 %4, %v269
    %v271 = vpop.permute.xlu0 %270
    %272 = vst [vmem:[%s267] sm:$0xff] %v271
    %s273 = scalar_lea.vmem [#allocation2], 120
    %s274 = scalar_lea.vmem [#allocation0], 120
    %v275 = vld [vmem:[%s274] sm:$0xff]
    %276 = vperm.xlu0 %4, %v275
    %v277 = vpop.permute.xlu0 %276
    %278 = vst [vmem:[%s273] sm:$0xff] %v277
    %s280 = sshll.u32 1, 4
    %s281 = ssub.s32 %s280, 1
    %v283 = vld [vmem:[#allocation2] sm:%s281]
    %s284 = sshll.u32 1, 4
    %s285 = ssub.s32 %s284, 1
    %286 = vst [vmem:[#allocation3] sm:%s285] %v283
    %s287 = scalar_lea.vmem [#allocation2], 8
    %v288 = vld [vmem:[%s287] sm:%s281]
    %s289 = sshll.u32 1, 4
    %s290 = ssub.s32 %s289, 1
    %s291 = scalar_lea.vmem [#allocation3], 4
    %292 = vst [vmem:[%s291] sm:%s290] %v288
    %s293 = scalar_lea.vmem [#allocation2], 16
    %v294 = vld [vmem:[%s293] sm:%s281]
    %s295 = sshll.u32 1, 4
    %s296 = ssub.s32 %s295, 1
    %s297 = smul.addr 4, 2
    %s298 = scalar_lea.vmem [#allocation3], %s297
    %299 = vst [vmem:[%s298] sm:%s296] %v294
    %s300 = scalar_lea.vmem [#allocation2], 24
    %v301 = vld [vmem:[%s300] sm:%s281]
    %s302 = sshll.u32 1, 4
    %s303 = ssub.s32 %s302, 1
    %s304 = smul.addr 4, 3
    %s305 = scalar_lea.vmem [#allocation3], %s304
    %306 = vst [vmem:[%s305] sm:%s303] %v301
    %s307 = scalar_lea.vmem [#allocation2], 32
    %v308 = vld [vmem:[%s307] sm:%s281]
    %s309 = sshll.u32 1, 4
    %s310 = ssub.s32 %s309, 1
    %s311 = smul.addr 4, 4
    %s312 = scalar_lea.vmem [#allocation3], %s311
    %313 = vst [vmem:[%s312] sm:%s310] %v308
    %s314 = scalar_lea.vmem [#allocation2], 40
    %v315 = vld [vmem:[%s314] sm:%s281]
    %s316 = sshll.u32 1, 4
    %s317 = ssub.s32 %s316, 1
    %s318 = smul.addr 4, 5
    %s319 = scalar_lea.vmem [#allocation3], %s318
    %320 = vst [vmem:[%s319] sm:%s317] %v315
    %s321 = scalar_lea.vmem [#allocation2], 48
    %v322 = vld [vmem:[%s321] sm:%s281]
    %s323 = sshll.u32 1, 4
    %s324 = ssub.s32 %s323, 1
    %s325 = smul.addr 4, 6
    %s326 = scalar_lea.vmem [#allocation3], %s325
    %327 = vst [vmem:[%s326] sm:%s324] %v322
    %s328 = scalar_lea.vmem [#allocation2], 56
    %v329 = vld [vmem:[%s328] sm:%s281]
    %s330 = sshll.u32 1, 4
    %s331 = ssub.s32 %s330, 1
    %s332 = smul.addr 4, 7
    %s333 = scalar_lea.vmem [#allocation3], %s332
    %334 = vst [vmem:[%s333] sm:%s331] %v329
    %s335 = scalar_lea.vmem [#allocation2], 64
    %v336 = vld [vmem:[%s335] sm:%s281]
    %s337 = sshll.u32 1, 4
    %s338 = ssub.s32 %s337, 1
    %s339 = smul.addr 4, 8
    %s340 = scalar_lea.vmem [#allocation3], %s339
    %341 = vst [vmem:[%s340] sm:%s338] %v336
    %s342 = scalar_lea.vmem [#allocation2], 72
    %v343 = vld [vmem:[%s342] sm:%s281]
    %s344 = sshll.u32 1, 4
    %s345 = ssub.s32 %s344, 1
    %s346 = smul.addr 4, 9
    %s347 = scalar_lea.vmem [#allocation3], %s346
    %348 = vst [vmem:[%s347] sm:%s345] %v343
    %s349 = scalar_lea.vmem [#allocation2], 80
    %v350 = vld [vmem:[%s349] sm:%s281]
    %s351 = sshll.u32 1, 4
    %s352 = ssub.s32 %s351, 1
    %s353 = smul.addr 4, 10
    %s354 = scalar_lea.vmem [#allocation3], %s353
    %355 = vst [vmem:[%s354] sm:%s352] %v350
    %s356 = scalar_lea.vmem [#allocation2], 88
    %v357 = vld [vmem:[%s356] sm:%s281]
    %s358 = sshll.u32 1, 4
    %s359 = ssub.s32 %s358, 1
    %s360 = smul.addr 4, 11
    %s361 = scalar_lea.vmem [#allocation3], %s360
    %362 = vst [vmem:[%s361] sm:%s359] %v357
    %s363 = scalar_lea.vmem [#allocation2], 96
    %v364 = vld [vmem:[%s363] sm:%s281]
    %s365 = sshll.u32 1, 4
    %s366 = ssub.s32 %s365, 1
    %s367 = smul.addr 4, 12
    %s368 = scalar_lea.vmem [#allocation3], %s367
    %369 = vst [vmem:[%s368] sm:%s366] %v364
    %s370 = scalar_lea.vmem [#allocation2], 104
    %v371 = vld [vmem:[%s370] sm:%s281]
    %s372 = sshll.u32 1, 4
    %s373 = ssub.s32 %s372, 1
    %s374 = smul.addr 4, 13
    %s375 = scalar_lea.vmem [#allocation3], %s374
    %376 = vst [vmem:[%s375] sm:%s373] %v371
    %s377 = scalar_lea.vmem [#allocation2], 112
    %v378 = vld [vmem:[%s377] sm:%s281]
    %s379 = sshll.u32 1, 4
    %s380 = ssub.s32 %s379, 1
    %s381 = smul.addr 4, 14
    %s382 = scalar_lea.vmem [#allocation3], %s381
    %383 = vst [vmem:[%s382] sm:%s380] %v378
    %s384 = scalar_lea.vmem [#allocation2], 120
    %v385 = vld [vmem:[%s384] sm:%s281]
    %s386 = sshll.u32 1, 4
    %s387 = ssub.s32 %s386, 1
    %s388 = smul.addr 4, 15
    %s389 = scalar_lea.vmem [#allocation3], %s388
    %390 = vst [vmem:[%s389] sm:%s387] %v385
    // Predicated region
    $region39: #{reverse.3} parent=1 // pred_check
      _
    $region40: #{reverse.3} parent=1 // pred_check_branch
      %392 = sbr.rel (0) target = $region42
    $region41: #{reverse.3} parent=1 // pred_region
      // Predicated region
      $region43: #{reverse.3} parent=41 // pred_check
        _
      $region44: #{reverse.3} parent=41 // pred_check_branch
        %394 = sbr.rel target = $region46
      $region45: #{reverse.3} parent=41 // pred_region
        // Predicated region
        $region58: #{reverse.3} parent=45 // pred_check
          _
        $region59: #{reverse.3} parent=45 // pred_check_branch
          %440 = sbr.rel (0) target = $region61
        $region60: #{reverse.3} parent=45 // pred_region
          loop: start=0, step=1, limit=1
          $region62: #{reverse.3} parent=60 // loop_pre_header
            _
          $region63: #{reverse.3} parent=60 // loop_header
            %s442 = sphi 0, %s446
            %p443 = scmp.ge.s32.totalorder %s442, 1
            %s447 = sphi [#allocation3], [#allocation3]
            %s448 = sphi %s1, %s1
          $region64: #{reverse.3} parent=60 // loop_header_branch
            %445 = sbr.rel (%p443) target = $region68
          $region65: #{reverse.3} parent=60 // loop_body
            _
          $region66: #{reverse.3} parent=60 // loop_footer
            %s446 = sadd.s32 1, %s442
          $region67: #{reverse.3} parent=60 // loop_footer_branch
            %441 = sbr.rel target = $region63
          $region68: #{reverse.3} parent=60 // loop_exit
            _
          %s450 = ssub.s32 16, 1
          loop: start=0, step=1, limit=1
          $region69: #{reverse.3} parent=60 // loop_pre_header
            _
          $region70: #{reverse.3} parent=60 // loop_header
            %s452 = sphi 0, %s456
            %p453 = scmp.ge.s32.totalorder %s452, 1
            %s457 = sphi [#allocation3], [#allocation3]
            %s458 = sphi %s1, %s1
          $region71: #{reverse.3} parent=60 // loop_header_branch
            %455 = sbr.rel (%p453) target = $region75
          $region72: #{reverse.3} parent=60 // loop_body
            %v459 = vld [vmem:[%s457] sm:%s450]
            %460 = vst [vmem:[%s458] sm:%s450] %v459
            %v461 = vld [vmem:[%s457 + $0x4] sm:%s450]
            %462 = vst [vmem:[%s458 + $0x4] sm:%s450] %v461
            %v463 = vld [vmem:[%s457 + $0x8] sm:%s450]
            %464 = vst [vmem:[%s458 + $0x8] sm:%s450] %v463
            %v465 = vld [vmem:[%s457 + $0xc] sm:%s450]
            %466 = vst [vmem:[%s458 + $0xc] sm:%s450] %v465
            %v467 = vld [vmem:[%s457 + $0x10] sm:%s450]
            %468 = vst [vmem:[%s458 + $0x10] sm:%s450] %v467
            %v469 = vld [vmem:[%s457 + $0x14] sm:%s450]
            %470 = vst [vmem:[%s458 + $0x14] sm:%s450] %v469
            %v471 = vld [vmem:[%s457 + $0x18] sm:%s450]
            %472 = vst [vmem:[%s458 + $0x18] sm:%s450] %v471
            %v473 = vld [vmem:[%s457 + $0x1c] sm:%s450]
            %474 = vst [vmem:[%s458 + $0x1c] sm:%s450] %v473
            %v475 = vld [vmem:[%s457 + $0x20] sm:%s450]
            %476 = vst [vmem:[%s458 + $0x20] sm:%s450] %v475
            %v477 = vld [vmem:[%s457 + $0x24] sm:%s450]
            %478 = vst [vmem:[%s458 + $0x24] sm:%s450] %v477
            %v479 = vld [vmem:[%s457 + $0x28] sm:%s450]
            %480 = vst [vmem:[%s458 + $0x28] sm:%s450] %v479
            %v481 = vld [vmem:[%s457 + $0x2c] sm:%s450]
            %482 = vst [vmem:[%s458 + $0x2c] sm:%s450] %v481
            %v483 = vld [vmem:[%s457 + $0x30] sm:%s450]
            %484 = vst [vmem:[%s458 + $0x30] sm:%s450] %v483
            %v485 = vld [vmem:[%s457 + $0x34] sm:%s450]
            %486 = vst [vmem:[%s458 + $0x34] sm:%s450] %v485
            %v487 = vld [vmem:[%s457 + $0x38] sm:%s450]
            %488 = vst [vmem:[%s458 + $0x38] sm:%s450] %v487
            %v489 = vld [vmem:[%s457 + $0x3c] sm:%s450]
            %490 = vst [vmem:[%s458 + $0x3c] sm:%s450] %v489
          $region73: #{reverse.3} parent=60 // loop_footer
            %s456 = sadd.s32 1, %s452
          $region74: #{reverse.3} parent=60 // loop_footer_branch
            %451 = sbr.rel target = $region70
          $region75: #{reverse.3} parent=60 // loop_exit
            _
        $region61: #{reverse.3} parent=45 // pred_fallthru
          _
      $region46: #{reverse.3} parent=41 // pred_fallthru
        _
      // Predicated region
      $region47: #{reverse.3} parent=41 // pred_check
        _
      $region48: #{reverse.3} parent=41 // pred_check_branch
        %396 = sbr.rel (0) target = $region50
      $region49: #{reverse.3} parent=41 // pred_region
        %s398 = ssub.s32 16, 1
        loop: start=0, step=1, limit=1
        $region51: #{reverse.3} parent=49 // loop_pre_header
          _
        $region52: #{reverse.3} parent=49 // loop_header
          %s400 = sphi 0, %s404
          %p401 = scmp.ge.s32.totalorder %s400, 1
          %s405 = sphi [#allocation3], [#allocation3]
          %s406 = sphi %s1, %s1
        $region53: #{reverse.3} parent=49 // loop_header_branch
          %403 = sbr.rel (%p401) target = $region57
        $region54: #{reverse.3} parent=49 // loop_body
          %v407 = vld [vmem:[%s405] sm:%s398]
          %408 = vst [vmem:[%s406] sm:%s398] %v407
          %v409 = vld [vmem:[%s405 + $0x4] sm:%s398]
          %410 = vst [vmem:[%s406 + $0x4] sm:%s398] %v409
          %v411 = vld [vmem:[%s405 + $0x8] sm:%s398]
          %412 = vst [vmem:[%s406 + $0x8] sm:%s398] %v411
          %v413 = vld [vmem:[%s405 + $0xc] sm:%s398]
          %414 = vst [vmem:[%s406 + $0xc] sm:%s398] %v413
          %v415 = vld [vmem:[%s405 + $0x10] sm:%s398]
          %416 = vst [vmem:[%s406 + $0x10] sm:%s398] %v415
          %v417 = vld [vmem:[%s405 + $0x14] sm:%s398]
          %418 = vst [vmem:[%s406 + $0x14] sm:%s398] %v417
          %v419 = vld [vmem:[%s405 + $0x18] sm:%s398]
          %420 = vst [vmem:[%s406 + $0x18] sm:%s398] %v419
          %v421 = vld [vmem:[%s405 + $0x1c] sm:%s398]
          %422 = vst [vmem:[%s406 + $0x1c] sm:%s398] %v421
          %v423 = vld [vmem:[%s405 + $0x20] sm:%s398]
          %424 = vst [vmem:[%s406 + $0x20] sm:%s398] %v423
          %v425 = vld [vmem:[%s405 + $0x24] sm:%s398]
          %426 = vst [vmem:[%s406 + $0x24] sm:%s398] %v425
          %v427 = vld [vmem:[%s405 + $0x28] sm:%s398]
          %428 = vst [vmem:[%s406 + $0x28] sm:%s398] %v427
          %v429 = vld [vmem:[%s405 + $0x2c] sm:%s398]
          %430 = vst [vmem:[%s406 + $0x2c] sm:%s398] %v429
          %v431 = vld [vmem:[%s405 + $0x30] sm:%s398]
          %432 = vst [vmem:[%s406 + $0x30] sm:%s398] %v431
          %v433 = vld [vmem:[%s405 + $0x34] sm:%s398]
          %434 = vst [vmem:[%s406 + $0x34] sm:%s398] %v433
          %v435 = vld [vmem:[%s405 + $0x38] sm:%s398]
          %436 = vst [vmem:[%s406 + $0x38] sm:%s398] %v435
          %v437 = vld [vmem:[%s405 + $0x3c] sm:%s398]
          %438 = vst [vmem:[%s406 + $0x3c] sm:%s398] %v437
        $region55: #{reverse.3} parent=49 // loop_footer
          %s404 = sadd.s32 1, %s400
        $region56: #{reverse.3} parent=49 // loop_footer_branch
          %399 = sbr.rel target = $region52
        $region57: #{reverse.3} parent=49 // loop_exit
          _
      $region50: #{reverse.3} parent=41 // pred_fallthru
        _
    $region42: #{reverse.3} parent=1 // pred_fallthru
      _
    %491 = vnop

// kernel: multi_wavelet_cross_forward.24
$region0: #{multi_wavelet_cross_forward.24}
  #allocation0 [shape = 'u32[]', space=smem, size = 0x4, offset = 0x4, fixed_abs, tag = 'smem constant byte address 0x4 - core index']
  #allocation1 [shape = 'u32[144,128]{1,0:T(1,128)}', space=vmem, size = 0x12000, scoped, tag = 'internal scratch']
  %s0 = inlined_call_operand.vmem [shape: f32[8,32], index: 0, kind: input, shape index: {}]
  %s1 = inlined_call_operand.vmem [shape: f32[32,32], index: 1, kind: input, shape index: {}]
  %s2 = inlined_call_operand.vmem [shape: f32[8,32], index: 2, kind: output, shape index: {}]
  %s3 = sld [smem:[#allocation0]]
  $region18: #{multi_wavelet_cross_forward.24} parent=0
    _
  %s5 = ssub.s32 1, %s3
  %s6 = scalar_select 0, %s5, %s3
  // Predicated region
  $region2: #{multi_wavelet_cross_forward.24} parent=0 // pred_check
    _
  $region3: #{multi_wavelet_cross_forward.24} parent=0 // pred_check_branch
    %8 = sbr.rel (0) target = $region5
  $region4: #{multi_wavelet_cross_forward.24} parent=0 // pred_region
    _
  $region5: #{multi_wavelet_cross_forward.24} parent=0 // pred_fallthru
    _
  // Predicated region
  $region6: #{multi_wavelet_cross_forward.24} parent=0 // pred_check
    _
  $region7: #{multi_wavelet_cross_forward.24} parent=0 // pred_check_branch
    %10 = sbr.rel (0) target = $region9
  $region8: #{multi_wavelet_cross_forward.24} parent=0 // pred_region
    _
  $region9: #{multi_wavelet_cross_forward.24} parent=0 // pred_fallthru
    _
  %v11 = vld [vmem:[%s0] sm:$0xff]
  %v12 = vld [vmem:[%s1] sm:$0xff]
  %v13 = vld [vmem:[%s1 + $0x8] sm:$0xff]
  %v14 = vld [vmem:[%s1 + $0x10] sm:$0xff]
  %v15 = vld [vmem:[%s1 + $0x18] sm:$0xff]
  %vm16 = vcmask 261120
  %v18 = vsel %vm16, %v11, 0
  %20 = vmatprep.subr.mxu0 0.0
  %21 = vmatpush1.msra.mxu0 0.0
  %22 = vmatprep.subr.mxu0 0.0
  %23 = vmatpush1.msra.mxu0 0.0
  %24 = vmatprep.subr.mxu0 0.0
  %25 = vmatpush1.msra.mxu0 0.0
  %26 = vmatprep.subr.mxu0 0.0
  %27 = vmatpush1.msra.mxu0 0.0
  %28 = vmatprep.subr.mxu0 0.0
  %29 = vmatpush1.msra.mxu0 0.0
  %30 = vmatprep.subr.mxu0 0.0
  %31 = vmatpush1.msra.mxu0 0.0
  %32 = vmatprep.subr.mxu0 0.0
  %33 = vmatpush1.msra.mxu0 0.0
  %34 = vmatprep.subr.mxu0 0.0
  %35 = vmatpush1.msra.mxu0 0.0
  %36 = vmatprep.subr.mxu0 0.0
  %37 = vmatpush1.msra.mxu0 0.0
  %38 = vmatprep.subr.mxu0 0.0
  %39 = vmatpush1.msra.mxu0 0.0
  %40 = vmatprep.subr.mxu0 0.0
  %41 = vmatpush1.msra.mxu0 0.0
  %42 = vmatprep.subr.mxu0 0.0
  %43 = vmatpush1.msra.mxu0 0.0
  %44 = vmatprep.subr.mxu0 0.0
  %45 = vmatpush1.msra.mxu0 %v15
  %46 = vmatprep.subr.mxu0 0.0
  %47 = vmatpush1.msra.mxu0 %v14
  %48 = vmatprep.subr.mxu0 0.0
  %49 = vmatpush1.msra.mxu0 %v13
  %50 = vmatprep.subr.mxu0 0.0
  %51 = vmatpush1.msra.mxu0 %v12
  %52 = vmatprep.subr.mxu0 0.0
  %53 = vmatpush2.msra.mxu0 0.0
  %54 = vmatprep.subr.mxu0 0.0
  %55 = vmatpush2.msra.mxu0 0.0
  %56 = vmatprep.subr.mxu0 0.0
  %57 = vmatpush2.msra.mxu0 0.0
  %58 = vmatprep.subr.mxu0 0.0
  %59 = vmatpush2.msra.mxu0 0.0
  %60 = vmatprep.subr.mxu0 0.0
  %61 = vmatpush2.msra.mxu0 0.0
  %62 = vmatprep.subr.mxu0 0.0
  %63 = vmatpush2.msra.mxu0 0.0
  %64 = vmatprep.subr.mxu0 0.0
  %65 = vmatpush2.msra.mxu0 0.0
  %66 = vmatprep.subr.mxu0 0.0
  %67 = vmatpush2.msra.mxu0 0.0
  %68 = vmatprep.subr.mxu0 0.0
  %69 = vmatpush2.msra.mxu0 0.0
  %70 = vmatprep.subr.mxu0 0.0
  %71 = vmatpush2.msra.mxu0 0.0
  %72 = vmatprep.subr.mxu0 0.0
  %73 = vmatpush2.msra.mxu0 0.0
  %74 = vmatprep.subr.mxu0 0.0
  %75 = vmatpush2.msra.mxu0 0.0
  %76 = vmatprep.subr.mxu0 0.0
  %77 = vmatpush2.msra.mxu0 0.0
  %78 = vmatprep.subr.mxu0 0.0
  %79 = vmatpush2.msra.mxu0 0.0
  %80 = vmatprep.subr.mxu0 0.0
  %81 = vmatpush2.msra.mxu0 0.0
  %82 = vmatprep.subr.mxu0 0.0
  %83 = vmatpush2.msra.mxu0 0.0
  %84 = vmatprep.mubr.f32.mxu0 0.0
  %85 = vmatmul.mubr.f32.gmra.mxu0 %v18
  %v86 = vpop.f32.mrf.mxu0
  %v87 = vadd.f32 0.0, %v86
  %v88 = vpop.f32.mrf.mxu0
  %89 = vdwg.mxu0
  %90 = vst.msk [vmem:[%s2] sm:$0xff] %vm16, %v87
  // Predicated region
  $region10: #{multi_wavelet_cross_forward.24} parent=0 // pred_check
    _
  $region11: #{multi_wavelet_cross_forward.24} parent=0 // pred_check_branch
    %92 = sbr.rel (0) target = $region13
  $region12: #{multi_wavelet_cross_forward.24} parent=0 // pred_region
    _
  $region13: #{multi_wavelet_cross_forward.24} parent=0 // pred_fallthru
    _
  // Predicated region
  $region14: #{multi_wavelet_cross_forward.24} parent=0 // pred_check
    _
  $region15: #{multi_wavelet_cross_forward.24} parent=0 // pred_check_branch
    %94 = sbr.rel (0) target = $region17
  $region16: #{multi_wavelet_cross_forward.24} parent=0 // pred_region
    _
  $region17: #{multi_wavelet_cross_forward.24} parent=0 // pred_fallthru
    _

// kernel: multi_wavelet_cross_forward.21
$region0: #{multi_wavelet_cross_forward.21}
  #allocation0 [shape = 'u32[]', space=smem, size = 0x4, offset = 0x4, fixed_abs, tag = 'smem constant byte address 0x4 - core index']
  #allocation1 [shape = 'u32[144,128]{1,0:T(1,128)}', space=vmem, size = 0x12000, scoped, tag = 'internal scratch']
  %s0 = inlined_call_operand.vmem [shape: f32[16,4,8], index: 0, kind: input, shape index: {}]
  %s1 = inlined_call_operand.vmem [shape: f32[16,4,8], index: 1, kind: input, shape index: {}]
  %s2 = inlined_call_operand.vmem [shape: f32[16,4,8], index: 2, kind: input, shape index: {}]
  %s3 = inlined_call_operand.vmem [shape: f32[16,4,8], index: 3, kind: input, shape index: {}]
  %s4 = inlined_call_operand.vmem [shape: f32[16,4,8], index: 4, kind: output, shape index: {0}]
  %s5 = inlined_call_operand.vmem [shape: f32[16,4,8], index: 5, kind: output, shape index: {1}]
  %6 = xla_tuple %s4, %s5
  %s7 = sld [smem:[#allocation0]]
  $region57: #{multi_wavelet_cross_forward.21} parent=0
    _
  %s9 = ssub.s32 1, %s7
  %s10 = scalar_select 0, %s9, %s7
  loop: start=0, step=1, limit=4
  $region2: #{multi_wavelet_cross_forward.21} parent=0 // loop_pre_header
    _
  $region3: #{multi_wavelet_cross_forward.21} parent=0 // loop_header
    %s12 = sphi 0, %s16
    %p13 = scmp.ge.s32.totalorder %s12, 4
    %s22 = sphi 0, %s24
    %s25 = sphi 0, %s22
    %s26 = sphi 0, %s25
    %s42 = sphi 0, %s26
    %s48 = sphi 0, %s50
    %s51 = sphi 0, %s48
    %s52 = sphi 0, %s51
    %s68 = sphi 0, %s52
    %s74 = sphi 0, %s76
    %s77 = sphi 0, %s74
    %s78 = sphi 0, %s77
    %s94 = sphi 0, %s78
    %s100 = sphi 0, %s102
    %s103 = sphi 0, %s100
    %s104 = sphi 0, %s103
    %s120 = sphi 0, %s104
    %s126 = sphi 0, %s128
    %s129 = sphi 0, %s126
    %s130 = sphi 0, %s129
    %s146 = sphi 0, %s130
    %s152 = sphi 0, %s154
    %s155 = sphi 0, %s152
    %s156 = sphi 0, %s155
    %s172 = sphi 0, %s156
  $region4: #{multi_wavelet_cross_forward.21} parent=0 // loop_header_branch
    %15 = sbr.rel (%p13) target = $region8
  $region5: #{multi_wavelet_cross_forward.21} parent=0 // loop_body
    %s17 = ssub.s32 %s12, 1
    %s18 = ssub.s32 %s12, 2
    %s19 = sadd.s32 %s12, 1
    %s20 = ssub.s32 %s12, %s19
    %p21 = scmp.eq.s32.totalorder %s20, 0
    %s23 = sadd.s32 %s22, 1
    %s24 = scalar_select %p21, %s22, %s23
    %p27 = pneg %p21
    %p28 = scmp.eq.s32.totalorder %s12, 1
    %p29 = por %p27, %p28
    %p30 = scmp.ne.s32.totalorder %s22, %s25
    %p31 = scmp.eq.s32.totalorder %s12, 0
    %p32 = por %p30, %p31
    %p33 = scmp.ne.s32.totalorder %s22, %s25
    %p34 = scmp.eq.s32.totalorder %s17, 1
    %p35 = por %p33, %p34
    %p36 = scmp.ne.s32.totalorder %s25, %s26
    %p37 = scmp.eq.s32.totalorder %s17, 0
    %p38 = por %p36, %p37
    %p39 = scmp.ne.s32.totalorder %s25, %s26
    %p40 = scmp.eq.s32.totalorder %s18, 1
    %p41 = por %p39, %p40
    %p43 = scmp.ne.s32.totalorder %s26, %s42
    %p44 = scmp.eq.s32.totalorder %s18, 0
    %p45 = por %p43, %p44
    %s46 = ssub.s32 %s12, %s19
    %p47 = scmp.eq.s32.totalorder %s46, 0
    %s49 = sadd.s32 %s48, 1
    %s50 = scalar_select %p47, %s48, %s49
    %p53 = pneg %p47
    %p54 = scmp.eq.s32.totalorder %s12, 1
    %p55 = por %p53, %p54
    %p56 = scmp.ne.s32.totalorder %s48, %s51
    %p57 = scmp.eq.s32.totalorder %s12, 0
    %p58 = por %p56, %p57
    %p59 = scmp.ne.s32.totalorder %s48, %s51
    %p60 = scmp.eq.s32.totalorder %s17, 1
    %p61 = por %p59, %p60
    %p62 = scmp.ne.s32.totalorder %s51, %s52
    %p63 = scmp.eq.s32.totalorder %s17, 0
    %p64 = por %p62, %p63
    %p65 = scmp.ne.s32.totalorder %s51, %s52
    %p66 = scmp.eq.s32.totalorder %s18, 1
    %p67 = por %p65, %p66
    %p69 = scmp.ne.s32.totalorder %s52, %s68
    %p70 = scmp.eq.s32.totalorder %s18, 0
    %p71 = por %p69, %p70
    %s72 = ssub.s32 %s12, %s19
    %p73 = scmp.eq.s32.totalorder %s72, 0
    %s75 = sadd.s32 %s74, 1
    %s76 = scalar_select %p73, %s74, %s75
    %p79 = pneg %p73
    %p80 = scmp.eq.s32.totalorder %s12, 1
    %p81 = por %p79, %p80
    %p82 = scmp.ne.s32.totalorder %s74, %s77
    %p83 = scmp.eq.s32.totalorder %s12, 0
    %p84 = por %p82, %p83
    %p85 = scmp.ne.s32.totalorder %s74, %s77
    %p86 = scmp.eq.s32.totalorder %s17, 1
    %p87 = por %p85, %p86
    %p88 = scmp.ne.s32.totalorder %s77, %s78
    %p89 = scmp.eq.s32.totalorder %s17, 0
    %p90 = por %p88, %p89
    %p91 = scmp.ne.s32.totalorder %s77, %s78
    %p92 = scmp.eq.s32.totalorder %s18, 1
    %p93 = por %p91, %p92
    %p95 = scmp.ne.s32.totalorder %s78, %s94
    %p96 = scmp.eq.s32.totalorder %s18, 0
    %p97 = por %p95, %p96
    %s98 = ssub.s32 %s12, %s19
    %p99 = scmp.eq.s32.totalorder %s98, 0
    %s101 = sadd.s32 %s100, 1
    %s102 = scalar_select %p99, %s100, %s101
    %p105 = pneg %p99
    %p106 = scmp.eq.s32.totalorder %s12, 1
    %p107 = por %p105, %p106
    %p108 = scmp.ne.s32.totalorder %s100, %s103
    %p109 = scmp.eq.s32.totalorder %s12, 0
    %p110 = por %p108, %p109
    %p111 = scmp.ne.s32.totalorder %s100, %s103
    %p112 = scmp.eq.s32.totalorder %s17, 1
    %p113 = por %p111, %p112
    %p114 = scmp.ne.s32.totalorder %s103, %s104
    %p115 = scmp.eq.s32.totalorder %s17, 0
    %p116 = por %p114, %p115
    %p117 = scmp.ne.s32.totalorder %s103, %s104
    %p118 = scmp.eq.s32.totalorder %s18, 1
    %p119 = por %p117, %p118
    %p121 = scmp.ne.s32.totalorder %s104, %s120
    %p122 = scmp.eq.s32.totalorder %s18, 0
    %p123 = por %p121, %p122
    %s124 = ssub.s32 %s12, %s19
    %p125 = scmp.eq.s32.totalorder %s124, 0
    %s127 = sadd.s32 %s126, 1
    %s128 = scalar_select %p125, %s126, %s127
    %p131 = pneg %p125
    %p132 = scmp.eq.s32.totalorder %s12, 1
    %p133 = por %p131, %p132
    %p134 = scmp.ne.s32.totalorder %s126, %s129
    %p135 = scmp.eq.s32.totalorder %s12, 0
    %p136 = por %p134, %p135
    %p137 = scmp.ne.s32.totalorder %s126, %s129
    %p138 = scmp.eq.s32.totalorder %s17, 1
    %p139 = por %p137, %p138
    %p140 = scmp.ne.s32.totalorder %s129, %s130
    %p141 = scmp.eq.s32.totalorder %s17, 0
    %p142 = por %p140, %p141
    %p143 = scmp.ne.s32.totalorder %s129, %s130
    %p144 = scmp.eq.s32.totalorder %s18, 1
    %p145 = por %p143, %p144
    %p147 = scmp.ne.s32.totalorder %s130, %s146
    %p148 = scmp.eq.s32.totalorder %s18, 0
    %p149 = por %p147, %p148
    %s150 = ssub.s32 %s12, %s19
    %p151 = scmp.eq.s32.totalorder %s150, 0
    %s153 = sadd.s32 %s152, 1
    %s154 = scalar_select %p151, %s152, %s153
    %p157 = pneg %p151
    %p158 = scmp.eq.s32.totalorder %s12, 1
    %p159 = por %p157, %p158
    %p160 = scmp.ne.s32.totalorder %s152, %s155
    %p161 = scmp.eq.s32.totalorder %s12, 0
    %p162 = por %p160, %p161
    %p163 = scmp.ne.s32.totalorder %s152, %s155
    %p164 = scmp.eq.s32.totalorder %s17, 1
    %p165 = por %p163, %p164
    %p166 = scmp.ne.s32.totalorder %s155, %s156
    %p167 = scmp.eq.s32.totalorder %s17, 0
    %p168 = por %p166, %p167
    %p169 = scmp.ne.s32.totalorder %s155, %s156
    %p170 = scmp.eq.s32.totalorder %s18, 1
    %p171 = por %p169, %p170
    %p173 = scmp.ne.s32.totalorder %s156, %s172
    %p174 = scmp.eq.s32.totalorder %s18, 0
    %p175 = por %p173, %p174
    %p176 = scmp.le.s32.totalorder 1, %s12
    %p177 = scmp.lt.s32.totalorder %s12, 3
    %p178 = pnand %p176, %p177
    %p179 = pneg %p178
    // Predicated region
    $region9: #{multi_wavelet_cross_forward.21} parent=5 // pred_check
      _
    $region10: #{multi_wavelet_cross_forward.21} parent=5 // pred_check_branch
      %181 = sbr.rel (%p178) target = $region12
    $region11: #{multi_wavelet_cross_forward.21} parent=5 // pred_region
      %s182 = ssub.s32 %s12, 1
    $region12: #{multi_wavelet_cross_forward.21} parent=5 // pred_fallthru
      _
    %p183 = scmp.lt.s32.totalorder %s12, 2
    // Predicated region
    $region13: #{multi_wavelet_cross_forward.21} parent=5 // pred_check
      %p184 = pneg %p183
    $region14: #{multi_wavelet_cross_forward.21} parent=5 // pred_check_branch
      %186 = sbr.rel (%p184) target = $region16
    $region15: #{multi_wavelet_cross_forward.21} parent=5 // pred_region
      // Predicated region
      $region17: #{multi_wavelet_cross_forward.21} parent=15 // pred_check
        %p187 = pneg %p32
      $region18: #{multi_wavelet_cross_forward.21} parent=15 // pred_check_branch
        %189 = sbr.rel (%p187) target = $region20
      $region19: #{multi_wavelet_cross_forward.21} parent=15 // pred_region
        %s190 = smul.u32 8, %s12
        %p191 = scmp.lt.s32.totalorder %s190, 15
        %s192 = scalar_select %p191, %s190, 15
        %s193 = smul.addr %s192, 4
        %s194 = scalar_lea.vmem %s0, %s193
        %s195 = smul.u32 8, %s12
      $region20: #{multi_wavelet_cross_forward.21} parent=15 // pred_fallthru
        _
      // Predicated region
      $region21: #{multi_wavelet_cross_forward.21} parent=15 // pred_check
        %p196 = pneg %p58
      $region22: #{multi_wavelet_cross_forward.21} parent=15 // pred_check_branch
        %198 = sbr.rel (%p196) target = $region24
      $region23: #{multi_wavelet_cross_forward.21} parent=15 // pred_region
        %s199 = smul.u32 8, %s12
        %p200 = scmp.lt.s32.totalorder %s199, 15
        %s201 = scalar_select %p200, %s199, 15
        %s202 = smul.addr %s201, 4
        %s203 = scalar_lea.vmem %s1, %s202
        %s204 = smul.u32 8, %s12
      $region24: #{multi_wavelet_cross_forward.21} parent=15 // pred_fallthru
        _
      // Predicated region
      $region25: #{multi_wavelet_cross_forward.21} parent=15 // pred_check
        %p205 = pneg %p84
      $region26: #{multi_wavelet_cross_forward.21} parent=15 // pred_check_branch
        %207 = sbr.rel (%p205) target = $region28
      $region27: #{multi_wavelet_cross_forward.21} parent=15 // pred_region
        %s208 = smul.u32 8, %s12
        %p209 = scmp.lt.s32.totalorder %s208, 15
        %s210 = scalar_select %p209, %s208, 15
        %s211 = smul.addr %s210, 4
        %s212 = scalar_lea.vmem %s2, %s211
        %s213 = smul.u32 8, %s12
      $region28: #{multi_wavelet_cross_forward.21} parent=15 // pred_fallthru
        _
      // Predicated region
      $region29: #{multi_wavelet_cross_forward.21} parent=15 // pred_check
        %p214 = pneg %p110
      $region30: #{multi_wavelet_cross_forward.21} parent=15 // pred_check_branch
        %216 = sbr.rel (%p214) target = $region32
      $region31: #{multi_wavelet_cross_forward.21} parent=15 // pred_region
        %s217 = smul.u32 8, %s12
        %p218 = scmp.lt.s32.totalorder %s217, 15
        %s219 = scalar_select %p218, %s217, 15
        %s220 = smul.addr %s219, 4
        %s221 = scalar_lea.vmem %s3, %s220
        %s222 = smul.u32 8, %s12
      $region32: #{multi_wavelet_cross_forward.21} parent=15 // pred_fallthru
        _
    $region16: #{multi_wavelet_cross_forward.21} parent=5 // pred_fallthru
      _
    %p223 = scmp.le.s32.totalorder 1, %s12
    %p224 = scmp.lt.s32.totalorder %s12, 3
    %p225 = pnand %p223, %p224
    %p226 = pneg %p225
    // Predicated region
    $region33: #{multi_wavelet_cross_forward.21} parent=5 // pred_check
      _
    $region34: #{multi_wavelet_cross_forward.21} parent=5 // pred_check_branch
      %228 = sbr.rel (%p225) target = $region36
    $region35: #{multi_wavelet_cross_forward.21} parent=5 // pred_region
      %s229 = ssub.s32 %s12, 1
      %s230 = smul.u32 8, %s17
      %p231 = scmp.lt.s32.totalorder %s230, 15
      %s232 = scalar_select %p231, %s230, 15
      %s233 = smul.addr %s232, 4
      %s234 = scalar_lea.vmem %s0, %s233
      %p235 = pneg %p38
      %p236 = pneg %p35
      %s237 = smul.u32 8, %s17
      %p238 = scmp.lt.s32.totalorder %s237, 15
      %s239 = scalar_select %p238, %s237, 15
      %s240 = smul.addr %s239, 4
      %s241 = scalar_lea.vmem %s1, %s240
      %p242 = pneg %p64
      %p243 = pneg %p61
      %s244 = smul.u32 8, %s17
      %p245 = scmp.lt.s32.totalorder %s244, 15
      %s246 = scalar_select %p245, %s244, 15
      %s247 = smul.addr %s246, 4
      %s248 = scalar_lea.vmem %s2, %s247
      %p249 = pneg %p90
      %p250 = pneg %p87
      %s251 = smul.u32 8, %s17
      %p252 = scmp.lt.s32.totalorder %s251, 15
      %s253 = scalar_select %p252, %s251, 15
      %s254 = smul.addr %s253, 4
      %s255 = scalar_lea.vmem %s3, %s254
      %p256 = pneg %p116
      %p257 = pneg %p113
      %p258 = pneg %p142
      %p259 = pneg %p139
      %s260 = smul.u32 8, %s17
      %p261 = scmp.lt.s32.totalorder %s260, 15
      %s262 = scalar_select %p261, %s260, 15
      %s263 = smul.addr %s262, 4
      %s264 = scalar_lea.vmem %s4, %s263
      %p265 = pneg %p168
      %p266 = pneg %p165
      %s267 = smul.u32 8, %s17
      %p268 = scmp.lt.s32.totalorder %s267, 15
      %s269 = scalar_select %p268, %s267, 15
      %s270 = smul.addr %s269, 4
      %s271 = scalar_lea.vmem %s5, %s270
      %s272 = smul.u32 8, %s17
      %p273 = scmp.lt.s32.totalorder %s272, 15
      %s274 = scalar_select %p273, %s272, 15
      %s275 = smul.addr %s274, 4
      %s276 = scalar_lea.vmem %s0, %s275
      %s277 = smul.u32 8, %s17
      %s278 = smul.u32 8, %s17
      %p279 = scmp.lt.s32.totalorder %s278, 15
      %s280 = scalar_select %p279, %s278, 15
      %s281 = smul.addr %s280, 4
      %s282 = scalar_lea.vmem %s1, %s281
      %s283 = smul.u32 8, %s17
      %s284 = smul.u32 8, %s17
      %p285 = scmp.lt.s32.totalorder %s284, 15
      %s286 = scalar_select %p285, %s284, 15
      %s287 = smul.addr %s286, 4
      %s288 = scalar_lea.vmem %s2, %s287
      %s289 = smul.u32 8, %s17
      %s290 = smul.u32 8, %s17
      %p291 = scmp.lt.s32.totalorder %s290, 15
      %s292 = scalar_select %p291, %s290, 15
      %s293 = smul.addr %s292, 4
      %s294 = scalar_lea.vmem %s3, %s293
      %s295 = smul.u32 8, %s17
      %s296 = smul.u32 8, %s17
      %p297 = scmp.lt.s32.totalorder %s296, 15
      %s298 = scalar_select %p297, %s296, 15
      %s299 = smul.addr %s298, 4
      %s300 = scalar_lea.vmem %s4, %s299
      %s301 = smul.u32 8, %s17
      %s302 = smul.u32 8, %s17
      %p303 = scmp.lt.s32.totalorder %s302, 15
      %s304 = scalar_select %p303, %s302, 15
      %s305 = smul.addr %s304, 4
      %s306 = scalar_lea.vmem %s5, %s305
      %s307 = smul.u32 8, %s17
      %v308 = vld [vmem:[%s276] sm:$0xf]
      %v309 = vld [vmem:[%s276 + $0x4] sm:$0xf]
      %v310 = vld [vmem:[%s276 + $0x8] sm:$0xf]
      %v311 = vld [vmem:[%s276 + $0xc] sm:$0xf]
      %v312 = vld [vmem:[%s276 + $0x10] sm:$0xf]
      %v313 = vld [vmem:[%s276 + $0x14] sm:$0xf]
      %v314 = vld [vmem:[%s276 + $0x18] sm:$0xf]
      %v315 = vld [vmem:[%s276 + $0x1c] sm:$0xf]
      %v316 = vld [vmem:[%s282] sm:$0xf]
      %v317 = vld [vmem:[%s282 + $0x4] sm:$0xf]
      %v318 = vld [vmem:[%s282 + $0x8] sm:$0xf]
      %v319 = vld [vmem:[%s282 + $0xc] sm:$0xf]
      %v320 = vld [vmem:[%s282 + $0x10] sm:$0xf]
      %v321 = vld [vmem:[%s282 + $0x14] sm:$0xf]
      %v322 = vld [vmem:[%s282 + $0x18] sm:$0xf]
      %v323 = vld [vmem:[%s282 + $0x1c] sm:$0xf]
      %v324 = vld [vmem:[%s288] sm:$0xf]
      %v325 = vld [vmem:[%s288 + $0x4] sm:$0xf]
      %v326 = vld [vmem:[%s288 + $0x8] sm:$0xf]
      %v327 = vld [vmem:[%s288 + $0xc] sm:$0xf]
      %v328 = vld [vmem:[%s288 + $0x10] sm:$0xf]
      %v329 = vld [vmem:[%s288 + $0x14] sm:$0xf]
      %v330 = vld [vmem:[%s288 + $0x18] sm:$0xf]
      %v331 = vld [vmem:[%s288 + $0x1c] sm:$0xf]
      %v332 = vld [vmem:[%s294] sm:$0xf]
      %v333 = vld [vmem:[%s294 + $0x4] sm:$0xf]
      %v334 = vld [vmem:[%s294 + $0x8] sm:$0xf]
      %v335 = vld [vmem:[%s294 + $0xc] sm:$0xf]
      %v336 = vld [vmem:[%s294 + $0x10] sm:$0xf]
      %v337 = vld [vmem:[%s294 + $0x14] sm:$0xf]
      %v338 = vld [vmem:[%s294 + $0x18] sm:$0xf]
      %v339 = vld [vmem:[%s294 + $0x1c] sm:$0xf]
      %340 = vxpose.xlu0.b32.start [1/16] %v308, 128
      %341 = vxpose.xlu0.b32.cont [2/16] 0.0, 128
      %342 = vxpose.xlu0.b32.cont [3/16] 0.0, 128
      %343 = vxpose.xlu0.b32.cont [4/16] 0.0, 128
      %344 = vxpose.xlu0.b32.cont [5/16] 0.0, 128
      %345 = vxpose.xlu0.b32.cont [6/16] 0.0, 128
      %346 = vxpose.xlu0.b32.cont [7/16] 0.0, 128
      %347 = vxpose.xlu0.b32.cont [8/16] 0.0, 128
      %348 = vxpose.xlu0.b32.cont [9/16] 0.0, 128
      %349 = vxpose.xlu0.b32.cont [10/16] 0.0, 128
      %350 = vxpose.xlu0.b32.cont [11/16] 0.0, 128
      %351 = vxpose.xlu0.b32.cont [12/16] 0.0, 128
      %352 = vxpose.xlu0.b32.cont [13/16] 0.0, 128
      %353 = vxpose.xlu0.b32.cont [14/16] 0.0, 128
      %354 = vxpose.xlu0.b32.cont [15/16] 0.0, 128
      %355 = vxpose.xlu0.b32.end [16/16] 0.0, 128
      %v356 = vpop.trf.xlu0
      %v357 = vpop.trf.xlu0
      %v358 = vpop.trf.xlu0
      %v359 = vpop.trf.xlu0
      %v360 = vpop.trf.xlu0
      %v361 = vpop.trf.xlu0
      %v362 = vpop.trf.xlu0
      %v363 = vpop.trf.xlu0
      %v364 = vpop.trf.xlu0
      %v365 = vpop.trf.xlu0
      %v366 = vpop.trf.xlu0
      %v367 = vpop.trf.xlu0
      %v368 = vpop.trf.xlu0
      %v369 = vpop.trf.xlu0
      %v370 = vpop.trf.xlu0
      %v371 = vpop.trf.xlu0
      %vm372 = vcmask 31744
      %v374 = vsel %vm372, %v356, 0
      %vm376 = vcmask 1043456
      %v378 = vsel %vm376, %v324, 0
      %380 = vmatprep.subr.mxu0 0.0
      %381 = vmatpush1.msra.mxu0 0.0
      %382 = vmatprep.subr.mxu0 0.0
      %383 = vmatpush1.msra.mxu0 0.0
      %384 = vmatprep.subr.mxu0 0.0
      %385 = vmatpush1.msra.mxu0 0.0
      %386 = vmatprep.subr.mxu0 0.0
      %387 = vmatpush1.msra.mxu0 0.0
      %388 = vmatprep.subr.mxu0 0.0
      %389 = vmatpush1.msra.mxu0 0.0
      %390 = vmatprep.subr.mxu0 0.0
      %391 = vmatpush1.msra.mxu0 0.0
      %392 = vmatprep.subr.mxu0 0.0
      %393 = vmatpush1.msra.mxu0 0.0
      %394 = vmatprep.subr.mxu0 0.0
      %395 = vmatpush1.msra.mxu0 0.0
      %396 = vmatprep.subr.mxu0 0.0
      %397 = vmatpush1.msra.mxu0 0.0
      %398 = vmatprep.subr.mxu0 0.0
      %399 = vmatpush1.msra.mxu0 0.0
      %400 = vmatprep.subr.mxu0 0.0
      %401 = vmatpush1.msra.mxu0 0.0
      %402 = vmatprep.subr.mxu0 0.0
      %403 = vmatpush1.msra.mxu0 0.0
      %404 = vmatprep.subr.mxu0 0.0
      %405 = vmatpush1.msra.mxu0 0.0
      %406 = vmatprep.subr.mxu0 0.0
      %407 = vmatpush1.msra.mxu0 0.0
      %408 = vmatprep.subr.mxu0 0.0
      %409 = vmatpush1.msra.mxu0 0.0
      %410 = vmatprep.subr.mxu0 0.0
      %411 = vmatpush1.msra.mxu0 %v378
      %412 = vmatprep.subr.mxu0 0.0
      %413 = vmatpush2.msra.mxu0 0.0
      %414 = vmatprep.subr.mxu0 0.0
      %415 = vmatpush2.msra.mxu0 0.0
      %416 = vmatprep.subr.mxu0 0.0
      %417 = vmatpush2.msra.mxu0 0.0
      %418 = vmatprep.subr.mxu0 0.0
      %419 = vmatpush2.msra.mxu0 0.0
      %420 = vmatprep.subr.mxu0 0.0
      %421 = vmatpush2.msra.mxu0 0.0
      %422 = vmatprep.subr.mxu0 0.0
      %423 = vmatpush2.msra.mxu0 0.0
      %424 = vmatprep.subr.mxu0 0.0
      %425 = vmatpush2.msra.mxu0 0.0
      %426 = vmatprep.subr.mxu0 0.0
      %427 = vmatpush2.msra.mxu0 0.0
      %428 = vmatprep.subr.mxu0 0.0
      %429 = vmatpush2.msra.mxu0 0.0
      %430 = vmatprep.subr.mxu0 0.0
      %431 = vmatpush2.msra.mxu0 0.0
      %432 = vmatprep.subr.mxu0 0.0
      %433 = vmatpush2.msra.mxu0 0.0
      %434 = vmatprep.subr.mxu0 0.0
      %435 = vmatpush2.msra.mxu0 0.0
      %436 = vmatprep.subr.mxu0 0.0
      %437 = vmatpush2.msra.mxu0 0.0
      %438 = vmatprep.subr.mxu0 0.0
      %439 = vmatpush2.msra.mxu0 0.0
      %440 = vmatprep.subr.mxu0 0.0
      %441 = vmatpush2.msra.mxu0 0.0
      %442 = vmatprep.subr.mxu0 0.0
      %443 = vmatpush2.msra.mxu0 0.0
      %444 = vmatprep.mubr.f32.mxu0 0.0
      %445 = vmatmul.mubr.f32.gmra.mxu0 %v374
      %v446 = vpop.f32.mrf.mxu0
      %v447 = vadd.f32 0.0, %v446
      %v448 = vpop.f32.mrf.mxu0
      %449 = vdwg.mxu0
      %450 = vxpose.xlu0.b32.start [1/16] %v309, 128
      %451 = vxpose.xlu0.b32.cont [2/16] 0.0, 128
      %452 = vxpose.xlu0.b32.cont [3/16] 0.0, 128
      %453 = vxpose.xlu0.b32.cont [4/16] 0.0, 128
      %454 = vxpose.xlu0.b32.cont [5/16] 0.0, 128
      %455 = vxpose.xlu0.b32.cont [6/16] 0.0, 128
      %456 = vxpose.xlu0.b32.cont [7/16] 0.0, 128
      %457 = vxpose.xlu0.b32.cont [8/16] 0.0, 128
      %458 = vxpose.xlu0.b32.cont [9/16] 0.0, 128
      %459 = vxpose.xlu0.b32.cont [10/16] 0.0, 128
      %460 = vxpose.xlu0.b32.cont [11/16] 0.0, 128
      %461 = vxpose.xlu0.b32.cont [12/16] 0.0, 128
      %462 = vxpose.xlu0.b32.cont [13/16] 0.0, 128
      %463 = vxpose.xlu0.b32.cont [14/16] 0.0, 128
      %464 = vxpose.xlu0.b32.cont [15/16] 0.0, 128
      %465 = vxpose.xlu0.b32.end [16/16] 0.0, 128
      %v466 = vpop.trf.xlu0
      %v467 = vpop.trf.xlu0
      %v468 = vpop.trf.xlu0
      %v469 = vpop.trf.xlu0
      %v470 = vpop.trf.xlu0
      %v471 = vpop.trf.xlu0
      %v472 = vpop.trf.xlu0
      %v473 = vpop.trf.xlu0
      %v474 = vpop.trf.xlu0
      %v475 = vpop.trf.xlu0
      %v476 = vpop.trf.xlu0
      %v477 = vpop.trf.xlu0
      %v478 = vpop.trf.xlu0
      %v479 = vpop.trf.xlu0
      %v480 = vpop.trf.xlu0
      %v481 = vpop.trf.xlu0
      %v483 = vsel %vm372, %v466, 0
      %v486 = vsel %vm376, %v325, 0
      %488 = vmatprep.subr.mxu0 0.0
      %489 = vmatpush1.msra.mxu0 0.0
      %490 = vmatprep.subr.mxu0 0.0
      %491 = vmatpush1.msra.mxu0 0.0
      %492 = vmatprep.subr.mxu0 0.0
      %493 = vmatpush1.msra.mxu0 0.0
      %494 = vmatprep.subr.mxu0 0.0
      %495 = vmatpush1.msra.mxu0 0.0
      %496 = vmatprep.subr.mxu0 0.0
      %497 = vmatpush1.msra.mxu0 0.0
      %498 = vmatprep.subr.mxu0 0.0
      %499 = vmatpush1.msra.mxu0 0.0
      %500 = vmatprep.subr.mxu0 0.0
      %501 = vmatpush1.msra.mxu0 0.0
      %502 = vmatprep.subr.mxu0 0.0
      %503 = vmatpush1.msra.mxu0 0.0
      %504 = vmatprep.subr.mxu0 0.0
      %505 = vmatpush1.msra.mxu0 0.0
      %506 = vmatprep.subr.mxu0 0.0
      %507 = vmatpush1.msra.mxu0 0.0
      %508 = vmatprep.subr.mxu0 0.0
      %509 = vmatpush1.msra.mxu0 0.0
      %510 = vmatprep.subr.mxu0 0.0
      %511 = vmatpush1.msra.mxu0 0.0
      %512 = vmatprep.subr.mxu0 0.0
      %513 = vmatpush1.msra.mxu0 0.0
      %514 = vmatprep.subr.mxu0 0.0
      %515 = vmatpush1.msra.mxu0 0.0
      %516 = vmatprep.subr.mxu0 0.0
      %517 = vmatpush1.msra.mxu0 0.0
      %518 = vmatprep.subr.mxu0 0.0
      %519 = vmatpush1.msra.mxu0 %v486
      %520 = vmatprep.subr.mxu0 0.0
      %521 = vmatpush2.msra.mxu0 0.0
      %522 = vmatprep.subr.mxu0 0.0
      %523 = vmatpush2.msra.mxu0 0.0
      %524 = vmatprep.subr.mxu0 0.0
      %525 = vmatpush2.msra.mxu0 0.0
      %526 = vmatprep.subr.mxu0 0.0
      %527 = vmatpush2.msra.mxu0 0.0
      %528 = vmatprep.subr.mxu0 0.0
      %529 = vmatpush2.msra.mxu0 0.0
      %530 = vmatprep.subr.mxu0 0.0
      %531 = vmatpush2.msra.mxu0 0.0
      %532 = vmatprep.subr.mxu0 0.0
      %533 = vmatpush2.msra.mxu0 0.0
      %534 = vmatprep.subr.mxu0 0.0
      %535 = vmatpush2.msra.mxu0 0.0
      %536 = vmatprep.subr.mxu0 0.0
      %537 = vmatpush2.msra.mxu0 0.0
      %538 = vmatprep.subr.mxu0 0.0
      %539 = vmatpush2.msra.mxu0 0.0
      %540 = vmatprep.subr.mxu0 0.0
      %541 = vmatpush2.msra.mxu0 0.0
      %542 = vmatprep.subr.mxu0 0.0
      %543 = vmatpush2.msra.mxu0 0.0
      %544 = vmatprep.subr.mxu0 0.0
      %545 = vmatpush2.msra.mxu0 0.0
      %546 = vmatprep.subr.mxu0 0.0
      %547 = vmatpush2.msra.mxu0 0.0
      %548 = vmatprep.subr.mxu0 0.0
      %549 = vmatpush2.msra.mxu0 0.0
      %550 = vmatprep.subr.mxu0 0.0
      %551 = vmatpush2.msra.mxu0 0.0
      %552 = vmatprep.mubr.f32.mxu0 0.0
      %553 = vmatmul.mubr.f32.gmra.mxu0 %v483
      %v554 = vpop.f32.mrf.mxu0
      %v555 = vadd.f32 0.0, %v554
      %v556 = vpop.f32.mrf.mxu0
      %557 = vdwg.mxu0
      %558 = vxpose.xlu0.b32.start [1/16] %v310, 128
      %559 = vxpose.xlu0.b32.cont [2/16] 0.0, 128
      %560 = vxpose.xlu0.b32.cont [3/16] 0.0, 128
      %561 = vxpose.xlu0.b32.cont [4/16] 0.0, 128
      %562 = vxpose.xlu0.b32.cont [5/16] 0.0, 128
      %563 = vxpose.xlu0.b32.cont [6/16] 0.0, 128
      %564 = vxpose.xlu0.b32.cont [7/16] 0.0, 128
      %565 = vxpose.xlu0.b32.cont [8/16] 0.0, 128
      %566 = vxpose.xlu0.b32.cont [9/16] 0.0, 128
      %567 = vxpose.xlu0.b32.cont [10/16] 0.0, 128
      %568 = vxpose.xlu0.b32.cont [11/16] 0.0, 128
      %569 = vxpose.xlu0.b32.cont [12/16] 0.0, 128
      %570 = vxpose.xlu0.b32.cont [13/16] 0.0, 128
      %571 = vxpose.xlu0.b32.cont [14/16] 0.0, 128
      %572 = vxpose.xlu0.b32.cont [15/16] 0.0, 128
      %573 = vxpose.xlu0.b32.end [16/16] 0.0, 128
      %v574 = vpop.trf.xlu0
      %v575 = vpop.trf.xlu0
      %v576 = vpop.trf.xlu0
      %v577 = vpop.trf.xlu0
      %v578 = vpop.trf.xlu0
      %v579 = vpop.trf.xlu0
      %v580 = vpop.trf.xlu0
      %v581 = vpop.trf.xlu0
      %v582 = vpop.trf.xlu0
      %v583 = vpop.trf.xlu0
      %v584 = vpop.trf.xlu0
      %v585 = vpop.trf.xlu0
      %v586 = vpop.trf.xlu0
      %v587 = vpop.trf.xlu0
      %v588 = vpop.trf.xlu0
      %v589 = vpop.trf.xlu0
      %v591 = vsel %vm372, %v574, 0
      %v594 = vsel %vm376, %v326, 0
      %596 = vmatprep.subr.mxu0 0.0
      %597 = vmatpush1.msra.mxu0 0.0
      %598 = vmatprep.subr.mxu0 0.0
      %599 = vmatpush1.msra.mxu0 0.0
      %600 = vmatprep.subr.mxu0 0.0
      %601 = vmatpush1.msra.mxu0 0.0
      %602 = vmatprep.subr.mxu0 0.0
      %603 = vmatpush1.msra.mxu0 0.0
      %604 = vmatprep.subr.mxu0 0.0
      %605 = vmatpush1.msra.mxu0 0.0
      %606 = vmatprep.subr.mxu0 0.0
      %607 = vmatpush1.msra.mxu0 0.0
      %608 = vmatprep.subr.mxu0 0.0
      %609 = vmatpush1.msra.mxu0 0.0
      %610 = vmatprep.subr.mxu0 0.0
      %611 = vmatpush1.msra.mxu0 0.0
      %612 = vmatprep.subr.mxu0 0.0
      %613 = vmatpush1.msra.mxu0 0.0
      %614 = vmatprep.subr.mxu0 0.0
      %615 = vmatpush1.msra.mxu0 0.0
      %616 = vmatprep.subr.mxu0 0.0
      %617 = vmatpush1.msra.mxu0 0.0
      %618 = vmatprep.subr.mxu0 0.0
      %619 = vmatpush1.msra.mxu0 0.0
      %620 = vmatprep.subr.mxu0 0.0
      %621 = vmatpush1.msra.mxu0 0.0
      %622 = vmatprep.subr.mxu0 0.0
      %623 = vmatpush1.msra.mxu0 0.0
      %624 = vmatprep.subr.mxu0 0.0
      %625 = vmatpush1.msra.mxu0 0.0
      %626 = vmatprep.subr.mxu0 0.0
      %627 = vmatpush1.msra.mxu0 %v594
      %628 = vmatprep.subr.mxu0 0.0
      %629 = vmatpush2.msra.mxu0 0.0
      %630 = vmatprep.subr.mxu0 0.0
      %631 = vmatpush2.msra.mxu0 0.0
      %632 = vmatprep.subr.mxu0 0.0
      %633 = vmatpush2.msra.mxu0 0.0
      %634 = vmatprep.subr.mxu0 0.0
      %635 = vmatpush2.msra.mxu0 0.0
      %636 = vmatprep.subr.mxu0 0.0
      %637 = vmatpush2.msra.mxu0 0.0
      %638 = vmatprep.subr.mxu0 0.0
      %639 = vmatpush2.msra.mxu0 0.0
      %640 = vmatprep.subr.mxu0 0.0
      %641 = vmatpush2.msra.mxu0 0.0
      %642 = vmatprep.subr.mxu0 0.0
      %643 = vmatpush2.msra.mxu0 0.0
      %644 = vmatprep.subr.mxu0 0.0
      %645 = vmatpush2.msra.mxu0 0.0
      %646 = vmatprep.subr.mxu0 0.0
      %647 = vmatpush2.msra.mxu0 0.0
      %648 = vmatprep.subr.mxu0 0.0
      %649 = vmatpush2.msra.mxu0 0.0
      %650 = vmatprep.subr.mxu0 0.0
      %651 = vmatpush2.msra.mxu0 0.0
      %652 = vmatprep.subr.mxu0 0.0
      %653 = vmatpush2.msra.mxu0 0.0
      %654 = vmatprep.subr.mxu0 0.0
      %655 = vmatpush2.msra.mxu0 0.0
      %656 = vmatprep.subr.mxu0 0.0
      %657 = vmatpush2.msra.mxu0 0.0
      %658 = vmatprep.subr.mxu0 0.0
      %659 = vmatpush2.msra.mxu0 0.0
      %660 = vmatprep.mubr.f32.mxu0 0.0
      %661 = vmatmul.mubr.f32.gmra.mxu0 %v591
      %v662 = vpop.f32.mrf.mxu0
      %v663 = vadd.f32 0.0, %v662
      %v664 = vpop.f32.mrf.mxu0
      %665 = vdwg.mxu0
      %666 = vxpose.xlu0.b32.start [1/16] %v311, 128
      %667 = vxpose.xlu0.b32.cont [2/16] 0.0, 128
      %668 = vxpose.xlu0.b32.cont [3/16] 0.0, 128
      %669 = vxpose.xlu0.b32.cont [4/16] 0.0, 128
      %670 = vxpose.xlu0.b32.cont [5/16] 0.0, 128
      %671 = vxpose.xlu0.b32.cont [6/16] 0.0, 128
      %672 = vxpose.xlu0.b32.cont [7/16] 0.0, 128
      %673 = vxpose.xlu0.b32.cont [8/16] 0.0, 128
      %674 = vxpose.xlu0.b32.cont [9/16] 0.0, 128
      %675 = vxpose.xlu0.b32.cont [10/16] 0.0, 128
      %676 = vxpose.xlu0.b32.cont [11/16] 0.0, 128
      %677 = vxpose.xlu0.b32.cont [12/16] 0.0, 128
      %678 = vxpose.xlu0.b32.cont [13/16] 0.0, 128
      %679 = vxpose.xlu0.b32.cont [14/16] 0.0, 128
      %680 = vxpose.xlu0.b32.cont [15/16] 0.0, 128
      %681 = vxpose.xlu0.b32.end [16/16] 0.0, 128
      %v682 = vpop.trf.xlu0
      %v683 = vpop.trf.xlu0
      %v684 = vpop.trf.xlu0
      %v685 = vpop.trf.xlu0
      %v686 = vpop.trf.xlu0
      %v687 = vpop.trf.xlu0
      %v688 = vpop.trf.xlu0
      %v689 = vpop.trf.xlu0
      %v690 = vpop.trf.xlu0
      %v691 = vpop.trf.xlu0
      %v692 = vpop.trf.xlu0
      %v693 = vpop.trf.xlu0
      %v694 = vpop.trf.xlu0
      %v695 = vpop.trf.xlu0
      %v696 = vpop.trf.xlu0
      %v697 = vpop.trf.xlu0
      %v699 = vsel %vm372, %v682, 0
      %v702 = vsel %vm376, %v327, 0
      %704 = vmatprep.subr.mxu0 0.0
      %705 = vmatpush1.msra.mxu0 0.0
      %706 = vmatprep.subr.mxu0 0.0
      %707 = vmatpush1.msra.mxu0 0.0
      %708 = vmatprep.subr.mxu0 0.0
      %709 = vmatpush1.msra.mxu0 0.0
      %710 = vmatprep.subr.mxu0 0.0
      %711 = vmatpush1.msra.mxu0 0.0
      %712 = vmatprep.subr.mxu0 0.0
      %713 = vmatpush1.msra.mxu0 0.0
      %714 = vmatprep.subr.mxu0 0.0
      %715 = vmatpush1.msra.mxu0 0.0
      %716 = vmatprep.subr.mxu0 0.0
      %717 = vmatpush1.msra.mxu0 0.0
      %718 = vmatprep.subr.mxu0 0.0
      %719 = vmatpush1.msra.mxu0 0.0
      %720 = vmatprep.subr.mxu0 0.0
      %721 = vmatpush1.msra.mxu0 0.0
      %722 = vmatprep.subr.mxu0 0.0
      %723 = vmatpush1.msra.mxu0 0.0
      %724 = vmatprep.subr.mxu0 0.0
      %725 = vmatpush1.msra.mxu0 0.0
      %726 = vmatprep.subr.mxu0 0.0
      %727 = vmatpush1.msra.mxu0 0.0
      %728 = vmatprep.subr.mxu0 0.0
      %729 = vmatpush1.msra.mxu0 0.0
      %730 = vmatprep.subr.mxu0 0.0
      %731 = vmatpush1.msra.mxu0 0.0
      %732 = vmatprep.subr.mxu0 0.0
      %733 = vmatpush1.msra.mxu0 0.0
      %734 = vmatprep.subr.mxu0 0.0
      %735 = vmatpush1.msra.mxu0 %v702
      %736 = vmatprep.subr.mxu0 0.0
      %737 = vmatpush2.msra.mxu0 0.0
      %738 = vmatprep.subr.mxu0 0.0
      %739 = vmatpush2.msra.mxu0 0.0
      %740 = vmatprep.subr.mxu0 0.0
      %741 = vmatpush2.msra.mxu0 0.0
      %742 = vmatprep.subr.mxu0 0.0
      %743 = vmatpush2.msra.mxu0 0.0
      %744 = vmatprep.subr.mxu0 0.0
      %745 = vmatpush2.msra.mxu0 0.0
      %746 = vmatprep.subr.mxu0 0.0
      %747 = vmatpush2.msra.mxu0 0.0
      %748 = vmatprep.subr.mxu0 0.0
      %749 = vmatpush2.msra.mxu0 0.0
      %750 = vmatprep.subr.mxu0 0.0
      %751 = vmatpush2.msra.mxu0 0.0
      %752 = vmatprep.subr.mxu0 0.0
      %753 = vmatpush2.msra.mxu0 0.0
      %754 = vmatprep.subr.mxu0 0.0
      %755 = vmatpush2.msra.mxu0 0.0
      %756 = vmatprep.subr.mxu0 0.0
      %757 = vmatpush2.msra.mxu0 0.0
      %758 = vmatprep.subr.mxu0 0.0
      %759 = vmatpush2.msra.mxu0 0.0
      %760 = vmatprep.subr.mxu0 0.0
      %761 = vmatpush2.msra.mxu0 0.0
      %762 = vmatprep.subr.mxu0 0.0
      %763 = vmatpush2.msra.mxu0 0.0
      %764 = vmatprep.subr.mxu0 0.0
      %765 = vmatpush2.msra.mxu0 0.0
      %766 = vmatprep.subr.mxu0 0.0
      %767 = vmatpush2.msra.mxu0 0.0
      %768 = vmatprep.mubr.f32.mxu0 0.0
      %769 = vmatmul.mubr.f32.gmra.mxu0 %v699
      %v770 = vpop.f32.mrf.mxu0
      %v771 = vadd.f32 0.0, %v770
      %v772 = vpop.f32.mrf.mxu0
      %773 = vdwg.mxu0
      %774 = vxpose.xlu0.b32.start [1/16] %v312, 128
      %775 = vxpose.xlu0.b32.cont [2/16] 0.0, 128
      %776 = vxpose.xlu0.b32.cont [3/16] 0.0, 128
      %777 = vxpose.xlu0.b32.cont [4/16] 0.0, 128
      %778 = vxpose.xlu0.b32.cont [5/16] 0.0, 128
      %779 = vxpose.xlu0.b32.cont [6/16] 0.0, 128
      %780 = vxpose.xlu0.b32.cont [7/16] 0.0, 128
      %781 = vxpose.xlu0.b32.cont [8/16] 0.0, 128
      %782 = vxpose.xlu0.b32.cont [9/16] 0.0, 128
      %783 = vxpose.xlu0.b32.cont [10/16] 0.0, 128
      %784 = vxpose.xlu0.b32.cont [11/16] 0.0, 128
      %785 = vxpose.xlu0.b32.cont [12/16] 0.0, 128
      %786 = vxpose.xlu0.b32.cont [13/16] 0.0, 128
      %787 = vxpose.xlu0.b32.cont [14/16] 0.0, 128
      %788 = vxpose.xlu0.b32.cont [15/16] 0.0, 128
      %789 = vxpose.xlu0.b32.end [16/16] 0.0, 128
      %v790 = vpop.trf.xlu0
      %v791 = vpop.trf.xlu0
      %v792 = vpop.trf.xlu0
      %v793 = vpop.trf.xlu0
      %v794 = vpop.trf.xlu0
      %v795 = vpop.trf.xlu0
      %v796 = vpop.trf.xlu0
      %v797 = vpop.trf.xlu0
      %v798 = vpop.trf.xlu0
      %v799 = vpop.trf.xlu0
      %v800 = vpop.trf.xlu0
      %v801 = vpop.trf.xlu0
      %v802 = vpop.trf.xlu0
      %v803 = vpop.trf.xlu0
      %v804 = vpop.trf.xlu0
      %v805 = vpop.trf.xlu0
      %v807 = vsel %vm372, %v790, 0
      %v810 = vsel %vm376, %v328, 0
      %812 = vmatprep.subr.mxu0 0.0
      %813 = vmatpush1.msra.mxu0 0.0
      %814 = vmatprep.subr.mxu0 0.0
      %815 = vmatpush1.msra.mxu0 0.0
      %816 = vmatprep.subr.mxu0 0.0
      %817 = vmatpush1.msra.mxu0 0.0
      %818 = vmatprep.subr.mxu0 0.0
      %819 = vmatpush1.msra.mxu0 0.0
      %820 = vmatprep.subr.mxu0 0.0
      %821 = vmatpush1.msra.mxu0 0.0
      %822 = vmatprep.subr.mxu0 0.0
      %823 = vmatpush1.msra.mxu0 0.0
      %824 = vmatprep.subr.mxu0 0.0
      %825 = vmatpush1.msra.mxu0 0.0
      %826 = vmatprep.subr.mxu0 0.0
      %827 = vmatpush1.msra.mxu0 0.0
      %828 = vmatprep.subr.mxu0 0.0
      %829 = vmatpush1.msra.mxu0 0.0
      %830 = vmatprep.subr.mxu0 0.0
      %831 = vmatpush1.msra.mxu0 0.0
      %832 = vmatprep.subr.mxu0 0.0
      %833 = vmatpush1.msra.mxu0 0.0
      %834 = vmatprep.subr.mxu0 0.0
      %835 = vmatpush1.msra.mxu0 0.0
      %836 = vmatprep.subr.mxu0 0.0
      %837 = vmatpush1.msra.mxu0 0.0
      %838 = vmatprep.subr.mxu0 0.0
      %839 = vmatpush1.msra.mxu0 0.0
      %840 = vmatprep.subr.mxu0 0.0
      %841 = vmatpush1.msra.mxu0 0.0
      %842 = vmatprep.subr.mxu0 0.0
      %843 = vmatpush1.msra.mxu0 %v810
      %844 = vmatprep.subr.mxu0 0.0
      %845 = vmatpush2.msra.mxu0 0.0
      %846 = vmatprep.subr.mxu0 0.0
      %847 = vmatpush2.msra.mxu0 0.0
      %848 = vmatprep.subr.mxu0 0.0
      %849 = vmatpush2.msra.mxu0 0.0
      %850 = vmatprep.subr.mxu0 0.0
      %851 = vmatpush2.msra.mxu0 0.0
      %852 = vmatprep.subr.mxu0 0.0
      %853 = vmatpush2.msra.mxu0 0.0
      %854 = vmatprep.subr.mxu0 0.0
      %855 = vmatpush2.msra.mxu0 0.0
      %856 = vmatprep.subr.mxu0 0.0
      %857 = vmatpush2.msra.mxu0 0.0
      %858 = vmatprep.subr.mxu0 0.0
      %859 = vmatpush2.msra.mxu0 0.0
      %860 = vmatprep.subr.mxu0 0.0
      %861 = vmatpush2.msra.mxu0 0.0
      %862 = vmatprep.subr.mxu0 0.0
      %863 = vmatpush2.msra.mxu0 0.0
      %864 = vmatprep.subr.mxu0 0.0
      %865 = vmatpush2.msra.mxu0 0.0
      %866 = vmatprep.subr.mxu0 0.0
      %867 = vmatpush2.msra.mxu0 0.0
      %868 = vmatprep.subr.mxu0 0.0
      %869 = vmatpush2.msra.mxu0 0.0
      %870 = vmatprep.subr.mxu0 0.0
      %871 = vmatpush2.msra.mxu0 0.0
      %872 = vmatprep.subr.mxu0 0.0
      %873 = vmatpush2.msra.mxu0 0.0
      %874 = vmatprep.subr.mxu0 0.0
      %875 = vmatpush2.msra.mxu0 0.0
      %876 = vmatprep.mubr.f32.mxu0 0.0
      %877 = vmatmul.mubr.f32.gmra.mxu0 %v807
      %v878 = vpop.f32.mrf.mxu0
      %v879 = vadd.f32 0.0, %v878
      %v880 = vpop.f32.mrf.mxu0
      %881 = vdwg.mxu0
      %882 = vxpose.xlu0.b32.start [1/16] %v313, 128
      %883 = vxpose.xlu0.b32.cont [2/16] 0.0, 128
      %884 = vxpose.xlu0.b32.cont [3/16] 0.0, 128
      %885 = vxpose.xlu0.b32.cont [4/16] 0.0, 128
      %886 = vxpose.xlu0.b32.cont [5/16] 0.0, 128
      %887 = vxpose.xlu0.b32.cont [6/16] 0.0, 128
      %888 = vxpose.xlu0.b32.cont [7/16] 0.0, 128
      %889 = vxpose.xlu0.b32.cont [8/16] 0.0, 128
      %890 = vxpose.xlu0.b32.cont [9/16] 0.0, 128
      %891 = vxpose.xlu0.b32.cont [10/16] 0.0, 128
      %892 = vxpose.xlu0.b32.cont [11/16] 0.0, 128
      %893 = vxpose.xlu0.b32.cont [12/16] 0.0, 128
      %894 = vxpose.xlu0.b32.cont [13/16] 0.0, 128
      %895 = vxpose.xlu0.b32.cont [14/16] 0.0, 128
      %896 = vxpose.xlu0.b32.cont [15/16] 0.0, 128
      %897 = vxpose.xlu0.b32.end [16/16] 0.0, 128
      %v898 = vpop.trf.xlu0
      %v899 = vpop.trf.xlu0
      %v900 = vpop.trf.xlu0
      %v901 = vpop.trf.xlu0
      %v902 = vpop.trf.xlu0
      %v903 = vpop.trf.xlu0
      %v904 = vpop.trf.xlu0
      %v905 = vpop.trf.xlu0
      %v906 = vpop.trf.xlu0
      %v907 = vpop.trf.xlu0
      %v908 = vpop.trf.xlu0
      %v909 = vpop.trf.xlu0
      %v910 = vpop.trf.xlu0
      %v911 = vpop.trf.xlu0
      %v912 = vpop.trf.xlu0
      %v913 = vpop.trf.xlu0
      %v915 = vsel %vm372, %v898, 0
      %v918 = vsel %vm376, %v329, 0
      %920 = vmatprep.subr.mxu0 0.0
      %921 = vmatpush1.msra.mxu0 0.0
      %922 = vmatprep.subr.mxu0 0.0
      %923 = vmatpush1.msra.mxu0 0.0
      %924 = vmatprep.subr.mxu0 0.0
      %925 = vmatpush1.msra.mxu0 0.0
      %926 = vmatprep.subr.mxu0 0.0
      %927 = vmatpush1.msra.mxu0 0.0
      %928 = vmatprep.subr.mxu0 0.0
      %929 = vmatpush1.msra.mxu0 0.0
      %930 = vmatprep.subr.mxu0 0.0
      %931 = vmatpush1.msra.mxu0 0.0
      %932 = vmatprep.subr.mxu0 0.0
      %933 = vmatpush1.msra.mxu0 0.0
      %934 = vmatprep.subr.mxu0 0.0
      %935 = vmatpush1.msra.mxu0 0.0
      %936 = vmatprep.subr.mxu0 0.0
      %937 = vmatpush1.msra.mxu0 0.0
      %938 = vmatprep.subr.mxu0 0.0
      %939 = vmatpush1.msra.mxu0 0.0
      %940 = vmatprep.subr.mxu0 0.0
      %941 = vmatpush1.msra.mxu0 0.0
      %942 = vmatprep.subr.mxu0 0.0
      %943 = vmatpush1.msra.mxu0 0.0
      %944 = vmatprep.subr.mxu0 0.0
      %945 = vmatpush1.msra.mxu0 0.0
      %946 = vmatprep.subr.mxu0 0.0
      %947 = vmatpush1.msra.mxu0 0.0
      %948 = vmatprep.subr.mxu0 0.0
      %949 = vmatpush1.msra.mxu0 0.0
      %950 = vmatprep.subr.mxu0 0.0
      %951 = vmatpush1.msra.mxu0 %v918
      %952 = vmatprep.subr.mxu0 0.0
      %953 = vmatpush2.msra.mxu0 0.0
      %954 = vmatprep.subr.mxu0 0.0
      %955 = vmatpush2.msra.mxu0 0.0
      %956 = vmatprep.subr.mxu0 0.0
      %957 = vmatpush2.msra.mxu0 0.0
      %958 = vmatprep.subr.mxu0 0.0
      %959 = vmatpush2.msra.mxu0 0.0
      %960 = vmatprep.subr.mxu0 0.0
      %961 = vmatpush2.msra.mxu0 0.0
      %962 = vmatprep.subr.mxu0 0.0
      %963 = vmatpush2.msra.mxu0 0.0
      %964 = vmatprep.subr.mxu0 0.0
      %965 = vmatpush2.msra.mxu0 0.0
      %966 = vmatprep.subr.mxu0 0.0
      %967 = vmatpush2.msra.mxu0 0.0
      %968 = vmatprep.subr.mxu0 0.0
      %969 = vmatpush2.msra.mxu0 0.0
      %970 = vmatprep.subr.mxu0 0.0
      %971 = vmatpush2.msra.mxu0 0.0
      %972 = vmatprep.subr.mxu0 0.0
      %973 = vmatpush2.msra.mxu0 0.0
      %974 = vmatprep.subr.mxu0 0.0
      %975 = vmatpush2.msra.mxu0 0.0
      %976 = vmatprep.subr.mxu0 0.0
      %977 = vmatpush2.msra.mxu0 0.0
      %978 = vmatprep.subr.mxu0 0.0
      %979 = vmatpush2.msra.mxu0 0.0
      %980 = vmatprep.subr.mxu0 0.0
      %981 = vmatpush2.msra.mxu0 0.0
      %982 = vmatprep.subr.mxu0 0.0
      %983 = vmatpush2.msra.mxu0 0.0
      %984 = vmatprep.mubr.f32.mxu0 0.0
      %985 = vmatmul.mubr.f32.gmra.mxu0 %v915
      %v986 = vpop.f32.mrf.mxu0
      %v987 = vadd.f32 0.0, %v986
      %v988 = vpop.f32.mrf.mxu0
      %989 = vdwg.mxu0
      %990 = vxpose.xlu0.b32.start [1/16] %v314, 128
      %991 = vxpose.xlu0.b32.cont [2/16] 0.0, 128
      %992 = vxpose.xlu0.b32.cont [3/16] 0.0, 128
      %993 = vxpose.xlu0.b32.cont [4/16] 0.0, 128
      %994 = vxpose.xlu0.b32.cont [5/16] 0.0, 128
      %995 = vxpose.xlu0.b32.cont [6/16] 0.0, 128
      %996 = vxpose.xlu0.b32.cont [7/16] 0.0, 128
      %997 = vxpose.xlu0.b32.cont [8/16] 0.0, 128
      %998 = vxpose.xlu0.b32.cont [9/16] 0.0, 128
      %999 = vxpose.xlu0.b32.cont [10/16] 0.0, 128
      %1000 = vxpose.xlu0.b32.cont [11/16] 0.0, 128
      %1001 = vxpose.xlu0.b32.cont [12/16] 0.0, 128
      %1002 = vxpose.xlu0.b32.cont [13/16] 0.0, 128
      %1003 = vxpose.xlu0.b32.cont [14/16] 0.0, 128
      %1004 = vxpose.xlu0.b32.cont [15/16] 0.0, 128
      %1005 = vxpose.xlu0.b32.end [16/16] 0.0, 128
      %v1006 = vpop.trf.xlu0
      %v1007 = vpop.trf.xlu0
      %v1008 = vpop.trf.xlu0
      %v1009 = vpop.trf.xlu0
      %v1010 = vpop.trf.xlu0
      %v1011 = vpop.trf.xlu0
      %v1012 = vpop.trf.xlu0
      %v1013 = vpop.trf.xlu0
      %v1014 = vpop.trf.xlu0
      %v1015 = vpop.trf.xlu0
      %v1016 = vpop.trf.xlu0
      %v1017 = vpop.trf.xlu0
      %v1018 = vpop.trf.xlu0
      %v1019 = vpop.trf.xlu0
      %v1020 = vpop.trf.xlu0
      %v1021 = vpop.trf.xlu0
      %v1023 = vsel %vm372, %v1006, 0
      %v1026 = vsel %vm376, %v330, 0
      %1028 = vmatprep.subr.mxu0 0.0
      %1029 = vmatpush1.msra.mxu0 0.0
      %1030 = vmatprep.subr.mxu0 0.0
      %1031 = vmatpush1.msra.mxu0 0.0
      %1032 = vmatprep.subr.mxu0 0.0
      %1033 = vmatpush1.msra.mxu0 0.0
      %1034 = vmatprep.subr.mxu0 0.0
      %1035 = vmatpush1.msra.mxu0 0.0
      %1036 = vmatprep.subr.mxu0 0.0
      %1037 = vmatpush1.msra.mxu0 0.0
      %1038 = vmatprep.subr.mxu0 0.0
      %1039 = vmatpush1.msra.mxu0 0.0
      %1040 = vmatprep.subr.mxu0 0.0
      %1041 = vmatpush1.msra.mxu0 0.0
      %1042 = vmatprep.subr.mxu0 0.0
      %1043 = vmatpush1.msra.mxu0 0.0
      %1044 = vmatprep.subr.mxu0 0.0
      %1045 = vmatpush1.msra.mxu0 0.0
      %1046 = vmatprep.subr.mxu0 0.0
      %1047 = vmatpush1.msra.mxu0 0.0
      %1048 = vmatprep.subr.mxu0 0.0
      %1049 = vmatpush1.msra.mxu0 0.0
      %1050 = vmatprep.subr.mxu0 0.0
      %1051 = vmatpush1.msra.mxu0 0.0
      %1052 = vmatprep.subr.mxu0 0.0
      %1053 = vmatpush1.msra.mxu0 0.0
      %1054 = vmatprep.subr.mxu0 0.0
      %1055 = vmatpush1.msra.mxu0 0.0
      %1056 = vmatprep.subr.mxu0 0.0
      %1057 = vmatpush1.msra.mxu0 0.0
      %1058 = vmatprep.subr.mxu0 0.0
      %1059 = vmatpush1.msra.mxu0 %v1026
      %1060 = vmatprep.subr.mxu0 0.0
      %1061 = vmatpush2.msra.mxu0 0.0
      %1062 = vmatprep.subr.mxu0 0.0
      %1063 = vmatpush2.msra.mxu0 0.0
      %1064 = vmatprep.subr.mxu0 0.0
      %1065 = vmatpush2.msra.mxu0 0.0
      %1066 = vmatprep.subr.mxu0 0.0
      %1067 = vmatpush2.msra.mxu0 0.0
      %1068 = vmatprep.subr.mxu0 0.0
      %1069 = vmatpush2.msra.mxu0 0.0
      %1070 = vmatprep.subr.mxu0 0.0
      %1071 = vmatpush2.msra.mxu0 0.0
      %1072 = vmatprep.subr.mxu0 0.0
      %1073 = vmatpush2.msra.mxu0 0.0
      %1074 = vmatprep.subr.mxu0 0.0
      %1075 = vmatpush2.msra.mxu0 0.0
      %1076 = vmatprep.subr.mxu0 0.0
      %1077 = vmatpush2.msra.mxu0 0.0
      %1078 = vmatprep.subr.mxu0 0.0
      %1079 = vmatpush2.msra.mxu0 0.0
      %1080 = vmatprep.subr.mxu0 0.0
      %1081 = vmatpush2.msra.mxu0 0.0
      %1082 = vmatprep.subr.mxu0 0.0
      %1083 = vmatpush2.msra.mxu0 0.0
      %1084 = vmatprep.subr.mxu0 0.0
      %1085 = vmatpush2.msra.mxu0 0.0
      %1086 = vmatprep.subr.mxu0 0.0
      %1087 = vmatpush2.msra.mxu0 0.0
      %1088 = vmatprep.subr.mxu0 0.0
      %1089 = vmatpush2.msra.mxu0 0.0
      %1090 = vmatprep.subr.mxu0 0.0
      %1091 = vmatpush2.msra.mxu0 0.0
      %1092 = vmatprep.mubr.f32.mxu0 0.0
      %1093 = vmatmul.mubr.f32.gmra.mxu0 %v1023
      %v1094 = vpop.f32.mrf.mxu0
      %v1095 = vadd.f32 0.0, %v1094
      %v1096 = vpop.f32.mrf.mxu0
      %1097 = vdwg.mxu0
      %1098 = vxpose.xlu0.b32.start [1/16] %v315, 128
      %1099 = vxpose.xlu0.b32.cont [2/16] 0.0, 128
      %1100 = vxpose.xlu0.b32.cont [3/16] 0.0, 128
      %1101 = vxpose.xlu0.b32.cont [4/16] 0.0, 128
      %1102 = vxpose.xlu0.b32.cont [5/16] 0.0, 128
      %1103 = vxpose.xlu0.b32.cont [6/16] 0.0, 128
      %1104 = vxpose.xlu0.b32.cont [7/16] 0.0, 128
      %1105 = vxpose.xlu0.b32.cont [8/16] 0.0, 128
      %1106 = vxpose.xlu0.b32.cont [9/16] 0.0, 128
      %1107 = vxpose.xlu0.b32.cont [10/16] 0.0, 128
      %1108 = vxpose.xlu0.b32.cont [11/16] 0.0, 128
      %1109 = vxpose.xlu0.b32.cont [12/16] 0.0, 128
      %1110 = vxpose.xlu0.b32.cont [13/16] 0.0, 128
      %1111 = vxpose.xlu0.b32.cont [14/16] 0.0, 128
      %1112 = vxpose.xlu0.b32.cont [15/16] 0.0, 128
      %1113 = vxpose.xlu0.b32.end [16/16] 0.0, 128
      %v1114 = vpop.trf.xlu0
      %v1115 = vpop.trf.xlu0
      %v1116 = vpop.trf.xlu0
      %v1117 = vpop.trf.xlu0
      %v1118 = vpop.trf.xlu0
      %v1119 = vpop.trf.xlu0
      %v1120 = vpop.trf.xlu0
      %v1121 = vpop.trf.xlu0
      %v1122 = vpop.trf.xlu0
      %v1123 = vpop.trf.xlu0
      %v1124 = vpop.trf.xlu0
      %v1125 = vpop.trf.xlu0
      %v1126 = vpop.trf.xlu0
      %v1127 = vpop.trf.xlu0
      %v1128 = vpop.trf.xlu0
      %v1129 = vpop.trf.xlu0
      %v1131 = vsel %vm372, %v1114, 0
      %v1134 = vsel %vm376, %v331, 0
      %1136 = vmatprep.subr.mxu0 0.0
      %1137 = vmatpush1.msra.mxu0 0.0
      %1138 = vmatprep.subr.mxu0 0.0
      %1139 = vmatpush1.msra.mxu0 0.0
      %1140 = vmatprep.subr.mxu0 0.0
      %1141 = vmatpush1.msra.mxu0 0.0
      %1142 = vmatprep.subr.mxu0 0.0
      %1143 = vmatpush1.msra.mxu0 0.0
      %1144 = vmatprep.subr.mxu0 0.0
      %1145 = vmatpush1.msra.mxu0 0.0
      %1146 = vmatprep.subr.mxu0 0.0
      %1147 = vmatpush1.msra.mxu0 0.0
      %1148 = vmatprep.subr.mxu0 0.0
      %1149 = vmatpush1.msra.mxu0 0.0
      %1150 = vmatprep.subr.mxu0 0.0
      %1151 = vmatpush1.msra.mxu0 0.0
      %1152 = vmatprep.subr.mxu0 0.0
      %1153 = vmatpush1.msra.mxu0 0.0
      %1154 = vmatprep.subr.mxu0 0.0
      %1155 = vmatpush1.msra.mxu0 0.0
      %1156 = vmatprep.subr.mxu0 0.0
      %1157 = vmatpush1.msra.mxu0 0.0
      %1158 = vmatprep.subr.mxu0 0.0
      %1159 = vmatpush1.msra.mxu0 0.0
      %1160 = vmatprep.subr.mxu0 0.0
      %1161 = vmatpush1.msra.mxu0 0.0
      %1162 = vmatprep.subr.mxu0 0.0
      %1163 = vmatpush1.msra.mxu0 0.0
      %1164 = vmatprep.subr.mxu0 0.0
      %1165 = vmatpush1.msra.mxu0 0.0
      %1166 = vmatprep.subr.mxu0 0.0
      %1167 = vmatpush1.msra.mxu0 %v1134
      %1168 = vmatprep.subr.mxu0 0.0
      %1169 = vmatpush2.msra.mxu0 0.0
      %1170 = vmatprep.subr.mxu0 0.0
      %1171 = vmatpush2.msra.mxu0 0.0
      %1172 = vmatprep.subr.mxu0 0.0
      %1173 = vmatpush2.msra.mxu0 0.0
      %1174 = vmatprep.subr.mxu0 0.0
      %1175 = vmatpush2.msra.mxu0 0.0
      %1176 = vmatprep.subr.mxu0 0.0
      %1177 = vmatpush2.msra.mxu0 0.0
      %1178 = vmatprep.subr.mxu0 0.0
      %1179 = vmatpush2.msra.mxu0 0.0
      %1180 = vmatprep.subr.mxu0 0.0
      %1181 = vmatpush2.msra.mxu0 0.0
      %1182 = vmatprep.subr.mxu0 0.0
      %1183 = vmatpush2.msra.mxu0 0.0
      %1184 = vmatprep.subr.mxu0 0.0
      %1185 = vmatpush2.msra.mxu0 0.0
      %1186 = vmatprep.subr.mxu0 0.0
      %1187 = vmatpush2.msra.mxu0 0.0
      %1188 = vmatprep.subr.mxu0 0.0
      %1189 = vmatpush2.msra.mxu0 0.0
      %1190 = vmatprep.subr.mxu0 0.0
      %1191 = vmatpush2.msra.mxu0 0.0
      %1192 = vmatprep.subr.mxu0 0.0
      %1193 = vmatpush2.msra.mxu0 0.0
      %1194 = vmatprep.subr.mxu0 0.0
      %1195 = vmatpush2.msra.mxu0 0.0
      %1196 = vmatprep.subr.mxu0 0.0
      %1197 = vmatpush2.msra.mxu0 0.0
      %1198 = vmatprep.subr.mxu0 0.0
      %1199 = vmatpush2.msra.mxu0 0.0
      %1200 = vmatprep.mubr.f32.mxu0 0.0
      %1201 = vmatmul.mubr.f32.gmra.mxu0 %v1131
      %v1202 = vpop.f32.mrf.mxu0
      %v1203 = vadd.f32 0.0, %v1202
      %v1204 = vpop.f32.mrf.mxu0
      %1205 = vdwg.mxu0
      %1206 = vxpose.xlu0.b32.start [1/16] %v316, 128
      %1207 = vxpose.xlu0.b32.cont [2/16] 0.0, 128
      %1208 = vxpose.xlu0.b32.cont [3/16] 0.0, 128
      %1209 = vxpose.xlu0.b32.cont [4/16] 0.0, 128
      %1210 = vxpose.xlu0.b32.cont [5/16] 0.0, 128
      %1211 = vxpose.xlu0.b32.cont [6/16] 0.0, 128
      %1212 = vxpose.xlu0.b32.cont [7/16] 0.0, 128
      %1213 = vxpose.xlu0.b32.cont [8/16] 0.0, 128
      %1214 = vxpose.xlu0.b32.cont [9/16] 0.0, 128
      %1215 = vxpose.xlu0.b32.cont [10/16] 0.0, 128
      %1216 = vxpose.xlu0.b32.cont [11/16] 0.0, 128
      %1217 = vxpose.xlu0.b32.cont [12/16] 0.0, 128
      %1218 = vxpose.xlu0.b32.cont [13/16] 0.0, 128
      %1219 = vxpose.xlu0.b32.cont [14/16] 0.0, 128
      %1220 = vxpose.xlu0.b32.cont [15/16] 0.0, 128
      %1221 = vxpose.xlu0.b32.end [16/16] 0.0, 128
      %v1222 = vpop.trf.xlu0
      %v1223 = vpop.trf.xlu0
      %v1224 = vpop.trf.xlu0
      %v1225 = vpop.trf.xlu0
      %v1226 = vpop.trf.xlu0
      %v1227 = vpop.trf.xlu0
      %v1228 = vpop.trf.xlu0
      %v1229 = vpop.trf.xlu0
      %v1230 = vpop.trf.xlu0
      %v1231 = vpop.trf.xlu0
      %v1232 = vpop.trf.xlu0
      %v1233 = vpop.trf.xlu0
      %v1234 = vpop.trf.xlu0
      %v1235 = vpop.trf.xlu0
      %v1236 = vpop.trf.xlu0
      %v1237 = vpop.trf.xlu0
      %v1239 = vsel %vm372, %v1222, 0
      %v1242 = vsel %vm376, %v332, 0
      %1244 = vmatprep.subr.mxu0 0.0
      %1245 = vmatpush1.msra.mxu0 0.0
      %1246 = vmatprep.subr.mxu0 0.0
      %1247 = vmatpush1.msra.mxu0 0.0
      %1248 = vmatprep.subr.mxu0 0.0
      %1249 = vmatpush1.msra.mxu0 0.0
      %1250 = vmatprep.subr.mxu0 0.0
      %1251 = vmatpush1.msra.mxu0 0.0
      %1252 = vmatprep.subr.mxu0 0.0
      %1253 = vmatpush1.msra.mxu0 0.0
      %1254 = vmatprep.subr.mxu0 0.0
      %1255 = vmatpush1.msra.mxu0 0.0
      %1256 = vmatprep.subr.mxu0 0.0
      %1257 = vmatpush1.msra.mxu0 0.0
      %1258 = vmatprep.subr.mxu0 0.0
      %1259 = vmatpush1.msra.mxu0 0.0
      %1260 = vmatprep.subr.mxu0 0.0
      %1261 = vmatpush1.msra.mxu0 0.0
      %1262 = vmatprep.subr.mxu0 0.0
      %1263 = vmatpush1.msra.mxu0 0.0
      %1264 = vmatprep.subr.mxu0 0.0
      %1265 = vmatpush1.msra.mxu0 0.0
      %1266 = vmatprep.subr.mxu0 0.0
      %1267 = vmatpush1.msra.mxu0 0.0
      %1268 = vmatprep.subr.mxu0 0.0
      %1269 = vmatpush1.msra.mxu0 0.0
      %1270 = vmatprep.subr.mxu0 0.0
      %1271 = vmatpush1.msra.mxu0 0.0
      %1272 = vmatprep.subr.mxu0 0.0
      %1273 = vmatpush1.msra.mxu0 0.0
      %1274 = vmatprep.subr.mxu0 0.0
      %1275 = vmatpush1.msra.mxu0 %v1242
      %1276 = vmatprep.subr.mxu0 0.0
      %1277 = vmatpush2.msra.mxu0 0.0
      %1278 = vmatprep.subr.mxu0 0.0
      %1279 = vmatpush2.msra.mxu0 0.0
      %1280 = vmatprep.subr.mxu0 0.0
      %1281 = vmatpush2.msra.mxu0 0.0
      %1282 = vmatprep.subr.mxu0 0.0
      %1283 = vmatpush2.msra.mxu0 0.0
      %1284 = vmatprep.subr.mxu0 0.0
      %1285 = vmatpush2.msra.mxu0 0.0
      %1286 = vmatprep.subr.mxu0 0.0
      %1287 = vmatpush2.msra.mxu0 0.0
      %1288 = vmatprep.subr.mxu0 0.0
      %1289 = vmatpush2.msra.mxu0 0.0
      %1290 = vmatprep.subr.mxu0 0.0
      %1291 = vmatpush2.msra.mxu0 0.0
      %1292 = vmatprep.subr.mxu0 0.0
      %1293 = vmatpush2.msra.mxu0 0.0
      %1294 = vmatprep.subr.mxu0 0.0
      %1295 = vmatpush2.msra.mxu0 0.0
      %1296 = vmatprep.subr.mxu0 0.0
      %1297 = vmatpush2.msra.mxu0 0.0
      %1298 = vmatprep.subr.mxu0 0.0
      %1299 = vmatpush2.msra.mxu0 0.0
      %1300 = vmatprep.subr.mxu0 0.0
      %1301 = vmatpush2.msra.mxu0 0.0
      %1302 = vmatprep.subr.mxu0 0.0
      %1303 = vmatpush2.msra.mxu0 0.0
      %1304 = vmatprep.subr.mxu0 0.0
      %1305 = vmatpush2.msra.mxu0 0.0
      %1306 = vmatprep.subr.mxu0 0.0
      %1307 = vmatpush2.msra.mxu0 0.0
      %1308 = vmatprep.mubr.f32.mxu0 0.0
      %1309 = vmatmul.mubr.f32.gmra.mxu0 %v1239
      %v1310 = vpop.f32.mrf.mxu0
      %v1311 = vadd.f32 0.0, %v1310
      %v1312 = vpop.f32.mrf.mxu0
      %1313 = vdwg.mxu0
      %1314 = vxpose.xlu0.b32.start [1/16] %v317, 128
      %1315 = vxpose.xlu0.b32.cont [2/16] 0.0, 128
      %1316 = vxpose.xlu0.b32.cont [3/16] 0.0, 128
      %1317 = vxpose.xlu0.b32.cont [4/16] 0.0, 128
      %1318 = vxpose.xlu0.b32.cont [5/16] 0.0, 128
      %1319 = vxpose.xlu0.b32.cont [6/16] 0.0, 128
      %1320 = vxpose.xlu0.b32.cont [7/16] 0.0, 128
      %1321 = vxpose.xlu0.b32.cont [8/16] 0.0, 128
      %1322 = vxpose.xlu0.b32.cont [9/16] 0.0, 128
      %1323 = vxpose.xlu0.b32.cont [10/16] 0.0, 128
      %1324 = vxpose.xlu0.b32.cont [11/16] 0.0, 128
      %1325 = vxpose.xlu0.b32.cont [12/16] 0.0, 128
      %1326 = vxpose.xlu0.b32.cont [13/16] 0.0, 128
      %1327 = vxpose.xlu0.b32.cont [14/16] 0.0, 128
      %1328 = vxpose.xlu0.b32.cont [15/16] 0.0, 128
      %1329 = vxpose.xlu0.b32.end [16/16] 0.0, 128
      %v1330 = vpop.trf.xlu0
      %v1331 = vpop.trf.xlu0
      %v1332 = vpop.trf.xlu0
      %v1333 = vpop.trf.xlu0
      %v1334 = vpop.trf.xlu0
      %v1335 = vpop.trf.xlu0
      %v1336 = vpop.trf.xlu0
      %v1337 = vpop.trf.xlu0
      %v1338 = vpop.trf.xlu0
      %v1339 = vpop.trf.xlu0
      %v1340 = vpop.trf.xlu0
      %v1341 = vpop.trf.xlu0
      %v1342 = vpop.trf.xlu0
      %v1343 = vpop.trf.xlu0
      %v1344 = vpop.trf.xlu0
      %v1345 = vpop.trf.xlu0
      %v1347 = vsel %vm372, %v1330, 0
      %v1350 = vsel %vm376, %v333, 0
      %1352 = vmatprep.subr.mxu0 0.0
      %1353 = vmatpush1.msra.mxu0 0.0
      %1354 = vmatprep.subr.mxu0 0.0
      %1355 = vmatpush1.msra.mxu0 0.0
      %1356 = vmatprep.subr.mxu0 0.0
      %1357 = vmatpush1.msra.mxu0 0.0
      %1358 = vmatprep.subr.mxu0 0.0
      %1359 = vmatpush1.msra.mxu0 0.0
      %1360 = vmatprep.subr.mxu0 0.0
      %1361 = vmatpush1.msra.mxu0 0.0
      %1362 = vmatprep.subr.mxu0 0.0
      %1363 = vmatpush1.msra.mxu0 0.0
      %1364 = vmatprep.subr.mxu0 0.0
      %1365 = vmatpush1.msra.mxu0 0.0
      %1366 = vmatprep.subr.mxu0 0.0
      %1367 = vmatpush1.msra.mxu0 0.0
      %1368 = vmatprep.subr.mxu0 0.0
      %1369 = vmatpush1.msra.mxu0 0.0
      %1370 = vmatprep.subr.mxu0 0.0
      %1371 = vmatpush1.msra.mxu0 0.0
      %1372 = vmatprep.subr.mxu0 0.0
      %1373 = vmatpush1.msra.mxu0 0.0
      %1374 = vmatprep.subr.mxu0 0.0
      %1375 = vmatpush1.msra.mxu0 0.0
      %1376 = vmatprep.subr.mxu0 0.0
      %1377 = vmatpush1.msra.mxu0 0.0
      %1378 = vmatprep.subr.mxu0 0.0
      %1379 = vmatpush1.msra.mxu0 0.0
      %1380 = vmatprep.subr.mxu0 0.0
      %1381 = vmatpush1.msra.mxu0 0.0
      %1382 = vmatprep.subr.mxu0 0.0
      %1383 = vmatpush1.msra.mxu0 %v1350
      %1384 = vmatprep.subr.mxu0 0.0
      %1385 = vmatpush2.msra.mxu0 0.0
      %1386 = vmatprep.subr.mxu0 0.0
      %1387 = vmatpush2.msra.mxu0 0.0
      %1388 = vmatprep.subr.mxu0 0.0
      %1389 = vmatpush2.msra.mxu0 0.0
      %1390 = vmatprep.subr.mxu0 0.0
      %1391 = vmatpush2.msra.mxu0 0.0
      %1392 = vmatprep.subr.mxu0 0.0
      %1393 = vmatpush2.msra.mxu0 0.0
      %1394 = vmatprep.subr.mxu0 0.0
      %1395 = vmatpush2.msra.mxu0 0.0
      %1396 = vmatprep.subr.mxu0 0.0
      %1397 = vmatpush2.msra.mxu0 0.0
      %1398 = vmatprep.subr.mxu0 0.0
      %1399 = vmatpush2.msra.mxu0 0.0
      %1400 = vmatprep.subr.mxu0 0.0
      %1401 = vmatpush2.msra.mxu0 0.0
      %1402 = vmatprep.subr.mxu0 0.0
      %1403 = vmatpush2.msra.mxu0 0.0
      %1404 = vmatprep.subr.mxu0 0.0
      %1405 = vmatpush2.msra.mxu0 0.0
      %1406 = vmatprep.subr.mxu0 0.0
      %1407 = vmatpush2.msra.mxu0 0.0
      %1408 = vmatprep.subr.mxu0 0.0
      %1409 = vmatpush2.msra.mxu0 0.0
      %1410 = vmatprep.subr.mxu0 0.0
      %1411 = vmatpush2.msra.mxu0 0.0
      %1412 = vmatprep.subr.mxu0 0.0
      %1413 = vmatpush2.msra.mxu0 0.0
      %1414 = vmatprep.subr.mxu0 0.0
      %1415 = vmatpush2.msra.mxu0 0.0
      %1416 = vmatprep.mubr.f32.mxu0 0.0
      %1417 = vmatmul.mubr.f32.gmra.mxu0 %v1347
      %v1418 = vpop.f32.mrf.mxu0
      %v1419 = vadd.f32 0.0, %v1418
      %v1420 = vpop.f32.mrf.mxu0
      %1421 = vdwg.mxu0
      %1422 = vxpose.xlu0.b32.start [1/16] %v318, 128
      %1423 = vxpose.xlu0.b32.cont [2/16] 0.0, 128
      %1424 = vxpose.xlu0.b32.cont [3/16] 0.0, 128
      %1425 = vxpose.xlu0.b32.cont [4/16] 0.0, 128
      %1426 = vxpose.xlu0.b32.cont [5/16] 0.0, 128
      %1427 = vxpose.xlu0.b32.cont [6/16] 0.0, 128
      %1428 = vxpose.xlu0.b32.cont [7/16] 0.0, 128
      %1429 = vxpose.xlu0.b32.cont [8/16] 0.0, 128
      %1430 = vxpose.xlu0.b32.cont [9/16] 0.0, 128
      %1431 = vxpose.xlu0.b32.cont [10/16] 0.0, 128
      %1432 = vxpose.xlu0.b32.cont [11/16] 0.0, 128
      %1433 = vxpose.xlu0.b32.cont [12/16] 0.0, 128
      %1434 = vxpose.xlu0.b32.cont [13/16] 0.0, 128
      %1435 = vxpose.xlu0.b32.cont [14/16] 0.0, 128
      %1436 = vxpose.xlu0.b32.cont [15/16] 0.0, 128
      %1437 = vxpose.xlu0.b32.end [16/16] 0.0, 128
      %v1438 = vpop.trf.xlu0
      %v1439 = vpop.trf.xlu0
      %v1440 = vpop.trf.xlu0
      %v1441 = vpop.trf.xlu0
      %v1442 = vpop.trf.xlu0
      %v1443 = vpop.trf.xlu0
      %v1444 = vpop.trf.xlu0
      %v1445 = vpop.trf.xlu0
      %v1446 = vpop.trf.xlu0
      %v1447 = vpop.trf.xlu0
      %v1448 = vpop.trf.xlu0
      %v1449 = vpop.trf.xlu0
      %v1450 = vpop.trf.xlu0
      %v1451 = vpop.trf.xlu0
      %v1452 = vpop.trf.xlu0
      %v1453 = vpop.trf.xlu0
      %v1455 = vsel %vm372, %v1438, 0
      %v1458 = vsel %vm376, %v334, 0
      %1460 = vmatprep.subr.mxu0 0.0
      %1461 = vmatpush1.msra.mxu0 0.0
      %1462 = vmatprep.subr.mxu0 0.0
      %1463 = vmatpush1.msra.mxu0 0.0
      %1464 = vmatprep.subr.mxu0 0.0
      %1465 = vmatpush1.msra.mxu0 0.0
      %1466 = vmatprep.subr.mxu0 0.0
      %1467 = vmatpush1.msra.mxu0 0.0
      %1468 = vmatprep.subr.mxu0 0.0
      %1469 = vmatpush1.msra.mxu0 0.0
      %1470 = vmatprep.subr.mxu0 0.0
      %1471 = vmatpush1.msra.mxu0 0.0
      %1472 = vmatprep.subr.mxu0 0.0
      %1473 = vmatpush1.msra.mxu0 0.0
      %1474 = vmatprep.subr.mxu0 0.0
      %1475 = vmatpush1.msra.mxu0 0.0
      %1476 = vmatprep.subr.mxu0 0.0
      %1477 = vmatpush1.msra.mxu0 0.0
      %1478 = vmatprep.subr.mxu0 0.0
      %1479 = vmatpush1.msra.mxu0 0.0
      %1480 = vmatprep.subr.mxu0 0.0
      %1481 = vmatpush1.msra.mxu0 0.0
      %1482 = vmatprep.subr.mxu0 0.0
      %1483 = vmatpush1.msra.mxu0 0.0
      %1484 = vmatprep.subr.mxu0 0.0
      %1485 = vmatpush1.msra.mxu0 0.0
      %1486 = vmatprep.subr.mxu0 0.0
      %1487 = vmatpush1.msra.mxu0 0.0
      %1488 = vmatprep.subr.mxu0 0.0
      %1489 = vmatpush1.msra.mxu0 0.0
      %1490 = vmatprep.subr.mxu0 0.0
      %1491 = vmatpush1.msra.mxu0 %v1458
      %1492 = vmatprep.subr.mxu0 0.0
      %1493 = vmatpush2.msra.mxu0 0.0
      %1494 = vmatprep.subr.mxu0 0.0
      %1495 = vmatpush2.msra.mxu0 0.0
      %1496 = vmatprep.subr.mxu0 0.0
      %1497 = vmatpush2.msra.mxu0 0.0
      %1498 = vmatprep.subr.mxu0 0.0
      %1499 = vmatpush2.msra.mxu0 0.0
      %1500 = vmatprep.subr.mxu0 0.0
      %1501 = vmatpush2.msra.mxu0 0.0
      %1502 = vmatprep.subr.mxu0 0.0
      %1503 = vmatpush2.msra.mxu0 0.0
      %1504 = vmatprep.subr.mxu0 0.0
      %1505 = vmatpush2.msra.mxu0 0.0
      %1506 = vmatprep.subr.mxu0 0.0
      %1507 = vmatpush2.msra.mxu0 0.0
      %1508 = vmatprep.subr.mxu0 0.0
      %1509 = vmatpush2.msra.mxu0 0.0
      %1510 = vmatprep.subr.mxu0 0.0
      %1511 = vmatpush2.msra.mxu0 0.0
      %1512 = vmatprep.subr.mxu0 0.0
      %1513 = vmatpush2.msra.mxu0 0.0
      %1514 = vmatprep.subr.mxu0 0.0
      %1515 = vmatpush2.msra.mxu0 0.0
      %1516 = vmatprep.subr.mxu0 0.0
      %1517 = vmatpush2.msra.mxu0 0.0
      %1518 = vmatprep.subr.mxu0 0.0
      %1519 = vmatpush2.msra.mxu0 0.0
      %1520 = vmatprep.subr.mxu0 0.0
      %1521 = vmatpush2.msra.mxu0 0.0
      %1522 = vmatprep.subr.mxu0 0.0
      %1523 = vmatpush2.msra.mxu0 0.0
      %1524 = vmatprep.mubr.f32.mxu0 0.0
      %1525 = vmatmul.mubr.f32.gmra.mxu0 %v1455
      %v1526 = vpop.f32.mrf.mxu0
      %v1527 = vadd.f32 0.0, %v1526
      %v1528 = vpop.f32.mrf.mxu0
      %1529 = vdwg.mxu0
      %1530 = vxpose.xlu0.b32.start [1/16] %v319, 128
      %1531 = vxpose.xlu0.b32.cont [2/16] 0.0, 128
      %1532 = vxpose.xlu0.b32.cont [3/16] 0.0, 128
      %1533 = vxpose.xlu0.b32.cont [4/16] 0.0, 128
      %1534 = vxpose.xlu0.b32.cont [5/16] 0.0, 128
      %1535 = vxpose.xlu0.b32.cont [6/16] 0.0, 128
      %1536 = vxpose.xlu0.b32.cont [7/16] 0.0, 128
      %1537 = vxpose.xlu0.b32.cont [8/16] 0.0, 128
      %1538 = vxpose.xlu0.b32.cont [9/16] 0.0, 128
      %1539 = vxpose.xlu0.b32.cont [10/16] 0.0, 128
      %1540 = vxpose.xlu0.b32.cont [11/16] 0.0, 128
      %1541 = vxpose.xlu0.b32.cont [12/16] 0.0, 128
      %1542 = vxpose.xlu0.b32.cont [13/16] 0.0, 128
      %1543 = vxpose.xlu0.b32.cont [14/16] 0.0, 128
      %1544 = vxpose.xlu0.b32.cont [15/16] 0.0, 128
      %1545 = vxpose.xlu0.b32.end [16/16] 0.0, 128
      %v1546 = vpop.trf.xlu0
      %v1547 = vpop.trf.xlu0
      %v1548 = vpop.trf.xlu0
      %v1549 = vpop.trf.xlu0
      %v1550 = vpop.trf.xlu0
      %v1551 = vpop.trf.xlu0
      %v1552 = vpop.trf.xlu0
      %v1553 = vpop.trf.xlu0
      %v1554 = vpop.trf.xlu0
      %v1555 = vpop.trf.xlu0
      %v1556 = vpop.trf.xlu0
      %v1557 = vpop.trf.xlu0
      %v1558 = vpop.trf.xlu0
      %v1559 = vpop.trf.xlu0
      %v1560 = vpop.trf.xlu0
      %v1561 = vpop.trf.xlu0
      %v1563 = vsel %vm372, %v1546, 0
      %v1566 = vsel %vm376, %v335, 0
      %1568 = vmatprep.subr.mxu0 0.0
      %1569 = vmatpush1.msra.mxu0 0.0
      %1570 = vmatprep.subr.mxu0 0.0
      %1571 = vmatpush1.msra.mxu0 0.0
      %1572 = vmatprep.subr.mxu0 0.0
      %1573 = vmatpush1.msra.mxu0 0.0
      %1574 = vmatprep.subr.mxu0 0.0
      %1575 = vmatpush1.msra.mxu0 0.0
      %1576 = vmatprep.subr.mxu0 0.0
      %1577 = vmatpush1.msra.mxu0 0.0
      %1578 = vmatprep.subr.mxu0 0.0
      %1579 = vmatpush1.msra.mxu0 0.0
      %1580 = vmatprep.subr.mxu0 0.0
      %1581 = vmatpush1.msra.mxu0 0.0
      %1582 = vmatprep.subr.mxu0 0.0
      %1583 = vmatpush1.msra.mxu0 0.0
      %1584 = vmatprep.subr.mxu0 0.0
      %1585 = vmatpush1.msra.mxu0 0.0
      %1586 = vmatprep.subr.mxu0 0.0
      %1587 = vmatpush1.msra.mxu0 0.0
      %1588 = vmatprep.subr.mxu0 0.0
      %1589 = vmatpush1.msra.mxu0 0.0
      %1590 = vmatprep.subr.mxu0 0.0
      %1591 = vmatpush1.msra.mxu0 0.0
      %1592 = vmatprep.subr.mxu0 0.0
      %1593 = vmatpush1.msra.mxu0 0.0
      %1594 = vmatprep.subr.mxu0 0.0
      %1595 = vmatpush1.msra.mxu0 0.0
      %1596 = vmatprep.subr.mxu0 0.0
      %1597 = vmatpush1.msra.mxu0 0.0
      %1598 = vmatprep.subr.mxu0 0.0
      %1599 = vmatpush1.msra.mxu0 %v1566
      %1600 = vmatprep.subr.mxu0 0.0
      %1601 = vmatpush2.msra.mxu0 0.0
      %1602 = vmatprep.subr.mxu0 0.0
      %1603 = vmatpush2.msra.mxu0 0.0
      %1604 = vmatprep.subr.mxu0 0.0
      %1605 = vmatpush2.msra.mxu0 0.0
      %1606 = vmatprep.subr.mxu0 0.0
      %1607 = vmatpush2.msra.mxu0 0.0
      %1608 = vmatprep.subr.mxu0 0.0
      %1609 = vmatpush2.msra.mxu0 0.0
      %1610 = vmatprep.subr.mxu0 0.0
      %1611 = vmatpush2.msra.mxu0 0.0
      %1612 = vmatprep.subr.mxu0 0.0
      %1613 = vmatpush2.msra.mxu0 0.0
      %1614 = vmatprep.subr.mxu0 0.0
      %1615 = vmatpush2.msra.mxu0 0.0
      %1616 = vmatprep.subr.mxu0 0.0
      %1617 = vmatpush2.msra.mxu0 0.0
      %1618 = vmatprep.subr.mxu0 0.0
      %1619 = vmatpush2.msra.mxu0 0.0
      %1620 = vmatprep.subr.mxu0 0.0
      %1621 = vmatpush2.msra.mxu0 0.0
      %1622 = vmatprep.subr.mxu0 0.0
      %1623 = vmatpush2.msra.mxu0 0.0
      %1624 = vmatprep.subr.mxu0 0.0
      %1625 = vmatpush2.msra.mxu0 0.0
      %1626 = vmatprep.subr.mxu0 0.0
      %1627 = vmatpush2.msra.mxu0 0.0
      %1628 = vmatprep.subr.mxu0 0.0
      %1629 = vmatpush2.msra.mxu0 0.0
      %1630 = vmatprep.subr.mxu0 0.0
      %1631 = vmatpush2.msra.mxu0 0.0
      %1632 = vmatprep.mubr.f32.mxu0 0.0
      %1633 = vmatmul.mubr.f32.gmra.mxu0 %v1563
      %v1634 = vpop.f32.mrf.mxu0
      %v1635 = vadd.f32 0.0, %v1634
      %v1636 = vpop.f32.mrf.mxu0
      %1637 = vdwg.mxu0
      %1638 = vxpose.xlu0.b32.start [1/16] %v320, 128
      %1639 = vxpose.xlu0.b32.cont [2/16] 0.0, 128
      %1640 = vxpose.xlu0.b32.cont [3/16] 0.0, 128
      %1641 = vxpose.xlu0.b32.cont [4/16] 0.0, 128
      %1642 = vxpose.xlu0.b32.cont [5/16] 0.0, 128
      %1643 = vxpose.xlu0.b32.cont [6/16] 0.0, 128
      %1644 = vxpose.xlu0.b32.cont [7/16] 0.0, 128
      %1645 = vxpose.xlu0.b32.cont [8/16] 0.0, 128
      %1646 = vxpose.xlu0.b32.cont [9/16] 0.0, 128
      %1647 = vxpose.xlu0.b32.cont [10/16] 0.0, 128
      %1648 = vxpose.xlu0.b32.cont [11/16] 0.0, 128
      %1649 = vxpose.xlu0.b32.cont [12/16] 0.0, 128
      %1650 = vxpose.xlu0.b32.cont [13/16] 0.0, 128
      %1651 = vxpose.xlu0.b32.cont [14/16] 0.0, 128
      %1652 = vxpose.xlu0.b32.cont [15/16] 0.0, 128
      %1653 = vxpose.xlu0.b32.end [16/16] 0.0, 128
      %v1654 = vpop.trf.xlu0
      %v1655 = vpop.trf.xlu0
      %v1656 = vpop.trf.xlu0
      %v1657 = vpop.trf.xlu0
      %v1658 = vpop.trf.xlu0
      %v1659 = vpop.trf.xlu0
      %v1660 = vpop.trf.xlu0
      %v1661 = vpop.trf.xlu0
      %v1662 = vpop.trf.xlu0
      %v1663 = vpop.trf.xlu0
      %v1664 = vpop.trf.xlu0
      %v1665 = vpop.trf.xlu0
      %v1666 = vpop.trf.xlu0
      %v1667 = vpop.trf.xlu0
      %v1668 = vpop.trf.xlu0
      %v1669 = vpop.trf.xlu0
      %v1671 = vsel %vm372, %v1654, 0
      %v1674 = vsel %vm376, %v336, 0
      %1676 = vmatprep.subr.mxu0 0.0
      %1677 = vmatpush1.msra.mxu0 0.0
      %1678 = vmatprep.subr.mxu0 0.0
      %1679 = vmatpush1.msra.mxu0 0.0
      %1680 = vmatprep.subr.mxu0 0.0
      %1681 = vmatpush1.msra.mxu0 0.0
      %1682 = vmatprep.subr.mxu0 0.0
      %1683 = vmatpush1.msra.mxu0 0.0
      %1684 = vmatprep.subr.mxu0 0.0
      %1685 = vmatpush1.msra.mxu0 0.0
      %1686 = vmatprep.subr.mxu0 0.0
      %1687 = vmatpush1.msra.mxu0 0.0
      %1688 = vmatprep.subr.mxu0 0.0
      %1689 = vmatpush1.msra.mxu0 0.0
      %1690 = vmatprep.subr.mxu0 0.0
      %1691 = vmatpush1.msra.mxu0 0.0
      %1692 = vmatprep.subr.mxu0 0.0
      %1693 = vmatpush1.msra.mxu0 0.0
      %1694 = vmatprep.subr.mxu0 0.0
      %1695 = vmatpush1.msra.mxu0 0.0
      %1696 = vmatprep.subr.mxu0 0.0
      %1697 = vmatpush1.msra.mxu0 0.0
      %1698 = vmatprep.subr.mxu0 0.0
      %1699 = vmatpush1.msra.mxu0 0.0
      %1700 = vmatprep.subr.mxu0 0.0
      %1701 = vmatpush1.msra.mxu0 0.0
      %1702 = vmatprep.subr.mxu0 0.0
      %1703 = vmatpush1.msra.mxu0 0.0
      %1704 = vmatprep.subr.mxu0 0.0
      %1705 = vmatpush1.msra.mxu0 0.0
      %1706 = vmatprep.subr.mxu0 0.0
      %1707 = vmatpush1.msra.mxu0 %v1674
      %1708 = vmatprep.subr.mxu0 0.0
      %1709 = vmatpush2.msra.mxu0 0.0
      %1710 = vmatprep.subr.mxu0 0.0
      %1711 = vmatpush2.msra.mxu0 0.0
      %1712 = vmatprep.subr.mxu0 0.0
      %1713 = vmatpush2.msra.mxu0 0.0
      %1714 = vmatprep.subr.mxu0 0.0
      %1715 = vmatpush2.msra.mxu0 0.0
      %1716 = vmatprep.subr.mxu0 0.0
      %1717 = vmatpush2.msra.mxu0 0.0
      %1718 = vmatprep.subr.mxu0 0.0
      %1719 = vmatpush2.msra.mxu0 0.0
      %1720 = vmatprep.subr.mxu0 0.0
      %1721 = vmatpush2.msra.mxu0 0.0
      %1722 = vmatprep.subr.mxu0 0.0
      %1723 = vmatpush2.msra.mxu0 0.0
      %1724 = vmatprep.subr.mxu0 0.0
      %1725 = vmatpush2.msra.mxu0 0.0
      %1726 = vmatprep.subr.mxu0 0.0
      %1727 = vmatpush2.msra.mxu0 0.0
      %1728 = vmatprep.subr.mxu0 0.0
      %1729 = vmatpush2.msra.mxu0 0.0
      %1730 = vmatprep.subr.mxu0 0.0
      %1731 = vmatpush2.msra.mxu0 0.0
      %1732 = vmatprep.subr.mxu0 0.0
      %1733 = vmatpush2.msra.mxu0 0.0
      %1734 = vmatprep.subr.mxu0 0.0
      %1735 = vmatpush2.msra.mxu0 0.0
      %1736 = vmatprep.subr.mxu0 0.0
      %1737 = vmatpush2.msra.mxu0 0.0
      %1738 = vmatprep.subr.mxu0 0.0
      %1739 = vmatpush2.msra.mxu0 0.0
      %1740 = vmatprep.mubr.f32.mxu0 0.0
      %1741 = vmatmul.mubr.f32.gmra.mxu0 %v1671
      %v1742 = vpop.f32.mrf.mxu0
      %v1743 = vadd.f32 0.0, %v1742
      %v1744 = vpop.f32.mrf.mxu0
      %1745 = vdwg.mxu0
      %1746 = vxpose.xlu0.b32.start [1/16] %v321, 128
      %1747 = vxpose.xlu0.b32.cont [2/16] 0.0, 128
      %1748 = vxpose.xlu0.b32.cont [3/16] 0.0, 128
      %1749 = vxpose.xlu0.b32.cont [4/16] 0.0, 128
      %1750 = vxpose.xlu0.b32.cont [5/16] 0.0, 128
      %1751 = vxpose.xlu0.b32.cont [6/16] 0.0, 128
      %1752 = vxpose.xlu0.b32.cont [7/16] 0.0, 128
      %1753 = vxpose.xlu0.b32.cont [8/16] 0.0, 128
      %1754 = vxpose.xlu0.b32.cont [9/16] 0.0, 128
      %1755 = vxpose.xlu0.b32.cont [10/16] 0.0, 128
      %1756 = vxpose.xlu0.b32.cont [11/16] 0.0, 128
      %1757 = vxpose.xlu0.b32.cont [12/16] 0.0, 128
      %1758 = vxpose.xlu0.b32.cont [13/16] 0.0, 128
      %1759 = vxpose.xlu0.b32.cont [14/16] 0.0, 128
      %1760 = vxpose.xlu0.b32.cont [15/16] 0.0, 128
      %1761 = vxpose.xlu0.b32.end [16/16] 0.0, 128
      %v1762 = vpop.trf.xlu0
      %v1763 = vpop.trf.xlu0
      %v1764 = vpop.trf.xlu0
      %v1765 = vpop.trf.xlu0
      %v1766 = vpop.trf.xlu0
      %v1767 = vpop.trf.xlu0
      %v1768 = vpop.trf.xlu0
      %v1769 = vpop.trf.xlu0
      %v1770 = vpop.trf.xlu0
      %v1771 = vpop.trf.xlu0
      %v1772 = vpop.trf.xlu0
      %v1773 = vpop.trf.xlu0
      %v1774 = vpop.trf.xlu0
      %v1775 = vpop.trf.xlu0
      %v1776 = vpop.trf.xlu0
      %v1777 = vpop.trf.xlu0
      %v1779 = vsel %vm372, %v1762, 0
      %v1782 = vsel %vm376, %v337, 0
      %1784 = vmatprep.subr.mxu0 0.0
      %1785 = vmatpush1.msra.mxu0 0.0
      %1786 = vmatprep.subr.mxu0 0.0
      %1787 = vmatpush1.msra.mxu0 0.0
      %1788 = vmatprep.subr.mxu0 0.0
      %1789 = vmatpush1.msra.mxu0 0.0
      %1790 = vmatprep.subr.mxu0 0.0
      %1791 = vmatpush1.msra.mxu0 0.0
      %1792 = vmatprep.subr.mxu0 0.0
      %1793 = vmatpush1.msra.mxu0 0.0
      %1794 = vmatprep.subr.mxu0 0.0
      %1795 = vmatpush1.msra.mxu0 0.0
      %1796 = vmatprep.subr.mxu0 0.0
      %1797 = vmatpush1.msra.mxu0 0.0
      %1798 = vmatprep.subr.mxu0 0.0
      %1799 = vmatpush1.msra.mxu0 0.0
      %1800 = vmatprep.subr.mxu0 0.0
      %1801 = vmatpush1.msra.mxu0 0.0
      %1802 = vmatprep.subr.mxu0 0.0
      %1803 = vmatpush1.msra.mxu0 0.0
      %1804 = vmatprep.subr.mxu0 0.0
      %1805 = vmatpush1.msra.mxu0 0.0
      %1806 = vmatprep.subr.mxu0 0.0
      %1807 = vmatpush1.msra.mxu0 0.0
      %1808 = vmatprep.subr.mxu0 0.0
      %1809 = vmatpush1.msra.mxu0 0.0
      %1810 = vmatprep.subr.mxu0 0.0
      %1811 = vmatpush1.msra.mxu0 0.0
      %1812 = vmatprep.subr.mxu0 0.0
      %1813 = vmatpush1.msra.mxu0 0.0
      %1814 = vmatprep.subr.mxu0 0.0
      %1815 = vmatpush1.msra.mxu0 %v1782
      %1816 = vmatprep.subr.mxu0 0.0
      %1817 = vmatpush2.msra.mxu0 0.0
      %1818 = vmatprep.subr.mxu0 0.0
      %1819 = vmatpush2.msra.mxu0 0.0
      %1820 = vmatprep.subr.mxu0 0.0
      %1821 = vmatpush2.msra.mxu0 0.0
      %1822 = vmatprep.subr.mxu0 0.0
      %1823 = vmatpush2.msra.mxu0 0.0
      %1824 = vmatprep.subr.mxu0 0.0
      %1825 = vmatpush2.msra.mxu0 0.0
      %1826 = vmatprep.subr.mxu0 0.0
      %1827 = vmatpush2.msra.mxu0 0.0
      %1828 = vmatprep.subr.mxu0 0.0
      %1829 = vmatpush2.msra.mxu0 0.0
      %1830 = vmatprep.subr.mxu0 0.0
      %1831 = vmatpush2.msra.mxu0 0.0
      %1832 = vmatprep.subr.mxu0 0.0
      %1833 = vmatpush2.msra.mxu0 0.0
      %1834 = vmatprep.subr.mxu0 0.0
      %1835 = vmatpush2.msra.mxu0 0.0
      %1836 = vmatprep.subr.mxu0 0.0
      %1837 = vmatpush2.msra.mxu0 0.0
      %1838 = vmatprep.subr.mxu0 0.0
      %1839 = vmatpush2.msra.mxu0 0.0
      %1840 = vmatprep.subr.mxu0 0.0
      %1841 = vmatpush2.msra.mxu0 0.0
      %1842 = vmatprep.subr.mxu0 0.0
      %1843 = vmatpush2.msra.mxu0 0.0
      %1844 = vmatprep.subr.mxu0 0.0
      %1845 = vmatpush2.msra.mxu0 0.0
      %1846 = vmatprep.subr.mxu0 0.0
      %1847 = vmatpush2.msra.mxu0 0.0
      %1848 = vmatprep.mubr.f32.mxu0 0.0
      %1849 = vmatmul.mubr.f32.gmra.mxu0 %v1779
      %v1850 = vpop.f32.mrf.mxu0
      %v1851 = vadd.f32 0.0, %v1850
      %v1852 = vpop.f32.mrf.mxu0
      %1853 = vdwg.mxu0
      %1854 = vxpose.xlu0.b32.start [1/16] %v322, 128
      %1855 = vxpose.xlu0.b32.cont [2/16] 0.0, 128
      %1856 = vxpose.xlu0.b32.cont [3/16] 0.0, 128
      %1857 = vxpose.xlu0.b32.cont [4/16] 0.0, 128
      %1858 = vxpose.xlu0.b32.cont [5/16] 0.0, 128
      %1859 = vxpose.xlu0.b32.cont [6/16] 0.0, 128
      %1860 = vxpose.xlu0.b32.cont [7/16] 0.0, 128
      %1861 = vxpose.xlu0.b32.cont [8/16] 0.0, 128
      %1862 = vxpose.xlu0.b32.cont [9/16] 0.0, 128
      %1863 = vxpose.xlu0.b32.cont [10/16] 0.0, 128
      %1864 = vxpose.xlu0.b32.cont [11/16] 0.0, 128
      %1865 = vxpose.xlu0.b32.cont [12/16] 0.0, 128
      %1866 = vxpose.xlu0.b32.cont [13/16] 0.0, 128
      %1867 = vxpose.xlu0.b32.cont [14/16] 0.0, 128
      %1868 = vxpose.xlu0.b32.cont [15/16] 0.0, 128
      %1869 = vxpose.xlu0.b32.end [16/16] 0.0, 128
      %v1870 = vpop.trf.xlu0
      %v1871 = vpop.trf.xlu0
      %v1872 = vpop.trf.xlu0
      %v1873 = vpop.trf.xlu0
      %v1874 = vpop.trf.xlu0
      %v1875 = vpop.trf.xlu0
      %v1876 = vpop.trf.xlu0
      %v1877 = vpop.trf.xlu0
      %v1878 = vpop.trf.xlu0
      %v1879 = vpop.trf.xlu0
      %v1880 = vpop.trf.xlu0
      %v1881 = vpop.trf.xlu0
      %v1882 = vpop.trf.xlu0
      %v1883 = vpop.trf.xlu0
      %v1884 = vpop.trf.xlu0
      %v1885 = vpop.trf.xlu0
      %v1887 = vsel %vm372, %v1870, 0
      %v1890 = vsel %vm376, %v338, 0
      %1892 = vmatprep.subr.mxu0 0.0
      %1893 = vmatpush1.msra.mxu0 0.0
      %1894 = vmatprep.subr.mxu0 0.0
      %1895 = vmatpush1.msra.mxu0 0.0
      %1896 = vmatprep.subr.mxu0 0.0
      %1897 = vmatpush1.msra.mxu0 0.0
      %1898 = vmatprep.subr.mxu0 0.0
      %1899 = vmatpush1.msra.mxu0 0.0
      %1900 = vmatprep.subr.mxu0 0.0
      %1901 = vmatpush1.msra.mxu0 0.0
      %1902 = vmatprep.subr.mxu0 0.0
      %1903 = vmatpush1.msra.mxu0 0.0
      %1904 = vmatprep.subr.mxu0 0.0
      %1905 = vmatpush1.msra.mxu0 0.0
      %1906 = vmatprep.subr.mxu0 0.0
      %1907 = vmatpush1.msra.mxu0 0.0
      %1908 = vmatprep.subr.mxu0 0.0
      %1909 = vmatpush1.msra.mxu0 0.0
      %1910 = vmatprep.subr.mxu0 0.0
      %1911 = vmatpush1.msra.mxu0 0.0
      %1912 = vmatprep.subr.mxu0 0.0
      %1913 = vmatpush1.msra.mxu0 0.0
      %1914 = vmatprep.subr.mxu0 0.0
      %1915 = vmatpush1.msra.mxu0 0.0
      %1916 = vmatprep.subr.mxu0 0.0
      %1917 = vmatpush1.msra.mxu0 0.0
      %1918 = vmatprep.subr.mxu0 0.0
      %1919 = vmatpush1.msra.mxu0 0.0
      %1920 = vmatprep.subr.mxu0 0.0
      %1921 = vmatpush1.msra.mxu0 0.0
      %1922 = vmatprep.subr.mxu0 0.0
      %1923 = vmatpush1.msra.mxu0 %v1890
      %1924 = vmatprep.subr.mxu0 0.0
      %1925 = vmatpush2.msra.mxu0 0.0
      %1926 = vmatprep.subr.mxu0 0.0
      %1927 = vmatpush2.msra.mxu0 0.0
      %1928 = vmatprep.subr.mxu0 0.0
      %1929 = vmatpush2.msra.mxu0 0.0
      %1930 = vmatprep.subr.mxu0 0.0
      %1931 = vmatpush2.msra.mxu0 0.0
      %1932 = vmatprep.subr.mxu0 0.0
      %1933 = vmatpush2.msra.mxu0 0.0
      %1934 = vmatprep.subr.mxu0 0.0
      %1935 = vmatpush2.msra.mxu0 0.0
      %1936 = vmatprep.subr.mxu0 0.0
      %1937 = vmatpush2.msra.mxu0 0.0
      %1938 = vmatprep.subr.mxu0 0.0
      %1939 = vmatpush2.msra.mxu0 0.0
      %1940 = vmatprep.subr.mxu0 0.0
      %1941 = vmatpush2.msra.mxu0 0.0
      %1942 = vmatprep.subr.mxu0 0.0
      %1943 = vmatpush2.msra.mxu0 0.0
      %1944 = vmatprep.subr.mxu0 0.0
      %1945 = vmatpush2.msra.mxu0 0.0
      %1946 = vmatprep.subr.mxu0 0.0
      %1947 = vmatpush2.msra.mxu0 0.0
      %1948 = vmatprep.subr.mxu0 0.0
      %1949 = vmatpush2.msra.mxu0 0.0
      %1950 = vmatprep.subr.mxu0 0.0
      %1951 = vmatpush2.msra.mxu0 0.0
      %1952 = vmatprep.subr.mxu0 0.0
      %1953 = vmatpush2.msra.mxu0 0.0
      %1954 = vmatprep.subr.mxu0 0.0
      %1955 = vmatpush2.msra.mxu0 0.0
      %1956 = vmatprep.mubr.f32.mxu0 0.0
      %1957 = vmatmul.mubr.f32.gmra.mxu0 %v1887
      %v1958 = vpop.f32.mrf.mxu0
      %v1959 = vadd.f32 0.0, %v1958
      %v1960 = vpop.f32.mrf.mxu0
      %1961 = vdwg.mxu0
      %1962 = vxpose.xlu0.b32.start [1/16] %v323, 128
      %1963 = vxpose.xlu0.b32.cont [2/16] 0.0, 128
      %1964 = vxpose.xlu0.b32.cont [3/16] 0.0, 128
      %1965 = vxpose.xlu0.b32.cont [4/16] 0.0, 128
      %1966 = vxpose.xlu0.b32.cont [5/16] 0.0, 128
      %1967 = vxpose.xlu0.b32.cont [6/16] 0.0, 128
      %1968 = vxpose.xlu0.b32.cont [7/16] 0.0, 128
      %1969 = vxpose.xlu0.b32.cont [8/16] 0.0, 128
      %1970 = vxpose.xlu0.b32.cont [9/16] 0.0, 128
      %1971 = vxpose.xlu0.b32.cont [10/16] 0.0, 128
      %1972 = vxpose.xlu0.b32.cont [11/16] 0.0, 128
      %1973 = vxpose.xlu0.b32.cont [12/16] 0.0, 128
      %1974 = vxpose.xlu0.b32.cont [13/16] 0.0, 128
      %1975 = vxpose.xlu0.b32.cont [14/16] 0.0, 128
      %1976 = vxpose.xlu0.b32.cont [15/16] 0.0, 128
      %1977 = vxpose.xlu0.b32.end [16/16] 0.0, 128
      %v1978 = vpop.trf.xlu0
      %v1979 = vpop.trf.xlu0
      %v1980 = vpop.trf.xlu0
      %v1981 = vpop.trf.xlu0
      %v1982 = vpop.trf.xlu0
      %v1983 = vpop.trf.xlu0
      %v1984 = vpop.trf.xlu0
      %v1985 = vpop.trf.xlu0
      %v1986 = vpop.trf.xlu0
      %v1987 = vpop.trf.xlu0
      %v1988 = vpop.trf.xlu0
      %v1989 = vpop.trf.xlu0
      %v1990 = vpop.trf.xlu0
      %v1991 = vpop.trf.xlu0
      %v1992 = vpop.trf.xlu0
      %v1993 = vpop.trf.xlu0
      %v1995 = vsel %vm372, %v1978, 0
      %v1998 = vsel %vm376, %v339, 0
      %2000 = vmatprep.subr.mxu0 0.0
      %2001 = vmatpush1.msra.mxu0 0.0
      %2002 = vmatprep.subr.mxu0 0.0
      %2003 = vmatpush1.msra.mxu0 0.0
      %2004 = vmatprep.subr.mxu0 0.0
      %2005 = vmatpush1.msra.mxu0 0.0
      %2006 = vmatprep.subr.mxu0 0.0
      %2007 = vmatpush1.msra.mxu0 0.0
      %2008 = vmatprep.subr.mxu0 0.0
      %2009 = vmatpush1.msra.mxu0 0.0
      %2010 = vmatprep.subr.mxu0 0.0
      %2011 = vmatpush1.msra.mxu0 0.0
      %2012 = vmatprep.subr.mxu0 0.0
      %2013 = vmatpush1.msra.mxu0 0.0
      %2014 = vmatprep.subr.mxu0 0.0
      %2015 = vmatpush1.msra.mxu0 0.0
      %2016 = vmatprep.subr.mxu0 0.0
      %2017 = vmatpush1.msra.mxu0 0.0
      %2018 = vmatprep.subr.mxu0 0.0
      %2019 = vmatpush1.msra.mxu0 0.0
      %2020 = vmatprep.subr.mxu0 0.0
      %2021 = vmatpush1.msra.mxu0 0.0
      %2022 = vmatprep.subr.mxu0 0.0
      %2023 = vmatpush1.msra.mxu0 0.0
      %2024 = vmatprep.subr.mxu0 0.0
      %2025 = vmatpush1.msra.mxu0 0.0
      %2026 = vmatprep.subr.mxu0 0.0
      %2027 = vmatpush1.msra.mxu0 0.0
      %2028 = vmatprep.subr.mxu0 0.0
      %2029 = vmatpush1.msra.mxu0 0.0
      %2030 = vmatprep.subr.mxu0 0.0
      %2031 = vmatpush1.msra.mxu0 %v1998
      %2032 = vmatprep.subr.mxu0 0.0
      %2033 = vmatpush2.msra.mxu0 0.0
      %2034 = vmatprep.subr.mxu0 0.0
      %2035 = vmatpush2.msra.mxu0 0.0
      %2036 = vmatprep.subr.mxu0 0.0
      %2037 = vmatpush2.msra.mxu0 0.0
      %2038 = vmatprep.subr.mxu0 0.0
      %2039 = vmatpush2.msra.mxu0 0.0
      %2040 = vmatprep.subr.mxu0 0.0
      %2041 = vmatpush2.msra.mxu0 0.0
      %2042 = vmatprep.subr.mxu0 0.0
      %2043 = vmatpush2.msra.mxu0 0.0
      %2044 = vmatprep.subr.mxu0 0.0
      %2045 = vmatpush2.msra.mxu0 0.0
      %2046 = vmatprep.subr.mxu0 0.0
      %2047 = vmatpush2.msra.mxu0 0.0
      %2048 = vmatprep.subr.mxu0 0.0
      %2049 = vmatpush2.msra.mxu0 0.0
      %2050 = vmatprep.subr.mxu0 0.0
      %2051 = vmatpush2.msra.mxu0 0.0
      %2052 = vmatprep.subr.mxu0 0.0
      %2053 = vmatpush2.msra.mxu0 0.0
      %2054 = vmatprep.subr.mxu0 0.0
      %2055 = vmatpush2.msra.mxu0 0.0
      %2056 = vmatprep.subr.mxu0 0.0
      %2057 = vmatpush2.msra.mxu0 0.0
      %2058 = vmatprep.subr.mxu0 0.0
      %2059 = vmatpush2.msra.mxu0 0.0
      %2060 = vmatprep.subr.mxu0 0.0
      %2061 = vmatpush2.msra.mxu0 0.0
      %2062 = vmatprep.subr.mxu0 0.0
      %2063 = vmatpush2.msra.mxu0 0.0
      %2064 = vmatprep.mubr.f32.mxu0 0.0
      %2065 = vmatmul.mubr.f32.gmra.mxu0 %v1995
      %v2066 = vpop.f32.mrf.mxu0
      %v2067 = vadd.f32 0.0, %v2066
      %v2068 = vpop.f32.mrf.mxu0
      %2069 = vdwg.mxu0
      %v2070 = vsub.f32 %v447, %v1311
      %v2071 = vsub.f32 %v555, %v1419
      %v2072 = vsub.f32 %v663, %v1527
      %v2073 = vsub.f32 %v771, %v1635
      %v2074 = vsub.f32 %v879, %v1743
      %v2075 = vsub.f32 %v987, %v1851
      %v2076 = vsub.f32 %v1095, %v1959
      %v2077 = vsub.f32 %v1203, %v2067
      %2078 = vmatprep.subr.mxu0 0.0
      %2079 = vmatpush1.msra.mxu0 0.0
      %2080 = vmatprep.subr.mxu0 0.0
      %2081 = vmatpush1.msra.mxu0 0.0
      %2082 = vmatprep.subr.mxu0 0.0
      %2083 = vmatpush1.msra.mxu0 0.0
      %2084 = vmatprep.subr.mxu0 0.0
      %2085 = vmatpush1.msra.mxu0 0.0
      %2086 = vmatprep.subr.mxu0 0.0
      %2087 = vmatpush1.msra.mxu0 0.0
      %2088 = vmatprep.subr.mxu0 0.0
      %2089 = vmatpush1.msra.mxu0 0.0
      %2090 = vmatprep.subr.mxu0 0.0
      %2091 = vmatpush1.msra.mxu0 0.0
      %2092 = vmatprep.subr.mxu0 0.0
      %2093 = vmatpush1.msra.mxu0 0.0
      %2094 = vmatprep.subr.mxu0 0.0
      %2095 = vmatpush1.msra.mxu0 0.0
      %2096 = vmatprep.subr.mxu0 0.0
      %2097 = vmatpush1.msra.mxu0 0.0
      %2098 = vmatprep.subr.mxu0 0.0
      %2099 = vmatpush1.msra.mxu0 0.0
      %2100 = vmatprep.subr.mxu0 0.0
      %2101 = vmatpush1.msra.mxu0 0.0
      %2102 = vmatprep.subr.mxu0 0.0
      %2103 = vmatpush1.msra.mxu0 0.0
      %2104 = vmatprep.subr.mxu0 0.0
      %2105 = vmatpush1.msra.mxu0 0.0
      %2106 = vmatprep.subr.mxu0 0.0
      %2107 = vmatpush1.msra.mxu0 0.0
      %2108 = vmatprep.subr.mxu0 0.0
      %2109 = vmatpush1.msra.mxu0 %v378
      %2110 = vmatprep.subr.mxu0 0.0
      %2111 = vmatpush2.msra.mxu0 0.0
      %2112 = vmatprep.subr.mxu0 0.0
      %2113 = vmatpush2.msra.mxu0 0.0
      %2114 = vmatprep.subr.mxu0 0.0
      %2115 = vmatpush2.msra.mxu0 0.0
      %2116 = vmatprep.subr.mxu0 0.0
      %2117 = vmatpush2.msra.mxu0 0.0
      %2118 = vmatprep.subr.mxu0 0.0
      %2119 = vmatpush2.msra.mxu0 0.0
      %2120 = vmatprep.subr.mxu0 0.0
      %2121 = vmatpush2.msra.mxu0 0.0
      %2122 = vmatprep.subr.mxu0 0.0
      %2123 = vmatpush2.msra.mxu0 0.0
      %2124 = vmatprep.subr.mxu0 0.0
      %2125 = vmatpush2.msra.mxu0 0.0
      %2126 = vmatprep.subr.mxu0 0.0
      %2127 = vmatpush2.msra.mxu0 0.0
      %2128 = vmatprep.subr.mxu0 0.0
      %2129 = vmatpush2.msra.mxu0 0.0
      %2130 = vmatprep.subr.mxu0 0.0
      %2131 = vmatpush2.msra.mxu0 0.0
      %2132 = vmatprep.subr.mxu0 0.0
      %2133 = vmatpush2.msra.mxu0 0.0
      %2134 = vmatprep.subr.mxu0 0.0
      %2135 = vmatpush2.msra.mxu0 0.0
      %2136 = vmatprep.subr.mxu0 0.0
      %2137 = vmatpush2.msra.mxu0 0.0
      %2138 = vmatprep.subr.mxu0 0.0
      %2139 = vmatpush2.msra.mxu0 0.0
      %2140 = vmatprep.subr.mxu0 0.0
      %2141 = vmatpush2.msra.mxu0 0.0
      %2142 = vmatprep.mubr.f32.mxu0 0.0
      %2143 = vmatmul.mubr.f32.gmra.mxu0 %v1239
      %v2144 = vpop.f32.mrf.mxu0
      %v2145 = vadd.f32 0.0, %v2144
      %v2146 = vpop.f32.mrf.mxu0
      %2147 = vdwg.mxu0
      %2148 = vmatprep.subr.mxu0 0.0
      %2149 = vmatpush1.msra.mxu0 0.0
      %2150 = vmatprep.subr.mxu0 0.0
      %2151 = vmatpush1.msra.mxu0 0.0
      %2152 = vmatprep.subr.mxu0 0.0
      %2153 = vmatpush1.msra.mxu0 0.0
      %2154 = vmatprep.subr.mxu0 0.0
      %2155 = vmatpush1.msra.mxu0 0.0
      %2156 = vmatprep.subr.mxu0 0.0
      %2157 = vmatpush1.msra.mxu0 0.0
      %2158 = vmatprep.subr.mxu0 0.0
      %2159 = vmatpush1.msra.mxu0 0.0
      %2160 = vmatprep.subr.mxu0 0.0
      %2161 = vmatpush1.msra.mxu0 0.0
      %2162 = vmatprep.subr.mxu0 0.0
      %2163 = vmatpush1.msra.mxu0 0.0
      %2164 = vmatprep.subr.mxu0 0.0
      %2165 = vmatpush1.msra.mxu0 0.0
      %2166 = vmatprep.subr.mxu0 0.0
      %2167 = vmatpush1.msra.mxu0 0.0
      %2168 = vmatprep.subr.mxu0 0.0
      %2169 = vmatpush1.msra.mxu0 0.0
      %2170 = vmatprep.subr.mxu0 0.0
      %2171 = vmatpush1.msra.mxu0 0.0
      %2172 = vmatprep.subr.mxu0 0.0
      %2173 = vmatpush1.msra.mxu0 0.0
      %2174 = vmatprep.subr.mxu0 0.0
      %2175 = vmatpush1.msra.mxu0 0.0
      %2176 = vmatprep.subr.mxu0 0.0
      %2177 = vmatpush1.msra.mxu0 0.0
      %2178 = vmatprep.subr.mxu0 0.0
      %2179 = vmatpush1.msra.mxu0 %v486
      %2180 = vmatprep.subr.mxu0 0.0
      %2181 = vmatpush2.msra.mxu0 0.0
      %2182 = vmatprep.subr.mxu0 0.0
      %2183 = vmatpush2.msra.mxu0 0.0
      %2184 = vmatprep.subr.mxu0 0.0
      %2185 = vmatpush2.msra.mxu0 0.0
      %2186 = vmatprep.subr.mxu0 0.0
      %2187 = vmatpush2.msra.mxu0 0.0
      %2188 = vmatprep.subr.mxu0 0.0
      %2189 = vmatpush2.msra.mxu0 0.0
      %2190 = vmatprep.subr.mxu0 0.0
      %2191 = vmatpush2.msra.mxu0 0.0
      %2192 = vmatprep.subr.mxu0 0.0
      %2193 = vmatpush2.msra.mxu0 0.0
      %2194 = vmatprep.subr.mxu0 0.0
      %2195 = vmatpush2.msra.mxu0 0.0
      %2196 = vmatprep.subr.mxu0 0.0
      %2197 = vmatpush2.msra.mxu0 0.0
      %2198 = vmatprep.subr.mxu0 0.0
      %2199 = vmatpush2.msra.mxu0 0.0
      %2200 = vmatprep.subr.mxu0 0.0
      %2201 = vmatpush2.msra.mxu0 0.0
      %2202 = vmatprep.subr.mxu0 0.0
      %2203 = vmatpush2.msra.mxu0 0.0
      %2204 = vmatprep.subr.mxu0 0.0
      %2205 = vmatpush2.msra.mxu0 0.0
      %2206 = vmatprep.subr.mxu0 0.0
      %2207 = vmatpush2.msra.mxu0 0.0
      %2208 = vmatprep.subr.mxu0 0.0
      %2209 = vmatpush2.msra.mxu0 0.0
      %2210 = vmatprep.subr.mxu0 0.0
      %2211 = vmatpush2.msra.mxu0 0.0
      %2212 = vmatprep.mubr.f32.mxu0 0.0
      %2213 = vmatmul.mubr.f32.gmra.mxu0 %v1347
      %v2214 = vpop.f32.mrf.mxu0
      %v2215 = vadd.f32 0.0, %v2214
      %v2216 = vpop.f32.mrf.mxu0
      %2217 = vdwg.mxu0
      %2218 = vmatprep.subr.mxu0 0.0
      %2219 = vmatpush1.msra.mxu0 0.0
      %2220 = vmatprep.subr.mxu0 0.0
      %2221 = vmatpush1.msra.mxu0 0.0
      %2222 = vmatprep.subr.mxu0 0.0
      %2223 = vmatpush1.msra.mxu0 0.0
      %2224 = vmatprep.subr.mxu0 0.0
      %2225 = vmatpush1.msra.mxu0 0.0
      %2226 = vmatprep.subr.mxu0 0.0
      %2227 = vmatpush1.msra.mxu0 0.0
      %2228 = vmatprep.subr.mxu0 0.0
      %2229 = vmatpush1.msra.mxu0 0.0
      %2230 = vmatprep.subr.mxu0 0.0
      %2231 = vmatpush1.msra.mxu0 0.0
      %2232 = vmatprep.subr.mxu0 0.0
      %2233 = vmatpush1.msra.mxu0 0.0
      %2234 = vmatprep.subr.mxu0 0.0
      %2235 = vmatpush1.msra.mxu0 0.0
      %2236 = vmatprep.subr.mxu0 0.0
      %2237 = vmatpush1.msra.mxu0 0.0
      %2238 = vmatprep.subr.mxu0 0.0
      %2239 = vmatpush1.msra.mxu0 0.0
      %2240 = vmatprep.subr.mxu0 0.0
      %2241 = vmatpush1.msra.mxu0 0.0
      %2242 = vmatprep.subr.mxu0 0.0
      %2243 = vmatpush1.msra.mxu0 0.0
      %2244 = vmatprep.subr.mxu0 0.0
      %2245 = vmatpush1.msra.mxu0 0.0
      %2246 = vmatprep.subr.mxu0 0.0
      %2247 = vmatpush1.msra.mxu0 0.0
      %2248 = vmatprep.subr.mxu0 0.0
      %2249 = vmatpush1.msra.mxu0 %v594
      %2250 = vmatprep.subr.mxu0 0.0
      %2251 = vmatpush2.msra.mxu0 0.0
      %2252 = vmatprep.subr.mxu0 0.0
      %2253 = vmatpush2.msra.mxu0 0.0
      %2254 = vmatprep.subr.mxu0 0.0
      %2255 = vmatpush2.msra.mxu0 0.0
      %2256 = vmatprep.subr.mxu0 0.0
      %2257 = vmatpush2.msra.mxu0 0.0
      %2258 = vmatprep.subr.mxu0 0.0
      %2259 = vmatpush2.msra.mxu0 0.0
      %2260 = vmatprep.subr.mxu0 0.0
      %2261 = vmatpush2.msra.mxu0 0.0
      %2262 = vmatprep.subr.mxu0 0.0
      %2263 = vmatpush2.msra.mxu0 0.0
      %2264 = vmatprep.subr.mxu0 0.0
      %2265 = vmatpush2.msra.mxu0 0.0
      %2266 = vmatprep.subr.mxu0 0.0
      %2267 = vmatpush2.msra.mxu0 0.0
      %2268 = vmatprep.subr.mxu0 0.0
      %2269 = vmatpush2.msra.mxu0 0.0
      %2270 = vmatprep.subr.mxu0 0.0
      %2271 = vmatpush2.msra.mxu0 0.0
      %2272 = vmatprep.subr.mxu0 0.0
      %2273 = vmatpush2.msra.mxu0 0.0
      %2274 = vmatprep.subr.mxu0 0.0
      %2275 = vmatpush2.msra.mxu0 0.0
      %2276 = vmatprep.subr.mxu0 0.0
      %2277 = vmatpush2.msra.mxu0 0.0
      %2278 = vmatprep.subr.mxu0 0.0
      %2279 = vmatpush2.msra.mxu0 0.0
      %2280 = vmatprep.subr.mxu0 0.0
      %2281 = vmatpush2.msra.mxu0 0.0
      %2282 = vmatprep.mubr.f32.mxu0 0.0
      %2283 = vmatmul.mubr.f32.gmra.mxu0 %v1455
      %v2284 = vpop.f32.mrf.mxu0
      %v2285 = vadd.f32 0.0, %v2284
      %v2286 = vpop.f32.mrf.mxu0
      %2287 = vdwg.mxu0
      %2288 = vmatprep.subr.mxu0 0.0
      %2289 = vmatpush1.msra.mxu0 0.0
      %2290 = vmatprep.subr.mxu0 0.0
      %2291 = vmatpush1.msra.mxu0 0.0
      %2292 = vmatprep.subr.mxu0 0.0
      %2293 = vmatpush1.msra.mxu0 0.0
      %2294 = vmatprep.subr.mxu0 0.0
      %2295 = vmatpush1.msra.mxu0 0.0
      %2296 = vmatprep.subr.mxu0 0.0
      %2297 = vmatpush1.msra.mxu0 0.0
      %2298 = vmatprep.subr.mxu0 0.0
      %2299 = vmatpush1.msra.mxu0 0.0
      %2300 = vmatprep.subr.mxu0 0.0
      %2301 = vmatpush1.msra.mxu0 0.0
      %2302 = vmatprep.subr.mxu0 0.0
      %2303 = vmatpush1.msra.mxu0 0.0
      %2304 = vmatprep.subr.mxu0 0.0
      %2305 = vmatpush1.msra.mxu0 0.0
      %2306 = vmatprep.subr.mxu0 0.0
      %2307 = vmatpush1.msra.mxu0 0.0
      %2308 = vmatprep.subr.mxu0 0.0
      %2309 = vmatpush1.msra.mxu0 0.0
      %2310 = vmatprep.subr.mxu0 0.0
      %2311 = vmatpush1.msra.mxu0 0.0
      %2312 = vmatprep.subr.mxu0 0.0
      %2313 = vmatpush1.msra.mxu0 0.0
      %2314 = vmatprep.subr.mxu0 0.0
      %2315 = vmatpush1.msra.mxu0 0.0
      %2316 = vmatprep.subr.mxu0 0.0
      %2317 = vmatpush1.msra.mxu0 0.0
      %2318 = vmatprep.subr.mxu0 0.0
      %2319 = vmatpush1.msra.mxu0 %v702
      %2320 = vmatprep.subr.mxu0 0.0
      %2321 = vmatpush2.msra.mxu0 0.0
      %2322 = vmatprep.subr.mxu0 0.0
      %2323 = vmatpush2.msra.mxu0 0.0
      %2324 = vmatprep.subr.mxu0 0.0
      %2325 = vmatpush2.msra.mxu0 0.0
      %2326 = vmatprep.subr.mxu0 0.0
      %2327 = vmatpush2.msra.mxu0 0.0
      %2328 = vmatprep.subr.mxu0 0.0
      %2329 = vmatpush2.msra.mxu0 0.0
      %2330 = vmatprep.subr.mxu0 0.0
      %2331 = vmatpush2.msra.mxu0 0.0
      %2332 = vmatprep.subr.mxu0 0.0
      %2333 = vmatpush2.msra.mxu0 0.0
      %2334 = vmatprep.subr.mxu0 0.0
      %2335 = vmatpush2.msra.mxu0 0.0
      %2336 = vmatprep.subr.mxu0 0.0
      %2337 = vmatpush2.msra.mxu0 0.0
      %2338 = vmatprep.subr.mxu0 0.0
      %2339 = vmatpush2.msra.mxu0 0.0
      %2340 = vmatprep.subr.mxu0 0.0
      %2341 = vmatpush2.msra.mxu0 0.0
      %2342 = vmatprep.subr.mxu0 0.0
      %2343 = vmatpush2.msra.mxu0 0.0
      %2344 = vmatprep.subr.mxu0 0.0
      %2345 = vmatpush2.msra.mxu0 0.0
      %2346 = vmatprep.subr.mxu0 0.0
      %2347 = vmatpush2.msra.mxu0 0.0
      %2348 = vmatprep.subr.mxu0 0.0
      %2349 = vmatpush2.msra.mxu0 0.0
      %2350 = vmatprep.subr.mxu0 0.0
      %2351 = vmatpush2.msra.mxu0 0.0
      %2352 = vmatprep.mubr.f32.mxu0 0.0
      %2353 = vmatmul.mubr.f32.gmra.mxu0 %v1563
      %v2354 = vpop.f32.mrf.mxu0
      %v2355 = vadd.f32 0.0, %v2354
      %v2356 = vpop.f32.mrf.mxu0
      %2357 = vdwg.mxu0
      %2358 = vmatprep.subr.mxu0 0.0
      %2359 = vmatpush1.msra.mxu0 0.0
      %2360 = vmatprep.subr.mxu0 0.0
      %2361 = vmatpush1.msra.mxu0 0.0
      %2362 = vmatprep.subr.mxu0 0.0
      %2363 = vmatpush1.msra.mxu0 0.0
      %2364 = vmatprep.subr.mxu0 0.0
      %2365 = vmatpush1.msra.mxu0 0.0
      %2366 = vmatprep.subr.mxu0 0.0
      %2367 = vmatpush1.msra.mxu0 0.0
      %2368 = vmatprep.subr.mxu0 0.0
      %2369 = vmatpush1.msra.mxu0 0.0
      %2370 = vmatprep.subr.mxu0 0.0
      %2371 = vmatpush1.msra.mxu0 0.0
      %2372 = vmatprep.subr.mxu0 0.0
      %2373 = vmatpush1.msra.mxu0 0.0
      %2374 = vmatprep.subr.mxu0 0.0
      %2375 = vmatpush1.msra.mxu0 0.0
      %2376 = vmatprep.subr.mxu0 0.0
      %2377 = vmatpush1.msra.mxu0 0.0
      %2378 = vmatprep.subr.mxu0 0.0
      %2379 = vmatpush1.msra.mxu0 0.0
      %2380 = vmatprep.subr.mxu0 0.0
      %2381 = vmatpush1.msra.mxu0 0.0
      %2382 = vmatprep.subr.mxu0 0.0
      %2383 = vmatpush1.msra.mxu0 0.0
      %2384 = vmatprep.subr.mxu0 0.0
      %2385 = vmatpush1.msra.mxu0 0.0
      %2386 = vmatprep.subr.mxu0 0.0
      %2387 = vmatpush1.msra.mxu0 0.0
      %2388 = vmatprep.subr.mxu0 0.0
      %2389 = vmatpush1.msra.mxu0 %v810
      %2390 = vmatprep.subr.mxu0 0.0
      %2391 = vmatpush2.msra.mxu0 0.0
      %2392 = vmatprep.subr.mxu0 0.0
      %2393 = vmatpush2.msra.mxu0 0.0
      %2394 = vmatprep.subr.mxu0 0.0
      %2395 = vmatpush2.msra.mxu0 0.0
      %2396 = vmatprep.subr.mxu0 0.0
      %2397 = vmatpush2.msra.mxu0 0.0
      %2398 = vmatprep.subr.mxu0 0.0
      %2399 = vmatpush2.msra.mxu0 0.0
      %2400 = vmatprep.subr.mxu0 0.0
      %2401 = vmatpush2.msra.mxu0 0.0
      %2402 = vmatprep.subr.mxu0 0.0
      %2403 = vmatpush2.msra.mxu0 0.0
      %2404 = vmatprep.subr.mxu0 0.0
      %2405 = vmatpush2.msra.mxu0 0.0
      %2406 = vmatprep.subr.mxu0 0.0
      %2407 = vmatpush2.msra.mxu0 0.0
      %2408 = vmatprep.subr.mxu0 0.0
      %2409 = vmatpush2.msra.mxu0 0.0
      %2410 = vmatprep.subr.mxu0 0.0
      %2411 = vmatpush2.msra.mxu0 0.0
      %2412 = vmatprep.subr.mxu0 0.0
      %2413 = vmatpush2.msra.mxu0 0.0
      %2414 = vmatprep.subr.mxu0 0.0
      %2415 = vmatpush2.msra.mxu0 0.0
      %2416 = vmatprep.subr.mxu0 0.0
      %2417 = vmatpush2.msra.mxu0 0.0
      %2418 = vmatprep.subr.mxu0 0.0
      %2419 = vmatpush2.msra.mxu0 0.0
      %2420 = vmatprep.subr.mxu0 0.0
      %2421 = vmatpush2.msra.mxu0 0.0
      %2422 = vmatprep.mubr.f32.mxu0 0.0
      %2423 = vmatmul.mubr.f32.gmra.mxu0 %v1671
      %v2424 = vpop.f32.mrf.mxu0
      %v2425 = vadd.f32 0.0, %v2424
      %v2426 = vpop.f32.mrf.mxu0
      %2427 = vdwg.mxu0
      %2428 = vmatprep.subr.mxu0 0.0
      %2429 = vmatpush1.msra.mxu0 0.0
      %2430 = vmatprep.subr.mxu0 0.0
      %2431 = vmatpush1.msra.mxu0 0.0
      %2432 = vmatprep.subr.mxu0 0.0
      %2433 = vmatpush1.msra.mxu0 0.0
      %2434 = vmatprep.subr.mxu0 0.0
      %2435 = vmatpush1.msra.mxu0 0.0
      %2436 = vmatprep.subr.mxu0 0.0
      %2437 = vmatpush1.msra.mxu0 0.0
      %2438 = vmatprep.subr.mxu0 0.0
      %2439 = vmatpush1.msra.mxu0 0.0
      %2440 = vmatprep.subr.mxu0 0.0
      %2441 = vmatpush1.msra.mxu0 0.0
      %2442 = vmatprep.subr.mxu0 0.0
      %2443 = vmatpush1.msra.mxu0 0.0
      %2444 = vmatprep.subr.mxu0 0.0
      %2445 = vmatpush1.msra.mxu0 0.0
      %2446 = vmatprep.subr.mxu0 0.0
      %2447 = vmatpush1.msra.mxu0 0.0
      %2448 = vmatprep.subr.mxu0 0.0
      %2449 = vmatpush1.msra.mxu0 0.0
      %2450 = vmatprep.subr.mxu0 0.0
      %2451 = vmatpush1.msra.mxu0 0.0
      %2452 = vmatprep.subr.mxu0 0.0
      %2453 = vmatpush1.msra.mxu0 0.0
      %2454 = vmatprep.subr.mxu0 0.0
      %2455 = vmatpush1.msra.mxu0 0.0
      %2456 = vmatprep.subr.mxu0 0.0
      %2457 = vmatpush1.msra.mxu0 0.0
      %2458 = vmatprep.subr.mxu0 0.0
      %2459 = vmatpush1.msra.mxu0 %v918
      %2460 = vmatprep.subr.mxu0 0.0
      %2461 = vmatpush2.msra.mxu0 0.0
      %2462 = vmatprep.subr.mxu0 0.0
      %2463 = vmatpush2.msra.mxu0 0.0
      %2464 = vmatprep.subr.mxu0 0.0
      %2465 = vmatpush2.msra.mxu0 0.0
      %2466 = vmatprep.subr.mxu0 0.0
      %2467 = vmatpush2.msra.mxu0 0.0
      %2468 = vmatprep.subr.mxu0 0.0
      %2469 = vmatpush2.msra.mxu0 0.0
      %2470 = vmatprep.subr.mxu0 0.0
      %2471 = vmatpush2.msra.mxu0 0.0
      %2472 = vmatprep.subr.mxu0 0.0
      %2473 = vmatpush2.msra.mxu0 0.0
      %2474 = vmatprep.subr.mxu0 0.0
      %2475 = vmatpush2.msra.mxu0 0.0
      %2476 = vmatprep.subr.mxu0 0.0
      %2477 = vmatpush2.msra.mxu0 0.0
      %2478 = vmatprep.subr.mxu0 0.0
      %2479 = vmatpush2.msra.mxu0 0.0
      %2480 = vmatprep.subr.mxu0 0.0
      %2481 = vmatpush2.msra.mxu0 0.0
      %2482 = vmatprep.subr.mxu0 0.0
      %2483 = vmatpush2.msra.mxu0 0.0
      %2484 = vmatprep.subr.mxu0 0.0
      %2485 = vmatpush2.msra.mxu0 0.0
      %2486 = vmatprep.subr.mxu0 0.0
      %2487 = vmatpush2.msra.mxu0 0.0
      %2488 = vmatprep.subr.mxu0 0.0
      %2489 = vmatpush2.msra.mxu0 0.0
      %2490 = vmatprep.subr.mxu0 0.0
      %2491 = vmatpush2.msra.mxu0 0.0
      %2492 = vmatprep.mubr.f32.mxu0 0.0
      %2493 = vmatmul.mubr.f32.gmra.mxu0 %v1779
      %v2494 = vpop.f32.mrf.mxu0
      %v2495 = vadd.f32 0.0, %v2494
      %v2496 = vpop.f32.mrf.mxu0
      %2497 = vdwg.mxu0
      %2498 = vmatprep.subr.mxu0 0.0
      %2499 = vmatpush1.msra.mxu0 0.0
      %2500 = vmatprep.subr.mxu0 0.0
      %2501 = vmatpush1.msra.mxu0 0.0
      %2502 = vmatprep.subr.mxu0 0.0
      %2503 = vmatpush1.msra.mxu0 0.0
      %2504 = vmatprep.subr.mxu0 0.0
      %2505 = vmatpush1.msra.mxu0 0.0
      %2506 = vmatprep.subr.mxu0 0.0
      %2507 = vmatpush1.msra.mxu0 0.0
      %2508 = vmatprep.subr.mxu0 0.0
      %2509 = vmatpush1.msra.mxu0 0.0
      %2510 = vmatprep.subr.mxu0 0.0
      %2511 = vmatpush1.msra.mxu0 0.0
      %2512 = vmatprep.subr.mxu0 0.0
      %2513 = vmatpush1.msra.mxu0 0.0
      %2514 = vmatprep.subr.mxu0 0.0
      %2515 = vmatpush1.msra.mxu0 0.0
      %2516 = vmatprep.subr.mxu0 0.0
      %2517 = vmatpush1.msra.mxu0 0.0
      %2518 = vmatprep.subr.mxu0 0.0
      %2519 = vmatpush1.msra.mxu0 0.0
      %2520 = vmatprep.subr.mxu0 0.0
      %2521 = vmatpush1.msra.mxu0 0.0
      %2522 = vmatprep.subr.mxu0 0.0
      %2523 = vmatpush1.msra.mxu0 0.0
      %2524 = vmatprep.subr.mxu0 0.0
      %2525 = vmatpush1.msra.mxu0 0.0
      %2526 = vmatprep.subr.mxu0 0.0
      %2527 = vmatpush1.msra.mxu0 0.0
      %2528 = vmatprep.subr.mxu0 0.0
      %2529 = vmatpush1.msra.mxu0 %v1026
      %2530 = vmatprep.subr.mxu0 0.0
      %2531 = vmatpush2.msra.mxu0 0.0
      %2532 = vmatprep.subr.mxu0 0.0
      %2533 = vmatpush2.msra.mxu0 0.0
      %2534 = vmatprep.subr.mxu0 0.0
      %2535 = vmatpush2.msra.mxu0 0.0
      %2536 = vmatprep.subr.mxu0 0.0
      %2537 = vmatpush2.msra.mxu0 0.0
      %2538 = vmatprep.subr.mxu0 0.0
      %2539 = vmatpush2.msra.mxu0 0.0
      %2540 = vmatprep.subr.mxu0 0.0
      %2541 = vmatpush2.msra.mxu0 0.0
      %2542 = vmatprep.subr.mxu0 0.0
      %2543 = vmatpush2.msra.mxu0 0.0
      %2544 = vmatprep.subr.mxu0 0.0
      %2545 = vmatpush2.msra.mxu0 0.0
      %2546 = vmatprep.subr.mxu0 0.0
      %2547 = vmatpush2.msra.mxu0 0.0
      %2548 = vmatprep.subr.mxu0 0.0
      %2549 = vmatpush2.msra.mxu0 0.0
      %2550 = vmatprep.subr.mxu0 0.0
      %2551 = vmatpush2.msra.mxu0 0.0
      %2552 = vmatprep.subr.mxu0 0.0
      %2553 = vmatpush2.msra.mxu0 0.0
      %2554 = vmatprep.subr.mxu0 0.0
      %2555 = vmatpush2.msra.mxu0 0.0
      %2556 = vmatprep.subr.mxu0 0.0
      %2557 = vmatpush2.msra.mxu0 0.0
      %2558 = vmatprep.subr.mxu0 0.0
      %2559 = vmatpush2.msra.mxu0 0.0
      %2560 = vmatprep.subr.mxu0 0.0
      %2561 = vmatpush2.msra.mxu0 0.0
      %2562 = vmatprep.mubr.f32.mxu0 0.0
      %2563 = vmatmul.mubr.f32.gmra.mxu0 %v1887
      %v2564 = vpop.f32.mrf.mxu0
      %v2565 = vadd.f32 0.0, %v2564
      %v2566 = vpop.f32.mrf.mxu0
      %2567 = vdwg.mxu0
      %2568 = vmatprep.subr.mxu0 0.0
      %2569 = vmatpush1.msra.mxu0 0.0
      %2570 = vmatprep.subr.mxu0 0.0
      %2571 = vmatpush1.msra.mxu0 0.0
      %2572 = vmatprep.subr.mxu0 0.0
      %2573 = vmatpush1.msra.mxu0 0.0
      %2574 = vmatprep.subr.mxu0 0.0
      %2575 = vmatpush1.msra.mxu0 0.0
      %2576 = vmatprep.subr.mxu0 0.0
      %2577 = vmatpush1.msra.mxu0 0.0
      %2578 = vmatprep.subr.mxu0 0.0
      %2579 = vmatpush1.msra.mxu0 0.0
      %2580 = vmatprep.subr.mxu0 0.0
      %2581 = vmatpush1.msra.mxu0 0.0
      %2582 = vmatprep.subr.mxu0 0.0
      %2583 = vmatpush1.msra.mxu0 0.0
      %2584 = vmatprep.subr.mxu0 0.0
      %2585 = vmatpush1.msra.mxu0 0.0
      %2586 = vmatprep.subr.mxu0 0.0
      %2587 = vmatpush1.msra.mxu0 0.0
      %2588 = vmatprep.subr.mxu0 0.0
      %2589 = vmatpush1.msra.mxu0 0.0
      %2590 = vmatprep.subr.mxu0 0.0
      %2591 = vmatpush1.msra.mxu0 0.0
      %2592 = vmatprep.subr.mxu0 0.0
      %2593 = vmatpush1.msra.mxu0 0.0
      %2594 = vmatprep.subr.mxu0 0.0
      %2595 = vmatpush1.msra.mxu0 0.0
      %2596 = vmatprep.subr.mxu0 0.0
      %2597 = vmatpush1.msra.mxu0 0.0
      %2598 = vmatprep.subr.mxu0 0.0
      %2599 = vmatpush1.msra.mxu0 %v1134
      %2600 = vmatprep.subr.mxu0 0.0
      %2601 = vmatpush2.msra.mxu0 0.0
      %2602 = vmatprep.subr.mxu0 0.0
      %2603 = vmatpush2.msra.mxu0 0.0
      %2604 = vmatprep.subr.mxu0 0.0
      %2605 = vmatpush2.msra.mxu0 0.0
      %2606 = vmatprep.subr.mxu0 0.0
      %2607 = vmatpush2.msra.mxu0 0.0
      %2608 = vmatprep.subr.mxu0 0.0
      %2609 = vmatpush2.msra.mxu0 0.0
      %2610 = vmatprep.subr.mxu0 0.0
      %2611 = vmatpush2.msra.mxu0 0.0
      %2612 = vmatprep.subr.mxu0 0.0
      %2613 = vmatpush2.msra.mxu0 0.0
      %2614 = vmatprep.subr.mxu0 0.0
      %2615 = vmatpush2.msra.mxu0 0.0
      %2616 = vmatprep.subr.mxu0 0.0
      %2617 = vmatpush2.msra.mxu0 0.0
      %2618 = vmatprep.subr.mxu0 0.0
      %2619 = vmatpush2.msra.mxu0 0.0
      %2620 = vmatprep.subr.mxu0 0.0
      %2621 = vmatpush2.msra.mxu0 0.0
      %2622 = vmatprep.subr.mxu0 0.0
      %2623 = vmatpush2.msra.mxu0 0.0
      %2624 = vmatprep.subr.mxu0 0.0
      %2625 = vmatpush2.msra.mxu0 0.0
      %2626 = vmatprep.subr.mxu0 0.0
      %2627 = vmatpush2.msra.mxu0 0.0
      %2628 = vmatprep.subr.mxu0 0.0
      %2629 = vmatpush2.msra.mxu0 0.0
      %2630 = vmatprep.subr.mxu0 0.0
      %2631 = vmatpush2.msra.mxu0 0.0
      %2632 = vmatprep.mubr.f32.mxu0 0.0
      %2633 = vmatmul.mubr.f32.gmra.mxu0 %v1995
      %v2634 = vpop.f32.mrf.mxu0
      %v2635 = vadd.f32 0.0, %v2634
      %v2636 = vpop.f32.mrf.mxu0
      %2637 = vdwg.mxu0
      %2638 = vmatprep.subr.mxu0 0.0
      %2639 = vmatpush1.msra.mxu0 0.0
      %2640 = vmatprep.subr.mxu0 0.0
      %2641 = vmatpush1.msra.mxu0 0.0
      %2642 = vmatprep.subr.mxu0 0.0
      %2643 = vmatpush1.msra.mxu0 0.0
      %2644 = vmatprep.subr.mxu0 0.0
      %2645 = vmatpush1.msra.mxu0 0.0
      %2646 = vmatprep.subr.mxu0 0.0
      %2647 = vmatpush1.msra.mxu0 0.0
      %2648 = vmatprep.subr.mxu0 0.0
      %2649 = vmatpush1.msra.mxu0 0.0
      %2650 = vmatprep.subr.mxu0 0.0
      %2651 = vmatpush1.msra.mxu0 0.0
      %2652 = vmatprep.subr.mxu0 0.0
      %2653 = vmatpush1.msra.mxu0 0.0
      %2654 = vmatprep.subr.mxu0 0.0
      %2655 = vmatpush1.msra.mxu0 0.0
      %2656 = vmatprep.subr.mxu0 0.0
      %2657 = vmatpush1.msra.mxu0 0.0
      %2658 = vmatprep.subr.mxu0 0.0
      %2659 = vmatpush1.msra.mxu0 0.0
      %2660 = vmatprep.subr.mxu0 0.0
      %2661 = vmatpush1.msra.mxu0 0.0
      %2662 = vmatprep.subr.mxu0 0.0
      %2663 = vmatpush1.msra.mxu0 0.0
      %2664 = vmatprep.subr.mxu0 0.0
      %2665 = vmatpush1.msra.mxu0 0.0
      %2666 = vmatprep.subr.mxu0 0.0
      %2667 = vmatpush1.msra.mxu0 0.0
      %2668 = vmatprep.subr.mxu0 0.0
      %2669 = vmatpush1.msra.mxu0 %v1242
      %2670 = vmatprep.subr.mxu0 0.0
      %2671 = vmatpush2.msra.mxu0 0.0
      %2672 = vmatprep.subr.mxu0 0.0
      %2673 = vmatpush2.msra.mxu0 0.0
      %2674 = vmatprep.subr.mxu0 0.0
      %2675 = vmatpush2.msra.mxu0 0.0
      %2676 = vmatprep.subr.mxu0 0.0
      %2677 = vmatpush2.msra.mxu0 0.0
      %2678 = vmatprep.subr.mxu0 0.0
      %2679 = vmatpush2.msra.mxu0 0.0
      %2680 = vmatprep.subr.mxu0 0.0
      %2681 = vmatpush2.msra.mxu0 0.0
      %2682 = vmatprep.subr.mxu0 0.0
      %2683 = vmatpush2.msra.mxu0 0.0
      %2684 = vmatprep.subr.mxu0 0.0
      %2685 = vmatpush2.msra.mxu0 0.0
      %2686 = vmatprep.subr.mxu0 0.0
      %2687 = vmatpush2.msra.mxu0 0.0
      %2688 = vmatprep.subr.mxu0 0.0
      %2689 = vmatpush2.msra.mxu0 0.0
      %2690 = vmatprep.subr.mxu0 0.0
      %2691 = vmatpush2.msra.mxu0 0.0
      %2692 = vmatprep.subr.mxu0 0.0
      %2693 = vmatpush2.msra.mxu0 0.0
      %2694 = vmatprep.subr.mxu0 0.0
      %2695 = vmatpush2.msra.mxu0 0.0
      %2696 = vmatprep.subr.mxu0 0.0
      %2697 = vmatpush2.msra.mxu0 0.0
      %2698 = vmatprep.subr.mxu0 0.0
      %2699 = vmatpush2.msra.mxu0 0.0
      %2700 = vmatprep.subr.mxu0 0.0
      %2701 = vmatpush2.msra.mxu0 0.0
      %2702 = vmatprep.mubr.f32.mxu0 0.0
      %2703 = vmatmul.mubr.f32.gmra.mxu0 %v374
      %v2704 = vpop.f32.mrf.mxu0
      %v2705 = vadd.f32 %v2145, %v2704
      %v2706 = vpop.f32.mrf.mxu0
      %2707 = vdwg.mxu0
      %2708 = vmatprep.subr.mxu0 0.0
      %2709 = vmatpush1.msra.mxu0 0.0
      %2710 = vmatprep.subr.mxu0 0.0
      %2711 = vmatpush1.msra.mxu0 0.0
      %2712 = vmatprep.subr.mxu0 0.0
      %2713 = vmatpush1.msra.mxu0 0.0
      %2714 = vmatprep.subr.mxu0 0.0
      %2715 = vmatpush1.msra.mxu0 0.0
      %2716 = vmatprep.subr.mxu0 0.0
      %2717 = vmatpush1.msra.mxu0 0.0
      %2718 = vmatprep.subr.mxu0 0.0
      %2719 = vmatpush1.msra.mxu0 0.0
      %2720 = vmatprep.subr.mxu0 0.0
      %2721 = vmatpush1.msra.mxu0 0.0
      %2722 = vmatprep.subr.mxu0 0.0
      %2723 = vmatpush1.msra.mxu0 0.0
      %2724 = vmatprep.subr.mxu0 0.0
      %2725 = vmatpush1.msra.mxu0 0.0
      %2726 = vmatprep.subr.mxu0 0.0
      %2727 = vmatpush1.msra.mxu0 0.0
      %2728 = vmatprep.subr.mxu0 0.0
      %2729 = vmatpush1.msra.mxu0 0.0
      %2730 = vmatprep.subr.mxu0 0.0
      %2731 = vmatpush1.msra.mxu0 0.0
      %2732 = vmatprep.subr.mxu0 0.0
      %2733 = vmatpush1.msra.mxu0 0.0
      %2734 = vmatprep.subr.mxu0 0.0
      %2735 = vmatpush1.msra.mxu0 0.0
      %2736 = vmatprep.subr.mxu0 0.0
      %2737 = vmatpush1.msra.mxu0 0.0
      %2738 = vmatprep.subr.mxu0 0.0
      %2739 = vmatpush1.msra.mxu0 %v1350
      %2740 = vmatprep.subr.mxu0 0.0
      %2741 = vmatpush2.msra.mxu0 0.0
      %2742 = vmatprep.subr.mxu0 0.0
      %2743 = vmatpush2.msra.mxu0 0.0
      %2744 = vmatprep.subr.mxu0 0.0
      %2745 = vmatpush2.msra.mxu0 0.0
      %2746 = vmatprep.subr.mxu0 0.0
      %2747 = vmatpush2.msra.mxu0 0.0
      %2748 = vmatprep.subr.mxu0 0.0
      %2749 = vmatpush2.msra.mxu0 0.0
      %2750 = vmatprep.subr.mxu0 0.0
      %2751 = vmatpush2.msra.mxu0 0.0
      %2752 = vmatprep.subr.mxu0 0.0
      %2753 = vmatpush2.msra.mxu0 0.0
      %2754 = vmatprep.subr.mxu0 0.0
      %2755 = vmatpush2.msra.mxu0 0.0
      %2756 = vmatprep.subr.mxu0 0.0
      %2757 = vmatpush2.msra.mxu0 0.0
      %2758 = vmatprep.subr.mxu0 0.0
      %2759 = vmatpush2.msra.mxu0 0.0
      %2760 = vmatprep.subr.mxu0 0.0
      %2761 = vmatpush2.msra.mxu0 0.0
      %2762 = vmatprep.subr.mxu0 0.0
      %2763 = vmatpush2.msra.mxu0 0.0
      %2764 = vmatprep.subr.mxu0 0.0
      %2765 = vmatpush2.msra.mxu0 0.0
      %2766 = vmatprep.subr.mxu0 0.0
      %2767 = vmatpush2.msra.mxu0 0.0
      %2768 = vmatprep.subr.mxu0 0.0
      %2769 = vmatpush2.msra.mxu0 0.0
      %2770 = vmatprep.subr.mxu0 0.0
      %2771 = vmatpush2.msra.mxu0 0.0
      %2772 = vmatprep.mubr.f32.mxu0 0.0
      %2773 = vmatmul.mubr.f32.gmra.mxu0 %v483
      %v2774 = vpop.f32.mrf.mxu0
      %v2775 = vadd.f32 %v2215, %v2774
      %v2776 = vpop.f32.mrf.mxu0
      %2777 = vdwg.mxu0
      %2778 = vmatprep.subr.mxu0 0.0
      %2779 = vmatpush1.msra.mxu0 0.0
      %2780 = vmatprep.subr.mxu0 0.0
      %2781 = vmatpush1.msra.mxu0 0.0
      %2782 = vmatprep.subr.mxu0 0.0
      %2783 = vmatpush1.msra.mxu0 0.0
      %2784 = vmatprep.subr.mxu0 0.0
      %2785 = vmatpush1.msra.mxu0 0.0
      %2786 = vmatprep.subr.mxu0 0.0
      %2787 = vmatpush1.msra.mxu0 0.0
      %2788 = vmatprep.subr.mxu0 0.0
      %2789 = vmatpush1.msra.mxu0 0.0
      %2790 = vmatprep.subr.mxu0 0.0
      %2791 = vmatpush1.msra.mxu0 0.0
      %2792 = vmatprep.subr.mxu0 0.0
      %2793 = vmatpush1.msra.mxu0 0.0
      %2794 = vmatprep.subr.mxu0 0.0
      %2795 = vmatpush1.msra.mxu0 0.0
      %2796 = vmatprep.subr.mxu0 0.0
      %2797 = vmatpush1.msra.mxu0 0.0
      %2798 = vmatprep.subr.mxu0 0.0
      %2799 = vmatpush1.msra.mxu0 0.0
      %2800 = vmatprep.subr.mxu0 0.0
      %2801 = vmatpush1.msra.mxu0 0.0
      %2802 = vmatprep.subr.mxu0 0.0
      %2803 = vmatpush1.msra.mxu0 0.0
      %2804 = vmatprep.subr.mxu0 0.0
      %2805 = vmatpush1.msra.mxu0 0.0
      %2806 = vmatprep.subr.mxu0 0.0
      %2807 = vmatpush1.msra.mxu0 0.0
      %2808 = vmatprep.subr.mxu0 0.0
      %2809 = vmatpush1.msra.mxu0 %v1458
      %2810 = vmatprep.subr.mxu0 0.0
      %2811 = vmatpush2.msra.mxu0 0.0
      %2812 = vmatprep.subr.mxu0 0.0
      %2813 = vmatpush2.msra.mxu0 0.0
      %2814 = vmatprep.subr.mxu0 0.0
      %2815 = vmatpush2.msra.mxu0 0.0
      %2816 = vmatprep.subr.mxu0 0.0
      %2817 = vmatpush2.msra.mxu0 0.0
      %2818 = vmatprep.subr.mxu0 0.0
      %2819 = vmatpush2.msra.mxu0 0.0
      %2820 = vmatprep.subr.mxu0 0.0
      %2821 = vmatpush2.msra.mxu0 0.0
      %2822 = vmatprep.subr.mxu0 0.0
      %2823 = vmatpush2.msra.mxu0 0.0
      %2824 = vmatprep.subr.mxu0 0.0
      %2825 = vmatpush2.msra.mxu0 0.0
      %2826 = vmatprep.subr.mxu0 0.0
      %2827 = vmatpush2.msra.mxu0 0.0
      %2828 = vmatprep.subr.mxu0 0.0
      %2829 = vmatpush2.msra.mxu0 0.0
      %2830 = vmatprep.subr.mxu0 0.0
      %2831 = vmatpush2.msra.mxu0 0.0
      %2832 = vmatprep.subr.mxu0 0.0
      %2833 = vmatpush2.msra.mxu0 0.0
      %2834 = vmatprep.subr.mxu0 0.0
      %2835 = vmatpush2.msra.mxu0 0.0
      %2836 = vmatprep.subr.mxu0 0.0
      %2837 = vmatpush2.msra.mxu0 0.0
      %2838 = vmatprep.subr.mxu0 0.0
      %2839 = vmatpush2.msra.mxu0 0.0
      %2840 = vmatprep.subr.mxu0 0.0
      %2841 = vmatpush2.msra.mxu0 0.0
      %2842 = vmatprep.mubr.f32.mxu0 0.0
      %2843 = vmatmul.mubr.f32.gmra.mxu0 %v591
      %v2844 = vpop.f32.mrf.mxu0
      %v2845 = vadd.f32 %v2285, %v2844
      %v2846 = vpop.f32.mrf.mxu0
      %2847 = vdwg.mxu0
      %2848 = vmatprep.subr.mxu0 0.0
      %2849 = vmatpush1.msra.mxu0 0.0
      %2850 = vmatprep.subr.mxu0 0.0
      %2851 = vmatpush1.msra.mxu0 0.0
      %2852 = vmatprep.subr.mxu0 0.0
      %2853 = vmatpush1.msra.mxu0 0.0
      %2854 = vmatprep.subr.mxu0 0.0
      %2855 = vmatpush1.msra.mxu0 0.0
      %2856 = vmatprep.subr.mxu0 0.0
      %2857 = vmatpush1.msra.mxu0 0.0
      %2858 = vmatprep.subr.mxu0 0.0
      %2859 = vmatpush1.msra.mxu0 0.0
      %2860 = vmatprep.subr.mxu0 0.0
      %2861 = vmatpush1.msra.mxu0 0.0
      %2862 = vmatprep.subr.mxu0 0.0
      %2863 = vmatpush1.msra.mxu0 0.0
      %2864 = vmatprep.subr.mxu0 0.0
      %2865 = vmatpush1.msra.mxu0 0.0
      %2866 = vmatprep.subr.mxu0 0.0
      %2867 = vmatpush1.msra.mxu0 0.0
      %2868 = vmatprep.subr.mxu0 0.0
      %2869 = vmatpush1.msra.mxu0 0.0
      %2870 = vmatprep.subr.mxu0 0.0
      %2871 = vmatpush1.msra.mxu0 0.0
      %2872 = vmatprep.subr.mxu0 0.0
      %2873 = vmatpush1.msra.mxu0 0.0
      %2874 = vmatprep.subr.mxu0 0.0
      %2875 = vmatpush1.msra.mxu0 0.0
      %2876 = vmatprep.subr.mxu0 0.0
      %2877 = vmatpush1.msra.mxu0 0.0
      %2878 = vmatprep.subr.mxu0 0.0
      %2879 = vmatpush1.msra.mxu0 %v1566
      %2880 = vmatprep.subr.mxu0 0.0
      %2881 = vmatpush2.msra.mxu0 0.0
      %2882 = vmatprep.subr.mxu0 0.0
      %2883 = vmatpush2.msra.mxu0 0.0
      %2884 = vmatprep.subr.mxu0 0.0
      %2885 = vmatpush2.msra.mxu0 0.0
      %2886 = vmatprep.subr.mxu0 0.0
      %2887 = vmatpush2.msra.mxu0 0.0
      %2888 = vmatprep.subr.mxu0 0.0
      %2889 = vmatpush2.msra.mxu0 0.0
      %2890 = vmatprep.subr.mxu0 0.0
      %2891 = vmatpush2.msra.mxu0 0.0
      %2892 = vmatprep.subr.mxu0 0.0
      %2893 = vmatpush2.msra.mxu0 0.0
      %2894 = vmatprep.subr.mxu0 0.0
      %2895 = vmatpush2.msra.mxu0 0.0
      %2896 = vmatprep.subr.mxu0 0.0
      %2897 = vmatpush2.msra.mxu0 0.0
      %2898 = vmatprep.subr.mxu0 0.0
      %2899 = vmatpush2.msra.mxu0 0.0
      %2900 = vmatprep.subr.mxu0 0.0
      %2901 = vmatpush2.msra.mxu0 0.0
      %2902 = vmatprep.subr.mxu0 0.0
      %2903 = vmatpush2.msra.mxu0 0.0
      %2904 = vmatprep.subr.mxu0 0.0
      %2905 = vmatpush2.msra.mxu0 0.0
      %2906 = vmatprep.subr.mxu0 0.0
      %2907 = vmatpush2.msra.mxu0 0.0
      %2908 = vmatprep.subr.mxu0 0.0
      %2909 = vmatpush2.msra.mxu0 0.0
      %2910 = vmatprep.subr.mxu0 0.0
      %2911 = vmatpush2.msra.mxu0 0.0
      %2912 = vmatprep.mubr.f32.mxu0 0.0
      %2913 = vmatmul.mubr.f32.gmra.mxu0 %v699
      %v2914 = vpop.f32.mrf.mxu0
      %v2915 = vadd.f32 %v2355, %v2914
      %v2916 = vpop.f32.mrf.mxu0
      %2917 = vdwg.mxu0
      %2918 = vmatprep.subr.mxu0 0.0
      %2919 = vmatpush1.msra.mxu0 0.0
      %2920 = vmatprep.subr.mxu0 0.0
      %2921 = vmatpush1.msra.mxu0 0.0
      %2922 = vmatprep.subr.mxu0 0.0
      %2923 = vmatpush1.msra.mxu0 0.0
      %2924 = vmatprep.subr.mxu0 0.0
      %2925 = vmatpush1.msra.mxu0 0.0
      %2926 = vmatprep.subr.mxu0 0.0
      %2927 = vmatpush1.msra.mxu0 0.0
      %2928 = vmatprep.subr.mxu0 0.0
      %2929 = vmatpush1.msra.mxu0 0.0
      %2930 = vmatprep.subr.mxu0 0.0
      %2931 = vmatpush1.msra.mxu0 0.0
      %2932 = vmatprep.subr.mxu0 0.0
      %2933 = vmatpush1.msra.mxu0 0.0
      %2934 = vmatprep.subr.mxu0 0.0
      %2935 = vmatpush1.msra.mxu0 0.0
      %2936 = vmatprep.subr.mxu0 0.0
      %2937 = vmatpush1.msra.mxu0 0.0
      %2938 = vmatprep.subr.mxu0 0.0
      %2939 = vmatpush1.msra.mxu0 0.0
      %2940 = vmatprep.subr.mxu0 0.0
      %2941 = vmatpush1.msra.mxu0 0.0
      %2942 = vmatprep.subr.mxu0 0.0
      %2943 = vmatpush1.msra.mxu0 0.0
      %2944 = vmatprep.subr.mxu0 0.0
      %2945 = vmatpush1.msra.mxu0 0.0
      %2946 = vmatprep.subr.mxu0 0.0
      %2947 = vmatpush1.msra.mxu0 0.0
      %2948 = vmatprep.subr.mxu0 0.0
      %2949 = vmatpush1.msra.mxu0 %v1674
      %2950 = vmatprep.subr.mxu0 0.0
      %2951 = vmatpush2.msra.mxu0 0.0
      %2952 = vmatprep.subr.mxu0 0.0
      %2953 = vmatpush2.msra.mxu0 0.0
      %2954 = vmatprep.subr.mxu0 0.0
      %2955 = vmatpush2.msra.mxu0 0.0
      %2956 = vmatprep.subr.mxu0 0.0
      %2957 = vmatpush2.msra.mxu0 0.0
      %2958 = vmatprep.subr.mxu0 0.0
      %2959 = vmatpush2.msra.mxu0 0.0
      %2960 = vmatprep.subr.mxu0 0.0
      %2961 = vmatpush2.msra.mxu0 0.0
      %2962 = vmatprep.subr.mxu0 0.0
      %2963 = vmatpush2.msra.mxu0 0.0
      %2964 = vmatprep.subr.mxu0 0.0
      %2965 = vmatpush2.msra.mxu0 0.0
      %2966 = vmatprep.subr.mxu0 0.0
      %2967 = vmatpush2.msra.mxu0 0.0
      %2968 = vmatprep.subr.mxu0 0.0
      %2969 = vmatpush2.msra.mxu0 0.0
      %2970 = vmatprep.subr.mxu0 0.0
      %2971 = vmatpush2.msra.mxu0 0.0
      %2972 = vmatprep.subr.mxu0 0.0
      %2973 = vmatpush2.msra.mxu0 0.0
      %2974 = vmatprep.subr.mxu0 0.0
      %2975 = vmatpush2.msra.mxu0 0.0
      %2976 = vmatprep.subr.mxu0 0.0
      %2977 = vmatpush2.msra.mxu0 0.0
      %2978 = vmatprep.subr.mxu0 0.0
      %2979 = vmatpush2.msra.mxu0 0.0
      %2980 = vmatprep.subr.mxu0 0.0
      %2981 = vmatpush2.msra.mxu0 0.0
      %2982 = vmatprep.mubr.f32.mxu0 0.0
      %2983 = vmatmul.mubr.f32.gmra.mxu0 %v807
      %v2984 = vpop.f32.mrf.mxu0
      %v2985 = vadd.f32 %v2425, %v2984
      %v2986 = vpop.f32.mrf.mxu0
      %2987 = vdwg.mxu0
      %2988 = vmatprep.subr.mxu0 0.0
      %2989 = vmatpush1.msra.mxu0 0.0
      %2990 = vmatprep.subr.mxu0 0.0
      %2991 = vmatpush1.msra.mxu0 0.0
      %2992 = vmatprep.subr.mxu0 0.0
      %2993 = vmatpush1.msra.mxu0 0.0
      %2994 = vmatprep.subr.mxu0 0.0
      %2995 = vmatpush1.msra.mxu0 0.0
      %2996 = vmatprep.subr.mxu0 0.0
      %2997 = vmatpush1.msra.mxu0 0.0
      %2998 = vmatprep.subr.mxu0 0.0
      %2999 = vmatpush1.msra.mxu0 0.0
      %3000 = vmatprep.subr.mxu0 0.0
      %3001 = vmatpush1.msra.mxu0 0.0
      %3002 = vmatprep.subr.mxu0 0.0
      %3003 = vmatpush1.msra.mxu0 0.0
      %3004 = vmatprep.subr.mxu0 0.0
      %3005 = vmatpush1.msra.mxu0 0.0
      %3006 = vmatprep.subr.mxu0 0.0
      %3007 = vmatpush1.msra.mxu0 0.0
      %3008 = vmatprep.subr.mxu0 0.0
      %3009 = vmatpush1.msra.mxu0 0.0
      %3010 = vmatprep.subr.mxu0 0.0
      %3011 = vmatpush1.msra.mxu0 0.0
      %3012 = vmatprep.subr.mxu0 0.0
      %3013 = vmatpush1.msra.mxu0 0.0
      %3014 = vmatprep.subr.mxu0 0.0
      %3015 = vmatpush1.msra.mxu0 0.0
      %3016 = vmatprep.subr.mxu0 0.0
      %3017 = vmatpush1.msra.mxu0 0.0
      %3018 = vmatprep.subr.mxu0 0.0
      %3019 = vmatpush1.msra.mxu0 %v1782
      %3020 = vmatprep.subr.mxu0 0.0
      %3021 = vmatpush2.msra.mxu0 0.0
      %3022 = vmatprep.subr.mxu0 0.0
      %3023 = vmatpush2.msra.mxu0 0.0
      %3024 = vmatprep.subr.mxu0 0.0
      %3025 = vmatpush2.msra.mxu0 0.0
      %3026 = vmatprep.subr.mxu0 0.0
      %3027 = vmatpush2.msra.mxu0 0.0
      %3028 = vmatprep.subr.mxu0 0.0
      %3029 = vmatpush2.msra.mxu0 0.0
      %3030 = vmatprep.subr.mxu0 0.0
      %3031 = vmatpush2.msra.mxu0 0.0
      %3032 = vmatprep.subr.mxu0 0.0
      %3033 = vmatpush2.msra.mxu0 0.0
      %3034 = vmatprep.subr.mxu0 0.0
      %3035 = vmatpush2.msra.mxu0 0.0
      %3036 = vmatprep.subr.mxu0 0.0
      %3037 = vmatpush2.msra.mxu0 0.0
      %3038 = vmatprep.subr.mxu0 0.0
      %3039 = vmatpush2.msra.mxu0 0.0
      %3040 = vmatprep.subr.mxu0 0.0
      %3041 = vmatpush2.msra.mxu0 0.0
      %3042 = vmatprep.subr.mxu0 0.0
      %3043 = vmatpush2.msra.mxu0 0.0
      %3044 = vmatprep.subr.mxu0 0.0
      %3045 = vmatpush2.msra.mxu0 0.0
      %3046 = vmatprep.subr.mxu0 0.0
      %3047 = vmatpush2.msra.mxu0 0.0
      %3048 = vmatprep.subr.mxu0 0.0
      %3049 = vmatpush2.msra.mxu0 0.0
      %3050 = vmatprep.subr.mxu0 0.0
      %3051 = vmatpush2.msra.mxu0 0.0
      %3052 = vmatprep.mubr.f32.mxu0 0.0
      %3053 = vmatmul.mubr.f32.gmra.mxu0 %v915
      %v3054 = vpop.f32.mrf.mxu0
      %v3055 = vadd.f32 %v2495, %v3054
      %v3056 = vpop.f32.mrf.mxu0
      %3057 = vdwg.mxu0
      %3058 = vmatprep.subr.mxu0 0.0
      %3059 = vmatpush1.msra.mxu0 0.0
      %3060 = vmatprep.subr.mxu0 0.0
      %3061 = vmatpush1.msra.mxu0 0.0
      %3062 = vmatprep.subr.mxu0 0.0
      %3063 = vmatpush1.msra.mxu0 0.0
      %3064 = vmatprep.subr.mxu0 0.0
      %3065 = vmatpush1.msra.mxu0 0.0
      %3066 = vmatprep.subr.mxu0 0.0
      %3067 = vmatpush1.msra.mxu0 0.0
      %3068 = vmatprep.subr.mxu0 0.0
      %3069 = vmatpush1.msra.mxu0 0.0
      %3070 = vmatprep.subr.mxu0 0.0
      %3071 = vmatpush1.msra.mxu0 0.0
      %3072 = vmatprep.subr.mxu0 0.0
      %3073 = vmatpush1.msra.mxu0 0.0
      %3074 = vmatprep.subr.mxu0 0.0
      %3075 = vmatpush1.msra.mxu0 0.0
      %3076 = vmatprep.subr.mxu0 0.0
      %3077 = vmatpush1.msra.mxu0 0.0
      %3078 = vmatprep.subr.mxu0 0.0
      %3079 = vmatpush1.msra.mxu0 0.0
      %3080 = vmatprep.subr.mxu0 0.0
      %3081 = vmatpush1.msra.mxu0 0.0
      %3082 = vmatprep.subr.mxu0 0.0
      %3083 = vmatpush1.msra.mxu0 0.0
      %3084 = vmatprep.subr.mxu0 0.0
      %3085 = vmatpush1.msra.mxu0 0.0
      %3086 = vmatprep.subr.mxu0 0.0
      %3087 = vmatpush1.msra.mxu0 0.0
      %3088 = vmatprep.subr.mxu0 0.0
      %3089 = vmatpush1.msra.mxu0 %v1890
      %3090 = vmatprep.subr.mxu0 0.0
      %3091 = vmatpush2.msra.mxu0 0.0
      %3092 = vmatprep.subr.mxu0 0.0
      %3093 = vmatpush2.msra.mxu0 0.0
      %3094 = vmatprep.subr.mxu0 0.0
      %3095 = vmatpush2.msra.mxu0 0.0
      %3096 = vmatprep.subr.mxu0 0.0
      %3097 = vmatpush2.msra.mxu0 0.0
      %3098 = vmatprep.subr.mxu0 0.0
      %3099 = vmatpush2.msra.mxu0 0.0
      %3100 = vmatprep.subr.mxu0 0.0
      %3101 = vmatpush2.msra.mxu0 0.0
      %3102 = vmatprep.subr.mxu0 0.0
      %3103 = vmatpush2.msra.mxu0 0.0
      %3104 = vmatprep.subr.mxu0 0.0
      %3105 = vmatpush2.msra.mxu0 0.0
      %3106 = vmatprep.subr.mxu0 0.0
      %3107 = vmatpush2.msra.mxu0 0.0
      %3108 = vmatprep.subr.mxu0 0.0
      %3109 = vmatpush2.msra.mxu0 0.0
      %3110 = vmatprep.subr.mxu0 0.0
      %3111 = vmatpush2.msra.mxu0 0.0
      %3112 = vmatprep.subr.mxu0 0.0
      %3113 = vmatpush2.msra.mxu0 0.0
      %3114 = vmatprep.subr.mxu0 0.0
      %3115 = vmatpush2.msra.mxu0 0.0
      %3116 = vmatprep.subr.mxu0 0.0
      %3117 = vmatpush2.msra.mxu0 0.0
      %3118 = vmatprep.subr.mxu0 0.0
      %3119 = vmatpush2.msra.mxu0 0.0
      %3120 = vmatprep.subr.mxu0 0.0
      %3121 = vmatpush2.msra.mxu0 0.0
      %3122 = vmatprep.mubr.f32.mxu0 0.0
      %3123 = vmatmul.mubr.f32.gmra.mxu0 %v1023
      %v3124 = vpop.f32.mrf.mxu0
      %v3125 = vadd.f32 %v2565, %v3124
      %v3126 = vpop.f32.mrf.mxu0
      %3127 = vdwg.mxu0
      %3128 = vmatprep.subr.mxu0 0.0
      %3129 = vmatpush1.msra.mxu0 0.0
      %3130 = vmatprep.subr.mxu0 0.0
      %3131 = vmatpush1.msra.mxu0 0.0
      %3132 = vmatprep.subr.mxu0 0.0
      %3133 = vmatpush1.msra.mxu0 0.0
      %3134 = vmatprep.subr.mxu0 0.0
      %3135 = vmatpush1.msra.mxu0 0.0
      %3136 = vmatprep.subr.mxu0 0.0
      %3137 = vmatpush1.msra.mxu0 0.0
      %3138 = vmatprep.subr.mxu0 0.0
      %3139 = vmatpush1.msra.mxu0 0.0
      %3140 = vmatprep.subr.mxu0 0.0
      %3141 = vmatpush1.msra.mxu0 0.0
      %3142 = vmatprep.subr.mxu0 0.0
      %3143 = vmatpush1.msra.mxu0 0.0
      %3144 = vmatprep.subr.mxu0 0.0
      %3145 = vmatpush1.msra.mxu0 0.0
      %3146 = vmatprep.subr.mxu0 0.0
      %3147 = vmatpush1.msra.mxu0 0.0
      %3148 = vmatprep.subr.mxu0 0.0
      %3149 = vmatpush1.msra.mxu0 0.0
      %3150 = vmatprep.subr.mxu0 0.0
      %3151 = vmatpush1.msra.mxu0 0.0
      %3152 = vmatprep.subr.mxu0 0.0
      %3153 = vmatpush1.msra.mxu0 0.0
      %3154 = vmatprep.subr.mxu0 0.0
      %3155 = vmatpush1.msra.mxu0 0.0
      %3156 = vmatprep.subr.mxu0 0.0
      %3157 = vmatpush1.msra.mxu0 0.0
      %3158 = vmatprep.subr.mxu0 0.0
      %3159 = vmatpush1.msra.mxu0 %v1998
      %3160 = vmatprep.subr.mxu0 0.0
      %3161 = vmatpush2.msra.mxu0 0.0
      %3162 = vmatprep.subr.mxu0 0.0
      %3163 = vmatpush2.msra.mxu0 0.0
      %3164 = vmatprep.subr.mxu0 0.0
      %3165 = vmatpush2.msra.mxu0 0.0
      %3166 = vmatprep.subr.mxu0 0.0
      %3167 = vmatpush2.msra.mxu0 0.0
      %3168 = vmatprep.subr.mxu0 0.0
      %3169 = vmatpush2.msra.mxu0 0.0
      %3170 = vmatprep.subr.mxu0 0.0
      %3171 = vmatpush2.msra.mxu0 0.0
      %3172 = vmatprep.subr.mxu0 0.0
      %3173 = vmatpush2.msra.mxu0 0.0
      %3174 = vmatprep.subr.mxu0 0.0
      %3175 = vmatpush2.msra.mxu0 0.0
      %3176 = vmatprep.subr.mxu0 0.0
      %3177 = vmatpush2.msra.mxu0 0.0
      %3178 = vmatprep.subr.mxu0 0.0
      %3179 = vmatpush2.msra.mxu0 0.0
      %3180 = vmatprep.subr.mxu0 0.0
      %3181 = vmatpush2.msra.mxu0 0.0
      %3182 = vmatprep.subr.mxu0 0.0
      %3183 = vmatpush2.msra.mxu0 0.0
      %3184 = vmatprep.subr.mxu0 0.0
      %3185 = vmatpush2.msra.mxu0 0.0
      %3186 = vmatprep.subr.mxu0 0.0
      %3187 = vmatpush2.msra.mxu0 0.0
      %3188 = vmatprep.subr.mxu0 0.0
      %3189 = vmatpush2.msra.mxu0 0.0
      %3190 = vmatprep.subr.mxu0 0.0
      %3191 = vmatpush2.msra.mxu0 0.0
      %3192 = vmatprep.mubr.f32.mxu0 0.0
      %3193 = vmatmul.mubr.f32.gmra.mxu0 %v1131
      %v3194 = vpop.f32.mrf.mxu0
      %v3195 = vadd.f32 %v2635, %v3194
      %v3196 = vpop.f32.mrf.mxu0
      %3197 = vdwg.mxu0
      %v3198 = vmul.f32 %v2070, 2.0
      %v3199 = vmul.f32 %v2071, 2.0
      %v3200 = vmul.f32 %v2072, 2.0
      %v3201 = vmul.f32 %v2073, 2.0
      %v3202 = vmul.f32 %v2074, 2.0
      %v3203 = vmul.f32 %v2075, 2.0
      %v3204 = vmul.f32 %v2076, 2.0
      %v3205 = vmul.f32 %v2077, 2.0
      %v3206 = vmul.f32 %v2705, 2.0
      %v3207 = vmul.f32 %v2775, 2.0
      %v3208 = vmul.f32 %v2845, 2.0
      %v3209 = vmul.f32 %v2915, 2.0
      %v3210 = vmul.f32 %v2985, 2.0
      %v3211 = vmul.f32 %v3055, 2.0
      %v3212 = vmul.f32 %v3125, 2.0
      %v3213 = vmul.f32 %v3195, 2.0
      %v3214 = vtanh.pop %v3198
      %v3215 = vtanh.pop %v3199
      %v3216 = vtanh.pop %v3200
      %v3217 = vtanh.pop %v3201
      %v3218 = vtanh.pop %v3202
      %v3219 = vtanh.pop %v3203
      %v3220 = vtanh.pop %v3204
      %v3221 = vtanh.pop %v3205
      %v3222 = vand.u32 2147483647, %v3198
      %v3223 = vand.u32 2147483647, %v3199
      %v3224 = vand.u32 2147483647, %v3200
      %v3225 = vand.u32 2147483647, %v3201
      %v3226 = vand.u32 2147483647, %v3202
      %v3227 = vand.u32 2147483647, %v3203
      %v3228 = vand.u32 2147483647, %v3204
      %v3229 = vand.u32 2147483647, %v3205
      %v3230 = vsub.f32 0.0, %v3222
      %v3231 = vsub.f32 0.0, %v3223
      %v3232 = vsub.f32 0.0, %v3224
      %v3233 = vsub.f32 0.0, %v3225
      %v3234 = vsub.f32 0.0, %v3226
      %v3235 = vsub.f32 0.0, %v3227
      %v3236 = vsub.f32 0.0, %v3228
      %v3237 = vsub.f32 0.0, %v3229
      %v3238 = vmul.f32 %v3230, 1.442695
      %v3239 = vpow.pop %v3238
      %v3240 = vmul.f32 %v3231, 1.442695
      %v3241 = vpow.pop %v3240
      %v3242 = vmul.f32 %v3232, 1.442695
      %v3243 = vpow.pop %v3242
      %v3244 = vmul.f32 %v3233, 1.442695
      %v3245 = vpow.pop %v3244
      %v3246 = vmul.f32 %v3234, 1.442695
      %v3247 = vpow.pop %v3246
      %v3248 = vmul.f32 %v3235, 1.442695
      %v3249 = vpow.pop %v3248
      %v3250 = vmul.f32 %v3236, 1.442695
      %v3251 = vpow.pop %v3250
      %v3252 = vmul.f32 %v3237, 1.442695
      %v3253 = vpow.pop %v3252
      %v3254 = vmul.f32 %v3239, 2.0
      %v3255 = vmul.f32 %v3241, 2.0
      %v3256 = vmul.f32 %v3243, 2.0
      %v3257 = vmul.f32 %v3245, 2.0
      %v3258 = vmul.f32 %v3247, 2.0
      %v3259 = vmul.f32 %v3249, 2.0
      %v3260 = vmul.f32 %v3251, 2.0
      %v3261 = vmul.f32 %v3253, 2.0
      %v3262 = vmul.f32 %v3239, %v3239
      %v3263 = vmul.f32 %v3241, %v3241
      %v3264 = vmul.f32 %v3243, %v3243
      %v3265 = vmul.f32 %v3245, %v3245
      %v3266 = vmul.f32 %v3247, %v3247
      %v3267 = vmul.f32 %v3249, %v3249
      %v3268 = vmul.f32 %v3251, %v3251
      %v3269 = vmul.f32 %v3253, %v3253
      %v3270 = vadd.f32 %v3262, 1.0
      %v3271 = vadd.f32 %v3263, 1.0
      %v3272 = vadd.f32 %v3264, 1.0
      %v3273 = vadd.f32 %v3265, 1.0
      %v3274 = vadd.f32 %v3266, 1.0
      %v3275 = vadd.f32 %v3267, 1.0
      %v3276 = vadd.f32 %v3268, 1.0
      %v3277 = vadd.f32 %v3269, 1.0
      %v3278 = vrcp.pop %v3270
      %v3279 = vmul.f32 %v3254, %v3278
      %v3280 = vrcp.pop %v3271
      %v3281 = vmul.f32 %v3255, %v3280
      %v3282 = vrcp.pop %v3272
      %v3283 = vmul.f32 %v3256, %v3282
      %v3284 = vrcp.pop %v3273
      %v3285 = vmul.f32 %v3257, %v3284
      %v3286 = vrcp.pop %v3274
      %v3287 = vmul.f32 %v3258, %v3286
      %v3288 = vrcp.pop %v3275
      %v3289 = vmul.f32 %v3259, %v3288
      %v3290 = vrcp.pop %v3276
      %v3291 = vmul.f32 %v3260, %v3290
      %v3292 = vrcp.pop %v3277
      %v3293 = vmul.f32 %v3261, %v3292
      %v3294 = vand.u32 2147483647, %v3206
      %vm3295 = vcmp.le.f32.partialorder %v3294, 0.7853982
      %vm3296 = vcmp.lt.s32.totalorder %v3206, 0
      %v3297 = vand.u32 %v3206, 2139095040
      %v3298 = vshrl.u32 %v3297, 23
      %v3299 = vsub.s32 %v3298, 127
      %v3300 = vand.u32 2147483647, %v3206
      %v3301 = vand.u32 %v3300, 8388607
      %v3302 = vor.u32 %v3301, 8388608
      %v3303 = vsub.s32 0, %v3302
      %v3304 = vadd.s32 %v3299, 1
      %vm3305 = vcmp.gt.s32.totalorder %v3304, 0
      %v3306 = vsel %vm3305, %v3304, 0
      %v3307 = vshrl.u32 %v3306, 5
      %v3308 = vand.u32 %v3306, 31
      %v3309 = vsub.s32 32, %v3308
      %v3310 = vshrl.u32 683565275, %v3309
      %v3311 = vshll.u32 683565275, %v3308
      %v3312 = vshrl.u32 2475754826, %v3309
      %v3313 = vor.u32 %v3311, %v3312
      %v3314 = vshll.u32 2475754826, %v3308
      %v3315 = vshrl.u32 2131351028, %v3309
      %v3316 = vor.u32 %v3314, %v3315
      %v3317 = vshll.u32 2131351028, %v3308
      %v3318 = vshrl.u32 2102212464, %v3309
      %v3319 = vor.u32 %v3317, %v3318
      %v3320 = vshll.u32 2102212464, %v3308
      %v3321 = vshrl.u32 920167782, %v3309
      %v3322 = vor.u32 %v3320, %v3321
      %v3323 = vshll.u32 920167782, %v3308
      %v3324 = vshrl.u32 1326507024, %v3309
      %v3325 = vor.u32 %v3323, %v3324
      %vm3326 = vcmp.lt.s32.totalorder %v3307, 1
      %vm3327 = vcmp.lt.s32.totalorder %v3307, 2
      %vm3328 = vcmp.lt.s32.totalorder %v3307, 3
      %vm3329 = vcmp.lt.s32.totalorder %v3307, 4
      %v3330 = vsel %vm3326, %v3310, %v3313
      %v3331 = vsel %vm3329, %v3319, 2102212464
      %v3332 = vsel %vm3328, %v3316, %v3331
      %v3333 = vsel %vm3327, %v3330, %v3332
      %v3334 = vsel %vm3326, %v3313, %v3316
      %v3335 = vsel %vm3329, %v3322, 920167782
      %v3336 = vsel %vm3328, %v3319, %v3335
      %v3337 = vsel %vm3327, %v3334, %v3336
      %v3338 = vsel %vm3326, %v3316, %v3319
      %v3339 = vsel %vm3329, %v3325, 1326507024
      %v3340 = vsel %vm3328, %v3322, %v3339
      %v3341 = vsel %vm3327, %v3338, %v3340
      %v3342 = vshll.u32 %v3302, 8
      %v3343 = vmul.u32.u64.compose %v3342, %v3341
      %v3344 = vextract.low.u32 %v3343
      %v3345 = vextract.high.u32 %v3343
      %v3346 = vmul.u32.u64.compose %v3342, %v3337
      %v3347 = vextract.low.u32 %v3346
      %v3348 = vextract.high.u32 %v3346
      %v3349 = vmul.u32 %v3342, %v3333
      %v3350 = vadd.s32 %v3345, %v3347
      %vm3351 = vc.u32 %v3345, %v3347
      %v3352 = vadd.s32 %v3348, 1
      %v3353 = vsel %vm3351, %v3352, %v3348
      %v3354 = vadd.s32 %v3349, %v3353
      %v3355 = vadd.s32 %v3354, 536870912
      %v3356 = vshrl.u32 %v3355, 30
      %v3357 = vshll.u32 %v3356, 30
      %v3358 = vsub.s32 %v3354, %v3357
      %vm3359 = vcmp.lt.s32.totalorder %v3358, 0
      %v3360 = vsub.s32 0, %v3358
      %v3361 = vsel %vm3359, %v3360, %v3358
      %v3362 = vclz %v3361
      %v3363 = vsub.s32 %v3362, 2
      %vm3364 = vcmp.gt.s32.totalorder 0, %v3363
      %v3365 = vsel %vm3364, 0, %v3363
      %v3366 = vsub.s32 32, %v3365
      %v3367 = vshll.u32 %v3358, %v3365
      %v3368 = vshrl.u32 %v3350, %v3366
      %v3369 = vor.u32 %v3367, %v3368
      %v3370 = vsub.s32 4294967266, %v3365
      %v3371 = vadd.s32 %v3370, 127
      %v3372 = vshll.u32 %v3371, 23
      %v3373 = vor.u32 4788187, %v3372
      %v3374 = vand.u32 2147483647, %v3373
      %v3376 = vcvt.s32.f32 %v3369
      %v3377 = vmul.f32 %v3376, %v3374
      %v3378 = vxor.u32 %v3377, 2147483648
      %v3379 = vsel %vm3296, %v3378, %v3377
      %v3380 = vsub.s32 4, %v3356
      %v3381 = vsel %vm3296, %v3380, %v3356
      %v3382 = vsel %vm3295, %v3206, %v3379
      %v3383 = vsel %vm3295, 0, %v3381
      %v3384 = vcosq.f32.pop %v3382
      %v3385 = vsinq.f32.pop %v3382
      %vm3386 = vweird.f32 %v3206
      %v3387 = vand.u32 %v3383, 3
      %vm3388 = vcmp.lt.s32.totalorder %v3387, 2
      %vm3389 = vcmp.eq.s32.totalorder %v3387, 0
      %v3390 = vxor.u32 %v3385, 2147483648
      %v3391 = vsel %vm3389, %v3384, %v3390
      %vm3392 = vcmp.eq.s32.totalorder %v3387, 2
      %v3393 = vxor.u32 %v3384, 2147483648
      %v3394 = vsel %vm3392, %v3393, %v3385
      %v3395 = vsel %vm3388, %v3391, %v3394
      %v3396 = vsel %vm3386, nan, %v3395
      %v3397 = vand.u32 2147483647, %v3207
      %vm3398 = vcmp.le.f32.partialorder %v3397, 0.7853982
      %vm3399 = vcmp.lt.s32.totalorder %v3207, 0
      %v3400 = vand.u32 %v3207, 2139095040
      %v3401 = vshrl.u32 %v3400, 23
      %v3402 = vsub.s32 %v3401, 127
      %v3403 = vand.u32 2147483647, %v3207
      %v3404 = vand.u32 %v3403, 8388607
      %v3405 = vor.u32 %v3404, 8388608
      %v3406 = vsub.s32 0, %v3405
      %v3407 = vadd.s32 %v3402, 1
      %vm3408 = vcmp.gt.s32.totalorder %v3407, 0
      %v3409 = vsel %vm3408, %v3407, 0
      %v3410 = vshrl.u32 %v3409, 5
      %v3411 = vand.u32 %v3409, 31
      %v3412 = vsub.s32 32, %v3411
      %v3413 = vshrl.u32 683565275, %v3412
      %v3414 = vshll.u32 683565275, %v3411
      %v3415 = vshrl.u32 2475754826, %v3412
      %v3416 = vor.u32 %v3414, %v3415
      %v3417 = vshll.u32 2475754826, %v3411
      %v3418 = vshrl.u32 2131351028, %v3412
      %v3419 = vor.u32 %v3417, %v3418
      %v3420 = vshll.u32 2131351028, %v3411
      %v3421 = vshrl.u32 2102212464, %v3412
      %v3422 = vor.u32 %v3420, %v3421
      %v3423 = vshll.u32 2102212464, %v3411
      %v3424 = vshrl.u32 920167782, %v3412
      %v3425 = vor.u32 %v3423, %v3424
      %v3426 = vshll.u32 920167782, %v3411
      %v3427 = vshrl.u32 1326507024, %v3412
      %v3428 = vor.u32 %v3426, %v3427
      %vm3429 = vcmp.lt.s32.totalorder %v3410, 1
      %vm3430 = vcmp.lt.s32.totalorder %v3410, 2
      %vm3431 = vcmp.lt.s32.totalorder %v3410, 3
      %vm3432 = vcmp.lt.s32.totalorder %v3410, 4
      %v3433 = vsel %vm3429, %v3413, %v3416
      %v3434 = vsel %vm3432, %v3422, 2102212464
      %v3435 = vsel %vm3431, %v3419, %v3434
      %v3436 = vsel %vm3430, %v3433, %v3435
      %v3437 = vsel %vm3429, %v3416, %v3419
      %v3438 = vsel %vm3432, %v3425, 920167782
      %v3439 = vsel %vm3431, %v3422, %v3438
      %v3440 = vsel %vm3430, %v3437, %v3439
      %v3441 = vsel %vm3429, %v3419, %v3422
      %v3442 = vsel %vm3432, %v3428, 1326507024
      %v3443 = vsel %vm3431, %v3425, %v3442
      %v3444 = vsel %vm3430, %v3441, %v3443
      %v3445 = vshll.u32 %v3405, 8
      %v3446 = vmul.u32.u64.compose %v3445, %v3444
      %v3447 = vextract.low.u32 %v3446
      %v3448 = vextract.high.u32 %v3446
      %v3449 = vmul.u32.u64.compose %v3445, %v3440
      %v3450 = vextract.low.u32 %v3449
      %v3451 = vextract.high.u32 %v3449
      %v3452 = vmul.u32 %v3445, %v3436
      %v3453 = vadd.s32 %v3448, %v3450
      %vm3454 = vc.u32 %v3448, %v3450
      %v3455 = vadd.s32 %v3451, 1
      %v3456 = vsel %vm3454, %v3455, %v3451
      %v3457 = vadd.s32 %v3452, %v3456
      %v3458 = vadd.s32 %v3457, 536870912
      %v3459 = vshrl.u32 %v3458, 30
      %v3460 = vshll.u32 %v3459, 30
      %v3461 = vsub.s32 %v3457, %v3460
      %vm3462 = vcmp.lt.s32.totalorder %v3461, 0
      %v3463 = vsub.s32 0, %v3461
      %v3464 = vsel %vm3462, %v3463, %v3461
      %v3465 = vclz %v3464
      %v3466 = vsub.s32 %v3465, 2
      %vm3467 = vcmp.gt.s32.totalorder 0, %v3466
      %v3468 = vsel %vm3467, 0, %v3466
      %v3469 = vsub.s32 32, %v3468
      %v3470 = vshll.u32 %v3461, %v3468
      %v3471 = vshrl.u32 %v3453, %v3469
      %v3472 = vor.u32 %v3470, %v3471
      %v3473 = vsub.s32 4294967266, %v3468
      %v3474 = vadd.s32 %v3473, 127
      %v3475 = vshll.u32 %v3474, 23
      %v3476 = vor.u32 4788187, %v3475
      %v3477 = vand.u32 2147483647, %v3476
      %v3479 = vcvt.s32.f32 %v3472
      %v3480 = vmul.f32 %v3479, %v3477
      %v3481 = vxor.u32 %v3480, 2147483648
      %v3482 = vsel %vm3399, %v3481, %v3480
      %v3483 = vsub.s32 4, %v3459
      %v3484 = vsel %vm3399, %v3483, %v3459
      %v3485 = vsel %vm3398, %v3207, %v3482
      %v3486 = vsel %vm3398, 0, %v3484
      %v3487 = vcosq.f32.pop %v3485
      %v3488 = vsinq.f32.pop %v3485
      %vm3489 = vweird.f32 %v3207
      %v3490 = vand.u32 %v3486, 3
      %vm3491 = vcmp.lt.s32.totalorder %v3490, 2
      %vm3492 = vcmp.eq.s32.totalorder %v3490, 0
      %v3493 = vxor.u32 %v3488, 2147483648
      %v3494 = vsel %vm3492, %v3487, %v3493
      %vm3495 = vcmp.eq.s32.totalorder %v3490, 2
      %v3496 = vxor.u32 %v3487, 2147483648
      %v3497 = vsel %vm3495, %v3496, %v3488
      %v3498 = vsel %vm3491, %v3494, %v3497
      %v3499 = vsel %vm3489, nan, %v3498
      %v3500 = vand.u32 2147483647, %v3208
      %vm3501 = vcmp.le.f32.partialorder %v3500, 0.7853982
      %vm3502 = vcmp.lt.s32.totalorder %v3208, 0
      %v3503 = vand.u32 %v3208, 2139095040
      %v3504 = vshrl.u32 %v3503, 23
      %v3505 = vsub.s32 %v3504, 127
      %v3506 = vand.u32 2147483647, %v3208
      %v3507 = vand.u32 %v3506, 8388607
      %v3508 = vor.u32 %v3507, 8388608
      %v3509 = vsub.s32 0, %v3508
      %v3510 = vadd.s32 %v3505, 1
      %vm3511 = vcmp.gt.s32.totalorder %v3510, 0
      %v3512 = vsel %vm3511, %v3510, 0
      %v3513 = vshrl.u32 %v3512, 5
      %v3514 = vand.u32 %v3512, 31
      %v3515 = vsub.s32 32, %v3514
      %v3516 = vshrl.u32 683565275, %v3515
      %v3517 = vshll.u32 683565275, %v3514
      %v3518 = vshrl.u32 2475754826, %v3515
      %v3519 = vor.u32 %v3517, %v3518
      %v3520 = vshll.u32 2475754826, %v3514
      %v3521 = vshrl.u32 2131351028, %v3515
      %v3522 = vor.u32 %v3520, %v3521
      %v3523 = vshll.u32 2131351028, %v3514
      %v3524 = vshrl.u32 2102212464, %v3515
      %v3525 = vor.u32 %v3523, %v3524
      %v3526 = vshll.u32 2102212464, %v3514
      %v3527 = vshrl.u32 920167782, %v3515
      %v3528 = vor.u32 %v3526, %v3527
      %v3529 = vshll.u32 920167782, %v3514
      %v3530 = vshrl.u32 1326507024, %v3515
      %v3531 = vor.u32 %v3529, %v3530
      %vm3532 = vcmp.lt.s32.totalorder %v3513, 1
      %vm3533 = vcmp.lt.s32.totalorder %v3513, 2
      %vm3534 = vcmp.lt.s32.totalorder %v3513, 3
      %vm3535 = vcmp.lt.s32.totalorder %v3513, 4
      %v3536 = vsel %vm3532, %v3516, %v3519
      %v3537 = vsel %vm3535, %v3525, 2102212464
      %v3538 = vsel %vm3534, %v3522, %v3537
      %v3539 = vsel %vm3533, %v3536, %v3538
      %v3540 = vsel %vm3532, %v3519, %v3522
      %v3541 = vsel %vm3535, %v3528, 920167782
      %v3542 = vsel %vm3534, %v3525, %v3541
      %v3543 = vsel %vm3533, %v3540, %v3542
      %v3544 = vsel %vm3532, %v3522, %v3525
      %v3545 = vsel %vm3535, %v3531, 1326507024
      %v3546 = vsel %vm3534, %v3528, %v3545
      %v3547 = vsel %vm3533, %v3544, %v3546
      %v3548 = vshll.u32 %v3508, 8
      %v3549 = vmul.u32.u64.compose %v3548, %v3547
      %v3550 = vextract.low.u32 %v3549
      %v3551 = vextract.high.u32 %v3549
      %v3552 = vmul.u32.u64.compose %v3548, %v3543
      %v3553 = vextract.low.u32 %v3552
      %v3554 = vextract.high.u32 %v3552
      %v3555 = vmul.u32 %v3548, %v3539
      %v3556 = vadd.s32 %v3551, %v3553
      %vm3557 = vc.u32 %v3551, %v3553
      %v3558 = vadd.s32 %v3554, 1
      %v3559 = vsel %vm3557, %v3558, %v3554
      %v3560 = vadd.s32 %v3555, %v3559
      %v3561 = vadd.s32 %v3560, 536870912
      %v3562 = vshrl.u32 %v3561, 30
      %v3563 = vshll.u32 %v3562, 30
      %v3564 = vsub.s32 %v3560, %v3563
      %vm3565 = vcmp.lt.s32.totalorder %v3564, 0
      %v3566 = vsub.s32 0, %v3564
      %v3567 = vsel %vm3565, %v3566, %v3564
      %v3568 = vclz %v3567
      %v3569 = vsub.s32 %v3568, 2
      %vm3570 = vcmp.gt.s32.totalorder 0, %v3569
      %v3571 = vsel %vm3570, 0, %v3569
      %v3572 = vsub.s32 32, %v3571
      %v3573 = vshll.u32 %v3564, %v3571
      %v3574 = vshrl.u32 %v3556, %v3572
      %v3575 = vor.u32 %v3573, %v3574
      %v3576 = vsub.s32 4294967266, %v3571
      %v3577 = vadd.s32 %v3576, 127
      %v3578 = vshll.u32 %v3577, 23
      %v3579 = vor.u32 4788187, %v3578
      %v3580 = vand.u32 2147483647, %v3579
      %v3582 = vcvt.s32.f32 %v3575
      %v3583 = vmul.f32 %v3582, %v3580
      %v3584 = vxor.u32 %v3583, 2147483648
      %v3585 = vsel %vm3502, %v3584, %v3583
      %v3586 = vsub.s32 4, %v3562
      %v3587 = vsel %vm3502, %v3586, %v3562
      %v3588 = vsel %vm3501, %v3208, %v3585
      %v3589 = vsel %vm3501, 0, %v3587
      %v3590 = vcosq.f32.pop %v3588
      %v3591 = vsinq.f32.pop %v3588
      %vm3592 = vweird.f32 %v3208
      %v3593 = vand.u32 %v3589, 3
      %vm3594 = vcmp.lt.s32.totalorder %v3593, 2
      %vm3595 = vcmp.eq.s32.totalorder %v3593, 0
      %v3596 = vxor.u32 %v3591, 2147483648
      %v3597 = vsel %vm3595, %v3590, %v3596
      %vm3598 = vcmp.eq.s32.totalorder %v3593, 2
      %v3599 = vxor.u32 %v3590, 2147483648
      %v3600 = vsel %vm3598, %v3599, %v3591
      %v3601 = vsel %vm3594, %v3597, %v3600
      %v3602 = vsel %vm3592, nan, %v3601
      %v3603 = vand.u32 2147483647, %v3209
      %vm3604 = vcmp.le.f32.partialorder %v3603, 0.7853982
      %vm3605 = vcmp.lt.s32.totalorder %v3209, 0
      %v3606 = vand.u32 %v3209, 2139095040
      %v3607 = vshrl.u32 %v3606, 23
      %v3608 = vsub.s32 %v3607, 127
      %v3609 = vand.u32 2147483647, %v3209
      %v3610 = vand.u32 %v3609, 8388607
      %v3611 = vor.u32 %v3610, 8388608
      %v3612 = vsub.s32 0, %v3611
      %v3613 = vadd.s32 %v3608, 1
      %vm3614 = vcmp.gt.s32.totalorder %v3613, 0
      %v3615 = vsel %vm3614, %v3613, 0
      %v3616 = vshrl.u32 %v3615, 5
      %v3617 = vand.u32 %v3615, 31
      %v3618 = vsub.s32 32, %v3617
      %v3619 = vshrl.u32 683565275, %v3618
      %v3620 = vshll.u32 683565275, %v3617
      %v3621 = vshrl.u32 2475754826, %v3618
      %v3622 = vor.u32 %v3620, %v3621
      %v3623 = vshll.u32 2475754826, %v3617
      %v3624 = vshrl.u32 2131351028, %v3618
      %v3625 = vor.u32 %v3623, %v3624
      %v3626 = vshll.u32 2131351028, %v3617
      %v3627 = vshrl.u32 2102212464, %v3618
      %v3628 = vor.u32 %v3626, %v3627
      %v3629 = vshll.u32 2102212464, %v3617
      %v3630 = vshrl.u32 920167782, %v3618
      %v3631 = vor.u32 %v3629, %v3630
      %v3632 = vshll.u32 920167782, %v3617
      %v3633 = vshrl.u32 1326507024, %v3618
      %v3634 = vor.u32 %v3632, %v3633
      %vm3635 = vcmp.lt.s32.totalorder %v3616, 1
      %vm3636 = vcmp.lt.s32.totalorder %v3616, 2
      %vm3637 = vcmp.lt.s32.totalorder %v3616, 3
      %vm3638 = vcmp.lt.s32.totalorder %v3616, 4
      %v3639 = vsel %vm3635, %v3619, %v3622
      %v3640 = vsel %vm3638, %v3628, 2102212464
      %v3641 = vsel %vm3637, %v3625, %v3640
      %v3642 = vsel %vm3636, %v3639, %v3641
      %v3643 = vsel %vm3635, %v3622, %v3625
      %v3644 = vsel %vm3638, %v3631, 920167782
      %v3645 = vsel %vm3637, %v3628, %v3644
      %v3646 = vsel %vm3636, %v3643, %v3645
      %v3647 = vsel %vm3635, %v3625, %v3628
      %v3648 = vsel %vm3638, %v3634, 1326507024
      %v3649 = vsel %vm3637, %v3631, %v3648
      %v3650 = vsel %vm3636, %v3647, %v3649
      %v3651 = vshll.u32 %v3611, 8
      %v3652 = vmul.u32.u64.compose %v3651, %v3650
      %v3653 = vextract.low.u32 %v3652
      %v3654 = vextract.high.u32 %v3652
      %v3655 = vmul.u32.u64.compose %v3651, %v3646
      %v3656 = vextract.low.u32 %v3655
      %v3657 = vextract.high.u32 %v3655
      %v3658 = vmul.u32 %v3651, %v3642
      %v3659 = vadd.s32 %v3654, %v3656
      %vm3660 = vc.u32 %v3654, %v3656
      %v3661 = vadd.s32 %v3657, 1
      %v3662 = vsel %vm3660, %v3661, %v3657
      %v3663 = vadd.s32 %v3658, %v3662
      %v3664 = vadd.s32 %v3663, 536870912
      %v3665 = vshrl.u32 %v3664, 30
      %v3666 = vshll.u32 %v3665, 30
      %v3667 = vsub.s32 %v3663, %v3666
      %vm3668 = vcmp.lt.s32.totalorder %v3667, 0
      %v3669 = vsub.s32 0, %v3667
      %v3670 = vsel %vm3668, %v3669, %v3667
      %v3671 = vclz %v3670
      %v3672 = vsub.s32 %v3671, 2
      %vm3673 = vcmp.gt.s32.totalorder 0, %v3672
      %v3674 = vsel %vm3673, 0, %v3672
      %v3675 = vsub.s32 32, %v3674
      %v3676 = vshll.u32 %v3667, %v3674
      %v3677 = vshrl.u32 %v3659, %v3675
      %v3678 = vor.u32 %v3676, %v3677
      %v3679 = vsub.s32 4294967266, %v3674
      %v3680 = vadd.s32 %v3679, 127
      %v3681 = vshll.u32 %v3680, 23
      %v3682 = vor.u32 4788187, %v3681
      %v3683 = vand.u32 2147483647, %v3682
      %v3685 = vcvt.s32.f32 %v3678
      %v3686 = vmul.f32 %v3685, %v3683
      %v3687 = vxor.u32 %v3686, 2147483648
      %v3688 = vsel %vm3605, %v3687, %v3686
      %v3689 = vsub.s32 4, %v3665
      %v3690 = vsel %vm3605, %v3689, %v3665
      %v3691 = vsel %vm3604, %v3209, %v3688
      %v3692 = vsel %vm3604, 0, %v3690
      %v3693 = vcosq.f32.pop %v3691
      %v3694 = vsinq.f32.pop %v3691
      %vm3695 = vweird.f32 %v3209
      %v3696 = vand.u32 %v3692, 3
      %vm3697 = vcmp.lt.s32.totalorder %v3696, 2
      %vm3698 = vcmp.eq.s32.totalorder %v3696, 0
      %v3699 = vxor.u32 %v3694, 2147483648
      %v3700 = vsel %vm3698, %v3693, %v3699
      %vm3701 = vcmp.eq.s32.totalorder %v3696, 2
      %v3702 = vxor.u32 %v3693, 2147483648
      %v3703 = vsel %vm3701, %v3702, %v3694
      %v3704 = vsel %vm3697, %v3700, %v3703
      %v3705 = vsel %vm3695, nan, %v3704
      %v3706 = vand.u32 2147483647, %v3210
      %vm3707 = vcmp.le.f32.partialorder %v3706, 0.7853982
      %vm3708 = vcmp.lt.s32.totalorder %v3210, 0
      %v3709 = vand.u32 %v3210, 2139095040
      %v3710 = vshrl.u32 %v3709, 23
      %v3711 = vsub.s32 %v3710, 127
      %v3712 = vand.u32 2147483647, %v3210
      %v3713 = vand.u32 %v3712, 8388607
      %v3714 = vor.u32 %v3713, 8388608
      %v3715 = vsub.s32 0, %v3714
      %v3716 = vadd.s32 %v3711, 1
      %vm3717 = vcmp.gt.s32.totalorder %v3716, 0
      %v3718 = vsel %vm3717, %v3716, 0
      %v3719 = vshrl.u32 %v3718, 5
      %v3720 = vand.u32 %v3718, 31
      %v3721 = vsub.s32 32, %v3720
      %v3722 = vshrl.u32 683565275, %v3721
      %v3723 = vshll.u32 683565275, %v3720
      %v3724 = vshrl.u32 2475754826, %v3721
      %v3725 = vor.u32 %v3723, %v3724
      %v3726 = vshll.u32 2475754826, %v3720
      %v3727 = vshrl.u32 2131351028, %v3721
      %v3728 = vor.u32 %v3726, %v3727
      %v3729 = vshll.u32 2131351028, %v3720
      %v3730 = vshrl.u32 2102212464, %v3721
      %v3731 = vor.u32 %v3729, %v3730
      %v3732 = vshll.u32 2102212464, %v3720
      %v3733 = vshrl.u32 920167782, %v3721
      %v3734 = vor.u32 %v3732, %v3733
      %v3735 = vshll.u32 920167782, %v3720
      %v3736 = vshrl.u32 1326507024, %v3721
      %v3737 = vor.u32 %v3735, %v3736
      %vm3738 = vcmp.lt.s32.totalorder %v3719, 1
      %vm3739 = vcmp.lt.s32.totalorder %v3719, 2
      %vm3740 = vcmp.lt.s32.totalorder %v3719, 3
      %vm3741 = vcmp.lt.s32.totalorder %v3719, 4
      %v3742 = vsel %vm3738, %v3722, %v3725
      %v3743 = vsel %vm3741, %v3731, 2102212464
      %v3744 = vsel %vm3740, %v3728, %v3743
      %v3745 = vsel %vm3739, %v3742, %v3744
      %v3746 = vsel %vm3738, %v3725, %v3728
      %v3747 = vsel %vm3741, %v3734, 920167782
      %v3748 = vsel %vm3740, %v3731, %v3747
      %v3749 = vsel %vm3739, %v3746, %v3748
      %v3750 = vsel %vm3738, %v3728, %v3731
      %v3751 = vsel %vm3741, %v3737, 1326507024
      %v3752 = vsel %vm3740, %v3734, %v3751
      %v3753 = vsel %vm3739, %v3750, %v3752
      %v3754 = vshll.u32 %v3714, 8
      %v3755 = vmul.u32.u64.compose %v3754, %v3753
      %v3756 = vextract.low.u32 %v3755
      %v3757 = vextract.high.u32 %v3755
      %v3758 = vmul.u32.u64.compose %v3754, %v3749
      %v3759 = vextract.low.u32 %v3758
      %v3760 = vextract.high.u32 %v3758
      %v3761 = vmul.u32 %v3754, %v3745
      %v3762 = vadd.s32 %v3757, %v3759
      %vm3763 = vc.u32 %v3757, %v3759
      %v3764 = vadd.s32 %v3760, 1
      %v3765 = vsel %vm3763, %v3764, %v3760
      %v3766 = vadd.s32 %v3761, %v3765
      %v3767 = vadd.s32 %v3766, 536870912
      %v3768 = vshrl.u32 %v3767, 30
      %v3769 = vshll.u32 %v3768, 30
      %v3770 = vsub.s32 %v3766, %v3769
      %vm3771 = vcmp.lt.s32.totalorder %v3770, 0
      %v3772 = vsub.s32 0, %v3770
      %v3773 = vsel %vm3771, %v3772, %v3770
      %v3774 = vclz %v3773
      %v3775 = vsub.s32 %v3774, 2
      %vm3776 = vcmp.gt.s32.totalorder 0, %v3775
      %v3777 = vsel %vm3776, 0, %v3775
      %v3778 = vsub.s32 32, %v3777
      %v3779 = vshll.u32 %v3770, %v3777
      %v3780 = vshrl.u32 %v3762, %v3778
      %v3781 = vor.u32 %v3779, %v3780
      %v3782 = vsub.s32 4294967266, %v3777
      %v3783 = vadd.s32 %v3782, 127
      %v3784 = vshll.u32 %v3783, 23
      %v3785 = vor.u32 4788187, %v3784
      %v3786 = vand.u32 2147483647, %v3785
      %v3788 = vcvt.s32.f32 %v3781
      %v3789 = vmul.f32 %v3788, %v3786
      %v3790 = vxor.u32 %v3789, 2147483648
      %v3791 = vsel %vm3708, %v3790, %v3789
      %v3792 = vsub.s32 4, %v3768
      %v3793 = vsel %vm3708, %v3792, %v3768
      %v3794 = vsel %vm3707, %v3210, %v3791
      %v3795 = vsel %vm3707, 0, %v3793
      %v3796 = vcosq.f32.pop %v3794
      %v3797 = vsinq.f32.pop %v3794
      %vm3798 = vweird.f32 %v3210
      %v3799 = vand.u32 %v3795, 3
      %vm3800 = vcmp.lt.s32.totalorder %v3799, 2
      %vm3801 = vcmp.eq.s32.totalorder %v3799, 0
      %v3802 = vxor.u32 %v3797, 2147483648
      %v3803 = vsel %vm3801, %v3796, %v3802
      %vm3804 = vcmp.eq.s32.totalorder %v3799, 2
      %v3805 = vxor.u32 %v3796, 2147483648
      %v3806 = vsel %vm3804, %v3805, %v3797
      %v3807 = vsel %vm3800, %v3803, %v3806
      %v3808 = vsel %vm3798, nan, %v3807
      %v3809 = vand.u32 2147483647, %v3211
      %vm3810 = vcmp.le.f32.partialorder %v3809, 0.7853982
      %vm3811 = vcmp.lt.s32.totalorder %v3211, 0
      %v3812 = vand.u32 %v3211, 2139095040
      %v3813 = vshrl.u32 %v3812, 23
      %v3814 = vsub.s32 %v3813, 127
      %v3815 = vand.u32 2147483647, %v3211
      %v3816 = vand.u32 %v3815, 8388607
      %v3817 = vor.u32 %v3816, 8388608
      %v3818 = vsub.s32 0, %v3817
      %v3819 = vadd.s32 %v3814, 1
      %vm3820 = vcmp.gt.s32.totalorder %v3819, 0
      %v3821 = vsel %vm3820, %v3819, 0
      %v3822 = vshrl.u32 %v3821, 5
      %v3823 = vand.u32 %v3821, 31
      %v3824 = vsub.s32 32, %v3823
      %v3825 = vshrl.u32 683565275, %v3824
      %v3826 = vshll.u32 683565275, %v3823
      %v3827 = vshrl.u32 2475754826, %v3824
      %v3828 = vor.u32 %v3826, %v3827
      %v3829 = vshll.u32 2475754826, %v3823
      %v3830 = vshrl.u32 2131351028, %v3824
      %v3831 = vor.u32 %v3829, %v3830
      %v3832 = vshll.u32 2131351028, %v3823
      %v3833 = vshrl.u32 2102212464, %v3824
      %v3834 = vor.u32 %v3832, %v3833
      %v3835 = vshll.u32 2102212464, %v3823
      %v3836 = vshrl.u32 920167782, %v3824
      %v3837 = vor.u32 %v3835, %v3836
      %v3838 = vshll.u32 920167782, %v3823
      %v3839 = vshrl.u32 1326507024, %v3824
      %v3840 = vor.u32 %v3838, %v3839
      %vm3841 = vcmp.lt.s32.totalorder %v3822, 1
      %vm3842 = vcmp.lt.s32.totalorder %v3822, 2
      %vm3843 = vcmp.lt.s32.totalorder %v3822, 3
      %vm3844 = vcmp.lt.s32.totalorder %v3822, 4
      %v3845 = vsel %vm3841, %v3825, %v3828
      %v3846 = vsel %vm3844, %v3834, 2102212464
      %v3847 = vsel %vm3843, %v3831, %v3846
      %v3848 = vsel %vm3842, %v3845, %v3847
      %v3849 = vsel %vm3841, %v3828, %v3831
      %v3850 = vsel %vm3844, %v3837, 920167782
      %v3851 = vsel %vm3843, %v3834, %v3850
      %v3852 = vsel %vm3842, %v3849, %v3851
      %v3853 = vsel %vm3841, %v3831, %v3834
      %v3854 = vsel %vm3844, %v3840, 1326507024
      %v3855 = vsel %vm3843, %v3837, %v3854
      %v3856 = vsel %vm3842, %v3853, %v3855
      %v3857 = vshll.u32 %v3817, 8
      %v3858 = vmul.u32.u64.compose %v3857, %v3856
      %v3859 = vextract.low.u32 %v3858
      %v3860 = vextract.high.u32 %v3858
      %v3861 = vmul.u32.u64.compose %v3857, %v3852
      %v3862 = vextract.low.u32 %v3861
      %v3863 = vextract.high.u32 %v3861
      %v3864 = vmul.u32 %v3857, %v3848
      %v3865 = vadd.s32 %v3860, %v3862
      %vm3866 = vc.u32 %v3860, %v3862
      %v3867 = vadd.s32 %v3863, 1
      %v3868 = vsel %vm3866, %v3867, %v3863
      %v3869 = vadd.s32 %v3864, %v3868
      %v3870 = vadd.s32 %v3869, 536870912
      %v3871 = vshrl.u32 %v3870, 30
      %v3872 = vshll.u32 %v3871, 30
      %v3873 = vsub.s32 %v3869, %v3872
      %vm3874 = vcmp.lt.s32.totalorder %v3873, 0
      %v3875 = vsub.s32 0, %v3873
      %v3876 = vsel %vm3874, %v3875, %v3873
      %v3877 = vclz %v3876
      %v3878 = vsub.s32 %v3877, 2
      %vm3879 = vcmp.gt.s32.totalorder 0, %v3878
      %v3880 = vsel %vm3879, 0, %v3878
      %v3881 = vsub.s32 32, %v3880
      %v3882 = vshll.u32 %v3873, %v3880
      %v3883 = vshrl.u32 %v3865, %v3881
      %v3884 = vor.u32 %v3882, %v3883
      %v3885 = vsub.s32 4294967266, %v3880
      %v3886 = vadd.s32 %v3885, 127
      %v3887 = vshll.u32 %v3886, 23
      %v3888 = vor.u32 4788187, %v3887
      %v3889 = vand.u32 2147483647, %v3888
      %v3891 = vcvt.s32.f32 %v3884
      %v3892 = vmul.f32 %v3891, %v3889
      %v3893 = vxor.u32 %v3892, 2147483648
      %v3894 = vsel %vm3811, %v3893, %v3892
      %v3895 = vsub.s32 4, %v3871
      %v3896 = vsel %vm3811, %v3895, %v3871
      %v3897 = vsel %vm3810, %v3211, %v3894
      %v3898 = vsel %vm3810, 0, %v3896
      %v3899 = vcosq.f32.pop %v3897
      %v3900 = vsinq.f32.pop %v3897
      %vm3901 = vweird.f32 %v3211
      %v3902 = vand.u32 %v3898, 3
      %vm3903 = vcmp.lt.s32.totalorder %v3902, 2
      %vm3904 = vcmp.eq.s32.totalorder %v3902, 0
      %v3905 = vxor.u32 %v3900, 2147483648
      %v3906 = vsel %vm3904, %v3899, %v3905
      %vm3907 = vcmp.eq.s32.totalorder %v3902, 2
      %v3908 = vxor.u32 %v3899, 2147483648
      %v3909 = vsel %vm3907, %v3908, %v3900
      %v3910 = vsel %vm3903, %v3906, %v3909
      %v3911 = vsel %vm3901, nan, %v3910
      %v3912 = vand.u32 2147483647, %v3212
      %vm3913 = vcmp.le.f32.partialorder %v3912, 0.7853982
      %vm3914 = vcmp.lt.s32.totalorder %v3212, 0
      %v3915 = vand.u32 %v3212, 2139095040
      %v3916 = vshrl.u32 %v3915, 23
      %v3917 = vsub.s32 %v3916, 127
      %v3918 = vand.u32 2147483647, %v3212
      %v3919 = vand.u32 %v3918, 8388607
      %v3920 = vor.u32 %v3919, 8388608
      %v3921 = vsub.s32 0, %v3920
      %v3922 = vadd.s32 %v3917, 1
      %vm3923 = vcmp.gt.s32.totalorder %v3922, 0
      %v3924 = vsel %vm3923, %v3922, 0
      %v3925 = vshrl.u32 %v3924, 5
      %v3926 = vand.u32 %v3924, 31
      %v3927 = vsub.s32 32, %v3926
      %v3928 = vshrl.u32 683565275, %v3927
      %v3929 = vshll.u32 683565275, %v3926
      %v3930 = vshrl.u32 2475754826, %v3927
      %v3931 = vor.u32 %v3929, %v3930
      %v3932 = vshll.u32 2475754826, %v3926
      %v3933 = vshrl.u32 2131351028, %v3927
      %v3934 = vor.u32 %v3932, %v3933
      %v3935 = vshll.u32 2131351028, %v3926
      %v3936 = vshrl.u32 2102212464, %v3927
      %v3937 = vor.u32 %v3935, %v3936
      %v3938 = vshll.u32 2102212464, %v3926
      %v3939 = vshrl.u32 920167782, %v3927
      %v3940 = vor.u32 %v3938, %v3939
      %v3941 = vshll.u32 920167782, %v3926
      %v3942 = vshrl.u32 1326507024, %v3927
      %v3943 = vor.u32 %v3941, %v3942
      %vm3944 = vcmp.lt.s32.totalorder %v3925, 1
      %vm3945 = vcmp.lt.s32.totalorder %v3925, 2
      %vm3946 = vcmp.lt.s32.totalorder %v3925, 3
      %vm3947 = vcmp.lt.s32.totalorder %v3925, 4
      %v3948 = vsel %vm3944, %v3928, %v3931
      %v3949 = vsel %vm3947, %v3937, 2102212464
      %v3950 = vsel %vm3946, %v3934, %v3949
      %v3951 = vsel %vm3945, %v3948, %v3950
      %v3952 = vsel %vm3944, %v3931, %v3934
      %v3953 = vsel %vm3947, %v3940, 920167782
      %v3954 = vsel %vm3946, %v3937, %v3953
      %v3955 = vsel %vm3945, %v3952, %v3954
      %v3956 = vsel %vm3944, %v3934, %v3937
      %v3957 = vsel %vm3947, %v3943, 1326507024
      %v3958 = vsel %vm3946, %v3940, %v3957
      %v3959 = vsel %vm3945, %v3956, %v3958
      %v3960 = vshll.u32 %v3920, 8
      %v3961 = vmul.u32.u64.compose %v3960, %v3959
      %v3962 = vextract.low.u32 %v3961
      %v3963 = vextract.high.u32 %v3961
      %v3964 = vmul.u32.u64.compose %v3960, %v3955
      %v3965 = vextract.low.u32 %v3964
      %v3966 = vextract.high.u32 %v3964
      %v3967 = vmul.u32 %v3960, %v3951
      %v3968 = vadd.s32 %v3963, %v3965
      %vm3969 = vc.u32 %v3963, %v3965
      %v3970 = vadd.s32 %v3966, 1
      %v3971 = vsel %vm3969, %v3970, %v3966
      %v3972 = vadd.s32 %v3967, %v3971
      %v3973 = vadd.s32 %v3972, 536870912
      %v3974 = vshrl.u32 %v3973, 30
      %v3975 = vshll.u32 %v3974, 30
      %v3976 = vsub.s32 %v3972, %v3975
      %vm3977 = vcmp.lt.s32.totalorder %v3976, 0
      %v3978 = vsub.s32 0, %v3976
      %v3979 = vsel %vm3977, %v3978, %v3976
      %v3980 = vclz %v3979
      %v3981 = vsub.s32 %v3980, 2
      %vm3982 = vcmp.gt.s32.totalorder 0, %v3981
      %v3983 = vsel %vm3982, 0, %v3981
      %v3984 = vsub.s32 32, %v3983
      %v3985 = vshll.u32 %v3976, %v3983
      %v3986 = vshrl.u32 %v3968, %v3984
      %v3987 = vor.u32 %v3985, %v3986
      %v3988 = vsub.s32 4294967266, %v3983
      %v3989 = vadd.s32 %v3988, 127
      %v3990 = vshll.u32 %v3989, 23
      %v3991 = vor.u32 4788187, %v3990
      %v3992 = vand.u32 2147483647, %v3991
      %v3994 = vcvt.s32.f32 %v3987
      %v3995 = vmul.f32 %v3994, %v3992
      %v3996 = vxor.u32 %v3995, 2147483648
      %v3997 = vsel %vm3914, %v3996, %v3995
      %v3998 = vsub.s32 4, %v3974
      %v3999 = vsel %vm3914, %v3998, %v3974
      %v4000 = vsel %vm3913, %v3212, %v3997
      %v4001 = vsel %vm3913, 0, %v3999
      %v4002 = vcosq.f32.pop %v4000
      %v4003 = vsinq.f32.pop %v4000
      %vm4004 = vweird.f32 %v3212
      %v4005 = vand.u32 %v4001, 3
      %vm4006 = vcmp.lt.s32.totalorder %v4005, 2
      %vm4007 = vcmp.eq.s32.totalorder %v4005, 0
      %v4008 = vxor.u32 %v4003, 2147483648
      %v4009 = vsel %vm4007, %v4002, %v4008
      %vm4010 = vcmp.eq.s32.totalorder %v4005, 2
      %v4011 = vxor.u32 %v4002, 2147483648
      %v4012 = vsel %vm4010, %v4011, %v4003
      %v4013 = vsel %vm4006, %v4009, %v4012
      %v4014 = vsel %vm4004, nan, %v4013
      %v4015 = vand.u32 2147483647, %v3213
      %vm4016 = vcmp.le.f32.partialorder %v4015, 0.7853982
      %vm4017 = vcmp.lt.s32.totalorder %v3213, 0
      %v4018 = vand.u32 %v3213, 2139095040
      %v4019 = vshrl.u32 %v4018, 23
      %v4020 = vsub.s32 %v4019, 127
      %v4021 = vand.u32 2147483647, %v3213
      %v4022 = vand.u32 %v4021, 8388607
      %v4023 = vor.u32 %v4022, 8388608
      %v4024 = vsub.s32 0, %v4023
      %v4025 = vadd.s32 %v4020, 1
      %vm4026 = vcmp.gt.s32.totalorder %v4025, 0
      %v4027 = vsel %vm4026, %v4025, 0
      %v4028 = vshrl.u32 %v4027, 5
      %v4029 = vand.u32 %v4027, 31
      %v4030 = vsub.s32 32, %v4029
      %v4031 = vshrl.u32 683565275, %v4030
      %v4032 = vshll.u32 683565275, %v4029
      %v4033 = vshrl.u32 2475754826, %v4030
      %v4034 = vor.u32 %v4032, %v4033
      %v4035 = vshll.u32 2475754826, %v4029
      %v4036 = vshrl.u32 2131351028, %v4030
      %v4037 = vor.u32 %v4035, %v4036
      %v4038 = vshll.u32 2131351028, %v4029
      %v4039 = vshrl.u32 2102212464, %v4030
      %v4040 = vor.u32 %v4038, %v4039
      %v4041 = vshll.u32 2102212464, %v4029
      %v4042 = vshrl.u32 920167782, %v4030
      %v4043 = vor.u32 %v4041, %v4042
      %v4044 = vshll.u32 920167782, %v4029
      %v4045 = vshrl.u32 1326507024, %v4030
      %v4046 = vor.u32 %v4044, %v4045
      %vm4047 = vcmp.lt.s32.totalorder %v4028, 1
      %vm4048 = vcmp.lt.s32.totalorder %v4028, 2
      %vm4049 = vcmp.lt.s32.totalorder %v4028, 3
      %vm4050 = vcmp.lt.s32.totalorder %v4028, 4
      %v4051 = vsel %vm4047, %v4031, %v4034
      %v4052 = vsel %vm4050, %v4040, 2102212464
      %v4053 = vsel %vm4049, %v4037, %v4052
      %v4054 = vsel %vm4048, %v4051, %v4053
      %v4055 = vsel %vm4047, %v4034, %v4037
      %v4056 = vsel %vm4050, %v4043, 920167782
      %v4057 = vsel %vm4049, %v4040, %v4056
      %v4058 = vsel %vm4048, %v4055, %v4057
      %v4059 = vsel %vm4047, %v4037, %v4040
      %v4060 = vsel %vm4050, %v4046, 1326507024
      %v4061 = vsel %vm4049, %v4043, %v4060
      %v4062 = vsel %vm4048, %v4059, %v4061
      %v4063 = vshll.u32 %v4023, 8
      %v4064 = vmul.u32.u64.compose %v4063, %v4062
      %v4065 = vextract.low.u32 %v4064
      %v4066 = vextract.high.u32 %v4064
      %v4067 = vmul.u32.u64.compose %v4063, %v4058
      %v4068 = vextract.low.u32 %v4067
      %v4069 = vextract.high.u32 %v4067
      %v4070 = vmul.u32 %v4063, %v4054
      %v4071 = vadd.s32 %v4066, %v4068
      %vm4072 = vc.u32 %v4066, %v4068
      %v4073 = vadd.s32 %v4069, 1
      %v4074 = vsel %vm4072, %v4073, %v4069
      %v4075 = vadd.s32 %v4070, %v4074
      %v4076 = vadd.s32 %v4075, 536870912
      %v4077 = vshrl.u32 %v4076, 30
      %v4078 = vshll.u32 %v4077, 30
      %v4079 = vsub.s32 %v4075, %v4078
      %vm4080 = vcmp.lt.s32.totalorder %v4079, 0
      %v4081 = vsub.s32 0, %v4079
      %v4082 = vsel %vm4080, %v4081, %v4079
      %v4083 = vclz %v4082
      %v4084 = vsub.s32 %v4083, 2
      %vm4085 = vcmp.gt.s32.totalorder 0, %v4084
      %v4086 = vsel %vm4085, 0, %v4084
      %v4087 = vsub.s32 32, %v4086
      %v4088 = vshll.u32 %v4079, %v4086
      %v4089 = vshrl.u32 %v4071, %v4087
      %v4090 = vor.u32 %v4088, %v4089
      %v4091 = vsub.s32 4294967266, %v4086
      %v4092 = vadd.s32 %v4091, 127
      %v4093 = vshll.u32 %v4092, 23
      %v4094 = vor.u32 4788187, %v4093
      %v4095 = vand.u32 2147483647, %v4094
      %v4097 = vcvt.s32.f32 %v4090
      %v4098 = vmul.f32 %v4097, %v4095
      %v4099 = vxor.u32 %v4098, 2147483648
      %v4100 = vsel %vm4017, %v4099, %v4098
      %v4101 = vsub.s32 4, %v4077
      %v4102 = vsel %vm4017, %v4101, %v4077
      %v4103 = vsel %vm4016, %v3213, %v4100
      %v4104 = vsel %vm4016, 0, %v4102
      %v4105 = vcosq.f32.pop %v4103
      %v4106 = vsinq.f32.pop %v4103
      %vm4107 = vweird.f32 %v3213
      %v4108 = vand.u32 %v4104, 3
      %vm4109 = vcmp.lt.s32.totalorder %v4108, 2
      %vm4110 = vcmp.eq.s32.totalorder %v4108, 0
      %v4111 = vxor.u32 %v4106, 2147483648
      %v4112 = vsel %vm4110, %v4105, %v4111
      %vm4113 = vcmp.eq.s32.totalorder %v4108, 2
      %v4114 = vxor.u32 %v4105, 2147483648
      %v4115 = vsel %vm4113, %v4114, %v4106
      %v4116 = vsel %vm4109, %v4112, %v4115
      %v4117 = vsel %vm4107, nan, %v4116
      %v4118 = vmul.f32 %v3396, %v3279
      %v4119 = vmul.f32 %v3499, %v3281
      %v4120 = vmul.f32 %v3602, %v3283
      %v4121 = vmul.f32 %v3705, %v3285
      %v4122 = vmul.f32 %v3808, %v3287
      %v4123 = vmul.f32 %v3911, %v3289
      %v4124 = vmul.f32 %v4014, %v3291
      %v4125 = vmul.f32 %v4117, %v3293
      %v4126 = vadd.f32 %v4118, 1.0
      %v4127 = vadd.f32 %v4119, 1.0
      %v4128 = vadd.f32 %v4120, 1.0
      %v4129 = vadd.f32 %v4121, 1.0
      %v4130 = vadd.f32 %v4122, 1.0
      %v4131 = vadd.f32 %v4123, 1.0
      %v4132 = vadd.f32 %v4124, 1.0
      %v4133 = vadd.f32 %v4125, 1.0
      %v4134 = vrcp.pop %v4126
      %v4135 = vmul.f32 %v3214, %v4134
      %v4136 = vrcp.pop %v4127
      %v4137 = vmul.f32 %v3215, %v4136
      %v4138 = vrcp.pop %v4128
      %v4139 = vmul.f32 %v3216, %v4138
      %v4140 = vrcp.pop %v4129
      %v4141 = vmul.f32 %v3217, %v4140
      %v4142 = vrcp.pop %v4130
      %v4143 = vmul.f32 %v3218, %v4142
      %v4144 = vrcp.pop %v4131
      %v4145 = vmul.f32 %v3219, %v4144
      %v4146 = vrcp.pop %v4132
      %v4147 = vmul.f32 %v3220, %v4146
      %v4148 = vrcp.pop %v4133
      %v4149 = vmul.f32 %v3221, %v4148
      %v4150 = vand.u32 2147483647, %v3206
      %vm4151 = vcmp.le.f32.partialorder %v4150, 0.7853982
      %vm4152 = vcmp.lt.s32.totalorder %v3206, 0
      %v4153 = vand.u32 %v3206, 2139095040
      %v4154 = vshrl.u32 %v4153, 23
      %v4155 = vsub.s32 %v4154, 127
      %v4156 = vand.u32 2147483647, %v3206
      %v4157 = vand.u32 %v4156, 8388607
      %v4158 = vor.u32 %v4157, 8388608
      %v4159 = vsub.s32 0, %v4158
      %v4160 = vadd.s32 %v4155, 1
      %vm4161 = vcmp.gt.s32.totalorder %v4160, 0
      %v4162 = vsel %vm4161, %v4160, 0
      %v4163 = vshrl.u32 %v4162, 5
      %v4164 = vand.u32 %v4162, 31
      %v4165 = vsub.s32 32, %v4164
      %v4166 = vshrl.u32 683565275, %v4165
      %v4167 = vshll.u32 683565275, %v4164
      %v4168 = vshrl.u32 2475754826, %v4165
      %v4169 = vor.u32 %v4167, %v4168
      %v4170 = vshll.u32 2475754826, %v4164
      %v4171 = vshrl.u32 2131351028, %v4165
      %v4172 = vor.u32 %v4170, %v4171
      %v4173 = vshll.u32 2131351028, %v4164
      %v4174 = vshrl.u32 2102212464, %v4165
      %v4175 = vor.u32 %v4173, %v4174
      %v4176 = vshll.u32 2102212464, %v4164
      %v4177 = vshrl.u32 920167782, %v4165
      %v4178 = vor.u32 %v4176, %v4177
      %v4179 = vshll.u32 920167782, %v4164
      %v4180 = vshrl.u32 1326507024, %v4165
      %v4181 = vor.u32 %v4179, %v4180
      %vm4182 = vcmp.lt.s32.totalorder %v4163, 1
      %vm4183 = vcmp.lt.s32.totalorder %v4163, 2
      %vm4184 = vcmp.lt.s32.totalorder %v4163, 3
      %vm4185 = vcmp.lt.s32.totalorder %v4163, 4
      %v4186 = vsel %vm4182, %v4166, %v4169
      %v4187 = vsel %vm4185, %v4175, 2102212464
      %v4188 = vsel %vm4184, %v4172, %v4187
      %v4189 = vsel %vm4183, %v4186, %v4188
      %v4190 = vsel %vm4182, %v4169, %v4172
      %v4191 = vsel %vm4185, %v4178, 920167782
      %v4192 = vsel %vm4184, %v4175, %v4191
      %v4193 = vsel %vm4183, %v4190, %v4192
      %v4194 = vsel %vm4182, %v4172, %v4175
      %v4195 = vsel %vm4185, %v4181, 1326507024
      %v4196 = vsel %vm4184, %v4178, %v4195
      %v4197 = vsel %vm4183, %v4194, %v4196
      %v4198 = vshll.u32 %v4158, 8
      %v4199 = vmul.u32.u64.compose %v4198, %v4197
      %v4200 = vextract.low.u32 %v4199
      %v4201 = vextract.high.u32 %v4199
      %v4202 = vmul.u32.u64.compose %v4198, %v4193
      %v4203 = vextract.low.u32 %v4202
      %v4204 = vextract.high.u32 %v4202
      %v4205 = vmul.u32 %v4198, %v4189
      %v4206 = vadd.s32 %v4201, %v4203
      %vm4207 = vc.u32 %v4201, %v4203
      %v4208 = vadd.s32 %v4204, 1
      %v4209 = vsel %vm4207, %v4208, %v4204
      %v4210 = vadd.s32 %v4205, %v4209
      %v4211 = vadd.s32 %v4210, 536870912
      %v4212 = vshrl.u32 %v4211, 30
      %v4213 = vshll.u32 %v4212, 30
      %v4214 = vsub.s32 %v4210, %v4213
      %vm4215 = vcmp.lt.s32.totalorder %v4214, 0
      %v4216 = vsub.s32 0, %v4214
      %v4217 = vsel %vm4215, %v4216, %v4214
      %v4218 = vclz %v4217
      %v4219 = vsub.s32 %v4218, 2
      %vm4220 = vcmp.gt.s32.totalorder 0, %v4219
      %v4221 = vsel %vm4220, 0, %v4219
      %v4222 = vsub.s32 32, %v4221
      %v4223 = vshll.u32 %v4214, %v4221
      %v4224 = vshrl.u32 %v4206, %v4222
      %v4225 = vor.u32 %v4223, %v4224
      %v4226 = vsub.s32 4294967266, %v4221
      %v4227 = vadd.s32 %v4226, 127
      %v4228 = vshll.u32 %v4227, 23
      %v4229 = vor.u32 4788187, %v4228
      %v4230 = vand.u32 2147483647, %v4229
      %v4232 = vcvt.s32.f32 %v4225
      %v4233 = vmul.f32 %v4232, %v4230
      %v4234 = vxor.u32 %v4233, 2147483648
      %v4235 = vsel %vm4152, %v4234, %v4233
      %v4236 = vsub.s32 4, %v4212
      %v4237 = vsel %vm4152, %v4236, %v4212
      %v4238 = vsel %vm4151, %v3206, %v4235
      %v4239 = vsel %vm4151, 0, %v4237
      %v4240 = vcosq.f32.pop %v4238
      %v4241 = vsinq.f32.pop %v4238
      %vm4242 = vweird.f32 %v3206
      %v4243 = vadd.s32 %v4239, 3
      %v4244 = vand.u32 %v4243, 3
      %vm4245 = vcmp.lt.s32.totalorder %v4244, 2
      %vm4246 = vcmp.eq.s32.totalorder %v4244, 0
      %v4247 = vxor.u32 %v4241, 2147483648
      %v4248 = vsel %vm4246, %v4240, %v4247
      %vm4249 = vcmp.eq.s32.totalorder %v4244, 2
      %v4250 = vxor.u32 %v4240, 2147483648
      %v4251 = vsel %vm4249, %v4250, %v4241
      %v4252 = vsel %vm4245, %v4248, %v4251
      %v4253 = vsel %vm4242, nan, %v4252
      %v4254 = vand.u32 2147483647, %v3207
      %vm4255 = vcmp.le.f32.partialorder %v4254, 0.7853982
      %vm4256 = vcmp.lt.s32.totalorder %v3207, 0
      %v4257 = vand.u32 %v3207, 2139095040
      %v4258 = vshrl.u32 %v4257, 23
      %v4259 = vsub.s32 %v4258, 127
      %v4260 = vand.u32 2147483647, %v3207
      %v4261 = vand.u32 %v4260, 8388607
      %v4262 = vor.u32 %v4261, 8388608
      %v4263 = vsub.s32 0, %v4262
      %v4264 = vadd.s32 %v4259, 1
      %vm4265 = vcmp.gt.s32.totalorder %v4264, 0
      %v4266 = vsel %vm4265, %v4264, 0
      %v4267 = vshrl.u32 %v4266, 5
      %v4268 = vand.u32 %v4266, 31
      %v4269 = vsub.s32 32, %v4268
      %v4270 = vshrl.u32 683565275, %v4269
      %v4271 = vshll.u32 683565275, %v4268
      %v4272 = vshrl.u32 2475754826, %v4269
      %v4273 = vor.u32 %v4271, %v4272
      %v4274 = vshll.u32 2475754826, %v4268
      %v4275 = vshrl.u32 2131351028, %v4269
      %v4276 = vor.u32 %v4274, %v4275
      %v4277 = vshll.u32 2131351028, %v4268
      %v4278 = vshrl.u32 2102212464, %v4269
      %v4279 = vor.u32 %v4277, %v4278
      %v4280 = vshll.u32 2102212464, %v4268
      %v4281 = vshrl.u32 920167782, %v4269
      %v4282 = vor.u32 %v4280, %v4281
      %v4283 = vshll.u32 920167782, %v4268
      %v4284 = vshrl.u32 1326507024, %v4269
      %v4285 = vor.u32 %v4283, %v4284
      %vm4286 = vcmp.lt.s32.totalorder %v4267, 1
      %vm4287 = vcmp.lt.s32.totalorder %v4267, 2
      %vm4288 = vcmp.lt.s32.totalorder %v4267, 3
      %vm4289 = vcmp.lt.s32.totalorder %v4267, 4
      %v4290 = vsel %vm4286, %v4270, %v4273
      %v4291 = vsel %vm4289, %v4279, 2102212464
      %v4292 = vsel %vm4288, %v4276, %v4291
      %v4293 = vsel %vm4287, %v4290, %v4292
      %v4294 = vsel %vm4286, %v4273, %v4276
      %v4295 = vsel %vm4289, %v4282, 920167782
      %v4296 = vsel %vm4288, %v4279, %v4295
      %v4297 = vsel %vm4287, %v4294, %v4296
      %v4298 = vsel %vm4286, %v4276, %v4279
      %v4299 = vsel %vm4289, %v4285, 1326507024
      %v4300 = vsel %vm4288, %v4282, %v4299
      %v4301 = vsel %vm4287, %v4298, %v4300
      %v4302 = vshll.u32 %v4262, 8
      %v4303 = vmul.u32.u64.compose %v4302, %v4301
      %v4304 = vextract.low.u32 %v4303
      %v4305 = vextract.high.u32 %v4303
      %v4306 = vmul.u32.u64.compose %v4302, %v4297
      %v4307 = vextract.low.u32 %v4306
      %v4308 = vextract.high.u32 %v4306
      %v4309 = vmul.u32 %v4302, %v4293
      %v4310 = vadd.s32 %v4305, %v4307
      %vm4311 = vc.u32 %v4305, %v4307
      %v4312 = vadd.s32 %v4308, 1
      %v4313 = vsel %vm4311, %v4312, %v4308
      %v4314 = vadd.s32 %v4309, %v4313
      %v4315 = vadd.s32 %v4314, 536870912
      %v4316 = vshrl.u32 %v4315, 30
      %v4317 = vshll.u32 %v4316, 30
      %v4318 = vsub.s32 %v4314, %v4317
      %vm4319 = vcmp.lt.s32.totalorder %v4318, 0
      %v4320 = vsub.s32 0, %v4318
      %v4321 = vsel %vm4319, %v4320, %v4318
      %v4322 = vclz %v4321
      %v4323 = vsub.s32 %v4322, 2
      %vm4324 = vcmp.gt.s32.totalorder 0, %v4323
      %v4325 = vsel %vm4324, 0, %v4323
      %v4326 = vsub.s32 32, %v4325
      %v4327 = vshll.u32 %v4318, %v4325
      %v4328 = vshrl.u32 %v4310, %v4326
      %v4329 = vor.u32 %v4327, %v4328
      %v4330 = vsub.s32 4294967266, %v4325
      %v4331 = vadd.s32 %v4330, 127
      %v4332 = vshll.u32 %v4331, 23
      %v4333 = vor.u32 4788187, %v4332
      %v4334 = vand.u32 2147483647, %v4333
      %v4336 = vcvt.s32.f32 %v4329
      %v4337 = vmul.f32 %v4336, %v4334
      %v4338 = vxor.u32 %v4337, 2147483648
      %v4339 = vsel %vm4256, %v4338, %v4337
      %v4340 = vsub.s32 4, %v4316
      %v4341 = vsel %vm4256, %v4340, %v4316
      %v4342 = vsel %vm4255, %v3207, %v4339
      %v4343 = vsel %vm4255, 0, %v4341
      %v4344 = vcosq.f32.pop %v4342
      %v4345 = vsinq.f32.pop %v4342
      %vm4346 = vweird.f32 %v3207
      %v4347 = vadd.s32 %v4343, 3
      %v4348 = vand.u32 %v4347, 3
      %vm4349 = vcmp.lt.s32.totalorder %v4348, 2
      %vm4350 = vcmp.eq.s32.totalorder %v4348, 0
      %v4351 = vxor.u32 %v4345, 2147483648
      %v4352 = vsel %vm4350, %v4344, %v4351
      %vm4353 = vcmp.eq.s32.totalorder %v4348, 2
      %v4354 = vxor.u32 %v4344, 2147483648
      %v4355 = vsel %vm4353, %v4354, %v4345
      %v4356 = vsel %vm4349, %v4352, %v4355
      %v4357 = vsel %vm4346, nan, %v4356
      %v4358 = vand.u32 2147483647, %v3208
      %vm4359 = vcmp.le.f32.partialorder %v4358, 0.7853982
      %vm4360 = vcmp.lt.s32.totalorder %v3208, 0
      %v4361 = vand.u32 %v3208, 2139095040
      %v4362 = vshrl.u32 %v4361, 23
      %v4363 = vsub.s32 %v4362, 127
      %v4364 = vand.u32 2147483647, %v3208
      %v4365 = vand.u32 %v4364, 8388607
      %v4366 = vor.u32 %v4365, 8388608
      %v4367 = vsub.s32 0, %v4366
      %v4368 = vadd.s32 %v4363, 1
      %vm4369 = vcmp.gt.s32.totalorder %v4368, 0
      %v4370 = vsel %vm4369, %v4368, 0
      %v4371 = vshrl.u32 %v4370, 5
      %v4372 = vand.u32 %v4370, 31
      %v4373 = vsub.s32 32, %v4372
      %v4374 = vshrl.u32 683565275, %v4373
      %v4375 = vshll.u32 683565275, %v4372
      %v4376 = vshrl.u32 2475754826, %v4373
      %v4377 = vor.u32 %v4375, %v4376
      %v4378 = vshll.u32 2475754826, %v4372
      %v4379 = vshrl.u32 2131351028, %v4373
      %v4380 = vor.u32 %v4378, %v4379
      %v4381 = vshll.u32 2131351028, %v4372
      %v4382 = vshrl.u32 2102212464, %v4373
      %v4383 = vor.u32 %v4381, %v4382
      %v4384 = vshll.u32 2102212464, %v4372
      %v4385 = vshrl.u32 920167782, %v4373
      %v4386 = vor.u32 %v4384, %v4385
      %v4387 = vshll.u32 920167782, %v4372
      %v4388 = vshrl.u32 1326507024, %v4373
      %v4389 = vor.u32 %v4387, %v4388
      %vm4390 = vcmp.lt.s32.totalorder %v4371, 1
      %vm4391 = vcmp.lt.s32.totalorder %v4371, 2
      %vm4392 = vcmp.lt.s32.totalorder %v4371, 3
      %vm4393 = vcmp.lt.s32.totalorder %v4371, 4
      %v4394 = vsel %vm4390, %v4374, %v4377
      %v4395 = vsel %vm4393, %v4383, 2102212464
      %v4396 = vsel %vm4392, %v4380, %v4395
      %v4397 = vsel %vm4391, %v4394, %v4396
      %v4398 = vsel %vm4390, %v4377, %v4380
      %v4399 = vsel %vm4393, %v4386, 920167782
      %v4400 = vsel %vm4392, %v4383, %v4399
      %v4401 = vsel %vm4391, %v4398, %v4400
      %v4402 = vsel %vm4390, %v4380, %v4383
      %v4403 = vsel %vm4393, %v4389, 1326507024
      %v4404 = vsel %vm4392, %v4386, %v4403
      %v4405 = vsel %vm4391, %v4402, %v4404
      %v4406 = vshll.u32 %v4366, 8
      %v4407 = vmul.u32.u64.compose %v4406, %v4405
      %v4408 = vextract.low.u32 %v4407
      %v4409 = vextract.high.u32 %v4407
      %v4410 = vmul.u32.u64.compose %v4406, %v4401
      %v4411 = vextract.low.u32 %v4410
      %v4412 = vextract.high.u32 %v4410
      %v4413 = vmul.u32 %v4406, %v4397
      %v4414 = vadd.s32 %v4409, %v4411
      %vm4415 = vc.u32 %v4409, %v4411
      %v4416 = vadd.s32 %v4412, 1
      %v4417 = vsel %vm4415, %v4416, %v4412
      %v4418 = vadd.s32 %v4413, %v4417
      %v4419 = vadd.s32 %v4418, 536870912
      %v4420 = vshrl.u32 %v4419, 30
      %v4421 = vshll.u32 %v4420, 30
      %v4422 = vsub.s32 %v4418, %v4421
      %vm4423 = vcmp.lt.s32.totalorder %v4422, 0
      %v4424 = vsub.s32 0, %v4422
      %v4425 = vsel %vm4423, %v4424, %v4422
      %v4426 = vclz %v4425
      %v4427 = vsub.s32 %v4426, 2
      %vm4428 = vcmp.gt.s32.totalorder 0, %v4427
      %v4429 = vsel %vm4428, 0, %v4427
      %v4430 = vsub.s32 32, %v4429
      %v4431 = vshll.u32 %v4422, %v4429
      %v4432 = vshrl.u32 %v4414, %v4430
      %v4433 = vor.u32 %v4431, %v4432
      %v4434 = vsub.s32 4294967266, %v4429
      %v4435 = vadd.s32 %v4434, 127
      %v4436 = vshll.u32 %v4435, 23
      %v4437 = vor.u32 4788187, %v4436
      %v4438 = vand.u32 2147483647, %v4437
      %v4440 = vcvt.s32.f32 %v4433
      %v4441 = vmul.f32 %v4440, %v4438
      %v4442 = vxor.u32 %v4441, 2147483648
      %v4443 = vsel %vm4360, %v4442, %v4441
      %v4444 = vsub.s32 4, %v4420
      %v4445 = vsel %vm4360, %v4444, %v4420
      %v4446 = vsel %vm4359, %v3208, %v4443
      %v4447 = vsel %vm4359, 0, %v4445
      %v4448 = vcosq.f32.pop %v4446
      %v4449 = vsinq.f32.pop %v4446
      %vm4450 = vweird.f32 %v3208
      %v4451 = vadd.s32 %v4447, 3
      %v4452 = vand.u32 %v4451, 3
      %vm4453 = vcmp.lt.s32.totalorder %v4452, 2
      %vm4454 = vcmp.eq.s32.totalorder %v4452, 0
      %v4455 = vxor.u32 %v4449, 2147483648
      %v4456 = vsel %vm4454, %v4448, %v4455
      %vm4457 = vcmp.eq.s32.totalorder %v4452, 2
      %v4458 = vxor.u32 %v4448, 2147483648
      %v4459 = vsel %vm4457, %v4458, %v4449
      %v4460 = vsel %vm4453, %v4456, %v4459
      %v4461 = vsel %vm4450, nan, %v4460
      %v4462 = vand.u32 2147483647, %v3209
      %vm4463 = vcmp.le.f32.partialorder %v4462, 0.7853982
      %vm4464 = vcmp.lt.s32.totalorder %v3209, 0
      %v4465 = vand.u32 %v3209, 2139095040
      %v4466 = vshrl.u32 %v4465, 23
      %v4467 = vsub.s32 %v4466, 127
      %v4468 = vand.u32 2147483647, %v3209
      %v4469 = vand.u32 %v4468, 8388607
      %v4470 = vor.u32 %v4469, 8388608
      %v4471 = vsub.s32 0, %v4470
      %v4472 = vadd.s32 %v4467, 1
      %vm4473 = vcmp.gt.s32.totalorder %v4472, 0
      %v4474 = vsel %vm4473, %v4472, 0
      %v4475 = vshrl.u32 %v4474, 5
      %v4476 = vand.u32 %v4474, 31
      %v4477 = vsub.s32 32, %v4476
      %v4478 = vshrl.u32 683565275, %v4477
      %v4479 = vshll.u32 683565275, %v4476
      %v4480 = vshrl.u32 2475754826, %v4477
      %v4481 = vor.u32 %v4479, %v4480
      %v4482 = vshll.u32 2475754826, %v4476
      %v4483 = vshrl.u32 2131351028, %v4477
      %v4484 = vor.u32 %v4482, %v4483
      %v4485 = vshll.u32 2131351028, %v4476
      %v4486 = vshrl.u32 2102212464, %v4477
      %v4487 = vor.u32 %v4485, %v4486
      %v4488 = vshll.u32 2102212464, %v4476
      %v4489 = vshrl.u32 920167782, %v4477
      %v4490 = vor.u32 %v4488, %v4489
      %v4491 = vshll.u32 920167782, %v4476
      %v4492 = vshrl.u32 1326507024, %v4477
      %v4493 = vor.u32 %v4491, %v4492
      %vm4494 = vcmp.lt.s32.totalorder %v4475, 1
      %vm4495 = vcmp.lt.s32.totalorder %v4475, 2
      %vm4496 = vcmp.lt.s32.totalorder %v4475, 3
      %vm4497 = vcmp.lt.s32.totalorder %v4475, 4
      %v4498 = vsel %vm4494, %v4478, %v4481
      %v4499 = vsel %vm4497, %v4487, 2102212464
      %v4500 = vsel %vm4496, %v4484, %v4499
      %v4501 = vsel %vm4495, %v4498, %v4500
      %v4502 = vsel %vm4494, %v4481, %v4484
      %v4503 = vsel %vm4497, %v4490, 920167782
      %v4504 = vsel %vm4496, %v4487, %v4503
      %v4505 = vsel %vm4495, %v4502, %v4504
      %v4506 = vsel %vm4494, %v4484, %v4487
      %v4507 = vsel %vm4497, %v4493, 1326507024
      %v4508 = vsel %vm4496, %v4490, %v4507
      %v4509 = vsel %vm4495, %v4506, %v4508
      %v4510 = vshll.u32 %v4470, 8
      %v4511 = vmul.u32.u64.compose %v4510, %v4509
      %v4512 = vextract.low.u32 %v4511
      %v4513 = vextract.high.u32 %v4511
      %v4514 = vmul.u32.u64.compose %v4510, %v4505
      %v4515 = vextract.low.u32 %v4514
      %v4516 = vextract.high.u32 %v4514
      %v4517 = vmul.u32 %v4510, %v4501
      %v4518 = vadd.s32 %v4513, %v4515
      %vm4519 = vc.u32 %v4513, %v4515
      %v4520 = vadd.s32 %v4516, 1
      %v4521 = vsel %vm4519, %v4520, %v4516
      %v4522 = vadd.s32 %v4517, %v4521
      %v4523 = vadd.s32 %v4522, 536870912
      %v4524 = vshrl.u32 %v4523, 30
      %v4525 = vshll.u32 %v4524, 30
      %v4526 = vsub.s32 %v4522, %v4525
      %vm4527 = vcmp.lt.s32.totalorder %v4526, 0
      %v4528 = vsub.s32 0, %v4526
      %v4529 = vsel %vm4527, %v4528, %v4526
      %v4530 = vclz %v4529
      %v4531 = vsub.s32 %v4530, 2
      %vm4532 = vcmp.gt.s32.totalorder 0, %v4531
      %v4533 = vsel %vm4532, 0, %v4531
      %v4534 = vsub.s32 32, %v4533
      %v4535 = vshll.u32 %v4526, %v4533
      %v4536 = vshrl.u32 %v4518, %v4534
      %v4537 = vor.u32 %v4535, %v4536
      %v4538 = vsub.s32 4294967266, %v4533
      %v4539 = vadd.s32 %v4538, 127
      %v4540 = vshll.u32 %v4539, 23
      %v4541 = vor.u32 4788187, %v4540
      %v4542 = vand.u32 2147483647, %v4541
      %v4544 = vcvt.s32.f32 %v4537
      %v4545 = vmul.f32 %v4544, %v4542
      %v4546 = vxor.u32 %v4545, 2147483648
      %v4547 = vsel %vm4464, %v4546, %v4545
      %v4548 = vsub.s32 4, %v4524
      %v4549 = vsel %vm4464, %v4548, %v4524
      %v4550 = vsel %vm4463, %v3209, %v4547
      %v4551 = vsel %vm4463, 0, %v4549
      %v4552 = vcosq.f32.pop %v4550
      %v4553 = vsinq.f32.pop %v4550
      %vm4554 = vweird.f32 %v3209
      %v4555 = vadd.s32 %v4551, 3
      %v4556 = vand.u32 %v4555, 3
      %vm4557 = vcmp.lt.s32.totalorder %v4556, 2
      %vm4558 = vcmp.eq.s32.totalorder %v4556, 0
      %v4559 = vxor.u32 %v4553, 2147483648
      %v4560 = vsel %vm4558, %v4552, %v4559
      %vm4561 = vcmp.eq.s32.totalorder %v4556, 2
      %v4562 = vxor.u32 %v4552, 2147483648
      %v4563 = vsel %vm4561, %v4562, %v4553
      %v4564 = vsel %vm4557, %v4560, %v4563
      %v4565 = vsel %vm4554, nan, %v4564
      %v4566 = vand.u32 2147483647, %v3210
      %vm4567 = vcmp.le.f32.partialorder %v4566, 0.7853982
      %vm4568 = vcmp.lt.s32.totalorder %v3210, 0
      %v4569 = vand.u32 %v3210, 2139095040
      %v4570 = vshrl.u32 %v4569, 23
      %v4571 = vsub.s32 %v4570, 127
      %v4572 = vand.u32 2147483647, %v3210
      %v4573 = vand.u32 %v4572, 8388607
      %v4574 = vor.u32 %v4573, 8388608
      %v4575 = vsub.s32 0, %v4574
      %v4576 = vadd.s32 %v4571, 1
      %vm4577 = vcmp.gt.s32.totalorder %v4576, 0
      %v4578 = vsel %vm4577, %v4576, 0
      %v4579 = vshrl.u32 %v4578, 5
      %v4580 = vand.u32 %v4578, 31
      %v4581 = vsub.s32 32, %v4580
      %v4582 = vshrl.u32 683565275, %v4581
      %v4583 = vshll.u32 683565275, %v4580
      %v4584 = vshrl.u32 2475754826, %v4581
      %v4585 = vor.u32 %v4583, %v4584
      %v4586 = vshll.u32 2475754826, %v4580
      %v4587 = vshrl.u32 2131351028, %v4581
      %v4588 = vor.u32 %v4586, %v4587
      %v4589 = vshll.u32 2131351028, %v4580
      %v4590 = vshrl.u32 2102212464, %v4581
      %v4591 = vor.u32 %v4589, %v4590
      %v4592 = vshll.u32 2102212464, %v4580
      %v4593 = vshrl.u32 920167782, %v4581
      %v4594 = vor.u32 %v4592, %v4593
      %v4595 = vshll.u32 920167782, %v4580
      %v4596 = vshrl.u32 1326507024, %v4581
      %v4597 = vor.u32 %v4595, %v4596
      %vm4598 = vcmp.lt.s32.totalorder %v4579, 1
      %vm4599 = vcmp.lt.s32.totalorder %v4579, 2
      %vm4600 = vcmp.lt.s32.totalorder %v4579, 3
      %vm4601 = vcmp.lt.s32.totalorder %v4579, 4
      %v4602 = vsel %vm4598, %v4582, %v4585
      %v4603 = vsel %vm4601, %v4591, 2102212464
      %v4604 = vsel %vm4600, %v4588, %v4603
      %v4605 = vsel %vm4599, %v4602, %v4604
      %v4606 = vsel %vm4598, %v4585, %v4588
      %v4607 = vsel %vm4601, %v4594, 920167782
      %v4608 = vsel %vm4600, %v4591, %v4607
      %v4609 = vsel %vm4599, %v4606, %v4608
      %v4610 = vsel %vm4598, %v4588, %v4591
      %v4611 = vsel %vm4601, %v4597, 1326507024
      %v4612 = vsel %vm4600, %v4594, %v4611
      %v4613 = vsel %vm4599, %v4610, %v4612
      %v4614 = vshll.u32 %v4574, 8
      %v4615 = vmul.u32.u64.compose %v4614, %v4613
      %v4616 = vextract.low.u32 %v4615
      %v4617 = vextract.high.u32 %v4615
      %v4618 = vmul.u32.u64.compose %v4614, %v4609
      %v4619 = vextract.low.u32 %v4618
      %v4620 = vextract.high.u32 %v4618
      %v4621 = vmul.u32 %v4614, %v4605
      %v4622 = vadd.s32 %v4617, %v4619
      %vm4623 = vc.u32 %v4617, %v4619
      %v4624 = vadd.s32 %v4620, 1
      %v4625 = vsel %vm4623, %v4624, %v4620
      %v4626 = vadd.s32 %v4621, %v4625
      %v4627 = vadd.s32 %v4626, 536870912
      %v4628 = vshrl.u32 %v4627, 30
      %v4629 = vshll.u32 %v4628, 30
      %v4630 = vsub.s32 %v4626, %v4629
      %vm4631 = vcmp.lt.s32.totalorder %v4630, 0
      %v4632 = vsub.s32 0, %v4630
      %v4633 = vsel %vm4631, %v4632, %v4630
      %v4634 = vclz %v4633
      %v4635 = vsub.s32 %v4634, 2
      %vm4636 = vcmp.gt.s32.totalorder 0, %v4635
      %v4637 = vsel %vm4636, 0, %v4635
      %v4638 = vsub.s32 32, %v4637
      %v4639 = vshll.u32 %v4630, %v4637
      %v4640 = vshrl.u32 %v4622, %v4638
      %v4641 = vor.u32 %v4639, %v4640
      %v4642 = vsub.s32 4294967266, %v4637
      %v4643 = vadd.s32 %v4642, 127
      %v4644 = vshll.u32 %v4643, 23
      %v4645 = vor.u32 4788187, %v4644
      %v4646 = vand.u32 2147483647, %v4645
      %v4648 = vcvt.s32.f32 %v4641
      %v4649 = vmul.f32 %v4648, %v4646
      %v4650 = vxor.u32 %v4649, 2147483648
      %v4651 = vsel %vm4568, %v4650, %v4649
      %v4652 = vsub.s32 4, %v4628
      %v4653 = vsel %vm4568, %v4652, %v4628
      %v4654 = vsel %vm4567, %v3210, %v4651
      %v4655 = vsel %vm4567, 0, %v4653
      %v4656 = vcosq.f32.pop %v4654
      %v4657 = vsinq.f32.pop %v4654
      %vm4658 = vweird.f32 %v3210
      %v4659 = vadd.s32 %v4655, 3
      %v4660 = vand.u32 %v4659, 3
      %vm4661 = vcmp.lt.s32.totalorder %v4660, 2
      %vm4662 = vcmp.eq.s32.totalorder %v4660, 0
      %v4663 = vxor.u32 %v4657, 2147483648
      %v4664 = vsel %vm4662, %v4656, %v4663
      %vm4665 = vcmp.eq.s32.totalorder %v4660, 2
      %v4666 = vxor.u32 %v4656, 2147483648
      %v4667 = vsel %vm4665, %v4666, %v4657
      %v4668 = vsel %vm4661, %v4664, %v4667
      %v4669 = vsel %vm4658, nan, %v4668
      %v4670 = vand.u32 2147483647, %v3211
      %vm4671 = vcmp.le.f32.partialorder %v4670, 0.7853982
      %vm4672 = vcmp.lt.s32.totalorder %v3211, 0
      %v4673 = vand.u32 %v3211, 2139095040
      %v4674 = vshrl.u32 %v4673, 23
      %v4675 = vsub.s32 %v4674, 127
      %v4676 = vand.u32 2147483647, %v3211
      %v4677 = vand.u32 %v4676, 8388607
      %v4678 = vor.u32 %v4677, 8388608
      %v4679 = vsub.s32 0, %v4678
      %v4680 = vadd.s32 %v4675, 1
      %vm4681 = vcmp.gt.s32.totalorder %v4680, 0
      %v4682 = vsel %vm4681, %v4680, 0
      %v4683 = vshrl.u32 %v4682, 5
      %v4684 = vand.u32 %v4682, 31
      %v4685 = vsub.s32 32, %v4684
      %v4686 = vshrl.u32 683565275, %v4685
      %v4687 = vshll.u32 683565275, %v4684
      %v4688 = vshrl.u32 2475754826, %v4685
      %v4689 = vor.u32 %v4687, %v4688
      %v4690 = vshll.u32 2475754826, %v4684
      %v4691 = vshrl.u32 2131351028, %v4685
      %v4692 = vor.u32 %v4690, %v4691
      %v4693 = vshll.u32 2131351028, %v4684
      %v4694 = vshrl.u32 2102212464, %v4685
      %v4695 = vor.u32 %v4693, %v4694
      %v4696 = vshll.u32 2102212464, %v4684
      %v4697 = vshrl.u32 920167782, %v4685
      %v4698 = vor.u32 %v4696, %v4697
      %v4699 = vshll.u32 920167782, %v4684
      %v4700 = vshrl.u32 1326507024, %v4685
      %v4701 = vor.u32 %v4699, %v4700
      %vm4702 = vcmp.lt.s32.totalorder %v4683, 1
      %vm4703 = vcmp.lt.s32.totalorder %v4683, 2
      %vm4704 = vcmp.lt.s32.totalorder %v4683, 3
      %vm4705 = vcmp.lt.s32.totalorder %v4683, 4
      %v4706 = vsel %vm4702, %v4686, %v4689
      %v4707 = vsel %vm4705, %v4695, 2102212464
      %v4708 = vsel %vm4704, %v4692, %v4707
      %v4709 = vsel %vm4703, %v4706, %v4708
      %v4710 = vsel %vm4702, %v4689, %v4692
      %v4711 = vsel %vm4705, %v4698, 920167782
      %v4712 = vsel %vm4704, %v4695, %v4711
      %v4713 = vsel %vm4703, %v4710, %v4712
      %v4714 = vsel %vm4702, %v4692, %v4695
      %v4715 = vsel %vm4705, %v4701, 1326507024
      %v4716 = vsel %vm4704, %v4698, %v4715
      %v4717 = vsel %vm4703, %v4714, %v4716
      %v4718 = vshll.u32 %v4678, 8
      %v4719 = vmul.u32.u64.compose %v4718, %v4717
      %v4720 = vextract.low.u32 %v4719
      %v4721 = vextract.high.u32 %v4719
      %v4722 = vmul.u32.u64.compose %v4718, %v4713
      %v4723 = vextract.low.u32 %v4722
      %v4724 = vextract.high.u32 %v4722
      %v4725 = vmul.u32 %v4718, %v4709
      %v4726 = vadd.s32 %v4721, %v4723
      %vm4727 = vc.u32 %v4721, %v4723
      %v4728 = vadd.s32 %v4724, 1
      %v4729 = vsel %vm4727, %v4728, %v4724
      %v4730 = vadd.s32 %v4725, %v4729
      %v4731 = vadd.s32 %v4730, 536870912
      %v4732 = vshrl.u32 %v4731, 30
      %v4733 = vshll.u32 %v4732, 30
      %v4734 = vsub.s32 %v4730, %v4733
      %vm4735 = vcmp.lt.s32.totalorder %v4734, 0
      %v4736 = vsub.s32 0, %v4734
      %v4737 = vsel %vm4735, %v4736, %v4734
      %v4738 = vclz %v4737
      %v4739 = vsub.s32 %v4738, 2
      %vm4740 = vcmp.gt.s32.totalorder 0, %v4739
      %v4741 = vsel %vm4740, 0, %v4739
      %v4742 = vsub.s32 32, %v4741
      %v4743 = vshll.u32 %v4734, %v4741
      %v4744 = vshrl.u32 %v4726, %v4742
      %v4745 = vor.u32 %v4743, %v4744
      %v4746 = vsub.s32 4294967266, %v4741
      %v4747 = vadd.s32 %v4746, 127
      %v4748 = vshll.u32 %v4747, 23
      %v4749 = vor.u32 4788187, %v4748
      %v4750 = vand.u32 2147483647, %v4749
      %v4752 = vcvt.s32.f32 %v4745
      %v4753 = vmul.f32 %v4752, %v4750
      %v4754 = vxor.u32 %v4753, 2147483648
      %v4755 = vsel %vm4672, %v4754, %v4753
      %v4756 = vsub.s32 4, %v4732
      %v4757 = vsel %vm4672, %v4756, %v4732
      %v4758 = vsel %vm4671, %v3211, %v4755
      %v4759 = vsel %vm4671, 0, %v4757
      %v4760 = vcosq.f32.pop %v4758
      %v4761 = vsinq.f32.pop %v4758
      %vm4762 = vweird.f32 %v3211
      %v4763 = vadd.s32 %v4759, 3
      %v4764 = vand.u32 %v4763, 3
      %vm4765 = vcmp.lt.s32.totalorder %v4764, 2
      %vm4766 = vcmp.eq.s32.totalorder %v4764, 0
      %v4767 = vxor.u32 %v4761, 2147483648
      %v4768 = vsel %vm4766, %v4760, %v4767
      %vm4769 = vcmp.eq.s32.totalorder %v4764, 2
      %v4770 = vxor.u32 %v4760, 2147483648
      %v4771 = vsel %vm4769, %v4770, %v4761
      %v4772 = vsel %vm4765, %v4768, %v4771
      %v4773 = vsel %vm4762, nan, %v4772
      %v4774 = vand.u32 2147483647, %v3212
      %vm4775 = vcmp.le.f32.partialorder %v4774, 0.7853982
      %vm4776 = vcmp.lt.s32.totalorder %v3212, 0
      %v4777 = vand.u32 %v3212, 2139095040
      %v4778 = vshrl.u32 %v4777, 23
      %v4779 = vsub.s32 %v4778, 127
      %v4780 = vand.u32 2147483647, %v3212
      %v4781 = vand.u32 %v4780, 8388607
      %v4782 = vor.u32 %v4781, 8388608
      %v4783 = vsub.s32 0, %v4782
      %v4784 = vadd.s32 %v4779, 1
      %vm4785 = vcmp.gt.s32.totalorder %v4784, 0
      %v4786 = vsel %vm4785, %v4784, 0
      %v4787 = vshrl.u32 %v4786, 5
      %v4788 = vand.u32 %v4786, 31
      %v4789 = vsub.s32 32, %v4788
      %v4790 = vshrl.u32 683565275, %v4789
      %v4791 = vshll.u32 683565275, %v4788
      %v4792 = vshrl.u32 2475754826, %v4789
      %v4793 = vor.u32 %v4791, %v4792
      %v4794 = vshll.u32 2475754826, %v4788
      %v4795 = vshrl.u32 2131351028, %v4789
      %v4796 = vor.u32 %v4794, %v4795
      %v4797 = vshll.u32 2131351028, %v4788
      %v4798 = vshrl.u32 2102212464, %v4789
      %v4799 = vor.u32 %v4797, %v4798
      %v4800 = vshll.u32 2102212464, %v4788
      %v4801 = vshrl.u32 920167782, %v4789
      %v4802 = vor.u32 %v4800, %v4801
      %v4803 = vshll.u32 920167782, %v4788
      %v4804 = vshrl.u32 1326507024, %v4789
      %v4805 = vor.u32 %v4803, %v4804
      %vm4806 = vcmp.lt.s32.totalorder %v4787, 1
      %vm4807 = vcmp.lt.s32.totalorder %v4787, 2
      %vm4808 = vcmp.lt.s32.totalorder %v4787, 3
      %vm4809 = vcmp.lt.s32.totalorder %v4787, 4
      %v4810 = vsel %vm4806, %v4790, %v4793
      %v4811 = vsel %vm4809, %v4799, 2102212464
      %v4812 = vsel %vm4808, %v4796, %v4811
      %v4813 = vsel %vm4807, %v4810, %v4812
      %v4814 = vsel %vm4806, %v4793, %v4796
      %v4815 = vsel %vm4809, %v4802, 920167782
      %v4816 = vsel %vm4808, %v4799, %v4815
      %v4817 = vsel %vm4807, %v4814, %v4816
      %v4818 = vsel %vm4806, %v4796, %v4799
      %v4819 = vsel %vm4809, %v4805, 1326507024
      %v4820 = vsel %vm4808, %v4802, %v4819
      %v4821 = vsel %vm4807, %v4818, %v4820
      %v4822 = vshll.u32 %v4782, 8
      %v4823 = vmul.u32.u64.compose %v4822, %v4821
      %v4824 = vextract.low.u32 %v4823
      %v4825 = vextract.high.u32 %v4823
      %v4826 = vmul.u32.u64.compose %v4822, %v4817
      %v4827 = vextract.low.u32 %v4826
      %v4828 = vextract.high.u32 %v4826
      %v4829 = vmul.u32 %v4822, %v4813
      %v4830 = vadd.s32 %v4825, %v4827
      %vm4831 = vc.u32 %v4825, %v4827
      %v4832 = vadd.s32 %v4828, 1
      %v4833 = vsel %vm4831, %v4832, %v4828
      %v4834 = vadd.s32 %v4829, %v4833
      %v4835 = vadd.s32 %v4834, 536870912
      %v4836 = vshrl.u32 %v4835, 30
      %v4837 = vshll.u32 %v4836, 30
      %v4838 = vsub.s32 %v4834, %v4837
      %vm4839 = vcmp.lt.s32.totalorder %v4838, 0
      %v4840 = vsub.s32 0, %v4838
      %v4841 = vsel %vm4839, %v4840, %v4838
      %v4842 = vclz %v4841
      %v4843 = vsub.s32 %v4842, 2
      %vm4844 = vcmp.gt.s32.totalorder 0, %v4843
      %v4845 = vsel %vm4844, 0, %v4843
      %v4846 = vsub.s32 32, %v4845
      %v4847 = vshll.u32 %v4838, %v4845
      %v4848 = vshrl.u32 %v4830, %v4846
      %v4849 = vor.u32 %v4847, %v4848
      %v4850 = vsub.s32 4294967266, %v4845
      %v4851 = vadd.s32 %v4850, 127
      %v4852 = vshll.u32 %v4851, 23
      %v4853 = vor.u32 4788187, %v4852
      %v4854 = vand.u32 2147483647, %v4853
      %v4856 = vcvt.s32.f32 %v4849
      %v4857 = vmul.f32 %v4856, %v4854
      %v4858 = vxor.u32 %v4857, 2147483648
      %v4859 = vsel %vm4776, %v4858, %v4857
      %v4860 = vsub.s32 4, %v4836
      %v4861 = vsel %vm4776, %v4860, %v4836
      %v4862 = vsel %vm4775, %v3212, %v4859
      %v4863 = vsel %vm4775, 0, %v4861
      %v4864 = vcosq.f32.pop %v4862
      %v4865 = vsinq.f32.pop %v4862
      %vm4866 = vweird.f32 %v3212
      %v4867 = vadd.s32 %v4863, 3
      %v4868 = vand.u32 %v4867, 3
      %vm4869 = vcmp.lt.s32.totalorder %v4868, 2
      %vm4870 = vcmp.eq.s32.totalorder %v4868, 0
      %v4871 = vxor.u32 %v4865, 2147483648
      %v4872 = vsel %vm4870, %v4864, %v4871
      %vm4873 = vcmp.eq.s32.totalorder %v4868, 2
      %v4874 = vxor.u32 %v4864, 2147483648
      %v4875 = vsel %vm4873, %v4874, %v4865
      %v4876 = vsel %vm4869, %v4872, %v4875
      %v4877 = vsel %vm4866, nan, %v4876
      %v4878 = vand.u32 2147483647, %v3213
      %vm4879 = vcmp.le.f32.partialorder %v4878, 0.7853982
      %vm4880 = vcmp.lt.s32.totalorder %v3213, 0
      %v4881 = vand.u32 %v3213, 2139095040
      %v4882 = vshrl.u32 %v4881, 23
      %v4883 = vsub.s32 %v4882, 127
      %v4884 = vand.u32 2147483647, %v3213
      %v4885 = vand.u32 %v4884, 8388607
      %v4886 = vor.u32 %v4885, 8388608
      %v4887 = vsub.s32 0, %v4886
      %v4888 = vadd.s32 %v4883, 1
      %vm4889 = vcmp.gt.s32.totalorder %v4888, 0
      %v4890 = vsel %vm4889, %v4888, 0
      %v4891 = vshrl.u32 %v4890, 5
      %v4892 = vand.u32 %v4890, 31
      %v4893 = vsub.s32 32, %v4892
      %v4894 = vshrl.u32 683565275, %v4893
      %v4895 = vshll.u32 683565275, %v4892
      %v4896 = vshrl.u32 2475754826, %v4893
      %v4897 = vor.u32 %v4895, %v4896
      %v4898 = vshll.u32 2475754826, %v4892
      %v4899 = vshrl.u32 2131351028, %v4893
      %v4900 = vor.u32 %v4898, %v4899
      %v4901 = vshll.u32 2131351028, %v4892
      %v4902 = vshrl.u32 2102212464, %v4893
      %v4903 = vor.u32 %v4901, %v4902
      %v4904 = vshll.u32 2102212464, %v4892
      %v4905 = vshrl.u32 920167782, %v4893
      %v4906 = vor.u32 %v4904, %v4905
      %v4907 = vshll.u32 920167782, %v4892
      %v4908 = vshrl.u32 1326507024, %v4893
      %v4909 = vor.u32 %v4907, %v4908
      %vm4910 = vcmp.lt.s32.totalorder %v4891, 1
      %vm4911 = vcmp.lt.s32.totalorder %v4891, 2
      %vm4912 = vcmp.lt.s32.totalorder %v4891, 3
      %vm4913 = vcmp.lt.s32.totalorder %v4891, 4
      %v4914 = vsel %vm4910, %v4894, %v4897
      %v4915 = vsel %vm4913, %v4903, 2102212464
      %v4916 = vsel %vm4912, %v4900, %v4915
      %v4917 = vsel %vm4911, %v4914, %v4916
      %v4918 = vsel %vm4910, %v4897, %v4900
      %v4919 = vsel %vm4913, %v4906, 920167782
      %v4920 = vsel %vm4912, %v4903, %v4919
      %v4921 = vsel %vm4911, %v4918, %v4920
      %v4922 = vsel %vm4910, %v4900, %v4903
      %v4923 = vsel %vm4913, %v4909, 1326507024
      %v4924 = vsel %vm4912, %v4906, %v4923
      %v4925 = vsel %vm4911, %v4922, %v4924
      %v4926 = vshll.u32 %v4886, 8
      %v4927 = vmul.u32.u64.compose %v4926, %v4925
      %v4928 = vextract.low.u32 %v4927
      %v4929 = vextract.high.u32 %v4927
      %v4930 = vmul.u32.u64.compose %v4926, %v4921
      %v4931 = vextract.low.u32 %v4930
      %v4932 = vextract.high.u32 %v4930
      %v4933 = vmul.u32 %v4926, %v4917
      %v4934 = vadd.s32 %v4929, %v4931
      %vm4935 = vc.u32 %v4929, %v4931
      %v4936 = vadd.s32 %v4932, 1
      %v4937 = vsel %vm4935, %v4936, %v4932
      %v4938 = vadd.s32 %v4933, %v4937
      %v4939 = vadd.s32 %v4938, 536870912
      %v4940 = vshrl.u32 %v4939, 30
      %v4941 = vshll.u32 %v4940, 30
      %v4942 = vsub.s32 %v4938, %v4941
      %vm4943 = vcmp.lt.s32.totalorder %v4942, 0
      %v4944 = vsub.s32 0, %v4942
      %v4945 = vsel %vm4943, %v4944, %v4942
      %v4946 = vclz %v4945
      %v4947 = vsub.s32 %v4946, 2
      %vm4948 = vcmp.gt.s32.totalorder 0, %v4947
      %v4949 = vsel %vm4948, 0, %v4947
      %v4950 = vsub.s32 32, %v4949
      %v4951 = vshll.u32 %v4942, %v4949
      %v4952 = vshrl.u32 %v4934, %v4950
      %v4953 = vor.u32 %v4951, %v4952
      %v4954 = vsub.s32 4294967266, %v4949
      %v4955 = vadd.s32 %v4954, 127
      %v4956 = vshll.u32 %v4955, 23
      %v4957 = vor.u32 4788187, %v4956
      %v4958 = vand.u32 2147483647, %v4957
      %v4960 = vcvt.s32.f32 %v4953
      %v4961 = vmul.f32 %v4960, %v4958
      %v4962 = vxor.u32 %v4961, 2147483648
      %v4963 = vsel %vm4880, %v4962, %v4961
      %v4964 = vsub.s32 4, %v4940
      %v4965 = vsel %vm4880, %v4964, %v4940
      %v4966 = vsel %vm4879, %v3213, %v4963
      %v4967 = vsel %vm4879, 0, %v4965
      %v4968 = vcosq.f32.pop %v4966
      %v4969 = vsinq.f32.pop %v4966
      %vm4970 = vweird.f32 %v3213
      %v4971 = vadd.s32 %v4967, 3
      %v4972 = vand.u32 %v4971, 3
      %vm4973 = vcmp.lt.s32.totalorder %v4972, 2
      %vm4974 = vcmp.eq.s32.totalorder %v4972, 0
      %v4975 = vxor.u32 %v4969, 2147483648
      %v4976 = vsel %vm4974, %v4968, %v4975
      %vm4977 = vcmp.eq.s32.totalorder %v4972, 2
      %v4978 = vxor.u32 %v4968, 2147483648
      %v4979 = vsel %vm4977, %v4978, %v4969
      %v4980 = vsel %vm4973, %v4976, %v4979
      %v4981 = vsel %vm4970, nan, %v4980
      %v4982 = vmul.f32 %v4253, %v3279
      %v4983 = vmul.f32 %v4357, %v3281
      %v4984 = vmul.f32 %v4461, %v3283
      %v4985 = vmul.f32 %v4565, %v3285
      %v4986 = vmul.f32 %v4669, %v3287
      %v4987 = vmul.f32 %v4773, %v3289
      %v4988 = vmul.f32 %v4877, %v3291
      %v4989 = vmul.f32 %v4981, %v3293
      %v4990 = vmul.f32 %v4982, %v4134
      %v4991 = vmul.f32 %v4983, %v4136
      %v4992 = vmul.f32 %v4984, %v4138
      %v4993 = vmul.f32 %v4985, %v4140
      %v4994 = vmul.f32 %v4986, %v4142
      %v4995 = vmul.f32 %v4987, %v4144
      %v4996 = vmul.f32 %v4988, %v4146
      %v4997 = vmul.f32 %v4989, %v4148
      %vm4998 = vcmask 64512
      %v4999 = vsel %vm4998, %v324, 0
      %v5002 = vsel %vm4998, %v4135, 0
      %5004 = vmatprep.subr.mxu0 0.0
      %5005 = vmatpush1.xpose.msra.mxu0 0.0
      %5006 = vmatprep.subr.mxu0 0.0
      %5007 = vmatpush1.xpose.msra.mxu0 0.0
      %5008 = vmatprep.subr.mxu0 0.0
      %5009 = vmatpush1.xpose.msra.mxu0 0.0
      %5010 = vmatprep.subr.mxu0 0.0
      %5011 = vmatpush1.xpose.msra.mxu0 0.0
      %5012 = vmatprep.subr.mxu0 0.0
      %5013 = vmatpush1.xpose.msra.mxu0 0.0
      %5014 = vmatprep.subr.mxu0 0.0
      %5015 = vmatpush1.xpose.msra.mxu0 0.0
      %5016 = vmatprep.subr.mxu0 0.0
      %5017 = vmatpush1.xpose.msra.mxu0 0.0
      %5018 = vmatprep.subr.mxu0 0.0
      %5019 = vmatpush1.xpose.msra.mxu0 0.0
      %5020 = vmatprep.subr.mxu0 0.0
      %5021 = vmatpush1.xpose.msra.mxu0 0.0
      %5022 = vmatprep.subr.mxu0 0.0
      %5023 = vmatpush1.xpose.msra.mxu0 0.0
      %5024 = vmatprep.subr.mxu0 0.0
      %5025 = vmatpush1.xpose.msra.mxu0 0.0
      %5026 = vmatprep.subr.mxu0 0.0
      %5027 = vmatpush1.xpose.msra.mxu0 0.0
      %5028 = vmatprep.subr.mxu0 0.0
      %5029 = vmatpush1.xpose.msra.mxu0 0.0
      %5030 = vmatprep.subr.mxu0 0.0
      %5031 = vmatpush1.xpose.msra.mxu0 0.0
      %5032 = vmatprep.subr.mxu0 0.0
      %5033 = vmatpush1.xpose.msra.mxu0 0.0
      %5034 = vmatprep.subr.mxu0 0.0
      %5035 = vmatpush1.xpose.msra.mxu0 %v5002
      %5036 = vmatprep.subr.mxu0 0.0
      %5037 = vmatpush2.xpose.msra.mxu0 0.0
      %5038 = vmatprep.subr.mxu0 0.0
      %5039 = vmatpush2.xpose.msra.mxu0 0.0
      %5040 = vmatprep.subr.mxu0 0.0
      %5041 = vmatpush2.xpose.msra.mxu0 0.0
      %5042 = vmatprep.subr.mxu0 0.0
      %5043 = vmatpush2.xpose.msra.mxu0 0.0
      %5044 = vmatprep.subr.mxu0 0.0
      %5045 = vmatpush2.xpose.msra.mxu0 0.0
      %5046 = vmatprep.subr.mxu0 0.0
      %5047 = vmatpush2.xpose.msra.mxu0 0.0
      %5048 = vmatprep.subr.mxu0 0.0
      %5049 = vmatpush2.xpose.msra.mxu0 0.0
      %5050 = vmatprep.subr.mxu0 0.0
      %5051 = vmatpush2.xpose.msra.mxu0 0.0
      %5052 = vmatprep.subr.mxu0 0.0
      %5053 = vmatpush2.xpose.msra.mxu0 0.0
      %5054 = vmatprep.subr.mxu0 0.0
      %5055 = vmatpush2.xpose.msra.mxu0 0.0
      %5056 = vmatprep.subr.mxu0 0.0
      %5057 = vmatpush2.xpose.msra.mxu0 0.0
      %5058 = vmatprep.subr.mxu0 0.0
      %5059 = vmatpush2.xpose.msra.mxu0 0.0
      %5060 = vmatprep.subr.mxu0 0.0
      %5061 = vmatpush2.xpose.msra.mxu0 0.0
      %5062 = vmatprep.subr.mxu0 0.0
      %5063 = vmatpush2.xpose.msra.mxu0 0.0
      %5064 = vmatprep.subr.mxu0 0.0
      %5065 = vmatpush2.xpose.msra.mxu0 0.0
      %5066 = vmatprep.subr.mxu0 0.0
      %5067 = vmatpush2.xpose.msra.mxu0 0.0
      %5068 = vmatprep.mubr.f32.mxu0 0.0
      %5069 = vmatmul.mubr.f32.gmra.mxu0 %v4999
      %v5070 = vpop.f32.mrf.mxu0
      %v5071 = vadd.f32 0.0, %v5070
      %v5072 = vpop.f32.mrf.mxu0
      %5073 = vdwg.mxu0
      %v5074 = vsel %vm4998, %v325, 0
      %v5077 = vsel %vm4998, %v4137, 0
      %5079 = vmatprep.subr.mxu0 0.0
      %5080 = vmatpush1.xpose.msra.mxu0 0.0
      %5081 = vmatprep.subr.mxu0 0.0
      %5082 = vmatpush1.xpose.msra.mxu0 0.0
      %5083 = vmatprep.subr.mxu0 0.0
      %5084 = vmatpush1.xpose.msra.mxu0 0.0
      %5085 = vmatprep.subr.mxu0 0.0
      %5086 = vmatpush1.xpose.msra.mxu0 0.0
      %5087 = vmatprep.subr.mxu0 0.0
      %5088 = vmatpush1.xpose.msra.mxu0 0.0
      %5089 = vmatprep.subr.mxu0 0.0
      %5090 = vmatpush1.xpose.msra.mxu0 0.0
      %5091 = vmatprep.subr.mxu0 0.0
      %5092 = vmatpush1.xpose.msra.mxu0 0.0
      %5093 = vmatprep.subr.mxu0 0.0
      %5094 = vmatpush1.xpose.msra.mxu0 0.0
      %5095 = vmatprep.subr.mxu0 0.0
      %5096 = vmatpush1.xpose.msra.mxu0 0.0
      %5097 = vmatprep.subr.mxu0 0.0
      %5098 = vmatpush1.xpose.msra.mxu0 0.0
      %5099 = vmatprep.subr.mxu0 0.0
      %5100 = vmatpush1.xpose.msra.mxu0 0.0
      %5101 = vmatprep.subr.mxu0 0.0
      %5102 = vmatpush1.xpose.msra.mxu0 0.0
      %5103 = vmatprep.subr.mxu0 0.0
      %5104 = vmatpush1.xpose.msra.mxu0 0.0
      %5105 = vmatprep.subr.mxu0 0.0
      %5106 = vmatpush1.xpose.msra.mxu0 0.0
      %5107 = vmatprep.subr.mxu0 0.0
      %5108 = vmatpush1.xpose.msra.mxu0 0.0
      %5109 = vmatprep.subr.mxu0 0.0
      %5110 = vmatpush1.xpose.msra.mxu0 %v5077
      %5111 = vmatprep.subr.mxu0 0.0
      %5112 = vmatpush2.xpose.msra.mxu0 0.0
      %5113 = vmatprep.subr.mxu0 0.0
      %5114 = vmatpush2.xpose.msra.mxu0 0.0
      %5115 = vmatprep.subr.mxu0 0.0
      %5116 = vmatpush2.xpose.msra.mxu0 0.0
      %5117 = vmatprep.subr.mxu0 0.0
      %5118 = vmatpush2.xpose.msra.mxu0 0.0
      %5119 = vmatprep.subr.mxu0 0.0
      %5120 = vmatpush2.xpose.msra.mxu0 0.0
      %5121 = vmatprep.subr.mxu0 0.0
      %5122 = vmatpush2.xpose.msra.mxu0 0.0
      %5123 = vmatprep.subr.mxu0 0.0
      %5124 = vmatpush2.xpose.msra.mxu0 0.0
      %5125 = vmatprep.subr.mxu0 0.0
      %5126 = vmatpush2.xpose.msra.mxu0 0.0
      %5127 = vmatprep.subr.mxu0 0.0
      %5128 = vmatpush2.xpose.msra.mxu0 0.0
      %5129 = vmatprep.subr.mxu0 0.0
      %5130 = vmatpush2.xpose.msra.mxu0 0.0
      %5131 = vmatprep.subr.mxu0 0.0
      %5132 = vmatpush2.xpose.msra.mxu0 0.0
      %5133 = vmatprep.subr.mxu0 0.0
      %5134 = vmatpush2.xpose.msra.mxu0 0.0
      %5135 = vmatprep.subr.mxu0 0.0
      %5136 = vmatpush2.xpose.msra.mxu0 0.0
      %5137 = vmatprep.subr.mxu0 0.0
      %5138 = vmatpush2.xpose.msra.mxu0 0.0
      %5139 = vmatprep.subr.mxu0 0.0
      %5140 = vmatpush2.xpose.msra.mxu0 0.0
      %5141 = vmatprep.subr.mxu0 0.0
      %5142 = vmatpush2.xpose.msra.mxu0 0.0
      %5143 = vmatprep.mubr.f32.mxu0 0.0
      %5144 = vmatmul.mubr.f32.gmra.mxu0 %v5074
      %v5145 = vpop.f32.mrf.mxu0
      %v5146 = vadd.f32 0.0, %v5145
      %v5147 = vpop.f32.mrf.mxu0
      %5148 = vdwg.mxu0
      %v5149 = vsel %vm4998, %v326, 0
      %v5152 = vsel %vm4998, %v4139, 0
      %5154 = vmatprep.subr.mxu0 0.0
      %5155 = vmatpush1.xpose.msra.mxu0 0.0
      %5156 = vmatprep.subr.mxu0 0.0
      %5157 = vmatpush1.xpose.msra.mxu0 0.0
      %5158 = vmatprep.subr.mxu0 0.0
      %5159 = vmatpush1.xpose.msra.mxu0 0.0
      %5160 = vmatprep.subr.mxu0 0.0
      %5161 = vmatpush1.xpose.msra.mxu0 0.0
      %5162 = vmatprep.subr.mxu0 0.0
      %5163 = vmatpush1.xpose.msra.mxu0 0.0
      %5164 = vmatprep.subr.mxu0 0.0
      %5165 = vmatpush1.xpose.msra.mxu0 0.0
      %5166 = vmatprep.subr.mxu0 0.0
      %5167 = vmatpush1.xpose.msra.mxu0 0.0
      %5168 = vmatprep.subr.mxu0 0.0
      %5169 = vmatpush1.xpose.msra.mxu0 0.0
      %5170 = vmatprep.subr.mxu0 0.0
      %5171 = vmatpush1.xpose.msra.mxu0 0.0
      %5172 = vmatprep.subr.mxu0 0.0
      %5173 = vmatpush1.xpose.msra.mxu0 0.0
      %5174 = vmatprep.subr.mxu0 0.0
      %5175 = vmatpush1.xpose.msra.mxu0 0.0
      %5176 = vmatprep.subr.mxu0 0.0
      %5177 = vmatpush1.xpose.msra.mxu0 0.0
      %5178 = vmatprep.subr.mxu0 0.0
      %5179 = vmatpush1.xpose.msra.mxu0 0.0
      %5180 = vmatprep.subr.mxu0 0.0
      %5181 = vmatpush1.xpose.msra.mxu0 0.0
      %5182 = vmatprep.subr.mxu0 0.0
      %5183 = vmatpush1.xpose.msra.mxu0 0.0
      %5184 = vmatprep.subr.mxu0 0.0
      %5185 = vmatpush1.xpose.msra.mxu0 %v5152
      %5186 = vmatprep.subr.mxu0 0.0
      %5187 = vmatpush2.xpose.msra.mxu0 0.0
      %5188 = vmatprep.subr.mxu0 0.0
      %5189 = vmatpush2.xpose.msra.mxu0 0.0
      %5190 = vmatprep.subr.mxu0 0.0
      %5191 = vmatpush2.xpose.msra.mxu0 0.0
      %5192 = vmatprep.subr.mxu0 0.0
      %5193 = vmatpush2.xpose.msra.mxu0 0.0
      %5194 = vmatprep.subr.mxu0 0.0
      %5195 = vmatpush2.xpose.msra.mxu0 0.0
      %5196 = vmatprep.subr.mxu0 0.0
      %5197 = vmatpush2.xpose.msra.mxu0 0.0
      %5198 = vmatprep.subr.mxu0 0.0
      %5199 = vmatpush2.xpose.msra.mxu0 0.0
      %5200 = vmatprep.subr.mxu0 0.0
      %5201 = vmatpush2.xpose.msra.mxu0 0.0
      %5202 = vmatprep.subr.mxu0 0.0
      %5203 = vmatpush2.xpose.msra.mxu0 0.0
      %5204 = vmatprep.subr.mxu0 0.0
      %5205 = vmatpush2.xpose.msra.mxu0 0.0
      %5206 = vmatprep.subr.mxu0 0.0
      %5207 = vmatpush2.xpose.msra.mxu0 0.0
      %5208 = vmatprep.subr.mxu0 0.0
      %5209 = vmatpush2.xpose.msra.mxu0 0.0
      %5210 = vmatprep.subr.mxu0 0.0
      %5211 = vmatpush2.xpose.msra.mxu0 0.0
      %5212 = vmatprep.subr.mxu0 0.0
      %5213 = vmatpush2.xpose.msra.mxu0 0.0
      %5214 = vmatprep.subr.mxu0 0.0
      %5215 = vmatpush2.xpose.msra.mxu0 0.0
      %5216 = vmatprep.subr.mxu0 0.0
      %5217 = vmatpush2.xpose.msra.mxu0 0.0
      %5218 = vmatprep.mubr.f32.mxu0 0.0
      %5219 = vmatmul.mubr.f32.gmra.mxu0 %v5149
      %v5220 = vpop.f32.mrf.mxu0
      %v5221 = vadd.f32 0.0, %v5220
      %v5222 = vpop.f32.mrf.mxu0
      %5223 = vdwg.mxu0
      %v5224 = vsel %vm4998, %v327, 0
      %v5227 = vsel %vm4998, %v4141, 0
      %5229 = vmatprep.subr.mxu0 0.0
      %5230 = vmatpush1.xpose.msra.mxu0 0.0
      %5231 = vmatprep.subr.mxu0 0.0
      %5232 = vmatpush1.xpose.msra.mxu0 0.0
      %5233 = vmatprep.subr.mxu0 0.0
      %5234 = vmatpush1.xpose.msra.mxu0 0.0
      %5235 = vmatprep.subr.mxu0 0.0
      %5236 = vmatpush1.xpose.msra.mxu0 0.0
      %5237 = vmatprep.subr.mxu0 0.0
      %5238 = vmatpush1.xpose.msra.mxu0 0.0
      %5239 = vmatprep.subr.mxu0 0.0
      %5240 = vmatpush1.xpose.msra.mxu0 0.0
      %5241 = vmatprep.subr.mxu0 0.0
      %5242 = vmatpush1.xpose.msra.mxu0 0.0
      %5243 = vmatprep.subr.mxu0 0.0
      %5244 = vmatpush1.xpose.msra.mxu0 0.0
      %5245 = vmatprep.subr.mxu0 0.0
      %5246 = vmatpush1.xpose.msra.mxu0 0.0
      %5247 = vmatprep.subr.mxu0 0.0
      %5248 = vmatpush1.xpose.msra.mxu0 0.0
      %5249 = vmatprep.subr.mxu0 0.0
      %5250 = vmatpush1.xpose.msra.mxu0 0.0
      %5251 = vmatprep.subr.mxu0 0.0
      %5252 = vmatpush1.xpose.msra.mxu0 0.0
      %5253 = vmatprep.subr.mxu0 0.0
      %5254 = vmatpush1.xpose.msra.mxu0 0.0
      %5255 = vmatprep.subr.mxu0 0.0
      %5256 = vmatpush1.xpose.msra.mxu0 0.0
      %5257 = vmatprep.subr.mxu0 0.0
      %5258 = vmatpush1.xpose.msra.mxu0 0.0
      %5259 = vmatprep.subr.mxu0 0.0
      %5260 = vmatpush1.xpose.msra.mxu0 %v5227
      %5261 = vmatprep.subr.mxu0 0.0
      %5262 = vmatpush2.xpose.msra.mxu0 0.0
      %5263 = vmatprep.subr.mxu0 0.0
      %5264 = vmatpush2.xpose.msra.mxu0 0.0
      %5265 = vmatprep.subr.mxu0 0.0
      %5266 = vmatpush2.xpose.msra.mxu0 0.0
      %5267 = vmatprep.subr.mxu0 0.0
      %5268 = vmatpush2.xpose.msra.mxu0 0.0
      %5269 = vmatprep.subr.mxu0 0.0
      %5270 = vmatpush2.xpose.msra.mxu0 0.0
      %5271 = vmatprep.subr.mxu0 0.0
      %5272 = vmatpush2.xpose.msra.mxu0 0.0
      %5273 = vmatprep.subr.mxu0 0.0
      %5274 = vmatpush2.xpose.msra.mxu0 0.0
      %5275 = vmatprep.subr.mxu0 0.0
      %5276 = vmatpush2.xpose.msra.mxu0 0.0
      %5277 = vmatprep.subr.mxu0 0.0
      %5278 = vmatpush2.xpose.msra.mxu0 0.0
      %5279 = vmatprep.subr.mxu0 0.0
      %5280 = vmatpush2.xpose.msra.mxu0 0.0
      %5281 = vmatprep.subr.mxu0 0.0
      %5282 = vmatpush2.xpose.msra.mxu0 0.0
      %5283 = vmatprep.subr.mxu0 0.0
      %5284 = vmatpush2.xpose.msra.mxu0 0.0
      %5285 = vmatprep.subr.mxu0 0.0
      %5286 = vmatpush2.xpose.msra.mxu0 0.0
      %5287 = vmatprep.subr.mxu0 0.0
      %5288 = vmatpush2.xpose.msra.mxu0 0.0
      %5289 = vmatprep.subr.mxu0 0.0
      %5290 = vmatpush2.xpose.msra.mxu0 0.0
      %5291 = vmatprep.subr.mxu0 0.0
      %5292 = vmatpush2.xpose.msra.mxu0 0.0
      %5293 = vmatprep.mubr.f32.mxu0 0.0
      %5294 = vmatmul.mubr.f32.gmra.mxu0 %v5224
      %v5295 = vpop.f32.mrf.mxu0
      %v5296 = vadd.f32 0.0, %v5295
      %v5297 = vpop.f32.mrf.mxu0
      %5298 = vdwg.mxu0
      %v5299 = vsel %vm4998, %v328, 0
      %v5302 = vsel %vm4998, %v4143, 0
      %5304 = vmatprep.subr.mxu0 0.0
      %5305 = vmatpush1.xpose.msra.mxu0 0.0
      %5306 = vmatprep.subr.mxu0 0.0
      %5307 = vmatpush1.xpose.msra.mxu0 0.0
      %5308 = vmatprep.subr.mxu0 0.0
      %5309 = vmatpush1.xpose.msra.mxu0 0.0
      %5310 = vmatprep.subr.mxu0 0.0
      %5311 = vmatpush1.xpose.msra.mxu0 0.0
      %5312 = vmatprep.subr.mxu0 0.0
      %5313 = vmatpush1.xpose.msra.mxu0 0.0
      %5314 = vmatprep.subr.mxu0 0.0
      %5315 = vmatpush1.xpose.msra.mxu0 0.0
      %5316 = vmatprep.subr.mxu0 0.0
      %5317 = vmatpush1.xpose.msra.mxu0 0.0
      %5318 = vmatprep.subr.mxu0 0.0
      %5319 = vmatpush1.xpose.msra.mxu0 0.0
      %5320 = vmatprep.subr.mxu0 0.0
      %5321 = vmatpush1.xpose.msra.mxu0 0.0
      %5322 = vmatprep.subr.mxu0 0.0
      %5323 = vmatpush1.xpose.msra.mxu0 0.0
      %5324 = vmatprep.subr.mxu0 0.0
      %5325 = vmatpush1.xpose.msra.mxu0 0.0
      %5326 = vmatprep.subr.mxu0 0.0
      %5327 = vmatpush1.xpose.msra.mxu0 0.0
      %5328 = vmatprep.subr.mxu0 0.0
      %5329 = vmatpush1.xpose.msra.mxu0 0.0
      %5330 = vmatprep.subr.mxu0 0.0
      %5331 = vmatpush1.xpose.msra.mxu0 0.0
      %5332 = vmatprep.subr.mxu0 0.0
      %5333 = vmatpush1.xpose.msra.mxu0 0.0
      %5334 = vmatprep.subr.mxu0 0.0
      %5335 = vmatpush1.xpose.msra.mxu0 %v5302
      %5336 = vmatprep.subr.mxu0 0.0
      %5337 = vmatpush2.xpose.msra.mxu0 0.0
      %5338 = vmatprep.subr.mxu0 0.0
      %5339 = vmatpush2.xpose.msra.mxu0 0.0
      %5340 = vmatprep.subr.mxu0 0.0
      %5341 = vmatpush2.xpose.msra.mxu0 0.0
      %5342 = vmatprep.subr.mxu0 0.0
      %5343 = vmatpush2.xpose.msra.mxu0 0.0
      %5344 = vmatprep.subr.mxu0 0.0
      %5345 = vmatpush2.xpose.msra.mxu0 0.0
      %5346 = vmatprep.subr.mxu0 0.0
      %5347 = vmatpush2.xpose.msra.mxu0 0.0
      %5348 = vmatprep.subr.mxu0 0.0
      %5349 = vmatpush2.xpose.msra.mxu0 0.0
      %5350 = vmatprep.subr.mxu0 0.0
      %5351 = vmatpush2.xpose.msra.mxu0 0.0
      %5352 = vmatprep.subr.mxu0 0.0
      %5353 = vmatpush2.xpose.msra.mxu0 0.0
      %5354 = vmatprep.subr.mxu0 0.0
      %5355 = vmatpush2.xpose.msra.mxu0 0.0
      %5356 = vmatprep.subr.mxu0 0.0
      %5357 = vmatpush2.xpose.msra.mxu0 0.0
      %5358 = vmatprep.subr.mxu0 0.0
      %5359 = vmatpush2.xpose.msra.mxu0 0.0
      %5360 = vmatprep.subr.mxu0 0.0
      %5361 = vmatpush2.xpose.msra.mxu0 0.0
      %5362 = vmatprep.subr.mxu0 0.0
      %5363 = vmatpush2.xpose.msra.mxu0 0.0
      %5364 = vmatprep.subr.mxu0 0.0
      %5365 = vmatpush2.xpose.msra.mxu0 0.0
      %5366 = vmatprep.subr.mxu0 0.0
      %5367 = vmatpush2.xpose.msra.mxu0 0.0
      %5368 = vmatprep.mubr.f32.mxu0 0.0
      %5369 = vmatmul.mubr.f32.gmra.mxu0 %v5299
      %v5370 = vpop.f32.mrf.mxu0
      %v5371 = vadd.f32 0.0, %v5370
      %v5372 = vpop.f32.mrf.mxu0
      %5373 = vdwg.mxu0
      %v5374 = vsel %vm4998, %v329, 0
      %v5377 = vsel %vm4998, %v4145, 0
      %5379 = vmatprep.subr.mxu0 0.0
      %5380 = vmatpush1.xpose.msra.mxu0 0.0
      %5381 = vmatprep.subr.mxu0 0.0
      %5382 = vmatpush1.xpose.msra.mxu0 0.0
      %5383 = vmatprep.subr.mxu0 0.0
      %5384 = vmatpush1.xpose.msra.mxu0 0.0
      %5385 = vmatprep.subr.mxu0 0.0
      %5386 = vmatpush1.xpose.msra.mxu0 0.0
      %5387 = vmatprep.subr.mxu0 0.0
      %5388 = vmatpush1.xpose.msra.mxu0 0.0
      %5389 = vmatprep.subr.mxu0 0.0
      %5390 = vmatpush1.xpose.msra.mxu0 0.0
      %5391 = vmatprep.subr.mxu0 0.0
      %5392 = vmatpush1.xpose.msra.mxu0 0.0
      %5393 = vmatprep.subr.mxu0 0.0
      %5394 = vmatpush1.xpose.msra.mxu0 0.0
      %5395 = vmatprep.subr.mxu0 0.0
      %5396 = vmatpush1.xpose.msra.mxu0 0.0
      %5397 = vmatprep.subr.mxu0 0.0
      %5398 = vmatpush1.xpose.msra.mxu0 0.0
      %5399 = vmatprep.subr.mxu0 0.0
      %5400 = vmatpush1.xpose.msra.mxu0 0.0
      %5401 = vmatprep.subr.mxu0 0.0
      %5402 = vmatpush1.xpose.msra.mxu0 0.0
      %5403 = vmatprep.subr.mxu0 0.0
      %5404 = vmatpush1.xpose.msra.mxu0 0.0
      %5405 = vmatprep.subr.mxu0 0.0
      %5406 = vmatpush1.xpose.msra.mxu0 0.0
      %5407 = vmatprep.subr.mxu0 0.0
      %5408 = vmatpush1.xpose.msra.mxu0 0.0
      %5409 = vmatprep.subr.mxu0 0.0
      %5410 = vmatpush1.xpose.msra.mxu0 %v5377
      %5411 = vmatprep.subr.mxu0 0.0
      %5412 = vmatpush2.xpose.msra.mxu0 0.0
      %5413 = vmatprep.subr.mxu0 0.0
      %5414 = vmatpush2.xpose.msra.mxu0 0.0
      %5415 = vmatprep.subr.mxu0 0.0
      %5416 = vmatpush2.xpose.msra.mxu0 0.0
      %5417 = vmatprep.subr.mxu0 0.0
      %5418 = vmatpush2.xpose.msra.mxu0 0.0
      %5419 = vmatprep.subr.mxu0 0.0
      %5420 = vmatpush2.xpose.msra.mxu0 0.0
      %5421 = vmatprep.subr.mxu0 0.0
      %5422 = vmatpush2.xpose.msra.mxu0 0.0
      %5423 = vmatprep.subr.mxu0 0.0
      %5424 = vmatpush2.xpose.msra.mxu0 0.0
      %5425 = vmatprep.subr.mxu0 0.0
      %5426 = vmatpush2.xpose.msra.mxu0 0.0
      %5427 = vmatprep.subr.mxu0 0.0
      %5428 = vmatpush2.xpose.msra.mxu0 0.0
      %5429 = vmatprep.subr.mxu0 0.0
      %5430 = vmatpush2.xpose.msra.mxu0 0.0
      %5431 = vmatprep.subr.mxu0 0.0
      %5432 = vmatpush2.xpose.msra.mxu0 0.0
      %5433 = vmatprep.subr.mxu0 0.0
      %5434 = vmatpush2.xpose.msra.mxu0 0.0
      %5435 = vmatprep.subr.mxu0 0.0
      %5436 = vmatpush2.xpose.msra.mxu0 0.0
      %5437 = vmatprep.subr.mxu0 0.0
      %5438 = vmatpush2.xpose.msra.mxu0 0.0
      %5439 = vmatprep.subr.mxu0 0.0
      %5440 = vmatpush2.xpose.msra.mxu0 0.0
      %5441 = vmatprep.subr.mxu0 0.0
      %5442 = vmatpush2.xpose.msra.mxu0 0.0
      %5443 = vmatprep.mubr.f32.mxu0 0.0
      %5444 = vmatmul.mubr.f32.gmra.mxu0 %v5374
      %v5445 = vpop.f32.mrf.mxu0
      %v5446 = vadd.f32 0.0, %v5445
      %v5447 = vpop.f32.mrf.mxu0
      %5448 = vdwg.mxu0
      %v5449 = vsel %vm4998, %v330, 0
      %v5452 = vsel %vm4998, %v4147, 0
      %5454 = vmatprep.subr.mxu0 0.0
      %5455 = vmatpush1.xpose.msra.mxu0 0.0
      %5456 = vmatprep.subr.mxu0 0.0
      %5457 = vmatpush1.xpose.msra.mxu0 0.0
      %5458 = vmatprep.subr.mxu0 0.0
      %5459 = vmatpush1.xpose.msra.mxu0 0.0
      %5460 = vmatprep.subr.mxu0 0.0
      %5461 = vmatpush1.xpose.msra.mxu0 0.0
      %5462 = vmatprep.subr.mxu0 0.0
      %5463 = vmatpush1.xpose.msra.mxu0 0.0
      %5464 = vmatprep.subr.mxu0 0.0
      %5465 = vmatpush1.xpose.msra.mxu0 0.0
      %5466 = vmatprep.subr.mxu0 0.0
      %5467 = vmatpush1.xpose.msra.mxu0 0.0
      %5468 = vmatprep.subr.mxu0 0.0
      %5469 = vmatpush1.xpose.msra.mxu0 0.0
      %5470 = vmatprep.subr.mxu0 0.0
      %5471 = vmatpush1.xpose.msra.mxu0 0.0
      %5472 = vmatprep.subr.mxu0 0.0
      %5473 = vmatpush1.xpose.msra.mxu0 0.0
      %5474 = vmatprep.subr.mxu0 0.0
      %5475 = vmatpush1.xpose.msra.mxu0 0.0
      %5476 = vmatprep.subr.mxu0 0.0
      %5477 = vmatpush1.xpose.msra.mxu0 0.0
      %5478 = vmatprep.subr.mxu0 0.0
      %5479 = vmatpush1.xpose.msra.mxu0 0.0
      %5480 = vmatprep.subr.mxu0 0.0
      %5481 = vmatpush1.xpose.msra.mxu0 0.0
      %5482 = vmatprep.subr.mxu0 0.0
      %5483 = vmatpush1.xpose.msra.mxu0 0.0
      %5484 = vmatprep.subr.mxu0 0.0
      %5485 = vmatpush1.xpose.msra.mxu0 %v5452
      %5486 = vmatprep.subr.mxu0 0.0
      %5487 = vmatpush2.xpose.msra.mxu0 0.0
      %5488 = vmatprep.subr.mxu0 0.0
      %5489 = vmatpush2.xpose.msra.mxu0 0.0
      %5490 = vmatprep.subr.mxu0 0.0
      %5491 = vmatpush2.xpose.msra.mxu0 0.0
      %5492 = vmatprep.subr.mxu0 0.0
      %5493 = vmatpush2.xpose.msra.mxu0 0.0
      %5494 = vmatprep.subr.mxu0 0.0
      %5495 = vmatpush2.xpose.msra.mxu0 0.0
      %5496 = vmatprep.subr.mxu0 0.0
      %5497 = vmatpush2.xpose.msra.mxu0 0.0
      %5498 = vmatprep.subr.mxu0 0.0
      %5499 = vmatpush2.xpose.msra.mxu0 0.0
      %5500 = vmatprep.subr.mxu0 0.0
      %5501 = vmatpush2.xpose.msra.mxu0 0.0
      %5502 = vmatprep.subr.mxu0 0.0
      %5503 = vmatpush2.xpose.msra.mxu0 0.0
      %5504 = vmatprep.subr.mxu0 0.0
      %5505 = vmatpush2.xpose.msra.mxu0 0.0
      %5506 = vmatprep.subr.mxu0 0.0
      %5507 = vmatpush2.xpose.msra.mxu0 0.0
      %5508 = vmatprep.subr.mxu0 0.0
      %5509 = vmatpush2.xpose.msra.mxu0 0.0
      %5510 = vmatprep.subr.mxu0 0.0
      %5511 = vmatpush2.xpose.msra.mxu0 0.0
      %5512 = vmatprep.subr.mxu0 0.0
      %5513 = vmatpush2.xpose.msra.mxu0 0.0
      %5514 = vmatprep.subr.mxu0 0.0
      %5515 = vmatpush2.xpose.msra.mxu0 0.0
      %5516 = vmatprep.subr.mxu0 0.0
      %5517 = vmatpush2.xpose.msra.mxu0 0.0
      %5518 = vmatprep.mubr.f32.mxu0 0.0
      %5519 = vmatmul.mubr.f32.gmra.mxu0 %v5449
      %v5520 = vpop.f32.mrf.mxu0
      %v5521 = vadd.f32 0.0, %v5520
      %v5522 = vpop.f32.mrf.mxu0
      %5523 = vdwg.mxu0
      %v5524 = vsel %vm4998, %v331, 0
      %v5527 = vsel %vm4998, %v4149, 0
      %5529 = vmatprep.subr.mxu0 0.0
      %5530 = vmatpush1.xpose.msra.mxu0 0.0
      %5531 = vmatprep.subr.mxu0 0.0
      %5532 = vmatpush1.xpose.msra.mxu0 0.0
      %5533 = vmatprep.subr.mxu0 0.0
      %5534 = vmatpush1.xpose.msra.mxu0 0.0
      %5535 = vmatprep.subr.mxu0 0.0
      %5536 = vmatpush1.xpose.msra.mxu0 0.0
      %5537 = vmatprep.subr.mxu0 0.0
      %5538 = vmatpush1.xpose.msra.mxu0 0.0
      %5539 = vmatprep.subr.mxu0 0.0
      %5540 = vmatpush1.xpose.msra.mxu0 0.0
      %5541 = vmatprep.subr.mxu0 0.0
      %5542 = vmatpush1.xpose.msra.mxu0 0.0
      %5543 = vmatprep.subr.mxu0 0.0
      %5544 = vmatpush1.xpose.msra.mxu0 0.0
      %5545 = vmatprep.subr.mxu0 0.0
      %5546 = vmatpush1.xpose.msra.mxu0 0.0
      %5547 = vmatprep.subr.mxu0 0.0
      %5548 = vmatpush1.xpose.msra.mxu0 0.0
      %5549 = vmatprep.subr.mxu0 0.0
      %5550 = vmatpush1.xpose.msra.mxu0 0.0
      %5551 = vmatprep.subr.mxu0 0.0
      %5552 = vmatpush1.xpose.msra.mxu0 0.0
      %5553 = vmatprep.subr.mxu0 0.0
      %5554 = vmatpush1.xpose.msra.mxu0 0.0
      %5555 = vmatprep.subr.mxu0 0.0
      %5556 = vmatpush1.xpose.msra.mxu0 0.0
      %5557 = vmatprep.subr.mxu0 0.0
      %5558 = vmatpush1.xpose.msra.mxu0 0.0
      %5559 = vmatprep.subr.mxu0 0.0
      %5560 = vmatpush1.xpose.msra.mxu0 %v5527
      %5561 = vmatprep.subr.mxu0 0.0
      %5562 = vmatpush2.xpose.msra.mxu0 0.0
      %5563 = vmatprep.subr.mxu0 0.0
      %5564 = vmatpush2.xpose.msra.mxu0 0.0
      %5565 = vmatprep.subr.mxu0 0.0
      %5566 = vmatpush2.xpose.msra.mxu0 0.0
      %5567 = vmatprep.subr.mxu0 0.0
      %5568 = vmatpush2.xpose.msra.mxu0 0.0
      %5569 = vmatprep.subr.mxu0 0.0
      %5570 = vmatpush2.xpose.msra.mxu0 0.0
      %5571 = vmatprep.subr.mxu0 0.0
      %5572 = vmatpush2.xpose.msra.mxu0 0.0
      %5573 = vmatprep.subr.mxu0 0.0
      %5574 = vmatpush2.xpose.msra.mxu0 0.0
      %5575 = vmatprep.subr.mxu0 0.0
      %5576 = vmatpush2.xpose.msra.mxu0 0.0
      %5577 = vmatprep.subr.mxu0 0.0
      %5578 = vmatpush2.xpose.msra.mxu0 0.0
      %5579 = vmatprep.subr.mxu0 0.0
      %5580 = vmatpush2.xpose.msra.mxu0 0.0
      %5581 = vmatprep.subr.mxu0 0.0
      %5582 = vmatpush2.xpose.msra.mxu0 0.0
      %5583 = vmatprep.subr.mxu0 0.0
      %5584 = vmatpush2.xpose.msra.mxu0 0.0
      %5585 = vmatprep.subr.mxu0 0.0
      %5586 = vmatpush2.xpose.msra.mxu0 0.0
      %5587 = vmatprep.subr.mxu0 0.0
      %5588 = vmatpush2.xpose.msra.mxu0 0.0
      %5589 = vmatprep.subr.mxu0 0.0
      %5590 = vmatpush2.xpose.msra.mxu0 0.0
      %5591 = vmatprep.subr.mxu0 0.0
      %5592 = vmatpush2.xpose.msra.mxu0 0.0
      %5593 = vmatprep.mubr.f32.mxu0 0.0
      %5594 = vmatmul.mubr.f32.gmra.mxu0 %v5524
      %v5595 = vpop.f32.mrf.mxu0
      %v5596 = vadd.f32 0.0, %v5595
      %v5597 = vpop.f32.mrf.mxu0
      %5598 = vdwg.mxu0
      %v5599 = vsel %vm4998, %v332, 0
      %v5602 = vsel %vm4998, %v4990, 0
      %5604 = vmatprep.subr.mxu0 0.0
      %5605 = vmatpush1.xpose.msra.mxu0 0.0
      %5606 = vmatprep.subr.mxu0 0.0
      %5607 = vmatpush1.xpose.msra.mxu0 0.0
      %5608 = vmatprep.subr.mxu0 0.0
      %5609 = vmatpush1.xpose.msra.mxu0 0.0
      %5610 = vmatprep.subr.mxu0 0.0
      %5611 = vmatpush1.xpose.msra.mxu0 0.0
      %5612 = vmatprep.subr.mxu0 0.0
      %5613 = vmatpush1.xpose.msra.mxu0 0.0
      %5614 = vmatprep.subr.mxu0 0.0
      %5615 = vmatpush1.xpose.msra.mxu0 0.0
      %5616 = vmatprep.subr.mxu0 0.0
      %5617 = vmatpush1.xpose.msra.mxu0 0.0
      %5618 = vmatprep.subr.mxu0 0.0
      %5619 = vmatpush1.xpose.msra.mxu0 0.0
      %5620 = vmatprep.subr.mxu0 0.0
      %5621 = vmatpush1.xpose.msra.mxu0 0.0
      %5622 = vmatprep.subr.mxu0 0.0
      %5623 = vmatpush1.xpose.msra.mxu0 0.0
      %5624 = vmatprep.subr.mxu0 0.0
      %5625 = vmatpush1.xpose.msra.mxu0 0.0
      %5626 = vmatprep.subr.mxu0 0.0
      %5627 = vmatpush1.xpose.msra.mxu0 0.0
      %5628 = vmatprep.subr.mxu0 0.0
      %5629 = vmatpush1.xpose.msra.mxu0 0.0
      %5630 = vmatprep.subr.mxu0 0.0
      %5631 = vmatpush1.xpose.msra.mxu0 0.0
      %5632 = vmatprep.subr.mxu0 0.0
      %5633 = vmatpush1.xpose.msra.mxu0 0.0
      %5634 = vmatprep.subr.mxu0 0.0
      %5635 = vmatpush1.xpose.msra.mxu0 %v5602
      %5636 = vmatprep.subr.mxu0 0.0
      %5637 = vmatpush2.xpose.msra.mxu0 0.0
      %5638 = vmatprep.subr.mxu0 0.0
      %5639 = vmatpush2.xpose.msra.mxu0 0.0
      %5640 = vmatprep.subr.mxu0 0.0
      %5641 = vmatpush2.xpose.msra.mxu0 0.0
      %5642 = vmatprep.subr.mxu0 0.0
      %5643 = vmatpush2.xpose.msra.mxu0 0.0
      %5644 = vmatprep.subr.mxu0 0.0
      %5645 = vmatpush2.xpose.msra.mxu0 0.0
      %5646 = vmatprep.subr.mxu0 0.0
      %5647 = vmatpush2.xpose.msra.mxu0 0.0
      %5648 = vmatprep.subr.mxu0 0.0
      %5649 = vmatpush2.xpose.msra.mxu0 0.0
      %5650 = vmatprep.subr.mxu0 0.0
      %5651 = vmatpush2.xpose.msra.mxu0 0.0
      %5652 = vmatprep.subr.mxu0 0.0
      %5653 = vmatpush2.xpose.msra.mxu0 0.0
      %5654 = vmatprep.subr.mxu0 0.0
      %5655 = vmatpush2.xpose.msra.mxu0 0.0
      %5656 = vmatprep.subr.mxu0 0.0
      %5657 = vmatpush2.xpose.msra.mxu0 0.0
      %5658 = vmatprep.subr.mxu0 0.0
      %5659 = vmatpush2.xpose.msra.mxu0 0.0
      %5660 = vmatprep.subr.mxu0 0.0
      %5661 = vmatpush2.xpose.msra.mxu0 0.0
      %5662 = vmatprep.subr.mxu0 0.0
      %5663 = vmatpush2.xpose.msra.mxu0 0.0
      %5664 = vmatprep.subr.mxu0 0.0
      %5665 = vmatpush2.xpose.msra.mxu0 0.0
      %5666 = vmatprep.subr.mxu0 0.0
      %5667 = vmatpush2.xpose.msra.mxu0 0.0
      %5668 = vmatprep.mubr.f32.mxu0 0.0
      %5669 = vmatmul.mubr.f32.gmra.mxu0 %v5599
      %v5670 = vpop.f32.mrf.mxu0
      %v5671 = vadd.f32 0.0, %v5670
      %v5672 = vpop.f32.mrf.mxu0
      %5673 = vdwg.mxu0
      %v5674 = vsel %vm4998, %v333, 0
      %v5677 = vsel %vm4998, %v4991, 0
      %5679 = vmatprep.subr.mxu0 0.0
      %5680 = vmatpush1.xpose.msra.mxu0 0.0
      %5681 = vmatprep.subr.mxu0 0.0
      %5682 = vmatpush1.xpose.msra.mxu0 0.0
      %5683 = vmatprep.subr.mxu0 0.0
      %5684 = vmatpush1.xpose.msra.mxu0 0.0
      %5685 = vmatprep.subr.mxu0 0.0
      %5686 = vmatpush1.xpose.msra.mxu0 0.0
      %5687 = vmatprep.subr.mxu0 0.0
      %5688 = vmatpush1.xpose.msra.mxu0 0.0
      %5689 = vmatprep.subr.mxu0 0.0
      %5690 = vmatpush1.xpose.msra.mxu0 0.0
      %5691 = vmatprep.subr.mxu0 0.0
      %5692 = vmatpush1.xpose.msra.mxu0 0.0
      %5693 = vmatprep.subr.mxu0 0.0
      %5694 = vmatpush1.xpose.msra.mxu0 0.0
      %5695 = vmatprep.subr.mxu0 0.0
      %5696 = vmatpush1.xpose.msra.mxu0 0.0
      %5697 = vmatprep.subr.mxu0 0.0
      %5698 = vmatpush1.xpose.msra.mxu0 0.0
      %5699 = vmatprep.subr.mxu0 0.0
      %5700 = vmatpush1.xpose.msra.mxu0 0.0
      %5701 = vmatprep.subr.mxu0 0.0
      %5702 = vmatpush1.xpose.msra.mxu0 0.0
      %5703 = vmatprep.subr.mxu0 0.0
      %5704 = vmatpush1.xpose.msra.mxu0 0.0
      %5705 = vmatprep.subr.mxu0 0.0
      %5706 = vmatpush1.xpose.msra.mxu0 0.0
      %5707 = vmatprep.subr.mxu0 0.0
      %5708 = vmatpush1.xpose.msra.mxu0 0.0
      %5709 = vmatprep.subr.mxu0 0.0
      %5710 = vmatpush1.xpose.msra.mxu0 %v5677
      %5711 = vmatprep.subr.mxu0 0.0
      %5712 = vmatpush2.xpose.msra.mxu0 0.0
      %5713 = vmatprep.subr.mxu0 0.0
      %5714 = vmatpush2.xpose.msra.mxu0 0.0
      %5715 = vmatprep.subr.mxu0 0.0
      %5716 = vmatpush2.xpose.msra.mxu0 0.0
      %5717 = vmatprep.subr.mxu0 0.0
      %5718 = vmatpush2.xpose.msra.mxu0 0.0
      %5719 = vmatprep.subr.mxu0 0.0
      %5720 = vmatpush2.xpose.msra.mxu0 0.0
      %5721 = vmatprep.subr.mxu0 0.0
      %5722 = vmatpush2.xpose.msra.mxu0 0.0
      %5723 = vmatprep.subr.mxu0 0.0
      %5724 = vmatpush2.xpose.msra.mxu0 0.0
      %5725 = vmatprep.subr.mxu0 0.0
      %5726 = vmatpush2.xpose.msra.mxu0 0.0
      %5727 = vmatprep.subr.mxu0 0.0
      %5728 = vmatpush2.xpose.msra.mxu0 0.0
      %5729 = vmatprep.subr.mxu0 0.0
      %5730 = vmatpush2.xpose.msra.mxu0 0.0
      %5731 = vmatprep.subr.mxu0 0.0
      %5732 = vmatpush2.xpose.msra.mxu0 0.0
      %5733 = vmatprep.subr.mxu0 0.0
      %5734 = vmatpush2.xpose.msra.mxu0 0.0
      %5735 = vmatprep.subr.mxu0 0.0
      %5736 = vmatpush2.xpose.msra.mxu0 0.0
      %5737 = vmatprep.subr.mxu0 0.0
      %5738 = vmatpush2.xpose.msra.mxu0 0.0
      %5739 = vmatprep.subr.mxu0 0.0
      %5740 = vmatpush2.xpose.msra.mxu0 0.0
      %5741 = vmatprep.subr.mxu0 0.0
      %5742 = vmatpush2.xpose.msra.mxu0 0.0
      %5743 = vmatprep.mubr.f32.mxu0 0.0
      %5744 = vmatmul.mubr.f32.gmra.mxu0 %v5674
      %v5745 = vpop.f32.mrf.mxu0
      %v5746 = vadd.f32 0.0, %v5745
      %v5747 = vpop.f32.mrf.mxu0
      %5748 = vdwg.mxu0
      %v5749 = vsel %vm4998, %v334, 0
      %v5752 = vsel %vm4998, %v4992, 0
      %5754 = vmatprep.subr.mxu0 0.0
      %5755 = vmatpush1.xpose.msra.mxu0 0.0
      %5756 = vmatprep.subr.mxu0 0.0
      %5757 = vmatpush1.xpose.msra.mxu0 0.0
      %5758 = vmatprep.subr.mxu0 0.0
      %5759 = vmatpush1.xpose.msra.mxu0 0.0
      %5760 = vmatprep.subr.mxu0 0.0
      %5761 = vmatpush1.xpose.msra.mxu0 0.0
      %5762 = vmatprep.subr.mxu0 0.0
      %5763 = vmatpush1.xpose.msra.mxu0 0.0
      %5764 = vmatprep.subr.mxu0 0.0
      %5765 = vmatpush1.xpose.msra.mxu0 0.0
      %5766 = vmatprep.subr.mxu0 0.0
      %5767 = vmatpush1.xpose.msra.mxu0 0.0
      %5768 = vmatprep.subr.mxu0 0.0
      %5769 = vmatpush1.xpose.msra.mxu0 0.0
      %5770 = vmatprep.subr.mxu0 0.0
      %5771 = vmatpush1.xpose.msra.mxu0 0.0
      %5772 = vmatprep.subr.mxu0 0.0
      %5773 = vmatpush1.xpose.msra.mxu0 0.0
      %5774 = vmatprep.subr.mxu0 0.0
      %5775 = vmatpush1.xpose.msra.mxu0 0.0
      %5776 = vmatprep.subr.mxu0 0.0
      %5777 = vmatpush1.xpose.msra.mxu0 0.0
      %5778 = vmatprep.subr.mxu0 0.0
      %5779 = vmatpush1.xpose.msra.mxu0 0.0
      %5780 = vmatprep.subr.mxu0 0.0
      %5781 = vmatpush1.xpose.msra.mxu0 0.0
      %5782 = vmatprep.subr.mxu0 0.0
      %5783 = vmatpush1.xpose.msra.mxu0 0.0
      %5784 = vmatprep.subr.mxu0 0.0
      %5785 = vmatpush1.xpose.msra.mxu0 %v5752
      %5786 = vmatprep.subr.mxu0 0.0
      %5787 = vmatpush2.xpose.msra.mxu0 0.0
      %5788 = vmatprep.subr.mxu0 0.0
      %5789 = vmatpush2.xpose.msra.mxu0 0.0
      %5790 = vmatprep.subr.mxu0 0.0
      %5791 = vmatpush2.xpose.msra.mxu0 0.0
      %5792 = vmatprep.subr.mxu0 0.0
      %5793 = vmatpush2.xpose.msra.mxu0 0.0
      %5794 = vmatprep.subr.mxu0 0.0
      %5795 = vmatpush2.xpose.msra.mxu0 0.0
      %5796 = vmatprep.subr.mxu0 0.0
      %5797 = vmatpush2.xpose.msra.mxu0 0.0
      %5798 = vmatprep.subr.mxu0 0.0
      %5799 = vmatpush2.xpose.msra.mxu0 0.0
      %5800 = vmatprep.subr.mxu0 0.0
      %5801 = vmatpush2.xpose.msra.mxu0 0.0
      %5802 = vmatprep.subr.mxu0 0.0
      %5803 = vmatpush2.xpose.msra.mxu0 0.0
      %5804 = vmatprep.subr.mxu0 0.0
      %5805 = vmatpush2.xpose.msra.mxu0 0.0
      %5806 = vmatprep.subr.mxu0 0.0
      %5807 = vmatpush2.xpose.msra.mxu0 0.0
      %5808 = vmatprep.subr.mxu0 0.0
      %5809 = vmatpush2.xpose.msra.mxu0 0.0
      %5810 = vmatprep.subr.mxu0 0.0
      %5811 = vmatpush2.xpose.msra.mxu0 0.0
      %5812 = vmatprep.subr.mxu0 0.0
      %5813 = vmatpush2.xpose.msra.mxu0 0.0
      %5814 = vmatprep.subr.mxu0 0.0
      %5815 = vmatpush2.xpose.msra.mxu0 0.0
      %5816 = vmatprep.subr.mxu0 0.0
      %5817 = vmatpush2.xpose.msra.mxu0 0.0
      %5818 = vmatprep.mubr.f32.mxu0 0.0
      %5819 = vmatmul.mubr.f32.gmra.mxu0 %v5749
      %v5820 = vpop.f32.mrf.mxu0
      %v5821 = vadd.f32 0.0, %v5820
      %v5822 = vpop.f32.mrf.mxu0
      %5823 = vdwg.mxu0
      %v5824 = vsel %vm4998, %v335, 0
      %v5827 = vsel %vm4998, %v4993, 0
      %5829 = vmatprep.subr.mxu0 0.0
      %5830 = vmatpush1.xpose.msra.mxu0 0.0
      %5831 = vmatprep.subr.mxu0 0.0
      %5832 = vmatpush1.xpose.msra.mxu0 0.0
      %5833 = vmatprep.subr.mxu0 0.0
      %5834 = vmatpush1.xpose.msra.mxu0 0.0
      %5835 = vmatprep.subr.mxu0 0.0
      %5836 = vmatpush1.xpose.msra.mxu0 0.0
      %5837 = vmatprep.subr.mxu0 0.0
      %5838 = vmatpush1.xpose.msra.mxu0 0.0
      %5839 = vmatprep.subr.mxu0 0.0
      %5840 = vmatpush1.xpose.msra.mxu0 0.0
      %5841 = vmatprep.subr.mxu0 0.0
      %5842 = vmatpush1.xpose.msra.mxu0 0.0
      %5843 = vmatprep.subr.mxu0 0.0
      %5844 = vmatpush1.xpose.msra.mxu0 0.0
      %5845 = vmatprep.subr.mxu0 0.0
      %5846 = vmatpush1.xpose.msra.mxu0 0.0
      %5847 = vmatprep.subr.mxu0 0.0
      %5848 = vmatpush1.xpose.msra.mxu0 0.0
      %5849 = vmatprep.subr.mxu0 0.0
      %5850 = vmatpush1.xpose.msra.mxu0 0.0
      %5851 = vmatprep.subr.mxu0 0.0
      %5852 = vmatpush1.xpose.msra.mxu0 0.0
      %5853 = vmatprep.subr.mxu0 0.0
      %5854 = vmatpush1.xpose.msra.mxu0 0.0
      %5855 = vmatprep.subr.mxu0 0.0
      %5856 = vmatpush1.xpose.msra.mxu0 0.0
      %5857 = vmatprep.subr.mxu0 0.0
      %5858 = vmatpush1.xpose.msra.mxu0 0.0
      %5859 = vmatprep.subr.mxu0 0.0
      %5860 = vmatpush1.xpose.msra.mxu0 %v5827
      %5861 = vmatprep.subr.mxu0 0.0
      %5862 = vmatpush2.xpose.msra.mxu0 0.0
      %5863 = vmatprep.subr.mxu0 0.0
      %5864 = vmatpush2.xpose.msra.mxu0 0.0
      %5865 = vmatprep.subr.mxu0 0.0
      %5866 = vmatpush2.xpose.msra.mxu0 0.0
      %5867 = vmatprep.subr.mxu0 0.0
      %5868 = vmatpush2.xpose.msra.mxu0 0.0
      %5869 = vmatprep.subr.mxu0 0.0
      %5870 = vmatpush2.xpose.msra.mxu0 0.0
      %5871 = vmatprep.subr.mxu0 0.0
      %5872 = vmatpush2.xpose.msra.mxu0 0.0
      %5873 = vmatprep.subr.mxu0 0.0
      %5874 = vmatpush2.xpose.msra.mxu0 0.0
      %5875 = vmatprep.subr.mxu0 0.0
      %5876 = vmatpush2.xpose.msra.mxu0 0.0
      %5877 = vmatprep.subr.mxu0 0.0
      %5878 = vmatpush2.xpose.msra.mxu0 0.0
      %5879 = vmatprep.subr.mxu0 0.0
      %5880 = vmatpush2.xpose.msra.mxu0 0.0
      %5881 = vmatprep.subr.mxu0 0.0
      %5882 = vmatpush2.xpose.msra.mxu0 0.0
      %5883 = vmatprep.subr.mxu0 0.0
      %5884 = vmatpush2.xpose.msra.mxu0 0.0
      %5885 = vmatprep.subr.mxu0 0.0
      %5886 = vmatpush2.xpose.msra.mxu0 0.0
      %5887 = vmatprep.subr.mxu0 0.0
      %5888 = vmatpush2.xpose.msra.mxu0 0.0
      %5889 = vmatprep.subr.mxu0 0.0
      %5890 = vmatpush2.xpose.msra.mxu0 0.0
      %5891 = vmatprep.subr.mxu0 0.0
      %5892 = vmatpush2.xpose.msra.mxu0 0.0
      %5893 = vmatprep.mubr.f32.mxu0 0.0
      %5894 = vmatmul.mubr.f32.gmra.mxu0 %v5824
      %v5895 = vpop.f32.mrf.mxu0
      %v5896 = vadd.f32 0.0, %v5895
      %v5897 = vpop.f32.mrf.mxu0
      %5898 = vdwg.mxu0
      %v5899 = vsel %vm4998, %v336, 0
      %v5902 = vsel %vm4998, %v4994, 0
      %5904 = vmatprep.subr.mxu0 0.0
      %5905 = vmatpush1.xpose.msra.mxu0 0.0
      %5906 = vmatprep.subr.mxu0 0.0
      %5907 = vmatpush1.xpose.msra.mxu0 0.0
      %5908 = vmatprep.subr.mxu0 0.0
      %5909 = vmatpush1.xpose.msra.mxu0 0.0
      %5910 = vmatprep.subr.mxu0 0.0
      %5911 = vmatpush1.xpose.msra.mxu0 0.0
      %5912 = vmatprep.subr.mxu0 0.0
      %5913 = vmatpush1.xpose.msra.mxu0 0.0
      %5914 = vmatprep.subr.mxu0 0.0
      %5915 = vmatpush1.xpose.msra.mxu0 0.0
      %5916 = vmatprep.subr.mxu0 0.0
      %5917 = vmatpush1.xpose.msra.mxu0 0.0
      %5918 = vmatprep.subr.mxu0 0.0
      %5919 = vmatpush1.xpose.msra.mxu0 0.0
      %5920 = vmatprep.subr.mxu0 0.0
      %5921 = vmatpush1.xpose.msra.mxu0 0.0
      %5922 = vmatprep.subr.mxu0 0.0
      %5923 = vmatpush1.xpose.msra.mxu0 0.0
      %5924 = vmatprep.subr.mxu0 0.0
      %5925 = vmatpush1.xpose.msra.mxu0 0.0
      %5926 = vmatprep.subr.mxu0 0.0
      %5927 = vmatpush1.xpose.msra.mxu0 0.0
      %5928 = vmatprep.subr.mxu0 0.0
      %5929 = vmatpush1.xpose.msra.mxu0 0.0
      %5930 = vmatprep.subr.mxu0 0.0
      %5931 = vmatpush1.xpose.msra.mxu0 0.0
      %5932 = vmatprep.subr.mxu0 0.0
      %5933 = vmatpush1.xpose.msra.mxu0 0.0
      %5934 = vmatprep.subr.mxu0 0.0
      %5935 = vmatpush1.xpose.msra.mxu0 %v5902
      %5936 = vmatprep.subr.mxu0 0.0
      %5937 = vmatpush2.xpose.msra.mxu0 0.0
      %5938 = vmatprep.subr.mxu0 0.0
      %5939 = vmatpush2.xpose.msra.mxu0 0.0
      %5940 = vmatprep.subr.mxu0 0.0
      %5941 = vmatpush2.xpose.msra.mxu0 0.0
      %5942 = vmatprep.subr.mxu0 0.0
      %5943 = vmatpush2.xpose.msra.mxu0 0.0
      %5944 = vmatprep.subr.mxu0 0.0
      %5945 = vmatpush2.xpose.msra.mxu0 0.0
      %5946 = vmatprep.subr.mxu0 0.0
      %5947 = vmatpush2.xpose.msra.mxu0 0.0
      %5948 = vmatprep.subr.mxu0 0.0
      %5949 = vmatpush2.xpose.msra.mxu0 0.0
      %5950 = vmatprep.subr.mxu0 0.0
      %5951 = vmatpush2.xpose.msra.mxu0 0.0
      %5952 = vmatprep.subr.mxu0 0.0
      %5953 = vmatpush2.xpose.msra.mxu0 0.0
      %5954 = vmatprep.subr.mxu0 0.0
      %5955 = vmatpush2.xpose.msra.mxu0 0.0
      %5956 = vmatprep.subr.mxu0 0.0
      %5957 = vmatpush2.xpose.msra.mxu0 0.0
      %5958 = vmatprep.subr.mxu0 0.0
      %5959 = vmatpush2.xpose.msra.mxu0 0.0
      %5960 = vmatprep.subr.mxu0 0.0
      %5961 = vmatpush2.xpose.msra.mxu0 0.0
      %5962 = vmatprep.subr.mxu0 0.0
      %5963 = vmatpush2.xpose.msra.mxu0 0.0
      %5964 = vmatprep.subr.mxu0 0.0
      %5965 = vmatpush2.xpose.msra.mxu0 0.0
      %5966 = vmatprep.subr.mxu0 0.0
      %5967 = vmatpush2.xpose.msra.mxu0 0.0
      %5968 = vmatprep.mubr.f32.mxu0 0.0
      %5969 = vmatmul.mubr.f32.gmra.mxu0 %v5899
      %v5970 = vpop.f32.mrf.mxu0
      %v5971 = vadd.f32 0.0, %v5970
      %v5972 = vpop.f32.mrf.mxu0
      %5973 = vdwg.mxu0
      %v5974 = vsel %vm4998, %v337, 0
      %v5977 = vsel %vm4998, %v4995, 0
      %5979 = vmatprep.subr.mxu0 0.0
      %5980 = vmatpush1.xpose.msra.mxu0 0.0
      %5981 = vmatprep.subr.mxu0 0.0
      %5982 = vmatpush1.xpose.msra.mxu0 0.0
      %5983 = vmatprep.subr.mxu0 0.0
      %5984 = vmatpush1.xpose.msra.mxu0 0.0
      %5985 = vmatprep.subr.mxu0 0.0
      %5986 = vmatpush1.xpose.msra.mxu0 0.0
      %5987 = vmatprep.subr.mxu0 0.0
      %5988 = vmatpush1.xpose.msra.mxu0 0.0
      %5989 = vmatprep.subr.mxu0 0.0
      %5990 = vmatpush1.xpose.msra.mxu0 0.0
      %5991 = vmatprep.subr.mxu0 0.0
      %5992 = vmatpush1.xpose.msra.mxu0 0.0
      %5993 = vmatprep.subr.mxu0 0.0
      %5994 = vmatpush1.xpose.msra.mxu0 0.0
      %5995 = vmatprep.subr.mxu0 0.0
      %5996 = vmatpush1.xpose.msra.mxu0 0.0
      %5997 = vmatprep.subr.mxu0 0.0
      %5998 = vmatpush1.xpose.msra.mxu0 0.0
      %5999 = vmatprep.subr.mxu0 0.0
      %6000 = vmatpush1.xpose.msra.mxu0 0.0
      %6001 = vmatprep.subr.mxu0 0.0
      %6002 = vmatpush1.xpose.msra.mxu0 0.0
      %6003 = vmatprep.subr.mxu0 0.0
      %6004 = vmatpush1.xpose.msra.mxu0 0.0
      %6005 = vmatprep.subr.mxu0 0.0
      %6006 = vmatpush1.xpose.msra.mxu0 0.0
      %6007 = vmatprep.subr.mxu0 0.0
      %6008 = vmatpush1.xpose.msra.mxu0 0.0
      %6009 = vmatprep.subr.mxu0 0.0
      %6010 = vmatpush1.xpose.msra.mxu0 %v5977
      %6011 = vmatprep.subr.mxu0 0.0
      %6012 = vmatpush2.xpose.msra.mxu0 0.0
      %6013 = vmatprep.subr.mxu0 0.0
      %6014 = vmatpush2.xpose.msra.mxu0 0.0
      %6015 = vmatprep.subr.mxu0 0.0
      %6016 = vmatpush2.xpose.msra.mxu0 0.0
      %6017 = vmatprep.subr.mxu0 0.0
      %6018 = vmatpush2.xpose.msra.mxu0 0.0
      %6019 = vmatprep.subr.mxu0 0.0
      %6020 = vmatpush2.xpose.msra.mxu0 0.0
      %6021 = vmatprep.subr.mxu0 0.0
      %6022 = vmatpush2.xpose.msra.mxu0 0.0
      %6023 = vmatprep.subr.mxu0 0.0
      %6024 = vmatpush2.xpose.msra.mxu0 0.0
      %6025 = vmatprep.subr.mxu0 0.0
      %6026 = vmatpush2.xpose.msra.mxu0 0.0
      %6027 = vmatprep.subr.mxu0 0.0
      %6028 = vmatpush2.xpose.msra.mxu0 0.0
      %6029 = vmatprep.subr.mxu0 0.0
      %6030 = vmatpush2.xpose.msra.mxu0 0.0
      %6031 = vmatprep.subr.mxu0 0.0
      %6032 = vmatpush2.xpose.msra.mxu0 0.0
      %6033 = vmatprep.subr.mxu0 0.0
      %6034 = vmatpush2.xpose.msra.mxu0 0.0
      %6035 = vmatprep.subr.mxu0 0.0
      %6036 = vmatpush2.xpose.msra.mxu0 0.0
      %6037 = vmatprep.subr.mxu0 0.0
      %6038 = vmatpush2.xpose.msra.mxu0 0.0
      %6039 = vmatprep.subr.mxu0 0.0
      %6040 = vmatpush2.xpose.msra.mxu0 0.0
      %6041 = vmatprep.subr.mxu0 0.0
      %6042 = vmatpush2.xpose.msra.mxu0 0.0
      %6043 = vmatprep.mubr.f32.mxu0 0.0
      %6044 = vmatmul.mubr.f32.gmra.mxu0 %v5974
      %v6045 = vpop.f32.mrf.mxu0
      %v6046 = vadd.f32 0.0, %v6045
      %v6047 = vpop.f32.mrf.mxu0
      %6048 = vdwg.mxu0
      %v6049 = vsel %vm4998, %v338, 0
      %v6052 = vsel %vm4998, %v4996, 0
      %6054 = vmatprep.subr.mxu0 0.0
      %6055 = vmatpush1.xpose.msra.mxu0 0.0
      %6056 = vmatprep.subr.mxu0 0.0
      %6057 = vmatpush1.xpose.msra.mxu0 0.0
      %6058 = vmatprep.subr.mxu0 0.0
      %6059 = vmatpush1.xpose.msra.mxu0 0.0
      %6060 = vmatprep.subr.mxu0 0.0
      %6061 = vmatpush1.xpose.msra.mxu0 0.0
      %6062 = vmatprep.subr.mxu0 0.0
      %6063 = vmatpush1.xpose.msra.mxu0 0.0
      %6064 = vmatprep.subr.mxu0 0.0
      %6065 = vmatpush1.xpose.msra.mxu0 0.0
      %6066 = vmatprep.subr.mxu0 0.0
      %6067 = vmatpush1.xpose.msra.mxu0 0.0
      %6068 = vmatprep.subr.mxu0 0.0
      %6069 = vmatpush1.xpose.msra.mxu0 0.0
      %6070 = vmatprep.subr.mxu0 0.0
      %6071 = vmatpush1.xpose.msra.mxu0 0.0
      %6072 = vmatprep.subr.mxu0 0.0
      %6073 = vmatpush1.xpose.msra.mxu0 0.0
      %6074 = vmatprep.subr.mxu0 0.0
      %6075 = vmatpush1.xpose.msra.mxu0 0.0
      %6076 = vmatprep.subr.mxu0 0.0
      %6077 = vmatpush1.xpose.msra.mxu0 0.0
      %6078 = vmatprep.subr.mxu0 0.0
      %6079 = vmatpush1.xpose.msra.mxu0 0.0
      %6080 = vmatprep.subr.mxu0 0.0
      %6081 = vmatpush1.xpose.msra.mxu0 0.0
      %6082 = vmatprep.subr.mxu0 0.0
      %6083 = vmatpush1.xpose.msra.mxu0 0.0
      %6084 = vmatprep.subr.mxu0 0.0
      %6085 = vmatpush1.xpose.msra.mxu0 %v6052
      %6086 = vmatprep.subr.mxu0 0.0
      %6087 = vmatpush2.xpose.msra.mxu0 0.0
      %6088 = vmatprep.subr.mxu0 0.0
      %6089 = vmatpush2.xpose.msra.mxu0 0.0
      %6090 = vmatprep.subr.mxu0 0.0
      %6091 = vmatpush2.xpose.msra.mxu0 0.0
      %6092 = vmatprep.subr.mxu0 0.0
      %6093 = vmatpush2.xpose.msra.mxu0 0.0
      %6094 = vmatprep.subr.mxu0 0.0
      %6095 = vmatpush2.xpose.msra.mxu0 0.0
      %6096 = vmatprep.subr.mxu0 0.0
      %6097 = vmatpush2.xpose.msra.mxu0 0.0
      %6098 = vmatprep.subr.mxu0 0.0
      %6099 = vmatpush2.xpose.msra.mxu0 0.0
      %6100 = vmatprep.subr.mxu0 0.0
      %6101 = vmatpush2.xpose.msra.mxu0 0.0
      %6102 = vmatprep.subr.mxu0 0.0
      %6103 = vmatpush2.xpose.msra.mxu0 0.0
      %6104 = vmatprep.subr.mxu0 0.0
      %6105 = vmatpush2.xpose.msra.mxu0 0.0
      %6106 = vmatprep.subr.mxu0 0.0
      %6107 = vmatpush2.xpose.msra.mxu0 0.0
      %6108 = vmatprep.subr.mxu0 0.0
      %6109 = vmatpush2.xpose.msra.mxu0 0.0
      %6110 = vmatprep.subr.mxu0 0.0
      %6111 = vmatpush2.xpose.msra.mxu0 0.0
      %6112 = vmatprep.subr.mxu0 0.0
      %6113 = vmatpush2.xpose.msra.mxu0 0.0
      %6114 = vmatprep.subr.mxu0 0.0
      %6115 = vmatpush2.xpose.msra.mxu0 0.0
      %6116 = vmatprep.subr.mxu0 0.0
      %6117 = vmatpush2.xpose.msra.mxu0 0.0
      %6118 = vmatprep.mubr.f32.mxu0 0.0
      %6119 = vmatmul.mubr.f32.gmra.mxu0 %v6049
      %v6120 = vpop.f32.mrf.mxu0
      %v6121 = vadd.f32 0.0, %v6120
      %v6122 = vpop.f32.mrf.mxu0
      %6123 = vdwg.mxu0
      %v6124 = vsel %vm4998, %v339, 0
      %v6127 = vsel %vm4998, %v4997, 0
      %6129 = vmatprep.subr.mxu0 0.0
      %6130 = vmatpush1.xpose.msra.mxu0 0.0
      %6131 = vmatprep.subr.mxu0 0.0
      %6132 = vmatpush1.xpose.msra.mxu0 0.0
      %6133 = vmatprep.subr.mxu0 0.0
      %6134 = vmatpush1.xpose.msra.mxu0 0.0
      %6135 = vmatprep.subr.mxu0 0.0
      %6136 = vmatpush1.xpose.msra.mxu0 0.0
      %6137 = vmatprep.subr.mxu0 0.0
      %6138 = vmatpush1.xpose.msra.mxu0 0.0
      %6139 = vmatprep.subr.mxu0 0.0
      %6140 = vmatpush1.xpose.msra.mxu0 0.0
      %6141 = vmatprep.subr.mxu0 0.0
      %6142 = vmatpush1.xpose.msra.mxu0 0.0
      %6143 = vmatprep.subr.mxu0 0.0
      %6144 = vmatpush1.xpose.msra.mxu0 0.0
      %6145 = vmatprep.subr.mxu0 0.0
      %6146 = vmatpush1.xpose.msra.mxu0 0.0
      %6147 = vmatprep.subr.mxu0 0.0
      %6148 = vmatpush1.xpose.msra.mxu0 0.0
      %6149 = vmatprep.subr.mxu0 0.0
      %6150 = vmatpush1.xpose.msra.mxu0 0.0
      %6151 = vmatprep.subr.mxu0 0.0
      %6152 = vmatpush1.xpose.msra.mxu0 0.0
      %6153 = vmatprep.subr.mxu0 0.0
      %6154 = vmatpush1.xpose.msra.mxu0 0.0
      %6155 = vmatprep.subr.mxu0 0.0
      %6156 = vmatpush1.xpose.msra.mxu0 0.0
      %6157 = vmatprep.subr.mxu0 0.0
      %6158 = vmatpush1.xpose.msra.mxu0 0.0
      %6159 = vmatprep.subr.mxu0 0.0
      %6160 = vmatpush1.xpose.msra.mxu0 %v6127
      %6161 = vmatprep.subr.mxu0 0.0
      %6162 = vmatpush2.xpose.msra.mxu0 0.0
      %6163 = vmatprep.subr.mxu0 0.0
      %6164 = vmatpush2.xpose.msra.mxu0 0.0
      %6165 = vmatprep.subr.mxu0 0.0
      %6166 = vmatpush2.xpose.msra.mxu0 0.0
      %6167 = vmatprep.subr.mxu0 0.0
      %6168 = vmatpush2.xpose.msra.mxu0 0.0
      %6169 = vmatprep.subr.mxu0 0.0
      %6170 = vmatpush2.xpose.msra.mxu0 0.0
      %6171 = vmatprep.subr.mxu0 0.0
      %6172 = vmatpush2.xpose.msra.mxu0 0.0
      %6173 = vmatprep.subr.mxu0 0.0
      %6174 = vmatpush2.xpose.msra.mxu0 0.0
      %6175 = vmatprep.subr.mxu0 0.0
      %6176 = vmatpush2.xpose.msra.mxu0 0.0
      %6177 = vmatprep.subr.mxu0 0.0
      %6178 = vmatpush2.xpose.msra.mxu0 0.0
      %6179 = vmatprep.subr.mxu0 0.0
      %6180 = vmatpush2.xpose.msra.mxu0 0.0
      %6181 = vmatprep.subr.mxu0 0.0
      %6182 = vmatpush2.xpose.msra.mxu0 0.0
      %6183 = vmatprep.subr.mxu0 0.0
      %6184 = vmatpush2.xpose.msra.mxu0 0.0
      %6185 = vmatprep.subr.mxu0 0.0
      %6186 = vmatpush2.xpose.msra.mxu0 0.0
      %6187 = vmatprep.subr.mxu0 0.0
      %6188 = vmatpush2.xpose.msra.mxu0 0.0
      %6189 = vmatprep.subr.mxu0 0.0
      %6190 = vmatpush2.xpose.msra.mxu0 0.0
      %6191 = vmatprep.subr.mxu0 0.0
      %6192 = vmatpush2.xpose.msra.mxu0 0.0
      %6193 = vmatprep.mubr.f32.mxu0 0.0
      %6194 = vmatmul.mubr.f32.gmra.mxu0 %v6124
      %v6195 = vpop.f32.mrf.mxu0
      %v6196 = vadd.f32 0.0, %v6195
      %v6197 = vpop.f32.mrf.mxu0
      %6198 = vdwg.mxu0
      %v6199 = vsub.f32 %v5071, %v5671
      %v6200 = vsub.f32 %v5146, %v5746
      %v6201 = vsub.f32 %v5221, %v5821
      %v6202 = vsub.f32 %v5296, %v5896
      %v6203 = vsub.f32 %v5371, %v5971
      %v6204 = vsub.f32 %v5446, %v6046
      %v6205 = vsub.f32 %v5521, %v6121
      %v6206 = vsub.f32 %v5596, %v6196
      %6207 = vmatprep.subr.mxu0 0.0
      %6208 = vmatpush1.xpose.msra.mxu0 0.0
      %6209 = vmatprep.subr.mxu0 0.0
      %6210 = vmatpush1.xpose.msra.mxu0 0.0
      %6211 = vmatprep.subr.mxu0 0.0
      %6212 = vmatpush1.xpose.msra.mxu0 0.0
      %6213 = vmatprep.subr.mxu0 0.0
      %6214 = vmatpush1.xpose.msra.mxu0 0.0
      %6215 = vmatprep.subr.mxu0 0.0
      %6216 = vmatpush1.xpose.msra.mxu0 0.0
      %6217 = vmatprep.subr.mxu0 0.0
      %6218 = vmatpush1.xpose.msra.mxu0 0.0
      %6219 = vmatprep.subr.mxu0 0.0
      %6220 = vmatpush1.xpose.msra.mxu0 0.0
      %6221 = vmatprep.subr.mxu0 0.0
      %6222 = vmatpush1.xpose.msra.mxu0 0.0
      %6223 = vmatprep.subr.mxu0 0.0
      %6224 = vmatpush1.xpose.msra.mxu0 0.0
      %6225 = vmatprep.subr.mxu0 0.0
      %6226 = vmatpush1.xpose.msra.mxu0 0.0
      %6227 = vmatprep.subr.mxu0 0.0
      %6228 = vmatpush1.xpose.msra.mxu0 0.0
      %6229 = vmatprep.subr.mxu0 0.0
      %6230 = vmatpush1.xpose.msra.mxu0 0.0
      %6231 = vmatprep.subr.mxu0 0.0
      %6232 = vmatpush1.xpose.msra.mxu0 0.0
      %6233 = vmatprep.subr.mxu0 0.0
      %6234 = vmatpush1.xpose.msra.mxu0 0.0
      %6235 = vmatprep.subr.mxu0 0.0
      %6236 = vmatpush1.xpose.msra.mxu0 0.0
      %6237 = vmatprep.subr.mxu0 0.0
      %6238 = vmatpush1.xpose.msra.mxu0 %v5002
      %6239 = vmatprep.subr.mxu0 0.0
      %6240 = vmatpush2.xpose.msra.mxu0 0.0
      %6241 = vmatprep.subr.mxu0 0.0
      %6242 = vmatpush2.xpose.msra.mxu0 0.0
      %6243 = vmatprep.subr.mxu0 0.0
      %6244 = vmatpush2.xpose.msra.mxu0 0.0
      %6245 = vmatprep.subr.mxu0 0.0
      %6246 = vmatpush2.xpose.msra.mxu0 0.0
      %6247 = vmatprep.subr.mxu0 0.0
      %6248 = vmatpush2.xpose.msra.mxu0 0.0
      %6249 = vmatprep.subr.mxu0 0.0
      %6250 = vmatpush2.xpose.msra.mxu0 0.0
      %6251 = vmatprep.subr.mxu0 0.0
      %6252 = vmatpush2.xpose.msra.mxu0 0.0
      %6253 = vmatprep.subr.mxu0 0.0
      %6254 = vmatpush2.xpose.msra.mxu0 0.0
      %6255 = vmatprep.subr.mxu0 0.0
      %6256 = vmatpush2.xpose.msra.mxu0 0.0
      %6257 = vmatprep.subr.mxu0 0.0
      %6258 = vmatpush2.xpose.msra.mxu0 0.0
      %6259 = vmatprep.subr.mxu0 0.0
      %6260 = vmatpush2.xpose.msra.mxu0 0.0
      %6261 = vmatprep.subr.mxu0 0.0
      %6262 = vmatpush2.xpose.msra.mxu0 0.0
      %6263 = vmatprep.subr.mxu0 0.0
      %6264 = vmatpush2.xpose.msra.mxu0 0.0
      %6265 = vmatprep.subr.mxu0 0.0
      %6266 = vmatpush2.xpose.msra.mxu0 0.0
      %6267 = vmatprep.subr.mxu0 0.0
      %6268 = vmatpush2.xpose.msra.mxu0 0.0
      %6269 = vmatprep.subr.mxu0 0.0
      %6270 = vmatpush2.xpose.msra.mxu0 0.0
      %6271 = vmatprep.mubr.f32.mxu0 0.0
      %6272 = vmatmul.mubr.f32.gmra.mxu0 %v5599
      %v6273 = vpop.f32.mrf.mxu0
      %v6274 = vadd.f32 0.0, %v6273
      %v6275 = vpop.f32.mrf.mxu0
      %6276 = vdwg.mxu0
      %6277 = vmatprep.subr.mxu0 0.0
      %6278 = vmatpush1.xpose.msra.mxu0 0.0
      %6279 = vmatprep.subr.mxu0 0.0
      %6280 = vmatpush1.xpose.msra.mxu0 0.0
      %6281 = vmatprep.subr.mxu0 0.0
      %6282 = vmatpush1.xpose.msra.mxu0 0.0
      %6283 = vmatprep.subr.mxu0 0.0
      %6284 = vmatpush1.xpose.msra.mxu0 0.0
      %6285 = vmatprep.subr.mxu0 0.0
      %6286 = vmatpush1.xpose.msra.mxu0 0.0
      %6287 = vmatprep.subr.mxu0 0.0
      %6288 = vmatpush1.xpose.msra.mxu0 0.0
      %6289 = vmatprep.subr.mxu0 0.0
      %6290 = vmatpush1.xpose.msra.mxu0 0.0
      %6291 = vmatprep.subr.mxu0 0.0
      %6292 = vmatpush1.xpose.msra.mxu0 0.0
      %6293 = vmatprep.subr.mxu0 0.0
      %6294 = vmatpush1.xpose.msra.mxu0 0.0
      %6295 = vmatprep.subr.mxu0 0.0
      %6296 = vmatpush1.xpose.msra.mxu0 0.0
      %6297 = vmatprep.subr.mxu0 0.0
      %6298 = vmatpush1.xpose.msra.mxu0 0.0
      %6299 = vmatprep.subr.mxu0 0.0
      %6300 = vmatpush1.xpose.msra.mxu0 0.0
      %6301 = vmatprep.subr.mxu0 0.0
      %6302 = vmatpush1.xpose.msra.mxu0 0.0
      %6303 = vmatprep.subr.mxu0 0.0
      %6304 = vmatpush1.xpose.msra.mxu0 0.0
      %6305 = vmatprep.subr.mxu0 0.0
      %6306 = vmatpush1.xpose.msra.mxu0 0.0
      %6307 = vmatprep.subr.mxu0 0.0
      %6308 = vmatpush1.xpose.msra.mxu0 %v5077
      %6309 = vmatprep.subr.mxu0 0.0
      %6310 = vmatpush2.xpose.msra.mxu0 0.0
      %6311 = vmatprep.subr.mxu0 0.0
      %6312 = vmatpush2.xpose.msra.mxu0 0.0
      %6313 = vmatprep.subr.mxu0 0.0
      %6314 = vmatpush2.xpose.msra.mxu0 0.0
      %6315 = vmatprep.subr.mxu0 0.0
      %6316 = vmatpush2.xpose.msra.mxu0 0.0
      %6317 = vmatprep.subr.mxu0 0.0
      %6318 = vmatpush2.xpose.msra.mxu0 0.0
      %6319 = vmatprep.subr.mxu0 0.0
      %6320 = vmatpush2.xpose.msra.mxu0 0.0
      %6321 = vmatprep.subr.mxu0 0.0
      %6322 = vmatpush2.xpose.msra.mxu0 0.0
      %6323 = vmatprep.subr.mxu0 0.0
      %6324 = vmatpush2.xpose.msra.mxu0 0.0
      %6325 = vmatprep.subr.mxu0 0.0
      %6326 = vmatpush2.xpose.msra.mxu0 0.0
      %6327 = vmatprep.subr.mxu0 0.0
      %6328 = vmatpush2.xpose.msra.mxu0 0.0
      %6329 = vmatprep.subr.mxu0 0.0
      %6330 = vmatpush2.xpose.msra.mxu0 0.0
      %6331 = vmatprep.subr.mxu0 0.0
      %6332 = vmatpush2.xpose.msra.mxu0 0.0
      %6333 = vmatprep.subr.mxu0 0.0
      %6334 = vmatpush2.xpose.msra.mxu0 0.0
      %6335 = vmatprep.subr.mxu0 0.0
      %6336 = vmatpush2.xpose.msra.mxu0 0.0
      %6337 = vmatprep.subr.mxu0 0.0
      %6338 = vmatpush2.xpose.msra.mxu0 0.0
      %6339 = vmatprep.subr.mxu0 0.0
      %6340 = vmatpush2.xpose.msra.mxu0 0.0
      %6341 = vmatprep.mubr.f32.mxu0 0.0
      %6342 = vmatmul.mubr.f32.gmra.mxu0 %v5674
      %v6343 = vpop.f32.mrf.mxu0
      %v6344 = vadd.f32 0.0, %v6343
      %v6345 = vpop.f32.mrf.mxu0
      %6346 = vdwg.mxu0
      %6347 = vmatprep.subr.mxu0 0.0
      %6348 = vmatpush1.xpose.msra.mxu0 0.0
      %6349 = vmatprep.subr.mxu0 0.0
      %6350 = vmatpush1.xpose.msra.mxu0 0.0
      %6351 = vmatprep.subr.mxu0 0.0
      %6352 = vmatpush1.xpose.msra.mxu0 0.0
      %6353 = vmatprep.subr.mxu0 0.0
      %6354 = vmatpush1.xpose.msra.mxu0 0.0
      %6355 = vmatprep.subr.mxu0 0.0
      %6356 = vmatpush1.xpose.msra.mxu0 0.0
      %6357 = vmatprep.subr.mxu0 0.0
      %6358 = vmatpush1.xpose.msra.mxu0 0.0
      %6359 = vmatprep.subr.mxu0 0.0
      %6360 = vmatpush1.xpose.msra.mxu0 0.0
      %6361 = vmatprep.subr.mxu0 0.0
      %6362 = vmatpush1.xpose.msra.mxu0 0.0
      %6363 = vmatprep.subr.mxu0 0.0
      %6364 = vmatpush1.xpose.msra.mxu0 0.0
      %6365 = vmatprep.subr.mxu0 0.0
      %6366 = vmatpush1.xpose.msra.mxu0 0.0
      %6367 = vmatprep.subr.mxu0 0.0
      %6368 = vmatpush1.xpose.msra.mxu0 0.0
      %6369 = vmatprep.subr.mxu0 0.0
      %6370 = vmatpush1.xpose.msra.mxu0 0.0
      %6371 = vmatprep.subr.mxu0 0.0
      %6372 = vmatpush1.xpose.msra.mxu0 0.0
      %6373 = vmatprep.subr.mxu0 0.0
      %6374 = vmatpush1.xpose.msra.mxu0 0.0
      %6375 = vmatprep.subr.mxu0 0.0
      %6376 = vmatpush1.xpose.msra.mxu0 0.0
      %6377 = vmatprep.subr.mxu0 0.0
      %6378 = vmatpush1.xpose.msra.mxu0 %v5152
      %6379 = vmatprep.subr.mxu0 0.0
      %6380 = vmatpush2.xpose.msra.mxu0 0.0
      %6381 = vmatprep.subr.mxu0 0.0
      %6382 = vmatpush2.xpose.msra.mxu0 0.0
      %6383 = vmatprep.subr.mxu0 0.0
      %6384 = vmatpush2.xpose.msra.mxu0 0.0
      %6385 = vmatprep.subr.mxu0 0.0
      %6386 = vmatpush2.xpose.msra.mxu0 0.0
      %6387 = vmatprep.subr.mxu0 0.0
      %6388 = vmatpush2.xpose.msra.mxu0 0.0
      %6389 = vmatprep.subr.mxu0 0.0
      %6390 = vmatpush2.xpose.msra.mxu0 0.0
      %6391 = vmatprep.subr.mxu0 0.0
      %6392 = vmatpush2.xpose.msra.mxu0 0.0
      %6393 = vmatprep.subr.mxu0 0.0
      %6394 = vmatpush2.xpose.msra.mxu0 0.0
      %6395 = vmatprep.subr.mxu0 0.0
      %6396 = vmatpush2.xpose.msra.mxu0 0.0
      %6397 = vmatprep.subr.mxu0 0.0
      %6398 = vmatpush2.xpose.msra.mxu0 0.0
      %6399 = vmatprep.subr.mxu0 0.0
      %6400 = vmatpush2.xpose.msra.mxu0 0.0
      %6401 = vmatprep.subr.mxu0 0.0
      %6402 = vmatpush2.xpose.msra.mxu0 0.0
      %6403 = vmatprep.subr.mxu0 0.0
      %6404 = vmatpush2.xpose.msra.mxu0 0.0
      %6405 = vmatprep.subr.mxu0 0.0
      %6406 = vmatpush2.xpose.msra.mxu0 0.0
      %6407 = vmatprep.subr.mxu0 0.0
      %6408 = vmatpush2.xpose.msra.mxu0 0.0
      %6409 = vmatprep.subr.mxu0 0.0
      %6410 = vmatpush2.xpose.msra.mxu0 0.0
      %6411 = vmatprep.mubr.f32.mxu0 0.0
      %6412 = vmatmul.mubr.f32.gmra.mxu0 %v5749
      %v6413 = vpop.f32.mrf.mxu0
      %v6414 = vadd.f32 0.0, %v6413
      %v6415 = vpop.f32.mrf.mxu0
      %6416 = vdwg.mxu0
      %6417 = vmatprep.subr.mxu0 0.0
      %6418 = vmatpush1.xpose.msra.mxu0 0.0
      %6419 = vmatprep.subr.mxu0 0.0
      %6420 = vmatpush1.xpose.msra.mxu0 0.0
      %6421 = vmatprep.subr.mxu0 0.0
      %6422 = vmatpush1.xpose.msra.mxu0 0.0
      %6423 = vmatprep.subr.mxu0 0.0
      %6424 = vmatpush1.xpose.msra.mxu0 0.0
      %6425 = vmatprep.subr.mxu0 0.0
      %6426 = vmatpush1.xpose.msra.mxu0 0.0
      %6427 = vmatprep.subr.mxu0 0.0
      %6428 = vmatpush1.xpose.msra.mxu0 0.0
      %6429 = vmatprep.subr.mxu0 0.0
      %6430 = vmatpush1.xpose.msra.mxu0 0.0
      %6431 = vmatprep.subr.mxu0 0.0
      %6432 = vmatpush1.xpose.msra.mxu0 0.0
      %6433 = vmatprep.subr.mxu0 0.0
      %6434 = vmatpush1.xpose.msra.mxu0 0.0
      %6435 = vmatprep.subr.mxu0 0.0
      %6436 = vmatpush1.xpose.msra.mxu0 0.0
      %6437 = vmatprep.subr.mxu0 0.0
      %6438 = vmatpush1.xpose.msra.mxu0 0.0
      %6439 = vmatprep.subr.mxu0 0.0
      %6440 = vmatpush1.xpose.msra.mxu0 0.0
      %6441 = vmatprep.subr.mxu0 0.0
      %6442 = vmatpush1.xpose.msra.mxu0 0.0
      %6443 = vmatprep.subr.mxu0 0.0
      %6444 = vmatpush1.xpose.msra.mxu0 0.0
      %6445 = vmatprep.subr.mxu0 0.0
      %6446 = vmatpush1.xpose.msra.mxu0 0.0
      %6447 = vmatprep.subr.mxu0 0.0
      %6448 = vmatpush1.xpose.msra.mxu0 %v5227
      %6449 = vmatprep.subr.mxu0 0.0
      %6450 = vmatpush2.xpose.msra.mxu0 0.0
      %6451 = vmatprep.subr.mxu0 0.0
      %6452 = vmatpush2.xpose.msra.mxu0 0.0
      %6453 = vmatprep.subr.mxu0 0.0
      %6454 = vmatpush2.xpose.msra.mxu0 0.0
      %6455 = vmatprep.subr.mxu0 0.0
      %6456 = vmatpush2.xpose.msra.mxu0 0.0
      %6457 = vmatprep.subr.mxu0 0.0
      %6458 = vmatpush2.xpose.msra.mxu0 0.0
      %6459 = vmatprep.subr.mxu0 0.0
      %6460 = vmatpush2.xpose.msra.mxu0 0.0
      %6461 = vmatprep.subr.mxu0 0.0
      %6462 = vmatpush2.xpose.msra.mxu0 0.0
      %6463 = vmatprep.subr.mxu0 0.0
      %6464 = vmatpush2.xpose.msra.mxu0 0.0
      %6465 = vmatprep.subr.mxu0 0.0
      %6466 = vmatpush2.xpose.msra.mxu0 0.0
      %6467 = vmatprep.subr.mxu0 0.0
      %6468 = vmatpush2.xpose.msra.mxu0 0.0
      %6469 = vmatprep.subr.mxu0 0.0
      %6470 = vmatpush2.xpose.msra.mxu0 0.0
      %6471 = vmatprep.subr.mxu0 0.0
      %6472 = vmatpush2.xpose.msra.mxu0 0.0
      %6473 = vmatprep.subr.mxu0 0.0
      %6474 = vmatpush2.xpose.msra.mxu0 0.0
      %6475 = vmatprep.subr.mxu0 0.0
      %6476 = vmatpush2.xpose.msra.mxu0 0.0
      %6477 = vmatprep.subr.mxu0 0.0
      %6478 = vmatpush2.xpose.msra.mxu0 0.0
      %6479 = vmatprep.subr.mxu0 0.0
      %6480 = vmatpush2.xpose.msra.mxu0 0.0
      %6481 = vmatprep.mubr.f32.mxu0 0.0
      %6482 = vmatmul.mubr.f32.gmra.mxu0 %v5824
      %v6483 = vpop.f32.mrf.mxu0
      %v6484 = vadd.f32 0.0, %v6483
      %v6485 = vpop.f32.mrf.mxu0
      %6486 = vdwg.mxu0
      %6487 = vmatprep.subr.mxu0 0.0
      %6488 = vmatpush1.xpose.msra.mxu0 0.0
      %6489 = vmatprep.subr.mxu0 0.0
      %6490 = vmatpush1.xpose.msra.mxu0 0.0
      %6491 = vmatprep.subr.mxu0 0.0
      %6492 = vmatpush1.xpose.msra.mxu0 0.0
      %6493 = vmatprep.subr.mxu0 0.0
      %6494 = vmatpush1.xpose.msra.mxu0 0.0
      %6495 = vmatprep.subr.mxu0 0.0
      %6496 = vmatpush1.xpose.msra.mxu0 0.0
      %6497 = vmatprep.subr.mxu0 0.0
      %6498 = vmatpush1.xpose.msra.mxu0 0.0
      %6499 = vmatprep.subr.mxu0 0.0
      %6500 = vmatpush1.xpose.msra.mxu0 0.0
      %6501 = vmatprep.subr.mxu0 0.0
      %6502 = vmatpush1.xpose.msra.mxu0 0.0
      %6503 = vmatprep.subr.mxu0 0.0
      %6504 = vmatpush1.xpose.msra.mxu0 0.0
      %6505 = vmatprep.subr.mxu0 0.0
      %6506 = vmatpush1.xpose.msra.mxu0 0.0
      %6507 = vmatprep.subr.mxu0 0.0
      %6508 = vmatpush1.xpose.msra.mxu0 0.0
      %6509 = vmatprep.subr.mxu0 0.0
      %6510 = vmatpush1.xpose.msra.mxu0 0.0
      %6511 = vmatprep.subr.mxu0 0.0
      %6512 = vmatpush1.xpose.msra.mxu0 0.0
      %6513 = vmatprep.subr.mxu0 0.0
      %6514 = vmatpush1.xpose.msra.mxu0 0.0
      %6515 = vmatprep.subr.mxu0 0.0
      %6516 = vmatpush1.xpose.msra.mxu0 0.0
      %6517 = vmatprep.subr.mxu0 0.0
      %6518 = vmatpush1.xpose.msra.mxu0 %v5302
      %6519 = vmatprep.subr.mxu0 0.0
      %6520 = vmatpush2.xpose.msra.mxu0 0.0
      %6521 = vmatprep.subr.mxu0 0.0
      %6522 = vmatpush2.xpose.msra.mxu0 0.0
      %6523 = vmatprep.subr.mxu0 0.0
      %6524 = vmatpush2.xpose.msra.mxu0 0.0
      %6525 = vmatprep.subr.mxu0 0.0
      %6526 = vmatpush2.xpose.msra.mxu0 0.0
      %6527 = vmatprep.subr.mxu0 0.0
      %6528 = vmatpush2.xpose.msra.mxu0 0.0
      %6529 = vmatprep.subr.mxu0 0.0
      %6530 = vmatpush2.xpose.msra.mxu0 0.0
      %6531 = vmatprep.subr.mxu0 0.0
      %6532 = vmatpush2.xpose.msra.mxu0 0.0
      %6533 = vmatprep.subr.mxu0 0.0
      %6534 = vmatpush2.xpose.msra.mxu0 0.0
      %6535 = vmatprep.subr.mxu0 0.0
      %6536 = vmatpush2.xpose.msra.mxu0 0.0
      %6537 = vmatprep.subr.mxu0 0.0
      %6538 = vmatpush2.xpose.msra.mxu0 0.0
      %6539 = vmatprep.subr.mxu0 0.0
      %6540 = vmatpush2.xpose.msra.mxu0 0.0
      %6541 = vmatprep.subr.mxu0 0.0
      %6542 = vmatpush2.xpose.msra.mxu0 0.0
      %6543 = vmatprep.subr.mxu0 0.0
      %6544 = vmatpush2.xpose.msra.mxu0 0.0
      %6545 = vmatprep.subr.mxu0 0.0
      %6546 = vmatpush2.xpose.msra.mxu0 0.0
      %6547 = vmatprep.subr.mxu0 0.0
      %6548 = vmatpush2.xpose.msra.mxu0 0.0
      %6549 = vmatprep.subr.mxu0 0.0
      %6550 = vmatpush2.xpose.msra.mxu0 0.0
      %6551 = vmatprep.mubr.f32.mxu0 0.0
      %6552 = vmatmul.mubr.f32.gmra.mxu0 %v5899
      %v6553 = vpop.f32.mrf.mxu0
      %v6554 = vadd.f32 0.0, %v6553
      %v6555 = vpop.f32.mrf.mxu0
      %6556 = vdwg.mxu0
      %6557 = vmatprep.subr.mxu0 0.0
      %6558 = vmatpush1.xpose.msra.mxu0 0.0
      %6559 = vmatprep.subr.mxu0 0.0
      %6560 = vmatpush1.xpose.msra.mxu0 0.0
      %6561 = vmatprep.subr.mxu0 0.0
      %6562 = vmatpush1.xpose.msra.mxu0 0.0
      %6563 = vmatprep.subr.mxu0 0.0
      %6564 = vmatpush1.xpose.msra.mxu0 0.0
      %6565 = vmatprep.subr.mxu0 0.0
      %6566 = vmatpush1.xpose.msra.mxu0 0.0
      %6567 = vmatprep.subr.mxu0 0.0
      %6568 = vmatpush1.xpose.msra.mxu0 0.0
      %6569 = vmatprep.subr.mxu0 0.0
      %6570 = vmatpush1.xpose.msra.mxu0 0.0
      %6571 = vmatprep.subr.mxu0 0.0
      %6572 = vmatpush1.xpose.msra.mxu0 0.0
      %6573 = vmatprep.subr.mxu0 0.0
      %6574 = vmatpush1.xpose.msra.mxu0 0.0
      %6575 = vmatprep.subr.mxu0 0.0
      %6576 = vmatpush1.xpose.msra.mxu0 0.0
      %6577 = vmatprep.subr.mxu0 0.0
      %6578 = vmatpush1.xpose.msra.mxu0 0.0
      %6579 = vmatprep.subr.mxu0 0.0
      %6580 = vmatpush1.xpose.msra.mxu0 0.0
      %6581 = vmatprep.subr.mxu0 0.0
      %6582 = vmatpush1.xpose.msra.mxu0 0.0
      %6583 = vmatprep.subr.mxu0 0.0
      %6584 = vmatpush1.xpose.msra.mxu0 0.0
      %6585 = vmatprep.subr.mxu0 0.0
      %6586 = vmatpush1.xpose.msra.mxu0 0.0
      %6587 = vmatprep.subr.mxu0 0.0
      %6588 = vmatpush1.xpose.msra.mxu0 %v5377
      %6589 = vmatprep.subr.mxu0 0.0
      %6590 = vmatpush2.xpose.msra.mxu0 0.0
      %6591 = vmatprep.subr.mxu0 0.0
      %6592 = vmatpush2.xpose.msra.mxu0 0.0
      %6593 = vmatprep.subr.mxu0 0.0
      %6594 = vmatpush2.xpose.msra.mxu0 0.0
      %6595 = vmatprep.subr.mxu0 0.0
      %6596 = vmatpush2.xpose.msra.mxu0 0.0
      %6597 = vmatprep.subr.mxu0 0.0
      %6598 = vmatpush2.xpose.msra.mxu0 0.0
      %6599 = vmatprep.subr.mxu0 0.0
      %6600 = vmatpush2.xpose.msra.mxu0 0.0
      %6601 = vmatprep.subr.mxu0 0.0
      %6602 = vmatpush2.xpose.msra.mxu0 0.0
      %6603 = vmatprep.subr.mxu0 0.0
      %6604 = vmatpush2.xpose.msra.mxu0 0.0
      %6605 = vmatprep.subr.mxu0 0.0
      %6606 = vmatpush2.xpose.msra.mxu0 0.0
      %6607 = vmatprep.subr.mxu0 0.0
      %6608 = vmatpush2.xpose.msra.mxu0 0.0
      %6609 = vmatprep.subr.mxu0 0.0
      %6610 = vmatpush2.xpose.msra.mxu0 0.0
      %6611 = vmatprep.subr.mxu0 0.0
      %6612 = vmatpush2.xpose.msra.mxu0 0.0
      %6613 = vmatprep.subr.mxu0 0.0
      %6614 = vmatpush2.xpose.msra.mxu0 0.0
      %6615 = vmatprep.subr.mxu0 0.0
      %6616 = vmatpush2.xpose.msra.mxu0 0.0
      %6617 = vmatprep.subr.mxu0 0.0
      %6618 = vmatpush2.xpose.msra.mxu0 0.0
      %6619 = vmatprep.subr.mxu0 0.0
      %6620 = vmatpush2.xpose.msra.mxu0 0.0
      %6621 = vmatprep.mubr.f32.mxu0 0.0
      %6622 = vmatmul.mubr.f32.gmra.mxu0 %v5974
      %v6623 = vpop.f32.mrf.mxu0
      %v6624 = vadd.f32 0.0, %v6623
      %v6625 = vpop.f32.mrf.mxu0
      %6626 = vdwg.mxu0
      %6627 = vmatprep.subr.mxu0 0.0
      %6628 = vmatpush1.xpose.msra.mxu0 0.0
      %6629 = vmatprep.subr.mxu0 0.0
      %6630 = vmatpush1.xpose.msra.mxu0 0.0
      %6631 = vmatprep.subr.mxu0 0.0
      %6632 = vmatpush1.xpose.msra.mxu0 0.0
      %6633 = vmatprep.subr.mxu0 0.0
      %6634 = vmatpush1.xpose.msra.mxu0 0.0
      %6635 = vmatprep.subr.mxu0 0.0
      %6636 = vmatpush1.xpose.msra.mxu0 0.0
      %6637 = vmatprep.subr.mxu0 0.0
      %6638 = vmatpush1.xpose.msra.mxu0 0.0
      %6639 = vmatprep.subr.mxu0 0.0
      %6640 = vmatpush1.xpose.msra.mxu0 0.0
      %6641 = vmatprep.subr.mxu0 0.0
      %6642 = vmatpush1.xpose.msra.mxu0 0.0
      %6643 = vmatprep.subr.mxu0 0.0
      %6644 = vmatpush1.xpose.msra.mxu0 0.0
      %6645 = vmatprep.subr.mxu0 0.0
      %6646 = vmatpush1.xpose.msra.mxu0 0.0
      %6647 = vmatprep.subr.mxu0 0.0
      %6648 = vmatpush1.xpose.msra.mxu0 0.0
      %6649 = vmatprep.subr.mxu0 0.0
      %6650 = vmatpush1.xpose.msra.mxu0 0.0
      %6651 = vmatprep.subr.mxu0 0.0
      %6652 = vmatpush1.xpose.msra.mxu0 0.0
      %6653 = vmatprep.subr.mxu0 0.0
      %6654 = vmatpush1.xpose.msra.mxu0 0.0
      %6655 = vmatprep.subr.mxu0 0.0
      %6656 = vmatpush1.xpose.msra.mxu0 0.0
      %6657 = vmatprep.subr.mxu0 0.0
      %6658 = vmatpush1.xpose.msra.mxu0 %v5452
      %6659 = vmatprep.subr.mxu0 0.0
      %6660 = vmatpush2.xpose.msra.mxu0 0.0
      %6661 = vmatprep.subr.mxu0 0.0
      %6662 = vmatpush2.xpose.msra.mxu0 0.0
      %6663 = vmatprep.subr.mxu0 0.0
      %6664 = vmatpush2.xpose.msra.mxu0 0.0
      %6665 = vmatprep.subr.mxu0 0.0
      %6666 = vmatpush2.xpose.msra.mxu0 0.0
      %6667 = vmatprep.subr.mxu0 0.0
      %6668 = vmatpush2.xpose.msra.mxu0 0.0
      %6669 = vmatprep.subr.mxu0 0.0
      %6670 = vmatpush2.xpose.msra.mxu0 0.0
      %6671 = vmatprep.subr.mxu0 0.0
      %6672 = vmatpush2.xpose.msra.mxu0 0.0
      %6673 = vmatprep.subr.mxu0 0.0
      %6674 = vmatpush2.xpose.msra.mxu0 0.0
      %6675 = vmatprep.subr.mxu0 0.0
      %6676 = vmatpush2.xpose.msra.mxu0 0.0
      %6677 = vmatprep.subr.mxu0 0.0
      %6678 = vmatpush2.xpose.msra.mxu0 0.0
      %6679 = vmatprep.subr.mxu0 0.0
      %6680 = vmatpush2.xpose.msra.mxu0 0.0
      %6681 = vmatprep.subr.mxu0 0.0
      %6682 = vmatpush2.xpose.msra.mxu0 0.0
      %6683 = vmatprep.subr.mxu0 0.0
      %6684 = vmatpush2.xpose.msra.mxu0 0.0
      %6685 = vmatprep.subr.mxu0 0.0
      %6686 = vmatpush2.xpose.msra.mxu0 0.0
      %6687 = vmatprep.subr.mxu0 0.0
      %6688 = vmatpush2.xpose.msra.mxu0 0.0
      %6689 = vmatprep.subr.mxu0 0.0
      %6690 = vmatpush2.xpose.msra.mxu0 0.0
      %6691 = vmatprep.mubr.f32.mxu0 0.0
      %6692 = vmatmul.mubr.f32.gmra.mxu0 %v6049
      %v6693 = vpop.f32.mrf.mxu0
      %v6694 = vadd.f32 0.0, %v6693
      %v6695 = vpop.f32.mrf.mxu0
      %6696 = vdwg.mxu0
      %6697 = vmatprep.subr.mxu0 0.0
      %6698 = vmatpush1.xpose.msra.mxu0 0.0
      %6699 = vmatprep.subr.mxu0 0.0
      %6700 = vmatpush1.xpose.msra.mxu0 0.0
      %6701 = vmatprep.subr.mxu0 0.0
      %6702 = vmatpush1.xpose.msra.mxu0 0.0
      %6703 = vmatprep.subr.mxu0 0.0
      %6704 = vmatpush1.xpose.msra.mxu0 0.0
      %6705 = vmatprep.subr.mxu0 0.0
      %6706 = vmatpush1.xpose.msra.mxu0 0.0
      %6707 = vmatprep.subr.mxu0 0.0
      %6708 = vmatpush1.xpose.msra.mxu0 0.0
      %6709 = vmatprep.subr.mxu0 0.0
      %6710 = vmatpush1.xpose.msra.mxu0 0.0
      %6711 = vmatprep.subr.mxu0 0.0
      %6712 = vmatpush1.xpose.msra.mxu0 0.0
      %6713 = vmatprep.subr.mxu0 0.0
      %6714 = vmatpush1.xpose.msra.mxu0 0.0
      %6715 = vmatprep.subr.mxu0 0.0
      %6716 = vmatpush1.xpose.msra.mxu0 0.0
      %6717 = vmatprep.subr.mxu0 0.0
      %6718 = vmatpush1.xpose.msra.mxu0 0.0
      %6719 = vmatprep.subr.mxu0 0.0
      %6720 = vmatpush1.xpose.msra.mxu0 0.0
      %6721 = vmatprep.subr.mxu0 0.0
      %6722 = vmatpush1.xpose.msra.mxu0 0.0
      %6723 = vmatprep.subr.mxu0 0.0
      %6724 = vmatpush1.xpose.msra.mxu0 0.0
      %6725 = vmatprep.subr.mxu0 0.0
      %6726 = vmatpush1.xpose.msra.mxu0 0.0
      %6727 = vmatprep.subr.mxu0 0.0
      %6728 = vmatpush1.xpose.msra.mxu0 %v5527
      %6729 = vmatprep.subr.mxu0 0.0
      %6730 = vmatpush2.xpose.msra.mxu0 0.0
      %6731 = vmatprep.subr.mxu0 0.0
      %6732 = vmatpush2.xpose.msra.mxu0 0.0
      %6733 = vmatprep.subr.mxu0 0.0
      %6734 = vmatpush2.xpose.msra.mxu0 0.0
      %6735 = vmatprep.subr.mxu0 0.0
      %6736 = vmatpush2.xpose.msra.mxu0 0.0
      %6737 = vmatprep.subr.mxu0 0.0
      %6738 = vmatpush2.xpose.msra.mxu0 0.0
      %6739 = vmatprep.subr.mxu0 0.0
      %6740 = vmatpush2.xpose.msra.mxu0 0.0
      %6741 = vmatprep.subr.mxu0 0.0
      %6742 = vmatpush2.xpose.msra.mxu0 0.0
      %6743 = vmatprep.subr.mxu0 0.0
      %6744 = vmatpush2.xpose.msra.mxu0 0.0
      %6745 = vmatprep.subr.mxu0 0.0
      %6746 = vmatpush2.xpose.msra.mxu0 0.0
      %6747 = vmatprep.subr.mxu0 0.0
      %6748 = vmatpush2.xpose.msra.mxu0 0.0
      %6749 = vmatprep.subr.mxu0 0.0
      %6750 = vmatpush2.xpose.msra.mxu0 0.0
      %6751 = vmatprep.subr.mxu0 0.0
      %6752 = vmatpush2.xpose.msra.mxu0 0.0
      %6753 = vmatprep.subr.mxu0 0.0
      %6754 = vmatpush2.xpose.msra.mxu0 0.0
      %6755 = vmatprep.subr.mxu0 0.0
      %6756 = vmatpush2.xpose.msra.mxu0 0.0
      %6757 = vmatprep.subr.mxu0 0.0
      %6758 = vmatpush2.xpose.msra.mxu0 0.0
      %6759 = vmatprep.subr.mxu0 0.0
      %6760 = vmatpush2.xpose.msra.mxu0 0.0
      %6761 = vmatprep.mubr.f32.mxu0 0.0
      %6762 = vmatmul.mubr.f32.gmra.mxu0 %v6124
      %v6763 = vpop.f32.mrf.mxu0
      %v6764 = vadd.f32 0.0, %v6763
      %v6765 = vpop.f32.mrf.mxu0
      %6766 = vdwg.mxu0
      %6767 = vmatprep.subr.mxu0 0.0
      %6768 = vmatpush1.xpose.msra.mxu0 0.0
      %6769 = vmatprep.subr.mxu0 0.0
      %6770 = vmatpush1.xpose.msra.mxu0 0.0
      %6771 = vmatprep.subr.mxu0 0.0
      %6772 = vmatpush1.xpose.msra.mxu0 0.0
      %6773 = vmatprep.subr.mxu0 0.0
      %6774 = vmatpush1.xpose.msra.mxu0 0.0
      %6775 = vmatprep.subr.mxu0 0.0
      %6776 = vmatpush1.xpose.msra.mxu0 0.0
      %6777 = vmatprep.subr.mxu0 0.0
      %6778 = vmatpush1.xpose.msra.mxu0 0.0
      %6779 = vmatprep.subr.mxu0 0.0
      %6780 = vmatpush1.xpose.msra.mxu0 0.0
      %6781 = vmatprep.subr.mxu0 0.0
      %6782 = vmatpush1.xpose.msra.mxu0 0.0
      %6783 = vmatprep.subr.mxu0 0.0
      %6784 = vmatpush1.xpose.msra.mxu0 0.0
      %6785 = vmatprep.subr.mxu0 0.0
      %6786 = vmatpush1.xpose.msra.mxu0 0.0
      %6787 = vmatprep.subr.mxu0 0.0
      %6788 = vmatpush1.xpose.msra.mxu0 0.0
      %6789 = vmatprep.subr.mxu0 0.0
      %6790 = vmatpush1.xpose.msra.mxu0 0.0
      %6791 = vmatprep.subr.mxu0 0.0
      %6792 = vmatpush1.xpose.msra.mxu0 0.0
      %6793 = vmatprep.subr.mxu0 0.0
      %6794 = vmatpush1.xpose.msra.mxu0 0.0
      %6795 = vmatprep.subr.mxu0 0.0
      %6796 = vmatpush1.xpose.msra.mxu0 0.0
      %6797 = vmatprep.subr.mxu0 0.0
      %6798 = vmatpush1.xpose.msra.mxu0 %v5602
      %6799 = vmatprep.subr.mxu0 0.0
      %6800 = vmatpush2.xpose.msra.mxu0 0.0
      %6801 = vmatprep.subr.mxu0 0.0
      %6802 = vmatpush2.xpose.msra.mxu0 0.0
      %6803 = vmatprep.subr.mxu0 0.0
      %6804 = vmatpush2.xpose.msra.mxu0 0.0
      %6805 = vmatprep.subr.mxu0 0.0
      %6806 = vmatpush2.xpose.msra.mxu0 0.0
      %6807 = vmatprep.subr.mxu0 0.0
      %6808 = vmatpush2.xpose.msra.mxu0 0.0
      %6809 = vmatprep.subr.mxu0 0.0
      %6810 = vmatpush2.xpose.msra.mxu0 0.0
      %6811 = vmatprep.subr.mxu0 0.0
      %6812 = vmatpush2.xpose.msra.mxu0 0.0
      %6813 = vmatprep.subr.mxu0 0.0
      %6814 = vmatpush2.xpose.msra.mxu0 0.0
      %6815 = vmatprep.subr.mxu0 0.0
      %6816 = vmatpush2.xpose.msra.mxu0 0.0
      %6817 = vmatprep.subr.mxu0 0.0
      %6818 = vmatpush2.xpose.msra.mxu0 0.0
      %6819 = vmatprep.subr.mxu0 0.0
      %6820 = vmatpush2.xpose.msra.mxu0 0.0
      %6821 = vmatprep.subr.mxu0 0.0
      %6822 = vmatpush2.xpose.msra.mxu0 0.0
      %6823 = vmatprep.subr.mxu0 0.0
      %6824 = vmatpush2.xpose.msra.mxu0 0.0
      %6825 = vmatprep.subr.mxu0 0.0
      %6826 = vmatpush2.xpose.msra.mxu0 0.0
      %6827 = vmatprep.subr.mxu0 0.0
      %6828 = vmatpush2.xpose.msra.mxu0 0.0
      %6829 = vmatprep.subr.mxu0 0.0
      %6830 = vmatpush2.xpose.msra.mxu0 0.0
      %6831 = vmatprep.mubr.f32.mxu0 0.0
      %6832 = vmatmul.mubr.f32.gmra.mxu0 %v4999
      %v6833 = vpop.f32.mrf.mxu0
      %v6834 = vadd.f32 %v6274, %v6833
      %v6835 = vpop.f32.mrf.mxu0
      %6836 = vdwg.mxu0
      %6837 = vmatprep.subr.mxu0 0.0
      %6838 = vmatpush1.xpose.msra.mxu0 0.0
      %6839 = vmatprep.subr.mxu0 0.0
      %6840 = vmatpush1.xpose.msra.mxu0 0.0
      %6841 = vmatprep.subr.mxu0 0.0
      %6842 = vmatpush1.xpose.msra.mxu0 0.0
      %6843 = vmatprep.subr.mxu0 0.0
      %6844 = vmatpush1.xpose.msra.mxu0 0.0
      %6845 = vmatprep.subr.mxu0 0.0
      %6846 = vmatpush1.xpose.msra.mxu0 0.0
      %6847 = vmatprep.subr.mxu0 0.0
      %6848 = vmatpush1.xpose.msra.mxu0 0.0
      %6849 = vmatprep.subr.mxu0 0.0
      %6850 = vmatpush1.xpose.msra.mxu0 0.0
      %6851 = vmatprep.subr.mxu0 0.0
      %6852 = vmatpush1.xpose.msra.mxu0 0.0
      %6853 = vmatprep.subr.mxu0 0.0
      %6854 = vmatpush1.xpose.msra.mxu0 0.0
      %6855 = vmatprep.subr.mxu0 0.0
      %6856 = vmatpush1.xpose.msra.mxu0 0.0
      %6857 = vmatprep.subr.mxu0 0.0
      %6858 = vmatpush1.xpose.msra.mxu0 0.0
      %6859 = vmatprep.subr.mxu0 0.0
      %6860 = vmatpush1.xpose.msra.mxu0 0.0
      %6861 = vmatprep.subr.mxu0 0.0
      %6862 = vmatpush1.xpose.msra.mxu0 0.0
      %6863 = vmatprep.subr.mxu0 0.0
      %6864 = vmatpush1.xpose.msra.mxu0 0.0
      %6865 = vmatprep.subr.mxu0 0.0
      %6866 = vmatpush1.xpose.msra.mxu0 0.0
      %6867 = vmatprep.subr.mxu0 0.0
      %6868 = vmatpush1.xpose.msra.mxu0 %v5677
      %6869 = vmatprep.subr.mxu0 0.0
      %6870 = vmatpush2.xpose.msra.mxu0 0.0
      %6871 = vmatprep.subr.mxu0 0.0
      %6872 = vmatpush2.xpose.msra.mxu0 0.0
      %6873 = vmatprep.subr.mxu0 0.0
      %6874 = vmatpush2.xpose.msra.mxu0 0.0
      %6875 = vmatprep.subr.mxu0 0.0
      %6876 = vmatpush2.xpose.msra.mxu0 0.0
      %6877 = vmatprep.subr.mxu0 0.0
      %6878 = vmatpush2.xpose.msra.mxu0 0.0
      %6879 = vmatprep.subr.mxu0 0.0
      %6880 = vmatpush2.xpose.msra.mxu0 0.0
      %6881 = vmatprep.subr.mxu0 0.0
      %6882 = vmatpush2.xpose.msra.mxu0 0.0
      %6883 = vmatprep.subr.mxu0 0.0
      %6884 = vmatpush2.xpose.msra.mxu0 0.0
      %6885 = vmatprep.subr.mxu0 0.0
      %6886 = vmatpush2.xpose.msra.mxu0 0.0
      %6887 = vmatprep.subr.mxu0 0.0
      %6888 = vmatpush2.xpose.msra.mxu0 0.0
      %6889 = vmatprep.subr.mxu0 0.0
      %6890 = vmatpush2.xpose.msra.mxu0 0.0
      %6891 = vmatprep.subr.mxu0 0.0
      %6892 = vmatpush2.xpose.msra.mxu0 0.0
      %6893 = vmatprep.subr.mxu0 0.0
      %6894 = vmatpush2.xpose.msra.mxu0 0.0
      %6895 = vmatprep.subr.mxu0 0.0
      %6896 = vmatpush2.xpose.msra.mxu0 0.0
      %6897 = vmatprep.subr.mxu0 0.0
      %6898 = vmatpush2.xpose.msra.mxu0 0.0
      %6899 = vmatprep.subr.mxu0 0.0
      %6900 = vmatpush2.xpose.msra.mxu0 0.0
      %6901 = vmatprep.mubr.f32.mxu0 0.0
      %6902 = vmatmul.mubr.f32.gmra.mxu0 %v5074
      %v6903 = vpop.f32.mrf.mxu0
      %v6904 = vadd.f32 %v6344, %v6903
      %v6905 = vpop.f32.mrf.mxu0
      %6906 = vdwg.mxu0
      %6907 = vmatprep.subr.mxu0 0.0
      %6908 = vmatpush1.xpose.msra.mxu0 0.0
      %6909 = vmatprep.subr.mxu0 0.0
      %6910 = vmatpush1.xpose.msra.mxu0 0.0
      %6911 = vmatprep.subr.mxu0 0.0
      %6912 = vmatpush1.xpose.msra.mxu0 0.0
      %6913 = vmatprep.subr.mxu0 0.0
      %6914 = vmatpush1.xpose.msra.mxu0 0.0
      %6915 = vmatprep.subr.mxu0 0.0
      %6916 = vmatpush1.xpose.msra.mxu0 0.0
      %6917 = vmatprep.subr.mxu0 0.0
      %6918 = vmatpush1.xpose.msra.mxu0 0.0
      %6919 = vmatprep.subr.mxu0 0.0
      %6920 = vmatpush1.xpose.msra.mxu0 0.0
      %6921 = vmatprep.subr.mxu0 0.0
      %6922 = vmatpush1.xpose.msra.mxu0 0.0
      %6923 = vmatprep.subr.mxu0 0.0
      %6924 = vmatpush1.xpose.msra.mxu0 0.0
      %6925 = vmatprep.subr.mxu0 0.0
      %6926 = vmatpush1.xpose.msra.mxu0 0.0
      %6927 = vmatprep.subr.mxu0 0.0
      %6928 = vmatpush1.xpose.msra.mxu0 0.0
      %6929 = vmatprep.subr.mxu0 0.0
      %6930 = vmatpush1.xpose.msra.mxu0 0.0
      %6931 = vmatprep.subr.mxu0 0.0
      %6932 = vmatpush1.xpose.msra.mxu0 0.0
      %6933 = vmatprep.subr.mxu0 0.0
      %6934 = vmatpush1.xpose.msra.mxu0 0.0
      %6935 = vmatprep.subr.mxu0 0.0
      %6936 = vmatpush1.xpose.msra.mxu0 0.0
      %6937 = vmatprep.subr.mxu0 0.0
      %6938 = vmatpush1.xpose.msra.mxu0 %v5752
      %6939 = vmatprep.subr.mxu0 0.0
      %6940 = vmatpush2.xpose.msra.mxu0 0.0
      %6941 = vmatprep.subr.mxu0 0.0
      %6942 = vmatpush2.xpose.msra.mxu0 0.0
      %6943 = vmatprep.subr.mxu0 0.0
      %6944 = vmatpush2.xpose.msra.mxu0 0.0
      %6945 = vmatprep.subr.mxu0 0.0
      %6946 = vmatpush2.xpose.msra.mxu0 0.0
      %6947 = vmatprep.subr.mxu0 0.0
      %6948 = vmatpush2.xpose.msra.mxu0 0.0
      %6949 = vmatprep.subr.mxu0 0.0
      %6950 = vmatpush2.xpose.msra.mxu0 0.0
      %6951 = vmatprep.subr.mxu0 0.0
      %6952 = vmatpush2.xpose.msra.mxu0 0.0
      %6953 = vmatprep.subr.mxu0 0.0
      %6954 = vmatpush2.xpose.msra.mxu0 0.0
      %6955 = vmatprep.subr.mxu0 0.0
      %6956 = vmatpush2.xpose.msra.mxu0 0.0
      %6957 = vmatprep.subr.mxu0 0.0
      %6958 = vmatpush2.xpose.msra.mxu0 0.0
      %6959 = vmatprep.subr.mxu0 0.0
      %6960 = vmatpush2.xpose.msra.mxu0 0.0
      %6961 = vmatprep.subr.mxu0 0.0
      %6962 = vmatpush2.xpose.msra.mxu0 0.0
      %6963 = vmatprep.subr.mxu0 0.0
      %6964 = vmatpush2.xpose.msra.mxu0 0.0
      %6965 = vmatprep.subr.mxu0 0.0
      %6966 = vmatpush2.xpose.msra.mxu0 0.0
      %6967 = vmatprep.subr.mxu0 0.0
      %6968 = vmatpush2.xpose.msra.mxu0 0.0
      %6969 = vmatprep.subr.mxu0 0.0
      %6970 = vmatpush2.xpose.msra.mxu0 0.0
      %6971 = vmatprep.mubr.f32.mxu0 0.0
      %6972 = vmatmul.mubr.f32.gmra.mxu0 %v5149
      %v6973 = vpop.f32.mrf.mxu0
      %v6974 = vadd.f32 %v6414, %v6973
      %v6975 = vpop.f32.mrf.mxu0
      %6976 = vdwg.mxu0
      %6977 = vmatprep.subr.mxu0 0.0
      %6978 = vmatpush1.xpose.msra.mxu0 0.0
      %6979 = vmatprep.subr.mxu0 0.0
      %6980 = vmatpush1.xpose.msra.mxu0 0.0
      %6981 = vmatprep.subr.mxu0 0.0
      %6982 = vmatpush1.xpose.msra.mxu0 0.0
      %6983 = vmatprep.subr.mxu0 0.0
      %6984 = vmatpush1.xpose.msra.mxu0 0.0
      %6985 = vmatprep.subr.mxu0 0.0
      %6986 = vmatpush1.xpose.msra.mxu0 0.0
      %6987 = vmatprep.subr.mxu0 0.0
      %6988 = vmatpush1.xpose.msra.mxu0 0.0
      %6989 = vmatprep.subr.mxu0 0.0
      %6990 = vmatpush1.xpose.msra.mxu0 0.0
      %6991 = vmatprep.subr.mxu0 0.0
      %6992 = vmatpush1.xpose.msra.mxu0 0.0
      %6993 = vmatprep.subr.mxu0 0.0
      %6994 = vmatpush1.xpose.msra.mxu0 0.0
      %6995 = vmatprep.subr.mxu0 0.0
      %6996 = vmatpush1.xpose.msra.mxu0 0.0
      %6997 = vmatprep.subr.mxu0 0.0
      %6998 = vmatpush1.xpose.msra.mxu0 0.0
      %6999 = vmatprep.subr.mxu0 0.0
      %7000 = vmatpush1.xpose.msra.mxu0 0.0
      %7001 = vmatprep.subr.mxu0 0.0
      %7002 = vmatpush1.xpose.msra.mxu0 0.0
      %7003 = vmatprep.subr.mxu0 0.0
      %7004 = vmatpush1.xpose.msra.mxu0 0.0
      %7005 = vmatprep.subr.mxu0 0.0
      %7006 = vmatpush1.xpose.msra.mxu0 0.0
      %7007 = vmatprep.subr.mxu0 0.0
      %7008 = vmatpush1.xpose.msra.mxu0 %v5827
      %7009 = vmatprep.subr.mxu0 0.0
      %7010 = vmatpush2.xpose.msra.mxu0 0.0
      %7011 = vmatprep.subr.mxu0 0.0
      %7012 = vmatpush2.xpose.msra.mxu0 0.0
      %7013 = vmatprep.subr.mxu0 0.0
      %7014 = vmatpush2.xpose.msra.mxu0 0.0
      %7015 = vmatprep.subr.mxu0 0.0
      %7016 = vmatpush2.xpose.msra.mxu0 0.0
      %7017 = vmatprep.subr.mxu0 0.0
      %7018 = vmatpush2.xpose.msra.mxu0 0.0
      %7019 = vmatprep.subr.mxu0 0.0
      %7020 = vmatpush2.xpose.msra.mxu0 0.0
      %7021 = vmatprep.subr.mxu0 0.0
      %7022 = vmatpush2.xpose.msra.mxu0 0.0
      %7023 = vmatprep.subr.mxu0 0.0
      %7024 = vmatpush2.xpose.msra.mxu0 0.0
      %7025 = vmatprep.subr.mxu0 0.0
      %7026 = vmatpush2.xpose.msra.mxu0 0.0
      %7027 = vmatprep.subr.mxu0 0.0
      %7028 = vmatpush2.xpose.msra.mxu0 0.0
      %7029 = vmatprep.subr.mxu0 0.0
      %7030 = vmatpush2.xpose.msra.mxu0 0.0
      %7031 = vmatprep.subr.mxu0 0.0
      %7032 = vmatpush2.xpose.msra.mxu0 0.0
      %7033 = vmatprep.subr.mxu0 0.0
      %7034 = vmatpush2.xpose.msra.mxu0 0.0
      %7035 = vmatprep.subr.mxu0 0.0
      %7036 = vmatpush2.xpose.msra.mxu0 0.0
      %7037 = vmatprep.subr.mxu0 0.0
      %7038 = vmatpush2.xpose.msra.mxu0 0.0
      %7039 = vmatprep.subr.mxu0 0.0
      %7040 = vmatpush2.xpose.msra.mxu0 0.0
      %7041 = vmatprep.mubr.f32.mxu0 0.0
      %7042 = vmatmul.mubr.f32.gmra.mxu0 %v5224
      %v7043 = vpop.f32.mrf.mxu0
      %v7044 = vadd.f32 %v6484, %v7043
      %v7045 = vpop.f32.mrf.mxu0
      %7046 = vdwg.mxu0
      %7047 = vmatprep.subr.mxu0 0.0
      %7048 = vmatpush1.xpose.msra.mxu0 0.0
      %7049 = vmatprep.subr.mxu0 0.0
      %7050 = vmatpush1.xpose.msra.mxu0 0.0
      %7051 = vmatprep.subr.mxu0 0.0
      %7052 = vmatpush1.xpose.msra.mxu0 0.0
      %7053 = vmatprep.subr.mxu0 0.0
      %7054 = vmatpush1.xpose.msra.mxu0 0.0
      %7055 = vmatprep.subr.mxu0 0.0
      %7056 = vmatpush1.xpose.msra.mxu0 0.0
      %7057 = vmatprep.subr.mxu0 0.0
      %7058 = vmatpush1.xpose.msra.mxu0 0.0
      %7059 = vmatprep.subr.mxu0 0.0
      %7060 = vmatpush1.xpose.msra.mxu0 0.0
      %7061 = vmatprep.subr.mxu0 0.0
      %7062 = vmatpush1.xpose.msra.mxu0 0.0
      %7063 = vmatprep.subr.mxu0 0.0
      %7064 = vmatpush1.xpose.msra.mxu0 0.0
      %7065 = vmatprep.subr.mxu0 0.0
      %7066 = vmatpush1.xpose.msra.mxu0 0.0
      %7067 = vmatprep.subr.mxu0 0.0
      %7068 = vmatpush1.xpose.msra.mxu0 0.0
      %7069 = vmatprep.subr.mxu0 0.0
      %7070 = vmatpush1.xpose.msra.mxu0 0.0
      %7071 = vmatprep.subr.mxu0 0.0
      %7072 = vmatpush1.xpose.msra.mxu0 0.0
      %7073 = vmatprep.subr.mxu0 0.0
      %7074 = vmatpush1.xpose.msra.mxu0 0.0
      %7075 = vmatprep.subr.mxu0 0.0
      %7076 = vmatpush1.xpose.msra.mxu0 0.0
      %7077 = vmatprep.subr.mxu0 0.0
      %7078 = vmatpush1.xpose.msra.mxu0 %v5902
      %7079 = vmatprep.subr.mxu0 0.0
      %7080 = vmatpush2.xpose.msra.mxu0 0.0
      %7081 = vmatprep.subr.mxu0 0.0
      %7082 = vmatpush2.xpose.msra.mxu0 0.0
      %7083 = vmatprep.subr.mxu0 0.0
      %7084 = vmatpush2.xpose.msra.mxu0 0.0
      %7085 = vmatprep.subr.mxu0 0.0
      %7086 = vmatpush2.xpose.msra.mxu0 0.0
      %7087 = vmatprep.subr.mxu0 0.0
      %7088 = vmatpush2.xpose.msra.mxu0 0.0
      %7089 = vmatprep.subr.mxu0 0.0
      %7090 = vmatpush2.xpose.msra.mxu0 0.0
      %7091 = vmatprep.subr.mxu0 0.0
      %7092 = vmatpush2.xpose.msra.mxu0 0.0
      %7093 = vmatprep.subr.mxu0 0.0
      %7094 = vmatpush2.xpose.msra.mxu0 0.0
      %7095 = vmatprep.subr.mxu0 0.0
      %7096 = vmatpush2.xpose.msra.mxu0 0.0
      %7097 = vmatprep.subr.mxu0 0.0
      %7098 = vmatpush2.xpose.msra.mxu0 0.0
      %7099 = vmatprep.subr.mxu0 0.0
      %7100 = vmatpush2.xpose.msra.mxu0 0.0
      %7101 = vmatprep.subr.mxu0 0.0
      %7102 = vmatpush2.xpose.msra.mxu0 0.0
      %7103 = vmatprep.subr.mxu0 0.0
      %7104 = vmatpush2.xpose.msra.mxu0 0.0
      %7105 = vmatprep.subr.mxu0 0.0
      %7106 = vmatpush2.xpose.msra.mxu0 0.0
      %7107 = vmatprep.subr.mxu0 0.0
      %7108 = vmatpush2.xpose.msra.mxu0 0.0
      %7109 = vmatprep.subr.mxu0 0.0
      %7110 = vmatpush2.xpose.msra.mxu0 0.0
      %7111 = vmatprep.mubr.f32.mxu0 0.0
      %7112 = vmatmul.mubr.f32.gmra.mxu0 %v5299
      %v7113 = vpop.f32.mrf.mxu0
      %v7114 = vadd.f32 %v6554, %v7113
      %v7115 = vpop.f32.mrf.mxu0
      %7116 = vdwg.mxu0
      %7117 = vmatprep.subr.mxu0 0.0
      %7118 = vmatpush1.xpose.msra.mxu0 0.0
      %7119 = vmatprep.subr.mxu0 0.0
      %7120 = vmatpush1.xpose.msra.mxu0 0.0
      %7121 = vmatprep.subr.mxu0 0.0
      %7122 = vmatpush1.xpose.msra.mxu0 0.0
      %7123 = vmatprep.subr.mxu0 0.0
      %7124 = vmatpush1.xpose.msra.mxu0 0.0
      %7125 = vmatprep.subr.mxu0 0.0
      %7126 = vmatpush1.xpose.msra.mxu0 0.0
      %7127 = vmatprep.subr.mxu0 0.0
      %7128 = vmatpush1.xpose.msra.mxu0 0.0
      %7129 = vmatprep.subr.mxu0 0.0
      %7130 = vmatpush1.xpose.msra.mxu0 0.0
      %7131 = vmatprep.subr.mxu0 0.0
      %7132 = vmatpush1.xpose.msra.mxu0 0.0
      %7133 = vmatprep.subr.mxu0 0.0
      %7134 = vmatpush1.xpose.msra.mxu0 0.0
      %7135 = vmatprep.subr.mxu0 0.0
      %7136 = vmatpush1.xpose.msra.mxu0 0.0
      %7137 = vmatprep.subr.mxu0 0.0
      %7138 = vmatpush1.xpose.msra.mxu0 0.0
      %7139 = vmatprep.subr.mxu0 0.0
      %7140 = vmatpush1.xpose.msra.mxu0 0.0
      %7141 = vmatprep.subr.mxu0 0.0
      %7142 = vmatpush1.xpose.msra.mxu0 0.0
      %7143 = vmatprep.subr.mxu0 0.0
      %7144 = vmatpush1.xpose.msra.mxu0 0.0
      %7145 = vmatprep.subr.mxu0 0.0
      %7146 = vmatpush1.xpose.msra.mxu0 0.0
      %7147 = vmatprep.subr.mxu0 0.0
      %7148 = vmatpush1.xpose.msra.mxu0 %v5977
      %7149 = vmatprep.subr.mxu0 0.0
      %7150 = vmatpush2.xpose.msra.mxu0 0.0
      %7151 = vmatprep.subr.mxu0 0.0
      %7152 = vmatpush2.xpose.msra.mxu0 0.0
      %7153 = vmatprep.subr.mxu0 0.0
      %7154 = vmatpush2.xpose.msra.mxu0 0.0
      %7155 = vmatprep.subr.mxu0 0.0
      %7156 = vmatpush2.xpose.msra.mxu0 0.0
      %7157 = vmatprep.subr.mxu0 0.0
      %7158 = vmatpush2.xpose.msra.mxu0 0.0
      %7159 = vmatprep.subr.mxu0 0.0
      %7160 = vmatpush2.xpose.msra.mxu0 0.0
      %7161 = vmatprep.subr.mxu0 0.0
      %7162 = vmatpush2.xpose.msra.mxu0 0.0
      %7163 = vmatprep.subr.mxu0 0.0
      %7164 = vmatpush2.xpose.msra.mxu0 0.0
      %7165 = vmatprep.subr.mxu0 0.0
      %7166 = vmatpush2.xpose.msra.mxu0 0.0
      %7167 = vmatprep.subr.mxu0 0.0
      %7168 = vmatpush2.xpose.msra.mxu0 0.0
      %7169 = vmatprep.subr.mxu0 0.0
      %7170 = vmatpush2.xpose.msra.mxu0 0.0
      %7171 = vmatprep.subr.mxu0 0.0
      %7172 = vmatpush2.xpose.msra.mxu0 0.0
      %7173 = vmatprep.subr.mxu0 0.0
      %7174 = vmatpush2.xpose.msra.mxu0 0.0
      %7175 = vmatprep.subr.mxu0 0.0
      %7176 = vmatpush2.xpose.msra.mxu0 0.0
      %7177 = vmatprep.subr.mxu0 0.0
      %7178 = vmatpush2.xpose.msra.mxu0 0.0
      %7179 = vmatprep.subr.mxu0 0.0
      %7180 = vmatpush2.xpose.msra.mxu0 0.0
      %7181 = vmatprep.mubr.f32.mxu0 0.0
      %7182 = vmatmul.mubr.f32.gmra.mxu0 %v5374
      %v7183 = vpop.f32.mrf.mxu0
      %v7184 = vadd.f32 %v6624, %v7183
      %v7185 = vpop.f32.mrf.mxu0
      %7186 = vdwg.mxu0
      %7187 = vmatprep.subr.mxu0 0.0
      %7188 = vmatpush1.xpose.msra.mxu0 0.0
      %7189 = vmatprep.subr.mxu0 0.0
      %7190 = vmatpush1.xpose.msra.mxu0 0.0
      %7191 = vmatprep.subr.mxu0 0.0
      %7192 = vmatpush1.xpose.msra.mxu0 0.0
      %7193 = vmatprep.subr.mxu0 0.0
      %7194 = vmatpush1.xpose.msra.mxu0 0.0
      %7195 = vmatprep.subr.mxu0 0.0
      %7196 = vmatpush1.xpose.msra.mxu0 0.0
      %7197 = vmatprep.subr.mxu0 0.0
      %7198 = vmatpush1.xpose.msra.mxu0 0.0
      %7199 = vmatprep.subr.mxu0 0.0
      %7200 = vmatpush1.xpose.msra.mxu0 0.0
      %7201 = vmatprep.subr.mxu0 0.0
      %7202 = vmatpush1.xpose.msra.mxu0 0.0
      %7203 = vmatprep.subr.mxu0 0.0
      %7204 = vmatpush1.xpose.msra.mxu0 0.0
      %7205 = vmatprep.subr.mxu0 0.0
      %7206 = vmatpush1.xpose.msra.mxu0 0.0
      %7207 = vmatprep.subr.mxu0 0.0
      %7208 = vmatpush1.xpose.msra.mxu0 0.0
      %7209 = vmatprep.subr.mxu0 0.0
      %7210 = vmatpush1.xpose.msra.mxu0 0.0
      %7211 = vmatprep.subr.mxu0 0.0
      %7212 = vmatpush1.xpose.msra.mxu0 0.0
      %7213 = vmatprep.subr.mxu0 0.0
      %7214 = vmatpush1.xpose.msra.mxu0 0.0
      %7215 = vmatprep.subr.mxu0 0.0
      %7216 = vmatpush1.xpose.msra.mxu0 0.0
      %7217 = vmatprep.subr.mxu0 0.0
      %7218 = vmatpush1.xpose.msra.mxu0 %v6052
      %7219 = vmatprep.subr.mxu0 0.0
      %7220 = vmatpush2.xpose.msra.mxu0 0.0
      %7221 = vmatprep.subr.mxu0 0.0
      %7222 = vmatpush2.xpose.msra.mxu0 0.0
      %7223 = vmatprep.subr.mxu0 0.0
      %7224 = vmatpush2.xpose.msra.mxu0 0.0
      %7225 = vmatprep.subr.mxu0 0.0
      %7226 = vmatpush2.xpose.msra.mxu0 0.0
      %7227 = vmatprep.subr.mxu0 0.0
      %7228 = vmatpush2.xpose.msra.mxu0 0.0
      %7229 = vmatprep.subr.mxu0 0.0
      %7230 = vmatpush2.xpose.msra.mxu0 0.0
      %7231 = vmatprep.subr.mxu0 0.0
      %7232 = vmatpush2.xpose.msra.mxu0 0.0
      %7233 = vmatprep.subr.mxu0 0.0
      %7234 = vmatpush2.xpose.msra.mxu0 0.0
      %7235 = vmatprep.subr.mxu0 0.0
      %7236 = vmatpush2.xpose.msra.mxu0 0.0
      %7237 = vmatprep.subr.mxu0 0.0
      %7238 = vmatpush2.xpose.msra.mxu0 0.0
      %7239 = vmatprep.subr.mxu0 0.0
      %7240 = vmatpush2.xpose.msra.mxu0 0.0
      %7241 = vmatprep.subr.mxu0 0.0
      %7242 = vmatpush2.xpose.msra.mxu0 0.0
      %7243 = vmatprep.subr.mxu0 0.0
      %7244 = vmatpush2.xpose.msra.mxu0 0.0
      %7245 = vmatprep.subr.mxu0 0.0
      %7246 = vmatpush2.xpose.msra.mxu0 0.0
      %7247 = vmatprep.subr.mxu0 0.0
      %7248 = vmatpush2.xpose.msra.mxu0 0.0
      %7249 = vmatprep.subr.mxu0 0.0
      %7250 = vmatpush2.xpose.msra.mxu0 0.0
      %7251 = vmatprep.mubr.f32.mxu0 0.0
      %7252 = vmatmul.mubr.f32.gmra.mxu0 %v5449
      %v7253 = vpop.f32.mrf.mxu0
      %v7254 = vadd.f32 %v6694, %v7253
      %v7255 = vpop.f32.mrf.mxu0
      %7256 = vdwg.mxu0
      %7257 = vmatprep.subr.mxu0 0.0
      %7258 = vmatpush1.xpose.msra.mxu0 0.0
      %7259 = vmatprep.subr.mxu0 0.0
      %7260 = vmatpush1.xpose.msra.mxu0 0.0
      %7261 = vmatprep.subr.mxu0 0.0
      %7262 = vmatpush1.xpose.msra.mxu0 0.0
      %7263 = vmatprep.subr.mxu0 0.0
      %7264 = vmatpush1.xpose.msra.mxu0 0.0
      %7265 = vmatprep.subr.mxu0 0.0
      %7266 = vmatpush1.xpose.msra.mxu0 0.0
      %7267 = vmatprep.subr.mxu0 0.0
      %7268 = vmatpush1.xpose.msra.mxu0 0.0
      %7269 = vmatprep.subr.mxu0 0.0
      %7270 = vmatpush1.xpose.msra.mxu0 0.0
      %7271 = vmatprep.subr.mxu0 0.0
      %7272 = vmatpush1.xpose.msra.mxu0 0.0
      %7273 = vmatprep.subr.mxu0 0.0
      %7274 = vmatpush1.xpose.msra.mxu0 0.0
      %7275 = vmatprep.subr.mxu0 0.0
      %7276 = vmatpush1.xpose.msra.mxu0 0.0
      %7277 = vmatprep.subr.mxu0 0.0
      %7278 = vmatpush1.xpose.msra.mxu0 0.0
      %7279 = vmatprep.subr.mxu0 0.0
      %7280 = vmatpush1.xpose.msra.mxu0 0.0
      %7281 = vmatprep.subr.mxu0 0.0
      %7282 = vmatpush1.xpose.msra.mxu0 0.0
      %7283 = vmatprep.subr.mxu0 0.0
      %7284 = vmatpush1.xpose.msra.mxu0 0.0
      %7285 = vmatprep.subr.mxu0 0.0
      %7286 = vmatpush1.xpose.msra.mxu0 0.0
      %7287 = vmatprep.subr.mxu0 0.0
      %7288 = vmatpush1.xpose.msra.mxu0 %v6127
      %7289 = vmatprep.subr.mxu0 0.0
      %7290 = vmatpush2.xpose.msra.mxu0 0.0
      %7291 = vmatprep.subr.mxu0 0.0
      %7292 = vmatpush2.xpose.msra.mxu0 0.0
      %7293 = vmatprep.subr.mxu0 0.0
      %7294 = vmatpush2.xpose.msra.mxu0 0.0
      %7295 = vmatprep.subr.mxu0 0.0
      %7296 = vmatpush2.xpose.msra.mxu0 0.0
      %7297 = vmatprep.subr.mxu0 0.0
      %7298 = vmatpush2.xpose.msra.mxu0 0.0
      %7299 = vmatprep.subr.mxu0 0.0
      %7300 = vmatpush2.xpose.msra.mxu0 0.0
      %7301 = vmatprep.subr.mxu0 0.0
      %7302 = vmatpush2.xpose.msra.mxu0 0.0
      %7303 = vmatprep.subr.mxu0 0.0
      %7304 = vmatpush2.xpose.msra.mxu0 0.0
      %7305 = vmatprep.subr.mxu0 0.0
      %7306 = vmatpush2.xpose.msra.mxu0 0.0
      %7307 = vmatprep.subr.mxu0 0.0
      %7308 = vmatpush2.xpose.msra.mxu0 0.0
      %7309 = vmatprep.subr.mxu0 0.0
      %7310 = vmatpush2.xpose.msra.mxu0 0.0
      %7311 = vmatprep.subr.mxu0 0.0
      %7312 = vmatpush2.xpose.msra.mxu0 0.0
      %7313 = vmatprep.subr.mxu0 0.0
      %7314 = vmatpush2.xpose.msra.mxu0 0.0
      %7315 = vmatprep.subr.mxu0 0.0
      %7316 = vmatpush2.xpose.msra.mxu0 0.0
      %7317 = vmatprep.subr.mxu0 0.0
      %7318 = vmatpush2.xpose.msra.mxu0 0.0
      %7319 = vmatprep.subr.mxu0 0.0
      %7320 = vmatpush2.xpose.msra.mxu0 0.0
      %7321 = vmatprep.mubr.f32.mxu0 0.0
      %7322 = vmatmul.mubr.f32.gmra.mxu0 %v5524
      %v7323 = vpop.f32.mrf.mxu0
      %v7324 = vadd.f32 %v6764, %v7323
      %v7325 = vpop.f32.mrf.mxu0
      %7326 = vdwg.mxu0
      %v7327 = vmul.f32 %v6199, 0.0009765625
      %v7328 = vmul.f32 %v6200, 0.0009765625
      %v7329 = vmul.f32 %v6201, 0.0009765625
      %v7330 = vmul.f32 %v6202, 0.0009765625
      %v7331 = vmul.f32 %v6203, 0.0009765625
      %v7332 = vmul.f32 %v6204, 0.0009765625
      %v7333 = vmul.f32 %v6205, 0.0009765625
      %v7334 = vmul.f32 %v6206, 0.0009765625
      %vm7335 = vcmask 60416
      %7336 = vst.msk [vmem:[%s300] sm:$0xf] %vm7335, %v7327
      %7337 = vst.msk [vmem:[%s300 + $0x4] sm:$0xf] %vm7335, %v7328
      %7338 = vst.msk [vmem:[%s300 + $0x8] sm:$0xf] %vm7335, %v7329
      %7339 = vst.msk [vmem:[%s300 + $0xc] sm:$0xf] %vm7335, %v7330
      %7340 = vst.msk [vmem:[%s300 + $0x10] sm:$0xf] %vm7335, %v7331
      %7341 = vst.msk [vmem:[%s300 + $0x14] sm:$0xf] %vm7335, %v7332
      %7342 = vst.msk [vmem:[%s300 + $0x18] sm:$0xf] %vm7335, %v7333
      %7343 = vst.msk [vmem:[%s300 + $0x1c] sm:$0xf] %vm7335, %v7334
      %v7344 = vmul.f32 %v6834, 0.0009765625
      %v7345 = vmul.f32 %v6904, 0.0009765625
      %v7346 = vmul.f32 %v6974, 0.0009765625
      %v7347 = vmul.f32 %v7044, 0.0009765625
      %v7348 = vmul.f32 %v7114, 0.0009765625
      %v7349 = vmul.f32 %v7184, 0.0009765625
      %v7350 = vmul.f32 %v7254, 0.0009765625
      %v7351 = vmul.f32 %v7324, 0.0009765625
      %7352 = vst.msk [vmem:[%s306] sm:$0xf] %vm7335, %v7344
      %7353 = vst.msk [vmem:[%s306 + $0x4] sm:$0xf] %vm7335, %v7345
      %7354 = vst.msk [vmem:[%s306 + $0x8] sm:$0xf] %vm7335, %v7346
      %7355 = vst.msk [vmem:[%s306 + $0xc] sm:$0xf] %vm7335, %v7347
      %7356 = vst.msk [vmem:[%s306 + $0x10] sm:$0xf] %vm7335, %v7348
      %7357 = vst.msk [vmem:[%s306 + $0x14] sm:$0xf] %vm7335, %v7349
      %7358 = vst.msk [vmem:[%s306 + $0x18] sm:$0xf] %vm7335, %v7350
      %7359 = vst.msk [vmem:[%s306 + $0x1c] sm:$0xf] %vm7335, %v7351
      %s7360 = smul.u32 8, %s17
      %p7361 = scmp.lt.s32.totalorder %s7360, 15
      %s7362 = scalar_select %p7361, %s7360, 15
      %s7363 = smul.addr %s7362, 4
      %s7364 = scalar_lea.vmem %s4, %s7363
      %s7365 = smul.u32 8, %s17
      %p7366 = scmp.lt.s32.totalorder %s7365, 15
      %s7367 = scalar_select %p7366, %s7365, 15
      %s7368 = smul.addr %s7367, 4
      %s7369 = scalar_lea.vmem %s5, %s7368
      // Predicated region
      $region37: #{multi_wavelet_cross_forward.21} parent=35 // pred_check
        %p7370 = pneg %p139
      $region38: #{multi_wavelet_cross_forward.21} parent=35 // pred_check_branch
        %7372 = sbr.rel (%p7370) target = $region40
      $region39: #{multi_wavelet_cross_forward.21} parent=35 // pred_region
        %s7373 = smul.u32 8, %s17
      $region40: #{multi_wavelet_cross_forward.21} parent=35 // pred_fallthru
        _
      // Predicated region
      $region41: #{multi_wavelet_cross_forward.21} parent=35 // pred_check
        %p7374 = pneg %p165
      $region42: #{multi_wavelet_cross_forward.21} parent=35 // pred_check_branch
        %7376 = sbr.rel (%p7374) target = $region44
      $region43: #{multi_wavelet_cross_forward.21} parent=35 // pred_region
        %s7377 = smul.u32 8, %s17
      $region44: #{multi_wavelet_cross_forward.21} parent=35 // pred_fallthru
        _
    $region36: #{multi_wavelet_cross_forward.21} parent=5 // pred_fallthru
      _
    %p7378 = scmp.le.s32.totalorder 2, %s12
    // Predicated region
    $region45: #{multi_wavelet_cross_forward.21} parent=5 // pred_check
      %p7379 = pneg %p7378
    $region46: #{multi_wavelet_cross_forward.21} parent=5 // pred_check_branch
      %7381 = sbr.rel (%p7379) target = $region48
    $region47: #{multi_wavelet_cross_forward.21} parent=5 // pred_region
      %s7382 = ssub.s32 %s12, 2
      // Predicated region
      $region49: #{multi_wavelet_cross_forward.21} parent=47 // pred_check
        %p7383 = pneg %p145
      $region50: #{multi_wavelet_cross_forward.21} parent=47 // pred_check_branch
        %7385 = sbr.rel (%p7383) target = $region52
      $region51: #{multi_wavelet_cross_forward.21} parent=47 // pred_region
        %s7386 = smul.u32 8, %s18
        %p7387 = scmp.lt.s32.totalorder %s7386, 15
        %s7388 = scalar_select %p7387, %s7386, 15
        %s7389 = smul.addr %s7388, 4
        %s7390 = scalar_lea.vmem %s4, %s7389
      $region52: #{multi_wavelet_cross_forward.21} parent=47 // pred_fallthru
        _
      // Predicated region
      $region53: #{multi_wavelet_cross_forward.21} parent=47 // pred_check
        %p7391 = pneg %p171
      $region54: #{multi_wavelet_cross_forward.21} parent=47 // pred_check_branch
        %7393 = sbr.rel (%p7391) target = $region56
      $region55: #{multi_wavelet_cross_forward.21} parent=47 // pred_region
        %s7394 = smul.u32 8, %s18
        %p7395 = scmp.lt.s32.totalorder %s7394, 15
        %s7396 = scalar_select %p7395, %s7394, 15
        %s7397 = smul.addr %s7396, 4
        %s7398 = scalar_lea.vmem %s5, %s7397
      $region56: #{multi_wavelet_cross_forward.21} parent=47 // pred_fallthru
        _
    $region48: #{multi_wavelet_cross_forward.21} parent=5 // pred_fallthru
      _
  $region6: #{multi_wavelet_cross_forward.21} parent=0 // loop_footer
    %s16 = sadd.s32 1, %s12
  $region7: #{multi_wavelet_cross_forward.21} parent=0 // loop_footer_branch
    %11 = sbr.rel target = $region3
  $region8: #{multi_wavelet_cross_forward.21} parent=0 // loop_exit
    _

// kernel: multi_wavelet_cross_forward.26
$region0: #{multi_wavelet_cross_forward.26}
  #allocation0 [shape = 'u32[]', space=smem, size = 0x4, offset = 0x4, fixed_abs, tag = 'smem constant byte address 0x4 - core index']
  #allocation1 [shape = 'u32[144,128]{1,0:T(1,128)}', space=vmem, size = 0x12000, scoped, tag = 'internal scratch']
  %s0 = inlined_call_operand.vmem [shape: f32[16,32], index: 0, kind: input, shape index: {}]
  %s1 = inlined_call_operand.vmem [shape: f32[32,32], index: 1, kind: input, shape index: {}]
  %s2 = inlined_call_operand.vmem [shape: f32[16,32], index: 2, kind: output, shape index: {}]
  %s3 = sld [smem:[#allocation0]]
  $region18: #{multi_wavelet_cross_forward.26} parent=0
    _
  %s5 = ssub.s32 1, %s3
  %s6 = scalar_select 0, %s5, %s3
  // Predicated region
  $region2: #{multi_wavelet_cross_forward.26} parent=0 // pred_check
    _
  $region3: #{multi_wavelet_cross_forward.26} parent=0 // pred_check_branch
    %8 = sbr.rel (0) target = $region5
  $region4: #{multi_wavelet_cross_forward.26} parent=0 // pred_region
    _
  $region5: #{multi_wavelet_cross_forward.26} parent=0 // pred_fallthru
    _
  // Predicated region
  $region6: #{multi_wavelet_cross_forward.26} parent=0 // pred_check
    _
  $region7: #{multi_wavelet_cross_forward.26} parent=0 // pred_check_branch
    %10 = sbr.rel (0) target = $region9
  $region8: #{multi_wavelet_cross_forward.26} parent=0 // pred_region
    _
  $region9: #{multi_wavelet_cross_forward.26} parent=0 // pred_fallthru
    _
  %v11 = vld [vmem:[%s0] sm:$0xff]
  %v12 = vld [vmem:[%s0 + $0x8] sm:$0xff]
  %v13 = vld [vmem:[%s1] sm:$0xff]
  %v14 = vld [vmem:[%s1 + $0x8] sm:$0xff]
  %v15 = vld [vmem:[%s1 + $0x10] sm:$0xff]
  %v16 = vld [vmem:[%s1 + $0x18] sm:$0xff]
  %vm17 = vcmask 261120
  %v19 = vsel %vm17, %v11, 0
  %v22 = vsel %vm17, %v12, 0
  %24 = vmatprep.subr.mxu0 0.0
  %25 = vmatpush1.msra.mxu0 0.0
  %26 = vmatprep.subr.mxu0 0.0
  %27 = vmatpush1.msra.mxu0 0.0
  %28 = vmatprep.subr.mxu0 0.0
  %29 = vmatpush1.msra.mxu0 0.0
  %30 = vmatprep.subr.mxu0 0.0
  %31 = vmatpush1.msra.mxu0 0.0
  %32 = vmatprep.subr.mxu0 0.0
  %33 = vmatpush1.msra.mxu0 0.0
  %34 = vmatprep.subr.mxu0 0.0
  %35 = vmatpush1.msra.mxu0 0.0
  %36 = vmatprep.subr.mxu0 0.0
  %37 = vmatpush1.msra.mxu0 0.0
  %38 = vmatprep.subr.mxu0 0.0
  %39 = vmatpush1.msra.mxu0 0.0
  %40 = vmatprep.subr.mxu0 0.0
  %41 = vmatpush1.msra.mxu0 0.0
  %42 = vmatprep.subr.mxu0 0.0
  %43 = vmatpush1.msra.mxu0 0.0
  %44 = vmatprep.subr.mxu0 0.0
  %45 = vmatpush1.msra.mxu0 0.0
  %46 = vmatprep.subr.mxu0 0.0
  %47 = vmatpush1.msra.mxu0 0.0
  %48 = vmatprep.subr.mxu0 0.0
  %49 = vmatpush1.msra.mxu0 %v16
  %50 = vmatprep.subr.mxu0 0.0
  %51 = vmatpush1.msra.mxu0 %v15
  %52 = vmatprep.subr.mxu0 0.0
  %53 = vmatpush1.msra.mxu0 %v14
  %54 = vmatprep.subr.mxu0 0.0
  %55 = vmatpush1.msra.mxu0 %v13
  %56 = vmatprep.subr.mxu0 0.0
  %57 = vmatpush2.msra.mxu0 0.0
  %58 = vmatprep.subr.mxu0 0.0
  %59 = vmatpush2.msra.mxu0 0.0
  %60 = vmatprep.subr.mxu0 0.0
  %61 = vmatpush2.msra.mxu0 0.0
  %62 = vmatprep.subr.mxu0 0.0
  %63 = vmatpush2.msra.mxu0 0.0
  %64 = vmatprep.subr.mxu0 0.0
  %65 = vmatpush2.msra.mxu0 0.0
  %66 = vmatprep.subr.mxu0 0.0
  %67 = vmatpush2.msra.mxu0 0.0
  %68 = vmatprep.subr.mxu0 0.0
  %69 = vmatpush2.msra.mxu0 0.0
  %70 = vmatprep.subr.mxu0 0.0
  %71 = vmatpush2.msra.mxu0 0.0
  %72 = vmatprep.subr.mxu0 0.0
  %73 = vmatpush2.msra.mxu0 0.0
  %74 = vmatprep.subr.mxu0 0.0
  %75 = vmatpush2.msra.mxu0 0.0
  %76 = vmatprep.subr.mxu0 0.0
  %77 = vmatpush2.msra.mxu0 0.0
  %78 = vmatprep.subr.mxu0 0.0
  %79 = vmatpush2.msra.mxu0 0.0
  %80 = vmatprep.subr.mxu0 0.0
  %81 = vmatpush2.msra.mxu0 0.0
  %82 = vmatprep.subr.mxu0 0.0
  %83 = vmatpush2.msra.mxu0 0.0
  %84 = vmatprep.subr.mxu0 0.0
  %85 = vmatpush2.msra.mxu0 0.0
  %86 = vmatprep.subr.mxu0 0.0
  %87 = vmatpush2.msra.mxu0 0.0
  %88 = vmatprep.mubr.f32.mxu0 0.0
  %89 = vmatmul.mubr.f32.gmra.mxu0 %v19
  %v90 = vpop.f32.mrf.mxu0
  %v91 = vadd.f32 0.0, %v90
  %v92 = vpop.f32.mrf.mxu0
  %93 = vmatprep.mubr.f32.mxu0 0.0
  %94 = vmatmul.mubr.f32.gmra.mxu0 %v22
  %v95 = vpop.f32.mrf.mxu0
  %v96 = vadd.f32 0.0, %v95
  %v97 = vpop.f32.mrf.mxu0
  %98 = vdwg.mxu0
  %99 = vst.msk [vmem:[%s2] sm:$0xff] %vm17, %v91
  %100 = vst.msk [vmem:[%s2 + $0x8] sm:$0xff] %vm17, %v96
  // Predicated region
  $region10: #{multi_wavelet_cross_forward.26} parent=0 // pred_check
    _
  $region11: #{multi_wavelet_cross_forward.26} parent=0 // pred_check_branch
    %102 = sbr.rel (0) target = $region13
  $region12: #{multi_wavelet_cross_forward.26} parent=0 // pred_region
    _
  $region13: #{multi_wavelet_cross_forward.26} parent=0 // pred_fallthru
    _
  // Predicated region
  $region14: #{multi_wavelet_cross_forward.26} parent=0 // pred_check
    _
  $region15: #{multi_wavelet_cross_forward.26} parent=0 // pred_check_branch
    %104 = sbr.rel (0) target = $region17
  $region16: #{multi_wavelet_cross_forward.26} parent=0 // pred_region
    _
  $region17: #{multi_wavelet_cross_forward.26} parent=0 // pred_fallthru
    _

// kernel: multi_wavelet_cross_forward.27
$region0: #{multi_wavelet_cross_forward.27}
  #allocation0 [shape = 'u32[]', space=smem, size = 0x4, offset = 0x4, fixed_abs, tag = 'smem constant byte address 0x4 - core index']
  #allocation1 [shape = 'u32[144,128]{1,0:T(1,128)}', space=vmem, size = 0x12000, scoped, tag = 'internal scratch']
  %s0 = inlined_call_operand.vmem [shape: f32[32,16], index: 0, kind: input, shape index: {}]
  %s1 = inlined_call_operand.vmem [shape: f32[16,32], index: 1, kind: input, shape index: {}]
  %s2 = inlined_call_operand.vmem [shape: f32[1,32], index: 2, kind: input, shape index: {}]
  %s3 = inlined_call_operand.hbm [shape: f32[32,32], index: 3, kind: output, shape index: {}]
  %s4 = sld [smem:[#allocation0]]
  $region22: #{multi_wavelet_cross_forward.27} parent=0
    _
  %s6 = ssub.s32 1, %s4
  %s7 = scalar_select 0, %s6, %s4
  $region1: #{multi_wavelet_cross_forward.27} parent=0
    #allocation2 [shape = 'u8[16384]{0}', space=vmem, size = 0x4000, scoped, tag = 'output window, operand 0, single buffered']
    #allocation3 [shape = 's32[1]{0}', space=sflag, size = 0x4, scoped, tag = 'scoped memory for multi_wavelet_cross_forward.27']
    %8 = vsyncpa [#allocation3], 0
    // Predicated region
    $region2: #{multi_wavelet_cross_forward.27} parent=1 // pred_check
      _
    $region3: #{multi_wavelet_cross_forward.27} parent=1 // pred_check_branch
      %10 = sbr.rel (0) target = $region5
    $region4: #{multi_wavelet_cross_forward.27} parent=1 // pred_region
      _
    $region5: #{multi_wavelet_cross_forward.27} parent=1 // pred_fallthru
      _
    // Predicated region
    $region6: #{multi_wavelet_cross_forward.27} parent=1 // pred_check
      _
    $region7: #{multi_wavelet_cross_forward.27} parent=1 // pred_check_branch
      %12 = sbr.rel (0) target = $region9
    $region8: #{multi_wavelet_cross_forward.27} parent=1 // pred_region
      _
    $region9: #{multi_wavelet_cross_forward.27} parent=1 // pred_fallthru
      _
    // Predicated region
    $region10: #{multi_wavelet_cross_forward.27} parent=1 // pred_check
      _
    $region11: #{multi_wavelet_cross_forward.27} parent=1 // pred_check_branch
      %14 = sbr.rel (0) target = $region13
    $region12: #{multi_wavelet_cross_forward.27} parent=1 // pred_region
      _
    $region13: #{multi_wavelet_cross_forward.27} parent=1 // pred_fallthru
      _
    %v15 = vld [vmem:[%s0] sm:$0xff]
    %v16 = vld [vmem:[%s0 + $0x8] sm:$0xff]
    %v17 = vld [vmem:[%s0 + $0x10] sm:$0xff]
    %v18 = vld [vmem:[%s0 + $0x18] sm:$0xff]
    %v19 = vld [vmem:[%s1] sm:$0xff]
    %v20 = vld [vmem:[%s1 + $0x8] sm:$0xff]
    %v21 = vld [vmem:[%s2] sm:$0x1]
    %v23 = vlaneseq
    %v24 = vshrl.u32 %v23, 7
    %v25 = vsub.s32 0, %v24
    %v26 = vrot.slane %v21, %v25
    %vm28 = vcmask 130048
    %v30 = vsel %vm28, %v15, 0
    %v33 = vsel %vm28, %v16, 0
    %v36 = vsel %vm28, %v17, 0
    %v39 = vsel %vm28, %v18, 0
    %41 = vmatprep.subr.mxu0 0.0
    %42 = vmatpush1.msra.mxu0 0.0
    %43 = vmatprep.subr.mxu0 0.0
    %44 = vmatpush1.msra.mxu0 0.0
    %45 = vmatprep.subr.mxu0 0.0
    %46 = vmatpush1.msra.mxu0 0.0
    %47 = vmatprep.subr.mxu0 0.0
    %48 = vmatpush1.msra.mxu0 0.0
    %49 = vmatprep.subr.mxu0 0.0
    %50 = vmatpush1.msra.mxu0 0.0
    %51 = vmatprep.subr.mxu0 0.0
    %52 = vmatpush1.msra.mxu0 0.0
    %53 = vmatprep.subr.mxu0 0.0
    %54 = vmatpush1.msra.mxu0 0.0
    %55 = vmatprep.subr.mxu0 0.0
    %56 = vmatpush1.msra.mxu0 0.0
    %57 = vmatprep.subr.mxu0 0.0
    %58 = vmatpush1.msra.mxu0 0.0
    %59 = vmatprep.subr.mxu0 0.0
    %60 = vmatpush1.msra.mxu0 0.0
    %61 = vmatprep.subr.mxu0 0.0
    %62 = vmatpush1.msra.mxu0 0.0
    %63 = vmatprep.subr.mxu0 0.0
    %64 = vmatpush1.msra.mxu0 0.0
    %65 = vmatprep.subr.mxu0 0.0
    %66 = vmatpush1.msra.mxu0 0.0
    %67 = vmatprep.subr.mxu0 0.0
    %68 = vmatpush1.msra.mxu0 0.0
    %69 = vmatprep.subr.mxu0 0.0
    %70 = vmatpush1.msra.mxu0 %v20
    %71 = vmatprep.subr.mxu0 0.0
    %72 = vmatpush1.msra.mxu0 %v19
    %73 = vmatprep.subr.mxu0 0.0
    %74 = vmatpush2.msra.mxu0 0.0
    %75 = vmatprep.subr.mxu0 0.0
    %76 = vmatpush2.msra.mxu0 0.0
    %77 = vmatprep.subr.mxu0 0.0
    %78 = vmatpush2.msra.mxu0 0.0
    %79 = vmatprep.subr.mxu0 0.0
    %80 = vmatpush2.msra.mxu0 0.0
    %81 = vmatprep.subr.mxu0 0.0
    %82 = vmatpush2.msra.mxu0 0.0
    %83 = vmatprep.subr.mxu0 0.0
    %84 = vmatpush2.msra.mxu0 0.0
    %85 = vmatprep.subr.mxu0 0.0
    %86 = vmatpush2.msra.mxu0 0.0
    %87 = vmatprep.subr.mxu0 0.0
    %88 = vmatpush2.msra.mxu0 0.0
    %89 = vmatprep.subr.mxu0 0.0
    %90 = vmatpush2.msra.mxu0 0.0
    %91 = vmatprep.subr.mxu0 0.0
    %92 = vmatpush2.msra.mxu0 0.0
    %93 = vmatprep.subr.mxu0 0.0
    %94 = vmatpush2.msra.mxu0 0.0
    %95 = vmatprep.subr.mxu0 0.0
    %96 = vmatpush2.msra.mxu0 0.0
    %97 = vmatprep.subr.mxu0 0.0
    %98 = vmatpush2.msra.mxu0 0.0
    %99 = vmatprep.subr.mxu0 0.0
    %100 = vmatpush2.msra.mxu0 0.0
    %101 = vmatprep.subr.mxu0 0.0
    %102 = vmatpush2.msra.mxu0 0.0
    %103 = vmatprep.subr.mxu0 0.0
    %104 = vmatpush2.msra.mxu0 0.0
    %105 = vmatprep.mubr.f32.mxu0 0.0
    %106 = vmatmul.mubr.f32.gmra.mxu0 %v30
    %v107 = vpop.f32.mrf.mxu0
    %v108 = vadd.f32 %v26, %v107
    %v109 = vpop.f32.mrf.mxu0
    %110 = vmatprep.mubr.f32.mxu0 0.0
    %111 = vmatmul.mubr.f32.gmra.mxu0 %v33
    %v112 = vpop.f32.mrf.mxu0
    %v113 = vadd.f32 %v26, %v112
    %v114 = vpop.f32.mrf.mxu0
    %115 = vmatprep.mubr.f32.mxu0 0.0
    %116 = vmatmul.mubr.f32.gmra.mxu0 %v36
    %v117 = vpop.f32.mrf.mxu0
    %v118 = vadd.f32 %v26, %v117
    %v119 = vpop.f32.mrf.mxu0
    %120 = vmatprep.mubr.f32.mxu0 0.0
    %121 = vmatmul.mubr.f32.gmra.mxu0 %v39
    %v122 = vpop.f32.mrf.mxu0
    %v123 = vadd.f32 %v26, %v122
    %v124 = vpop.f32.mrf.mxu0
    %125 = vdwg.mxu0
    %vm126 = vcmask 261120
    %127 = vst.msk [vmem:[#allocation2] sm:$0xff] %vm126, %v108
    %128 = vst.msk [vmem:[#allocation2 + $0x8] sm:$0xff] %vm126, %v113
    %129 = vst.msk [vmem:[#allocation2 + $0x10] sm:$0xff] %vm126, %v118
    %130 = vst.msk [vmem:[#allocation2 + $0x18] sm:$0xff] %vm126, %v123
    // Predicated region
    $region14: #{multi_wavelet_cross_forward.27} parent=1 // pred_check
      _
    $region15: #{multi_wavelet_cross_forward.27} parent=1 // pred_check_branch
      %132 = sbr.rel (0) target = $region17
    $region16: #{multi_wavelet_cross_forward.27} parent=1 // pred_region
      %s134 = ssub.s32 512, 512
      %135 = vsyncadd [#allocation3], %s134
      %s136 = sshll.u32 [#allocation2], 4
      %s137 = int_to_ptr.vmem [resolvable:$true] %s136
      %142 = dma.vmem_to_hbm [thread:$0]  %s137, 512, %s3, [#allocation3], 128, 128, 8
    $region17: #{multi_wavelet_cross_forward.27} parent=1 // pred_fallthru
      _
    // Predicated region
    $region18: #{multi_wavelet_cross_forward.27} parent=1 // pred_check
      _
    $region19: #{multi_wavelet_cross_forward.27} parent=1 // pred_check_branch
      %144 = sbr.rel (0) target = $region21
    $region20: #{multi_wavelet_cross_forward.27} parent=1 // pred_region
      %145 = dma.done [#allocation3], 512
    $region21: #{multi_wavelet_cross_forward.27} parent=1 // pred_fallthru
      _
    %146 = vsyncpa [#allocation3], 1

</llo_original>
